<compile_context>
chip_gen: v7x
topology: tpu7x:2x2x1
jax: 0.10.0
libtpu: 0.0.40
codegen_flags: <defaults>
</compile_context>

<pallas_src>
import functools

import jax
import jax.numpy as jnp
from jax import lax
from jax.experimental import pallas as pl
from jax.experimental.pallas import tpu as pltpu


def _round_up(x, m):
    return ((x + m - 1) // m) * m


def _cdiv(a, b):
    return (a + b - 1) // b


def _physical_vmem_bytes():
    try:
        return int(pltpu.get_tpu_info().vmem_capacity_bytes)
    except Exception:
        return 64 * 1024 * 1024  # conservative (v7x per-TC VMEM)


# ----------------------------------------------------------------------------------
# Pallas kernel: 3x3 conv (padding=1, stride 1 or 2) as 9 statically-unrolled matmuls.
# ----------------------------------------------------------------------------------
def _conv3x3_kernel(*refs, stride, pitch, plane_len, tm, relu, has_add):
    # planes_ref: (nplanes * plane_len, Cin) f32  — whole padded+flattened image (VMEM resident)
    # w_ref:      (9, Cin, Cout_pad)         bf16 — all 3x3 tap weights (VMEM resident)
    # b_ref:      (1, Cout_pad)              f32
    # add_ref:    (tm, Cout_pad)             f32  — optional fused residual input
    # o_ref:      (tm, Cout_pad)             f32  — one tile of flattened output rows
    if has_add:
        planes_ref, w_ref, b_ref, add_ref, o_ref = refs
    else:
        planes_ref, w_ref, b_ref, o_ref = refs
        add_ref = None

    row0 = pl.multiple_of(pl.program_id(1) * tm, 8)   # output row-tile start (tm % 8 == 0)

    acc = None
    for t in range(9):                                # statically unrolled tap reduction
        kh, kw = t // 3, t % 3
        if stride == 1:
            start = row0 + (kh * pitch + kw)
        else:  # stride == 2: pick the spatial-parity plane, then shift inside it
            base = ((kh % 2) * 2 + (kw % 2)) * plane_len
            start = base + row0 + ((kh // 2) * pitch + (kw // 2))
        lhs = planes_ref[pl.ds(start, tm), :].astype(jnp.bfloat16)
        d = jnp.dot(lhs, w_ref[t], preferred_element_type=jnp.float32)
        acc = d if acc is None else acc + d

    res = acc + b_ref[...]
    if has_add:
        res = res + add_ref[...]
    if relu:
        res = jnp.maximum(res, 0.0)
    o_ref[...] = res.astype(o_ref.dtype)


# ----------------------------------------------------------------------------------
# Wrapper: 3x3 conv, padding=1, stride in {1, 2}, NHWC activations, PyTorch OIHW weights.
# ----------------------------------------------------------------------------------
def conv3x3_nhwc(x, weight, bias, *, stride=1, relu=False, add_raw=None,
                 return_raw=False, tm_target=512):
    """x: [N, H, W, Cin] f32, weight: [Cout, Cin, 3, 3], bias: [Cout].

    Returns [N, Ho, Wo, Cout] f32, or (if return_raw) the kernel-layout slab
    (N * m_pad, cout_pad) that a subsequent call with matching geometry can consume as
    `add_raw` (fused residual add).
    """
    N, H, W, Cin = x.shape
    Cout = weight.shape[0]
    assert weight.shape == (Cout, Cin, 3, 3) and stride in (1, 2)
    Ho = (H + 2 - 3) // stride + 1
    Wo = (W + 2 - 3) // stride + 1

    # Glue (pure data movement): zero-pad and spatially flatten the input so every tap is a
    # flat shifted read; stride 2 additionally splits into the 4 spatial-parity planes.
    if stride == 1:
        pitch, nplanes, ph = Wo + 2, 1, Ho + 2
        x_pad = jnp.pad(x, ((0, 0), (1, 1), (1, 1), (0, 0)))
        planes = x_pad[:, None]                                        # (N, 1, ph, pitch, Cin)
        off_max = 2 * pitch + 2
    else:
        pitch, nplanes, ph = Wo + 1, 4, Ho + 1
        x_pad = jnp.pad(x, ((0, 0), (1, 2 * Ho + 1 - H), (1, 2 * Wo + 1 - W), (0, 0)))
        planes = jnp.stack([x_pad[:, a::2, b::2, :][:, :ph, :pitch, :]
                            for a in (0, 1) for b in (0, 1)], axis=1)  # (N, 4, ph, pitch, Cin)
        off_max = pitch + 1

    m_img = Ho * pitch                               # flattened output rows per image
    # Balanced row tiles (no ragged last tile); guarantee >=2 parallel grid steps when
    # N == 1 so both v7x TensorCores get work.
    min_tiles = 2 if N == 1 else 1
    tiles = max(_cdiv(m_img, tm_target), min_tiles)
    tm = min(_round_up(_cdiv(m_img, tiles), 8), _round_up(m_img, 8))
    row_tiles = _cdiv(m_img, tm)
    m_pad = row_tiles * tm
    plane_len = _round_up(m_pad + off_max, 8)        # every tap read stays inside its plane

    planes = planes.reshape(N, nplanes, ph * pitch, Cin)
    planes = jnp.pad(planes, ((0, 0), (0, 0), (0, plane_len - ph * pitch), (0, 0)))
    planes = planes.reshape(N * nplanes * plane_len, Cin).astype(jnp.float32)

    cout_pad = _round_up(Cout, 128)                  # lane-dense output stores
    w_taps = jnp.transpose(weight, (2, 3, 1, 0)).reshape(9, Cin, Cout)
    w_taps = jnp.pad(w_taps, ((0, 0), (0, 0), (0, cout_pad - Cout))).astype(jnp.bfloat16)
    b_row = jnp.pad(bias, (0, cout_pad - Cout)).reshape(1, cout_pad).astype(jnp.float32)

    grid = (N, row_tiles)
    has_add = add_raw is not None

    kernel = functools.partial(_conv3x3_kernel, stride=stride, pitch=pitch,
                               plane_len=plane_len, tm=tm, relu=relu, has_add=has_add)

    in_specs = [
        pl.BlockSpec((nplanes * plane_len, Cin), lambda n, i: (n, 0)),     # resident planes
        pl.BlockSpec((9, Cin, cout_pad), lambda n, i: (0, 0, 0)),          # resident weights
        pl.BlockSpec((1, cout_pad), lambda n, i: (0, 0)),                  # resident bias
    ]
    inputs = [planes, w_taps, b_row]
    io_aliases = {}
    if has_add:
        assert add_raw.shape == (N * m_pad, cout_pad) and add_raw.dtype == jnp.float32
        in_specs.append(pl.BlockSpec((tm, cout_pad), lambda n, i: (n * row_tiles + i, 0)))
        inputs.append(add_raw)
        io_aliases = {3: 0}                          # donate the residual slab to the output

    out_spec = pl.BlockSpec((tm, cout_pad), lambda n, i: (n * row_tiles + i, 0))

    flops = 2 * N * m_img * 9 * Cin * Cout
    bytes_accessed = (planes.size * 4 + w_taps.size * 2 + b_row.size * 4
                      + (2 if has_add else 1) * N * m_pad * cout_pad * 4)
    vmem_est = (2 * nplanes * plane_len * Cin * 4    # resident planes (double-buffered)
                + 2 * 9 * Cin * cout_pad * 2         # resident tap weights
                + (5 if has_add else 3) * tm * cout_pad * 4   # out tile / acc temp / add tile
                + 2 * cout_pad * 4)
    vmem_limit = int(min(int(0.9 * _physical_vmem_bytes()),
                         max(32 * 1024 * 1024, 2 * vmem_est)))

    out = pl.pallas_call(
        kernel,
        out_shape=jax.ShapeDtypeStruct((N * m_pad, cout_pad), jnp.float32),
        grid=grid,
        in_specs=in_specs,
        out_specs=out_spec,
        input_output_aliases=io_aliases,
        compiler_params=pltpu.CompilerParams(
            dimension_semantics=("parallel", "parallel"),
            vmem_limit_bytes=vmem_limit),
        cost_estimate=pl.CostEstimate(flops=int(flops), transcendentals=0,
                                      bytes_accessed=int(bytes_accessed)),
    )(*inputs)

    if return_raw:
        return out
    out = out.reshape(N, m_pad, cout_pad)[:, :m_img, :Cout]
    return out.reshape(N, Ho, pitch, Cout)[:, :, :Wo, :]


# ----------------------------------------------------------------------------------
# Adapter forward (Pallas) — sk=False, use_conv=True, dims=2 (the module defaults).
# ----------------------------------------------------------------------------------
def pixel_unshuffle(x, r):
    """nn.PixelUnshuffle(r): [N, C, H, W] -> [N, C*r*r, H//r, W//r]."""
    N, C, H, W = x.shape
    x = x.reshape(N, C, H // r, r, W // r, r)
    x = jnp.transpose(x, (0, 1, 3, 5, 2, 4))
    return x.reshape(N, C * r * r, H // r, W // r)


def adapter_forward(x, params, channels, nums_rb, *, tm_target=512):
    """Adapter.forward: returns a list of NCHW features (one per entry of `channels`)."""
    x = pixel_unshuffle(x, 8)
    x = jnp.transpose(x, (0, 2, 3, 1))                 # NHWC internally (hoisted transposes)
    x = conv3x3_nhwc(x, params["conv_in"]["w"], params["conv_in"]["b"], tm_target=tm_target)
    feats, idx = [], 0
    for i in range(len(channels)):
        for j in range(nums_rb):
            blk = params["body"][idx]; idx += 1
            if i != 0 and j == 0:                      # ResnetBlock(down=True): stride-2 conv
                x = conv3x3_nhwc(x, blk["down"]["w"], blk["down"]["b"], stride=2,
                                 tm_target=tm_target)
            x = conv3x3_nhwc(x, blk["in_conv"]["w"], blk["in_conv"]["b"], tm_target=tm_target)
            h = conv3x3_nhwc(x, blk["block1"]["w"], blk["block1"]["b"], relu=True,
                             tm_target=tm_target)
            # block2 stays in the kernel's raw padded layout; the ResnetBlock residual add
            # `h + skep(x)` is fused into the skep conv's finalize (buffer donated).
            h_raw = conv3x3_nhwc(h, blk["block2"]["w"], blk["block2"]["b"],
                                 return_raw=True, tm_target=tm_target)
            x = conv3x3_nhwc(x, blk["skep"]["w"], blk["skep"]["b"], add_raw=h_raw,
                             tm_target=tm_target)
        feats.append(jnp.transpose(x, (0, 3, 1, 2)))   # back to NCHW like the module
    return feats
# TODO(synk): Downsample(use_conv=False) -> AvgPool2d and the 1-D/3-D conv_nd branches are not
#             implemented; the Adapter defaults (use_conv=True, dims=2, sk=False) are covered.


# ----------------------------------------------------------------------------------
# Parameter construction + pure-JAX reference (for the correctness check).
# ----------------------------------------------------------------------------------
def _init_conv(key, cin, cout, k=3):
    kw, kb = jax.random.split(key)
    bound = 1.0 / (cin * k * k) ** 0.5
    return {"w": jax.random.uniform(kw, (cout, cin, k, k), jnp.float32, -bound, bound),
            "b": jax.random.uniform(kb, (cout,), jnp.float32, -bound, bound)}


def init_adapter_params(key, channels, nums_rb, cin):
    n_blocks = len(channels) * nums_rb
    keys = list(jax.random.split(key, 1 + 5 * n_blocks))
    params = {"conv_in": _init_conv(keys[0], cin, channels[0]), "body": []}
    kidx = 1
    for i in range(len(channels)):
        for j in range(nums_rb):
            down = (i != 0 and j == 0)
            in_c = channels[i - 1] if down else channels[i]
            out_c = channels[i]
            blk = {}
            if down:  # Downsample(in_c, use_conv=True): 3x3 stride-2 conv, in_c -> in_c
                blk["down"] = _init_conv(keys[kidx], in_c, in_c)
            kidx += 1
            # sk=False: in_conv and skep always present.  NOTE: the PyTorch module constructs
            # skep as Conv2d(in_c, out_c) but applies it to the post-in_conv activation, so it
            # is only well defined when in_c == out_c (the demo config keeps channels equal).
            blk["in_conv"] = _init_conv(keys[kidx], in_c, out_c); kidx += 1
            blk["block1"] = _init_conv(keys[kidx], out_c, out_c); kidx += 1
            blk["block2"] = _init_conv(keys[kidx], out_c, out_c); kidx += 1
            blk["skep"] = _init_conv(keys[kidx], in_c, out_c); kidx += 1
            params["body"].append(blk)
    return params


def _ref_conv(x, w, b, *, stride=1, relu=False, dtype=jnp.float32):
    y = lax.conv_general_dilated(x.astype(dtype), w.astype(dtype), (stride, stride),
                                 ((1, 1), (1, 1)),
                                 dimension_numbers=("NCHW", "OIHW", "NCHW"),
                                 preferred_element_type=jnp.float32)
    y = y + b[None, :, None, None].astype(jnp.float32)
    return jnp.maximum(y, 0.0) if relu else y


def adapter_forward_ref(x, params, channels, nums_rb, dtype=jnp.float32):
    x = pixel_unshuffle(x, 8)
    x = _ref_conv(x, params["conv_in"]["w"], params["conv_in"]["b"], dtype=dtype)
    feats, idx = [], 0
    for i in range(len(channels)):
        for j in range(nums_rb):
            blk = params["body"][idx]; idx += 1
            if i != 0 and j == 0:
                x = _ref_conv(x, blk["down"]["w"], blk["down"]["b"], stride=2, dtype=dtype)
            x = _ref_conv(x, blk["in_conv"]["w"], blk["in_conv"]["b"], dtype=dtype)
            h = _ref_conv(x, blk["block1"]["w"], blk["block1"]["b"], relu=True, dtype=dtype)
            h = _ref_conv(h, blk["block2"]["w"], blk["block2"]["b"], dtype=dtype)
            x = h + _ref_conv(x, blk["skep"]["w"], blk["skep"]["b"], dtype=dtype)
        feats.append(x)
    return feats


if __name__ == "__main__":
    key = jax.random.PRNGKey(0)
    k_x, k_p = jax.random.split(key)

    # Small Adapter config: PixelUnshuffle(8) turns [2, 1, 64, 64] into [2, 64, 8, 8] (cin=64);
    # two pyramid levels so the second ResnetBlock exercises the stride-2 Downsample conv.
    channels = [8, 8]
    nums_rb = 1
    cin = 64
    x = jax.random.normal(k_x, (2, 1, 64, 64), dtype=jnp.float32)
    params = init_adapter_params(k_p, channels, nums_rb, cin)

    fwd = jax.jit(functools.partial(adapter_forward, channels=channels, nums_rb=nums_rb))
    feats = jax.block_until_ready(fwd(x, params))

    # References: exact f32 module semantics, plus a bf16-operand variant matching the
    # kernel's MXU precision (bf16 inputs, f32 accumulation).
    ref_f32 = adapter_forward_ref(x, params, channels, nums_rb, dtype=jnp.float32)
    ref_bf16 = adapter_forward_ref(x, params, channels, nums_rb, dtype=jnp.bfloat16)

    expected_shapes = [(2, 8, 8, 8), (2, 8, 4, 4)]
    assert len(feats) == len(channels)
    for f, rb, rf, es in zip(feats, ref_bf16, ref_f32, expected_shapes):
        assert f.shape == es, (f.shape, es)
        # tight check vs the precision-matched reference (catches any indexing/layout bug)
        assert jnp.allclose(f, rb, atol=1e-2, rtol=1e-2), float(jnp.max(jnp.abs(f - rb)))
        # loose check vs the pure-f32 module semantics (bf16 MXU quantization tolerance)
        assert jnp.allclose(f, rf, atol=1e-1, rtol=1e-1), float(jnp.max(jnp.abs(f - rf)))
    print("KERNEL_OK")
</pallas_src>

<mosaic_0001>
module attributes {stable_mosaic.version = 11 : i64} {
  func.func @_conv3x3_kernel(%arg0: i32, %arg1: i32, %arg2: memref<104x64xf32, #tpu.memory_space<vmem>>, %arg3: memref<9x64x128xbf16, #tpu.memory_space<vmem>>, %arg4: memref<1x128xf32, #tpu.memory_space<vmem>>, %arg5: memref<80x128xf32, #tpu.memory_space<vmem>>) attributes {dimension_semantics = [#tpu.dimension_semantics<parallel>, #tpu.dimension_semantics<parallel>], iteration_bounds = array<i64: 2, 1>, scalar_prefetch = 0 : i64, scratch_operands = 0 : i64, tpu.core_type = #tpu.core_type<tc>, window_params = [{transform_indices = @transform_0, window_bounds = array<i64: 104, 64>}, {pipeline_mode = #tpu.pipeline_mode<synchronous>, transform_indices = @transform_1, window_bounds = array<i64: 9, 64, 128>}, {pipeline_mode = #tpu.pipeline_mode<synchronous>, transform_indices = @transform_2, window_bounds = array<i64: 1, 128>}, {transform_indices = @transform_3, window_bounds = array<i64: 80, 128>}]} {
    %c80_i32 = arith.constant 80 : i32
    %0 = arith.muli %arg1, %c80_i32 : i32
    %1 = tpu.assume_multiple %0, 8 : i32
    %c0_i32 = arith.constant 0 : i32
    %2 = arith.addi %1, %c0_i32 : i32
    %3 = arith.index_cast %2 : i32 to index
    %c0 = arith.constant 0 : index
    %4 = vector.load %arg2[%3, %c0] : memref<104x64xf32, #tpu.memory_space<vmem>>, vector<80x64xf32>
    %5 = arith.truncf %4 : vector<80x64xf32> to vector<80x64xbf16>
    %c0_0 = arith.constant 0 : index
    %c0_1 = arith.constant 0 : index
    %c0_2 = arith.constant 0 : index
    %6 = vector.load %arg3[%c0_0, %c0_1, %c0_2] : memref<9x64x128xbf16, #tpu.memory_space<vmem>>, vector<1x64x128xbf16>
    %7 = vector.shape_cast %6 : vector<1x64x128xbf16> to vector<64x128xbf16>
    %cst = arith.constant dense<0.000000e+00> : vector<80x128xf32>
    %8 = tpu.matmul %5, %7, %cst {dimension_numbers = #tpu.dot_dimension_numbers<[1], [0], [0], [1], [0, 0, 1, 1], [], []>} : vector<80x64xbf16>, vector<64x128xbf16>, vector<80x128xf32> -> vector<80x128xf32>
    %c1_i32 = arith.constant 1 : i32
    %9 = arith.addi %1, %c1_i32 : i32
    %10 = arith.index_cast %9 : i32 to index
    %c0_3 = arith.constant 0 : index
    %11 = vector.load %arg2[%10, %c0_3] : memref<104x64xf32, #tpu.memory_space<vmem>>, vector<80x64xf32>
    %12 = arith.truncf %11 : vector<80x64xf32> to vector<80x64xbf16>
    %c1 = arith.constant 1 : index
    %c0_4 = arith.constant 0 : index
    %c0_5 = arith.constant 0 : index
    %13 = vector.load %arg3[%c1, %c0_4, %c0_5] : memref<9x64x128xbf16, #tpu.memory_space<vmem>>, vector<1x64x128xbf16>
    %14 = vector.shape_cast %13 : vector<1x64x128xbf16> to vector<64x128xbf16>
    %cst_6 = arith.constant dense<0.000000e+00> : vector<80x128xf32>
    %15 = tpu.matmul %12, %14, %cst_6 {dimension_numbers = #tpu.dot_dimension_numbers<[1], [0], [0], [1], [0, 0, 1, 1], [], []>} : vector<80x64xbf16>, vector<64x128xbf16>, vector<80x128xf32> -> vector<80x128xf32>
    %16 = arith.addf %8, %15 : vector<80x128xf32>
    %c2_i32 = arith.constant 2 : i32
    %17 = arith.addi %1, %c2_i32 : i32
    %18 = arith.index_cast %17 : i32 to index
    %c0_7 = arith.constant 0 : index
    %19 = vector.load %arg2[%18, %c0_7] : memref<104x64xf32, #tpu.memory_space<vmem>>, vector<80x64xf32>
    %20 = arith.truncf %19 : vector<80x64xf32> to vector<80x64xbf16>
    %c2 = arith.constant 2 : index
    %c0_8 = arith.constant 0 : index
    %c0_9 = arith.constant 0 : index
    %21 = vector.load %arg3[%c2, %c0_8, %c0_9] : memref<9x64x128xbf16, #tpu.memory_space<vmem>>, vector<1x64x128xbf16>
    %22 = vector.shape_cast %21 : vector<1x64x128xbf16> to vector<64x128xbf16>
    %cst_10 = arith.constant dense<0.000000e+00> : vector<80x128xf32>
    %23 = tpu.matmul %20, %22, %cst_10 {dimension_numbers = #tpu.dot_dimension_numbers<[1], [0], [0], [1], [0, 0, 1, 1], [], []>} : vector<80x64xbf16>, vector<64x128xbf16>, vector<80x128xf32> -> vector<80x128xf32>
    %24 = arith.addf %16, %23 : vector<80x128xf32>
    %c10_i32 = arith.constant 10 : i32
    %25 = arith.addi %1, %c10_i32 : i32
    %26 = arith.index_cast %25 : i32 to index
    %c0_11 = arith.constant 0 : index
    %27 = vector.load %arg2[%26, %c0_11] : memref<104x64xf32, #tpu.memory_space<vmem>>, vector<80x64xf32>
    %28 = arith.truncf %27 : vector<80x64xf32> to vector<80x64xbf16>
    %c3 = arith.constant 3 : index
    %c0_12 = arith.constant 0 : index
    %c0_13 = arith.constant 0 : index
    %29 = vector.load %arg3[%c3, %c0_12, %c0_13] : memref<9x64x128xbf16, #tpu.memory_space<vmem>>, vector<1x64x128xbf16>
    %30 = vector.shape_cast %29 : vector<1x64x128xbf16> to vector<64x128xbf16>
    %cst_14 = arith.constant dense<0.000000e+00> : vector<80x128xf32>
    %31 = tpu.matmul %28, %30, %cst_14 {dimension_numbers = #tpu.dot_dimension_numbers<[1], [0], [0], [1], [0, 0, 1, 1], [], []>} : vector<80x64xbf16>, vector<64x128xbf16>, vector<80x128xf32> -> vector<80x128xf32>
    %32 = arith.addf %24, %31 : vector<80x128xf32>
    %c11_i32 = arith.constant 11 : i32
    %33 = arith.addi %1, %c11_i32 : i32
    %34 = arith.index_cast %33 : i32 to index
    %c0_15 = arith.constant 0 : index
    %35 = vector.load %arg2[%34, %c0_15] : memref<104x64xf32, #tpu.memory_space<vmem>>, vector<80x64xf32>
    %36 = arith.truncf %35 : vector<80x64xf32> to vector<80x64xbf16>
    %c4 = arith.constant 4 : index
    %c0_16 = arith.constant 0 : index
    %c0_17 = arith.constant 0 : index
    %37 = vector.load %arg3[%c4, %c0_16, %c0_17] : memref<9x64x128xbf16, #tpu.memory_space<vmem>>, vector<1x64x128xbf16>
    %38 = vector.shape_cast %37 : vector<1x64x128xbf16> to vector<64x128xbf16>
    %cst_18 = arith.constant dense<0.000000e+00> : vector<80x128xf32>
    %39 = tpu.matmul %36, %38, %cst_18 {dimension_numbers = #tpu.dot_dimension_numbers<[1], [0], [0], [1], [0, 0, 1, 1], [], []>} : vector<80x64xbf16>, vector<64x128xbf16>, vector<80x128xf32> -> vector<80x128xf32>
    %40 = arith.addf %32, %39 : vector<80x128xf32>
    %c12_i32 = arith.constant 12 : i32
    %41 = arith.addi %1, %c12_i32 : i32
    %42 = arith.index_cast %41 : i32 to index
    %c0_19 = arith.constant 0 : index
    %43 = vector.load %arg2[%42, %c0_19] : memref<104x64xf32, #tpu.memory_space<vmem>>, vector<80x64xf32>
    %44 = arith.truncf %43 : vector<80x64xf32> to vector<80x64xbf16>
    %c5 = arith.constant 5 : index
    %c0_20 = arith.constant 0 : index
    %c0_21 = arith.constant 0 : index
    %45 = vector.load %arg3[%c5, %c0_20, %c0_21] : memref<9x64x128xbf16, #tpu.memory_space<vmem>>, vector<1x64x128xbf16>
    %46 = vector.shape_cast %45 : vector<1x64x128xbf16> to vector<64x128xbf16>
    %cst_22 = arith.constant dense<0.000000e+00> : vector<80x128xf32>
    %47 = tpu.matmul %44, %46, %cst_22 {dimension_numbers = #tpu.dot_dimension_numbers<[1], [0], [0], [1], [0, 0, 1, 1], [], []>} : vector<80x64xbf16>, vector<64x128xbf16>, vector<80x128xf32> -> vector<80x128xf32>
    %48 = arith.addf %40, %47 : vector<80x128xf32>
    %c20_i32 = arith.constant 20 : i32
    %49 = arith.addi %1, %c20_i32 : i32
    %50 = arith.index_cast %49 : i32 to index
    %c0_23 = arith.constant 0 : index
    %51 = vector.load %arg2[%50, %c0_23] : memref<104x64xf32, #tpu.memory_space<vmem>>, vector<80x64xf32>
    %52 = arith.truncf %51 : vector<80x64xf32> to vector<80x64xbf16>
    %c6 = arith.constant 6 : index
    %c0_24 = arith.constant 0 : index
    %c0_25 = arith.constant 0 : index
    %53 = vector.load %arg3[%c6, %c0_24, %c0_25] : memref<9x64x128xbf16, #tpu.memory_space<vmem>>, vector<1x64x128xbf16>
    %54 = vector.shape_cast %53 : vector<1x64x128xbf16> to vector<64x128xbf16>
    %cst_26 = arith.constant dense<0.000000e+00> : vector<80x128xf32>
    %55 = tpu.matmul %52, %54, %cst_26 {dimension_numbers = #tpu.dot_dimension_numbers<[1], [0], [0], [1], [0, 0, 1, 1], [], []>} : vector<80x64xbf16>, vector<64x128xbf16>, vector<80x128xf32> -> vector<80x128xf32>
    %56 = arith.addf %48, %55 : vector<80x128xf32>
    %c21_i32 = arith.constant 21 : i32
    %57 = arith.addi %1, %c21_i32 : i32
    %58 = arith.index_cast %57 : i32 to index
    %c0_27 = arith.constant 0 : index
    %59 = vector.load %arg2[%58, %c0_27] : memref<104x64xf32, #tpu.memory_space<vmem>>, vector<80x64xf32>
    %60 = arith.truncf %59 : vector<80x64xf32> to vector<80x64xbf16>
    %c7 = arith.constant 7 : index
    %c0_28 = arith.constant 0 : index
    %c0_29 = arith.constant 0 : index
    %61 = vector.load %arg3[%c7, %c0_28, %c0_29] : memref<9x64x128xbf16, #tpu.memory_space<vmem>>, vector<1x64x128xbf16>
    %62 = vector.shape_cast %61 : vector<1x64x128xbf16> to vector<64x128xbf16>
    %cst_30 = arith.constant dense<0.000000e+00> : vector<80x128xf32>
    %63 = tpu.matmul %60, %62, %cst_30 {dimension_numbers = #tpu.dot_dimension_numbers<[1], [0], [0], [1], [0, 0, 1, 1], [], []>} : vector<80x64xbf16>, vector<64x128xbf16>, vector<80x128xf32> -> vector<80x128xf32>
    %64 = arith.addf %56, %63 : vector<80x128xf32>
    %c22_i32 = arith.constant 22 : i32
    %65 = arith.addi %1, %c22_i32 : i32
    %66 = arith.index_cast %65 : i32 to index
    %c0_31 = arith.constant 0 : index
    %67 = vector.load %arg2[%66, %c0_31] : memref<104x64xf32, #tpu.memory_space<vmem>>, vector<80x64xf32>
    %68 = arith.truncf %67 : vector<80x64xf32> to vector<80x64xbf16>
    %c8 = arith.constant 8 : index
    %c0_32 = arith.constant 0 : index
    %c0_33 = arith.constant 0 : index
    %69 = vector.load %arg3[%c8, %c0_32, %c0_33] : memref<9x64x128xbf16, #tpu.memory_space<vmem>>, vector<1x64x128xbf16>
    %70 = vector.shape_cast %69 : vector<1x64x128xbf16> to vector<64x128xbf16>
    %cst_34 = arith.constant dense<0.000000e+00> : vector<80x128xf32>
    %71 = tpu.matmul %68, %70, %cst_34 {dimension_numbers = #tpu.dot_dimension_numbers<[1], [0], [0], [1], [0, 0, 1, 1], [], []>} : vector<80x64xbf16>, vector<64x128xbf16>, vector<80x128xf32> -> vector<80x128xf32>
    %72 = arith.addf %64, %71 : vector<80x128xf32>
    %c0_35 = arith.constant 0 : index
    %c0_36 = arith.constant 0 : index
    %73 = vector.load %arg4[%c0_35, %c0_36] : memref<1x128xf32, #tpu.memory_space<vmem>>, vector<1x128xf32>
    %74 = vector.broadcast %73 : vector<1x128xf32> to vector<80x128xf32>
    %75 = arith.addf %72, %74 : vector<80x128xf32>
    %c0_37 = arith.constant 0 : index
    %c0_38 = arith.constant 0 : index
    %76 = vector.load %arg5[%c0_37, %c0_38] : memref<80x128xf32, #tpu.memory_space<vmem>>, vector<80x128xf32>
    tpu.vector_store %arg5[%c0_37, %c0_38], %75 {strides = array<i32>} : memref<80x128xf32, #tpu.memory_space<vmem>>, vector<80x128xf32>,
    return
  }
  func.func @transform_0(%arg0: i32, %arg1: i32) -> (i32, i32) {
    %c0_i32 = arith.constant 0 : i32
    %c0_i32_0 = arith.constant 0 : i32
    return %arg0, %c0_i32 : i32, i32
  }
  func.func @transform_1(%arg0: i32, %arg1: i32) -> (i32, i32, i32) {
    %c0_i32 = arith.constant 0 : i32
    %c0_i32_0 = arith.constant 0 : i32
    %c0_i32_1 = arith.constant 0 : i32
    %c0_i32_2 = arith.constant 0 : i32
    return %c0_i32, %c0_i32_0, %c0_i32_1 : i32, i32, i32
  }
  func.func @transform_2(%arg0: i32, %arg1: i32) -> (i32, i32) {
    %c0_i32 = arith.constant 0 : i32
    %c0_i32_0 = arith.constant 0 : i32
    %c0_i32_1 = arith.constant 0 : i32
    return %c0_i32, %c0_i32_0 : i32, i32
  }
  func.func @transform_3(%arg0: i32, %arg1: i32) -> (i32, i32) {
    %c1_i32 = arith.constant 1 : i32
    %0 = arith.muli %arg0, %c1_i32 : i32
    %1 = arith.addi %0, %arg1 : i32
    %c0_i32 = arith.constant 0 : i32
    %c0_i32_0 = arith.constant 0 : i32
    return %1, %c0_i32 : i32, i32
  }
}

module attributes {stable_mosaic.version = 11 : i64} {
  func.func @_conv3x3_kernel(%arg0: i32, %arg1: i32, %arg2: memref<104x8xf32, #tpu.memory_space<vmem>>, %arg3: memref<9x8x128xbf16, #tpu.memory_space<vmem>>, %arg4: memref<1x128xf32, #tpu.memory_space<vmem>>, %arg5: memref<80x128xf32, #tpu.memory_space<vmem>>, %arg6: memref<80x128xf32, #tpu.memory_space<vmem>>) attributes {dimension_semantics = [#tpu.dimension_semantics<parallel>, #tpu.dimension_semantics<parallel>], iteration_bounds = array<i64: 2, 1>, scalar_prefetch = 0 : i64, scratch_operands = 0 : i64, tpu.core_type = #tpu.core_type<tc>, window_params = [{transform_indices = @transform_0, window_bounds = array<i64: 104, 8>}, {pipeline_mode = #tpu.pipeline_mode<synchronous>, transform_indices = @transform_1, window_bounds = array<i64: 9, 8, 128>}, {pipeline_mode = #tpu.pipeline_mode<synchronous>, transform_indices = @transform_2, window_bounds = array<i64: 1, 128>}, {transform_indices = @transform_3, window_bounds = array<i64: 80, 128>}, {transform_indices = @transform_4, window_bounds = array<i64: 80, 128>}]} {
    %c80_i32 = arith.constant 80 : i32
    %0 = arith.muli %arg1, %c80_i32 : i32
    %1 = tpu.assume_multiple %0, 8 : i32
    %c0_i32 = arith.constant 0 : i32
    %2 = arith.addi %1, %c0_i32 : i32
    %3 = arith.index_cast %2 : i32 to index
    %c0 = arith.constant 0 : index
    %4 = vector.load %arg2[%3, %c0] : memref<104x8xf32, #tpu.memory_space<vmem>>, vector<80x8xf32>
    %5 = arith.truncf %4 : vector<80x8xf32> to vector<80x8xbf16>
    %c0_0 = arith.constant 0 : index
    %c0_1 = arith.constant 0 : index
    %c0_2 = arith.constant 0 : index
    %6 = vector.load %arg3[%c0_0, %c0_1, %c0_2] : memref<9x8x128xbf16, #tpu.memory_space<vmem>>, vector<1x8x128xbf16>
    %7 = vector.shape_cast %6 : vector<1x8x128xbf16> to vector<8x128xbf16>
    %cst = arith.constant dense<0.000000e+00> : vector<80x128xf32>
    %8 = tpu.matmul %5, %7, %cst {dimension_numbers = #tpu.dot_dimension_numbers<[1], [0], [0], [1], [0, 0, 1, 1], [], []>} : vector<80x8xbf16>, vector<8x128xbf16>, vector<80x128xf32> -> vector<80x128xf32>
    %c1_i32 = arith.constant 1 : i32
    %9 = arith.addi %1, %c1_i32 : i32
    %10 = arith.index_cast %9 : i32 to index
    %c0_3 = arith.constant 0 : index
    %11 = vector.load %arg2[%10, %c0_3] : memref<104x8xf32, #tpu.memory_space<vmem>>, vector<80x8xf32>
    %12 = arith.truncf %11 : vector<80x8xf32> to vector<80x8xbf16>
    %c1 = arith.constant 1 : index
    %c0_4 = arith.constant 0 : index
    %c0_5 = arith.constant 0 : index
    %13 = vector.load %arg3[%c1, %c0_4, %c0_5] : memref<9x8x128xbf16, #tpu.memory_space<vmem>>, vector<1x8x128xbf16>
    %14 = vector.shape_cast %13 : vector<1x8x128xbf16> to vector<8x128xbf16>
    %cst_6 = arith.constant dense<0.000000e+00> : vector<80x128xf32>
    %15 = tpu.matmul %12, %14, %cst_6 {dimension_numbers = #tpu.dot_dimension_numbers<[1], [0], [0], [1], [0, 0, 1, 1], [], []>} : vector<80x8xbf16>, vector<8x128xbf16>, vector<80x128xf32> -> vector<80x128xf32>
    %16 = arith.addf %8, %15 : vector<80x128xf32>
    %c2_i32 = arith.constant 2 : i32
    %17 = arith.addi %1, %c2_i32 : i32
    %18 = arith.index_cast %17 : i32 to index
    %c0_7 = arith.constant 0 : index
    %19 = vector.load %arg2[%18, %c0_7] : memref<104x8xf32, #tpu.memory_space<vmem>>, vector<80x8xf32>
    %20 = arith.truncf %19 : vector<80x8xf32> to vector<80x8xbf16>
    %c2 = arith.constant 2 : index
    %c0_8 = arith.constant 0 : index
    %c0_9 = arith.constant 0 : index
    %21 = vector.load %arg3[%c2, %c0_8, %c0_9] : memref<9x8x128xbf16, #tpu.memory_space<vmem>>, vector<1x8x128xbf16>
    %22 = vector.shape_cast %21 : vector<1x8x128xbf16> to vector<8x128xbf16>
    %cst_10 = arith.constant dense<0.000000e+00> : vector<80x128xf32>
    %23 = tpu.matmul %20, %22, %cst_10 {dimension_numbers = #tpu.dot_dimension_numbers<[1], [0], [0], [1], [0, 0, 1, 1], [], []>} : vector<80x8xbf16>, vector<8x128xbf16>, vector<80x128xf32> -> vector<80x128xf32>
    %24 = arith.addf %16, %23 : vector<80x128xf32>
    %c10_i32 = arith.constant 10 : i32
    %25 = arith.addi %1, %c10_i32 : i32
    %26 = arith.index_cast %25 : i32 to index
    %c0_11 = arith.constant 0 : index
    %27 = vector.load %arg2[%26, %c0_11] : memref<104x8xf32, #tpu.memory_space<vmem>>, vector<80x8xf32>
    %28 = arith.truncf %27 : vector<80x8xf32> to vector<80x8xbf16>
    %c3 = arith.constant 3 : index
    %c0_12 = arith.constant 0 : index
    %c0_13 = arith.constant 0 : index
    %29 = vector.load %arg3[%c3, %c0_12, %c0_13] : memref<9x8x128xbf16, #tpu.memory_space<vmem>>, vector<1x8x128xbf16>
    %30 = vector.shape_cast %29 : vector<1x8x128xbf16> to vector<8x128xbf16>
    %cst_14 = arith.constant dense<0.000000e+00> : vector<80x128xf32>
    %31 = tpu.matmul %28, %30, %cst_14 {dimension_numbers = #tpu.dot_dimension_numbers<[1], [0], [0], [1], [0, 0, 1, 1], [], []>} : vector<80x8xbf16>, vector<8x128xbf16>, vector<80x128xf32> -> vector<80x128xf32>
    %32 = arith.addf %24, %31 : vector<80x128xf32>
    %c11_i32 = arith.constant 11 : i32
    %33 = arith.addi %1, %c11_i32 : i32
    %34 = arith.index_cast %33 : i32 to index
    %c0_15 = arith.constant 0 : index
    %35 = vector.load %arg2[%34, %c0_15] : memref<104x8xf32, #tpu.memory_space<vmem>>, vector<80x8xf32>
    %36 = arith.truncf %35 : vector<80x8xf32> to vector<80x8xbf16>
    %c4 = arith.constant 4 : index
    %c0_16 = arith.constant 0 : index
    %c0_17 = arith.constant 0 : index
    %37 = vector.load %arg3[%c4, %c0_16, %c0_17] : memref<9x8x128xbf16, #tpu.memory_space<vmem>>, vector<1x8x128xbf16>
    %38 = vector.shape_cast %37 : vector<1x8x128xbf16> to vector<8x128xbf16>
    %cst_18 = arith.constant dense<0.000000e+00> : vector<80x128xf32>
    %39 = tpu.matmul %36, %38, %cst_18 {dimension_numbers = #tpu.dot_dimension_numbers<[1], [0], [0], [1], [0, 0, 1, 1], [], []>} : vector<80x8xbf16>, vector<8x128xbf16>, vector<80x128xf32> -> vector<80x128xf32>
    %40 = arith.addf %32, %39 : vector<80x128xf32>
    %c12_i32 = arith.constant 12 : i32
    %41 = arith.addi %1, %c12_i32 : i32
    %42 = arith.index_cast %41 : i32 to index
    %c0_19 = arith.constant 0 : index
    %43 = vector.load %arg2[%42, %c0_19] : memref<104x8xf32, #tpu.memory_space<vmem>>, vector<80x8xf32>
    %44 = arith.truncf %43 : vector<80x8xf32> to vector<80x8xbf16>
    %c5 = arith.constant 5 : index
    %c0_20 = arith.constant 0 : index
    %c0_21 = arith.constant 0 : index
    %45 = vector.load %arg3[%c5, %c0_20, %c0_21] : memref<9x8x128xbf16, #tpu.memory_space<vmem>>, vector<1x8x128xbf16>
    %46 = vector.shape_cast %45 : vector<1x8x128xbf16> to vector<8x128xbf16>
    %cst_22 = arith.constant dense<0.000000e+00> : vector<80x128xf32>
    %47 = tpu.matmul %44, %46, %cst_22 {dimension_numbers = #tpu.dot_dimension_numbers<[1], [0], [0], [1], [0, 0, 1, 1], [], []>} : vector<80x8xbf16>, vector<8x128xbf16>, vector<80x128xf32> -> vector<80x128xf32>
    %48 = arith.addf %40, %47 : vector<80x128xf32>
    %c20_i32 = arith.constant 20 : i32
    %49 = arith.addi %1, %c20_i32 : i32
    %50 = arith.index_cast %49 : i32 to index
    %c0_23 = arith.constant 0 : index
    %51 = vector.load %arg2[%50, %c0_23] : memref<104x8xf32, #tpu.memory_space<vmem>>, vector<80x8xf32>
    %52 = arith.truncf %51 : vector<80x8xf32> to vector<80x8xbf16>
    %c6 = arith.constant 6 : index
    %c0_24 = arith.constant 0 : index
    %c0_25 = arith.constant 0 : index
    %53 = vector.load %arg3[%c6, %c0_24, %c0_25] : memref<9x8x128xbf16, #tpu.memory_space<vmem>>, vector<1x8x128xbf16>
    %54 = vector.shape_cast %53 : vector<1x8x128xbf16> to vector<8x128xbf16>
    %cst_26 = arith.constant dense<0.000000e+00> : vector<80x128xf32>
    %55 = tpu.matmul %52, %54, %cst_26 {dimension_numbers = #tpu.dot_dimension_numbers<[1], [0], [0], [1], [0, 0, 1, 1], [], []>} : vector<80x8xbf16>, vector<8x128xbf16>, vector<80x128xf32> -> vector<80x128xf32>
    %56 = arith.addf %48, %55 : vector<80x128xf32>
    %c21_i32 = arith.constant 21 : i32
    %57 = arith.addi %1, %c21_i32 : i32
    %58 = arith.index_cast %57 : i32 to index
    %c0_27 = arith.constant 0 : index
    %59 = vector.load %arg2[%58, %c0_27] : memref<104x8xf32, #tpu.memory_space<vmem>>, vector<80x8xf32>
    %60 = arith.truncf %59 : vector<80x8xf32> to vector<80x8xbf16>
    %c7 = arith.constant 7 : index
    %c0_28 = arith.constant 0 : index
    %c0_29 = arith.constant 0 : index
    %61 = vector.load %arg3[%c7, %c0_28, %c0_29] : memref<9x8x128xbf16, #tpu.memory_space<vmem>>, vector<1x8x128xbf16>
    %62 = vector.shape_cast %61 : vector<1x8x128xbf16> to vector<8x128xbf16>
    %cst_30 = arith.constant dense<0.000000e+00> : vector<80x128xf32>
    %63 = tpu.matmul %60, %62, %cst_30 {dimension_numbers = #tpu.dot_dimension_numbers<[1], [0], [0], [1], [0, 0, 1, 1], [], []>} : vector<80x8xbf16>, vector<8x128xbf16>, vector<80x128xf32> -> vector<80x128xf32>
    %64 = arith.addf %56, %63 : vector<80x128xf32>
    %c22_i32 = arith.constant 22 : i32
    %65 = arith.addi %1, %c22_i32 : i32
    %66 = arith.index_cast %65 : i32 to index
    %c0_31 = arith.constant 0 : index
    %67 = vector.load %arg2[%66, %c0_31] : memref<104x8xf32, #tpu.memory_space<vmem>>, vector<80x8xf32>
    %68 = arith.truncf %67 : vector<80x8xf32> to vector<80x8xbf16>
    %c8 = arith.constant 8 : index
    %c0_32 = arith.constant 0 : index
    %c0_33 = arith.constant 0 : index
    %69 = vector.load %arg3[%c8, %c0_32, %c0_33] : memref<9x8x128xbf16, #tpu.memory_space<vmem>>, vector<1x8x128xbf16>
    %70 = vector.shape_cast %69 : vector<1x8x128xbf16> to vector<8x128xbf16>
    %cst_34 = arith.constant dense<0.000000e+00> : vector<80x128xf32>
    %71 = tpu.matmul %68, %70, %cst_34 {dimension_numbers = #tpu.dot_dimension_numbers<[1], [0], [0], [1], [0, 0, 1, 1], [], []>} : vector<80x8xbf16>, vector<8x128xbf16>, vector<80x128xf32> -> vector<80x128xf32>
    %72 = arith.addf %64, %71 : vector<80x128xf32>
    %c0_35 = arith.constant 0 : index
    %c0_36 = arith.constant 0 : index
    %73 = vector.load %arg4[%c0_35, %c0_36] : memref<1x128xf32, #tpu.memory_space<vmem>>, vector<1x128xf32>
    %74 = vector.broadcast %73 : vector<1x128xf32> to vector<80x128xf32>
    %75 = arith.addf %72, %74 : vector<80x128xf32>
    %c0_37 = arith.constant 0 : index
    %c0_38 = arith.constant 0 : index
    %76 = vector.load %arg5[%c0_37, %c0_38] : memref<80x128xf32, #tpu.memory_space<vmem>>, vector<80x128xf32>
    %77 = arith.addf %75, %76 : vector<80x128xf32>
    %c0_39 = arith.constant 0 : index
    %c0_40 = arith.constant 0 : index
    %78 = vector.load %arg6[%c0_39, %c0_40] : memref<80x128xf32, #tpu.memory_space<vmem>>, vector<80x128xf32>
    tpu.vector_store %arg6[%c0_39, %c0_40], %77 {strides = array<i32>} : memref<80x128xf32, #tpu.memory_space<vmem>>, vector<80x128xf32>,
    return
  }
  func.func @transform_0(%arg0: i32, %arg1: i32) -> (i32, i32) {
    %c0_i32 = arith.constant 0 : i32
    %c0_i32_0 = arith.constant 0 : i32
    return %arg0, %c0_i32 : i32, i32
  }
  func.func @transform_1(%arg0: i32, %arg1: i32) -> (i32, i32, i32) {
    %c0_i32 = arith.constant 0 : i32
    %c0_i32_0 = arith.constant 0 : i32
    %c0_i32_1 = arith.constant 0 : i32
    %c0_i32_2 = arith.constant 0 : i32
    return %c0_i32, %c0_i32_0, %c0_i32_1 : i32, i32, i32
  }
  func.func @transform_2(%arg0: i32, %arg1: i32) -> (i32, i32) {
    %c0_i32 = arith.constant 0 : i32
    %c0_i32_0 = arith.constant 0 : i32
    %c0_i32_1 = arith.constant 0 : i32
    return %c0_i32, %c0_i32_0 : i32, i32
  }
  func.func @transform_3(%arg0: i32, %arg1: i32) -> (i32, i32) {
    %c1_i32 = arith.constant 1 : i32
    %0 = arith.muli %arg0, %c1_i32 : i32
    %1 = arith.addi %0, %arg1 : i32
    %c0_i32 = arith.constant 0 : i32
    %c0_i32_0 = arith.constant 0 : i32
    return %1, %c0_i32 : i32, i32
  }
  func.func @transform_4(%arg0: i32, %arg1: i32) -> (i32, i32) {
    %c1_i32 = arith.constant 1 : i32
    %0 = arith.muli %arg0, %c1_i32 : i32
    %1 = arith.addi %0, %arg1 : i32
    %c0_i32 = arith.constant 0 : i32
    %c0_i32_0 = arith.constant 0 : i32
    return %1, %c0_i32 : i32, i32
  }
}

module attributes {stable_mosaic.version = 11 : i64} {
  func.func @_conv3x3_kernel(%arg0: i32, %arg1: i32, %arg2: memref<104x8xf32, #tpu.memory_space<vmem>>, %arg3: memref<9x8x128xbf16, #tpu.memory_space<vmem>>, %arg4: memref<1x128xf32, #tpu.memory_space<vmem>>, %arg5: memref<80x128xf32, #tpu.memory_space<vmem>>) attributes {dimension_semantics = [#tpu.dimension_semantics<parallel>, #tpu.dimension_semantics<parallel>], iteration_bounds = array<i64: 2, 1>, scalar_prefetch = 0 : i64, scratch_operands = 0 : i64, tpu.core_type = #tpu.core_type<tc>, window_params = [{transform_indices = @transform_0, window_bounds = array<i64: 104, 8>}, {pipeline_mode = #tpu.pipeline_mode<synchronous>, transform_indices = @transform_1, window_bounds = array<i64: 9, 8, 128>}, {pipeline_mode = #tpu.pipeline_mode<synchronous>, transform_indices = @transform_2, window_bounds = array<i64: 1, 128>}, {transform_indices = @transform_3, window_bounds = array<i64: 80, 128>}]} {
    %c80_i32 = arith.constant 80 : i32
    %0 = arith.muli %arg1, %c80_i32 : i32
    %1 = tpu.assume_multiple %0, 8 : i32
    %c0_i32 = arith.constant 0 : i32
    %2 = arith.addi %1, %c0_i32 : i32
    %3 = arith.index_cast %2 : i32 to index
    %c0 = arith.constant 0 : index
    %4 = vector.load %arg2[%3, %c0] : memref<104x8xf32, #tpu.memory_space<vmem>>, vector<80x8xf32>
    %5 = arith.truncf %4 : vector<80x8xf32> to vector<80x8xbf16>
    %c0_0 = arith.constant 0 : index
    %c0_1 = arith.constant 0 : index
    %c0_2 = arith.constant 0 : index
    %6 = vector.load %arg3[%c0_0, %c0_1, %c0_2] : memref<9x8x128xbf16, #tpu.memory_space<vmem>>, vector<1x8x128xbf16>
    %7 = vector.shape_cast %6 : vector<1x8x128xbf16> to vector<8x128xbf16>
    %cst = arith.constant dense<0.000000e+00> : vector<80x128xf32>
    %8 = tpu.matmul %5, %7, %cst {dimension_numbers = #tpu.dot_dimension_numbers<[1], [0], [0], [1], [0, 0, 1, 1], [], []>} : vector<80x8xbf16>, vector<8x128xbf16>, vector<80x128xf32> -> vector<80x128xf32>
    %c1_i32 = arith.constant 1 : i32
    %9 = arith.addi %1, %c1_i32 : i32
    %10 = arith.index_cast %9 : i32 to index
    %c0_3 = arith.constant 0 : index
    %11 = vector.load %arg2[%10, %c0_3] : memref<104x8xf32, #tpu.memory_space<vmem>>, vector<80x8xf32>
    %12 = arith.truncf %11 : vector<80x8xf32> to vector<80x8xbf16>
    %c1 = arith.constant 1 : index
    %c0_4 = arith.constant 0 : index
    %c0_5 = arith.constant 0 : index
    %13 = vector.load %arg3[%c1, %c0_4, %c0_5] : memref<9x8x128xbf16, #tpu.memory_space<vmem>>, vector<1x8x128xbf16>
    %14 = vector.shape_cast %13 : vector<1x8x128xbf16> to vector<8x128xbf16>
    %cst_6 = arith.constant dense<0.000000e+00> : vector<80x128xf32>
    %15 = tpu.matmul %12, %14, %cst_6 {dimension_numbers = #tpu.dot_dimension_numbers<[1], [0], [0], [1], [0, 0, 1, 1], [], []>} : vector<80x8xbf16>, vector<8x128xbf16>, vector<80x128xf32> -> vector<80x128xf32>
    %16 = arith.addf %8, %15 : vector<80x128xf32>
    %c2_i32 = arith.constant 2 : i32
    %17 = arith.addi %1, %c2_i32 : i32
    %18 = arith.index_cast %17 : i32 to index
    %c0_7 = arith.constant 0 : index
    %19 = vector.load %arg2[%18, %c0_7] : memref<104x8xf32, #tpu.memory_space<vmem>>, vector<80x8xf32>
    %20 = arith.truncf %19 : vector<80x8xf32> to vector<80x8xbf16>
    %c2 = arith.constant 2 : index
    %c0_8 = arith.constant 0 : index
    %c0_9 = arith.constant 0 : index
    %21 = vector.load %arg3[%c2, %c0_8, %c0_9] : memref<9x8x128xbf16, #tpu.memory_space<vmem>>, vector<1x8x128xbf16>
    %22 = vector.shape_cast %21 : vector<1x8x128xbf16> to vector<8x128xbf16>
    %cst_10 = arith.constant dense<0.000000e+00> : vector<80x128xf32>
    %23 = tpu.matmul %20, %22, %cst_10 {dimension_numbers = #tpu.dot_dimension_numbers<[1], [0], [0], [1], [0, 0, 1, 1], [], []>} : vector<80x8xbf16>, vector<8x128xbf16>, vector<80x128xf32> -> vector<80x128xf32>
    %24 = arith.addf %16, %23 : vector<80x128xf32>
    %c10_i32 = arith.constant 10 : i32
    %25 = arith.addi %1, %c10_i32 : i32
    %26 = arith.index_cast %25 : i32 to index
    %c0_11 = arith.constant 0 : index
    %27 = vector.load %arg2[%26, %c0_11] : memref<104x8xf32, #tpu.memory_space<vmem>>, vector<80x8xf32>
    %28 = arith.truncf %27 : vector<80x8xf32> to vector<80x8xbf16>
    %c3 = arith.constant 3 : index
    %c0_12 = arith.constant 0 : index
    %c0_13 = arith.constant 0 : index
    %29 = vector.load %arg3[%c3, %c0_12, %c0_13] : memref<9x8x128xbf16, #tpu.memory_space<vmem>>, vector<1x8x128xbf16>
    %30 = vector.shape_cast %29 : vector<1x8x128xbf16> to vector<8x128xbf16>
    %cst_14 = arith.constant dense<0.000000e+00> : vector<80x128xf32>
    %31 = tpu.matmul %28, %30, %cst_14 {dimension_numbers = #tpu.dot_dimension_numbers<[1], [0], [0], [1], [0, 0, 1, 1], [], []>} : vector<80x8xbf16>, vector<8x128xbf16>, vector<80x128xf32> -> vector<80x128xf32>
    %32 = arith.addf %24, %31 : vector<80x128xf32>
    %c11_i32 = arith.constant 11 : i32
    %33 = arith.addi %1, %c11_i32 : i32
    %34 = arith.index_cast %33 : i32 to index
    %c0_15 = arith.constant 0 : index
    %35 = vector.load %arg2[%34, %c0_15] : memref<104x8xf32, #tpu.memory_space<vmem>>, vector<80x8xf32>
    %36 = arith.truncf %35 : vector<80x8xf32> to vector<80x8xbf16>
    %c4 = arith.constant 4 : index
    %c0_16 = arith.constant 0 : index
    %c0_17 = arith.constant 0 : index
    %37 = vector.load %arg3[%c4, %c0_16, %c0_17] : memref<9x8x128xbf16, #tpu.memory_space<vmem>>, vector<1x8x128xbf16>
    %38 = vector.shape_cast %37 : vector<1x8x128xbf16> to vector<8x128xbf16>
    %cst_18 = arith.constant dense<0.000000e+00> : vector<80x128xf32>
    %39 = tpu.matmul %36, %38, %cst_18 {dimension_numbers = #tpu.dot_dimension_numbers<[1], [0], [0], [1], [0, 0, 1, 1], [], []>} : vector<80x8xbf16>, vector<8x128xbf16>, vector<80x128xf32> -> vector<80x128xf32>
    %40 = arith.addf %32, %39 : vector<80x128xf32>
    %c12_i32 = arith.constant 12 : i32
    %41 = arith.addi %1, %c12_i32 : i32
    %42 = arith.index_cast %41 : i32 to index
    %c0_19 = arith.constant 0 : index
    %43 = vector.load %arg2[%42, %c0_19] : memref<104x8xf32, #tpu.memory_space<vmem>>, vector<80x8xf32>
    %44 = arith.truncf %43 : vector<80x8xf32> to vector<80x8xbf16>
    %c5 = arith.constant 5 : index
    %c0_20 = arith.constant 0 : index
    %c0_21 = arith.constant 0 : index
    %45 = vector.load %arg3[%c5, %c0_20, %c0_21] : memref<9x8x128xbf16, #tpu.memory_space<vmem>>, vector<1x8x128xbf16>
    %46 = vector.shape_cast %45 : vector<1x8x128xbf16> to vector<8x128xbf16>
    %cst_22 = arith.constant dense<0.000000e+00> : vector<80x128xf32>
    %47 = tpu.matmul %44, %46, %cst_22 {dimension_numbers = #tpu.dot_dimension_numbers<[1], [0], [0], [1], [0, 0, 1, 1], [], []>} : vector<80x8xbf16>, vector<8x128xbf16>, vector<80x128xf32> -> vector<80x128xf32>
    %48 = arith.addf %40, %47 : vector<80x128xf32>
    %c20_i32 = arith.constant 20 : i32
    %49 = arith.addi %1, %c20_i32 : i32
    %50 = arith.index_cast %49 : i32 to index
    %c0_23 = arith.constant 0 : index
    %51 = vector.load %arg2[%50, %c0_23] : memref<104x8xf32, #tpu.memory_space<vmem>>, vector<80x8xf32>
    %52 = arith.truncf %51 : vector<80x8xf32> to vector<80x8xbf16>
    %c6 = arith.constant 6 : index
    %c0_24 = arith.constant 0 : index
    %c0_25 = arith.constant 0 : index
    %53 = vector.load %arg3[%c6, %c0_24, %c0_25] : memref<9x8x128xbf16, #tpu.memory_space<vmem>>, vector<1x8x128xbf16>
    %54 = vector.shape_cast %53 : vector<1x8x128xbf16> to vector<8x128xbf16>
    %cst_26 = arith.constant dense<0.000000e+00> : vector<80x128xf32>
    %55 = tpu.matmul %52, %54, %cst_26 {dimension_numbers = #tpu.dot_dimension_numbers<[1], [0], [0], [1], [0, 0, 1, 1], [], []>} : vector<80x8xbf16>, vector<8x128xbf16>, vector<80x128xf32> -> vector<80x128xf32>
    %56 = arith.addf %48, %55 : vector<80x128xf32>
    %c21_i32 = arith.constant 21 : i32
    %57 = arith.addi %1, %c21_i32 : i32
    %58 = arith.index_cast %57 : i32 to index
    %c0_27 = arith.constant 0 : index
    %59 = vector.load %arg2[%58, %c0_27] : memref<104x8xf32, #tpu.memory_space<vmem>>, vector<80x8xf32>
    %60 = arith.truncf %59 : vector<80x8xf32> to vector<80x8xbf16>
    %c7 = arith.constant 7 : index
    %c0_28 = arith.constant 0 : index
    %c0_29 = arith.constant 0 : index
    %61 = vector.load %arg3[%c7, %c0_28, %c0_29] : memref<9x8x128xbf16, #tpu.memory_space<vmem>>, vector<1x8x128xbf16>
    %62 = vector.shape_cast %61 : vector<1x8x128xbf16> to vector<8x128xbf16>
    %cst_30 = arith.constant dense<0.000000e+00> : vector<80x128xf32>
    %63 = tpu.matmul %60, %62, %cst_30 {dimension_numbers = #tpu.dot_dimension_numbers<[1], [0], [0], [1], [0, 0, 1, 1], [], []>} : vector<80x8xbf16>, vector<8x128xbf16>, vector<80x128xf32> -> vector<80x128xf32>
    %64 = arith.addf %56, %63 : vector<80x128xf32>
    %c22_i32 = arith.constant 22 : i32
    %65 = arith.addi %1, %c22_i32 : i32
    %66 = arith.index_cast %65 : i32 to index
    %c0_31 = arith.constant 0 : index
    %67 = vector.load %arg2[%66, %c0_31] : memref<104x8xf32, #tpu.memory_space<vmem>>, vector<80x8xf32>
    %68 = arith.truncf %67 : vector<80x8xf32> to vector<80x8xbf16>
    %c8 = arith.constant 8 : index
    %c0_32 = arith.constant 0 : index
    %c0_33 = arith.constant 0 : index
    %69 = vector.load %arg3[%c8, %c0_32, %c0_33] : memref<9x8x128xbf16, #tpu.memory_space<vmem>>, vector<1x8x128xbf16>
    %70 = vector.shape_cast %69 : vector<1x8x128xbf16> to vector<8x128xbf16>
    %cst_34 = arith.constant dense<0.000000e+00> : vector<80x128xf32>
    %71 = tpu.matmul %68, %70, %cst_34 {dimension_numbers = #tpu.dot_dimension_numbers<[1], [0], [0], [1], [0, 0, 1, 1], [], []>} : vector<80x8xbf16>, vector<8x128xbf16>, vector<80x128xf32> -> vector<80x128xf32>
    %72 = arith.addf %64, %71 : vector<80x128xf32>
    %c0_35 = arith.constant 0 : index
    %c0_36 = arith.constant 0 : index
    %73 = vector.load %arg4[%c0_35, %c0_36] : memref<1x128xf32, #tpu.memory_space<vmem>>, vector<1x128xf32>
    %74 = vector.broadcast %73 : vector<1x128xf32> to vector<80x128xf32>
    %75 = arith.addf %72, %74 : vector<80x128xf32>
    %cst_37 = arith.constant 0.000000e+00 : f32
    %76 = vector.broadcast %cst_37 : f32 to vector<80x128xf32>
    %77 = arith.maximumf %75, %76 : vector<80x128xf32>
    %c0_38 = arith.constant 0 : index
    %c0_39 = arith.constant 0 : index
    %78 = vector.load %arg5[%c0_38, %c0_39] : memref<80x128xf32, #tpu.memory_space<vmem>>, vector<80x128xf32>
    tpu.vector_store %arg5[%c0_38, %c0_39], %77 {strides = array<i32>} : memref<80x128xf32, #tpu.memory_space<vmem>>, vector<80x128xf32>,
    return
  }
  func.func @transform_0(%arg0: i32, %arg1: i32) -> (i32, i32) {
    %c0_i32 = arith.constant 0 : i32
    %c0_i32_0 = arith.constant 0 : i32
    return %arg0, %c0_i32 : i32, i32
  }
  func.func @transform_1(%arg0: i32, %arg1: i32) -> (i32, i32, i32) {
    %c0_i32 = arith.constant 0 : i32
    %c0_i32_0 = arith.constant 0 : i32
    %c0_i32_1 = arith.constant 0 : i32
    %c0_i32_2 = arith.constant 0 : i32
    return %c0_i32, %c0_i32_0, %c0_i32_1 : i32, i32, i32
  }
  func.func @transform_2(%arg0: i32, %arg1: i32) -> (i32, i32) {
    %c0_i32 = arith.constant 0 : i32
    %c0_i32_0 = arith.constant 0 : i32
    %c0_i32_1 = arith.constant 0 : i32
    return %c0_i32, %c0_i32_0 : i32, i32
  }
  func.func @transform_3(%arg0: i32, %arg1: i32) -> (i32, i32) {
    %c1_i32 = arith.constant 1 : i32
    %0 = arith.muli %arg0, %c1_i32 : i32
    %1 = arith.addi %0, %arg1 : i32
    %c0_i32 = arith.constant 0 : i32
    %c0_i32_0 = arith.constant 0 : i32
    return %1, %c0_i32 : i32, i32
  }
}

module attributes {stable_mosaic.version = 11 : i64} {
  func.func @_conv3x3_kernel(%arg0: i32, %arg1: i32, %arg2: memref<104x8xf32, #tpu.memory_space<vmem>>, %arg3: memref<9x8x128xbf16, #tpu.memory_space<vmem>>, %arg4: memref<1x128xf32, #tpu.memory_space<vmem>>, %arg5: memref<80x128xf32, #tpu.memory_space<vmem>>) attributes {dimension_semantics = [#tpu.dimension_semantics<parallel>, #tpu.dimension_semantics<parallel>], iteration_bounds = array<i64: 2, 1>, scalar_prefetch = 0 : i64, scratch_operands = 0 : i64, tpu.core_type = #tpu.core_type<tc>, window_params = [{transform_indices = @transform_0, window_bounds = array<i64: 104, 8>}, {pipeline_mode = #tpu.pipeline_mode<synchronous>, transform_indices = @transform_1, window_bounds = array<i64: 9, 8, 128>}, {pipeline_mode = #tpu.pipeline_mode<synchronous>, transform_indices = @transform_2, window_bounds = array<i64: 1, 128>}, {transform_indices = @transform_3, window_bounds = array<i64: 80, 128>}]} {
    %c80_i32 = arith.constant 80 : i32
    %0 = arith.muli %arg1, %c80_i32 : i32
    %1 = tpu.assume_multiple %0, 8 : i32
    %c0_i32 = arith.constant 0 : i32
    %2 = arith.addi %1, %c0_i32 : i32
    %3 = arith.index_cast %2 : i32 to index
    %c0 = arith.constant 0 : index
    %4 = vector.load %arg2[%3, %c0] : memref<104x8xf32, #tpu.memory_space<vmem>>, vector<80x8xf32>
    %5 = arith.truncf %4 : vector<80x8xf32> to vector<80x8xbf16>
    %c0_0 = arith.constant 0 : index
    %c0_1 = arith.constant 0 : index
    %c0_2 = arith.constant 0 : index
    %6 = vector.load %arg3[%c0_0, %c0_1, %c0_2] : memref<9x8x128xbf16, #tpu.memory_space<vmem>>, vector<1x8x128xbf16>
    %7 = vector.shape_cast %6 : vector<1x8x128xbf16> to vector<8x128xbf16>
    %cst = arith.constant dense<0.000000e+00> : vector<80x128xf32>
    %8 = tpu.matmul %5, %7, %cst {dimension_numbers = #tpu.dot_dimension_numbers<[1], [0], [0], [1], [0, 0, 1, 1], [], []>} : vector<80x8xbf16>, vector<8x128xbf16>, vector<80x128xf32> -> vector<80x128xf32>
    %c1_i32 = arith.constant 1 : i32
    %9 = arith.addi %1, %c1_i32 : i32
    %10 = arith.index_cast %9 : i32 to index
    %c0_3 = arith.constant 0 : index
    %11 = vector.load %arg2[%10, %c0_3] : memref<104x8xf32, #tpu.memory_space<vmem>>, vector<80x8xf32>
    %12 = arith.truncf %11 : vector<80x8xf32> to vector<80x8xbf16>
    %c1 = arith.constant 1 : index
    %c0_4 = arith.constant 0 : index
    %c0_5 = arith.constant 0 : index
    %13 = vector.load %arg3[%c1, %c0_4, %c0_5] : memref<9x8x128xbf16, #tpu.memory_space<vmem>>, vector<1x8x128xbf16>
    %14 = vector.shape_cast %13 : vector<1x8x128xbf16> to vector<8x128xbf16>
    %cst_6 = arith.constant dense<0.000000e+00> : vector<80x128xf32>
    %15 = tpu.matmul %12, %14, %cst_6 {dimension_numbers = #tpu.dot_dimension_numbers<[1], [0], [0], [1], [0, 0, 1, 1], [], []>} : vector<80x8xbf16>, vector<8x128xbf16>, vector<80x128xf32> -> vector<80x128xf32>
    %16 = arith.addf %8, %15 : vector<80x128xf32>
    %c2_i32 = arith.constant 2 : i32
    %17 = arith.addi %1, %c2_i32 : i32
    %18 = arith.index_cast %17 : i32 to index
    %c0_7 = arith.constant 0 : index
    %19 = vector.load %arg2[%18, %c0_7] : memref<104x8xf32, #tpu.memory_space<vmem>>, vector<80x8xf32>
    %20 = arith.truncf %19 : vector<80x8xf32> to vector<80x8xbf16>
    %c2 = arith.constant 2 : index
    %c0_8 = arith.constant 0 : index
    %c0_9 = arith.constant 0 : index
    %21 = vector.load %arg3[%c2, %c0_8, %c0_9] : memref<9x8x128xbf16, #tpu.memory_space<vmem>>, vector<1x8x128xbf16>
    %22 = vector.shape_cast %21 : vector<1x8x128xbf16> to vector<8x128xbf16>
    %cst_10 = arith.constant dense<0.000000e+00> : vector<80x128xf32>
    %23 = tpu.matmul %20, %22, %cst_10 {dimension_numbers = #tpu.dot_dimension_numbers<[1], [0], [0], [1], [0, 0, 1, 1], [], []>} : vector<80x8xbf16>, vector<8x128xbf16>, vector<80x128xf32> -> vector<80x128xf32>
    %24 = arith.addf %16, %23 : vector<80x128xf32>
    %c10_i32 = arith.constant 10 : i32
    %25 = arith.addi %1, %c10_i32 : i32
    %26 = arith.index_cast %25 : i32 to index
    %c0_11 = arith.constant 0 : index
    %27 = vector.load %arg2[%26, %c0_11] : memref<104x8xf32, #tpu.memory_space<vmem>>, vector<80x8xf32>
    %28 = arith.truncf %27 : vector<80x8xf32> to vector<80x8xbf16>
    %c3 = arith.constant 3 : index
    %c0_12 = arith.constant 0 : index
    %c0_13 = arith.constant 0 : index
    %29 = vector.load %arg3[%c3, %c0_12, %c0_13] : memref<9x8x128xbf16, #tpu.memory_space<vmem>>, vector<1x8x128xbf16>
    %30 = vector.shape_cast %29 : vector<1x8x128xbf16> to vector<8x128xbf16>
    %cst_14 = arith.constant dense<0.000000e+00> : vector<80x128xf32>
    %31 = tpu.matmul %28, %30, %cst_14 {dimension_numbers = #tpu.dot_dimension_numbers<[1], [0], [0], [1], [0, 0, 1, 1], [], []>} : vector<80x8xbf16>, vector<8x128xbf16>, vector<80x128xf32> -> vector<80x128xf32>
    %32 = arith.addf %24, %31 : vector<80x128xf32>
    %c11_i32 = arith.constant 11 : i32
    %33 = arith.addi %1, %c11_i32 : i32
    %34 = arith.index_cast %33 : i32 to index
    %c0_15 = arith.constant 0 : index
    %35 = vector.load %arg2[%34, %c0_15] : memref<104x8xf32, #tpu.memory_space<vmem>>, vector<80x8xf32>
    %36 = arith.truncf %35 : vector<80x8xf32> to vector<80x8xbf16>
    %c4 = arith.constant 4 : index
    %c0_16 = arith.constant 0 : index
    %c0_17 = arith.constant 0 : index
    %37 = vector.load %arg3[%c4, %c0_16, %c0_17] : memref<9x8x128xbf16, #tpu.memory_space<vmem>>, vector<1x8x128xbf16>
    %38 = vector.shape_cast %37 : vector<1x8x128xbf16> to vector<8x128xbf16>
    %cst_18 = arith.constant dense<0.000000e+00> : vector<80x128xf32>
    %39 = tpu.matmul %36, %38, %cst_18 {dimension_numbers = #tpu.dot_dimension_numbers<[1], [0], [0], [1], [0, 0, 1, 1], [], []>} : vector<80x8xbf16>, vector<8x128xbf16>, vector<80x128xf32> -> vector<80x128xf32>
    %40 = arith.addf %32, %39 : vector<80x128xf32>
    %c12_i32 = arith.constant 12 : i32
    %41 = arith.addi %1, %c12_i32 : i32
    %42 = arith.index_cast %41 : i32 to index
    %c0_19 = arith.constant 0 : index
    %43 = vector.load %arg2[%42, %c0_19] : memref<104x8xf32, #tpu.memory_space<vmem>>, vector<80x8xf32>
    %44 = arith.truncf %43 : vector<80x8xf32> to vector<80x8xbf16>
    %c5 = arith.constant 5 : index
    %c0_20 = arith.constant 0 : index
    %c0_21 = arith.constant 0 : index
    %45 = vector.load %arg3[%c5, %c0_20, %c0_21] : memref<9x8x128xbf16, #tpu.memory_space<vmem>>, vector<1x8x128xbf16>
    %46 = vector.shape_cast %45 : vector<1x8x128xbf16> to vector<8x128xbf16>
    %cst_22 = arith.constant dense<0.000000e+00> : vector<80x128xf32>
    %47 = tpu.matmul %44, %46, %cst_22 {dimension_numbers = #tpu.dot_dimension_numbers<[1], [0], [0], [1], [0, 0, 1, 1], [], []>} : vector<80x8xbf16>, vector<8x128xbf16>, vector<80x128xf32> -> vector<80x128xf32>
    %48 = arith.addf %40, %47 : vector<80x128xf32>
    %c20_i32 = arith.constant 20 : i32
    %49 = arith.addi %1, %c20_i32 : i32
    %50 = arith.index_cast %49 : i32 to index
    %c0_23 = arith.constant 0 : index
    %51 = vector.load %arg2[%50, %c0_23] : memref<104x8xf32, #tpu.memory_space<vmem>>, vector<80x8xf32>
    %52 = arith.truncf %51 : vector<80x8xf32> to vector<80x8xbf16>
    %c6 = arith.constant 6 : index
    %c0_24 = arith.constant 0 : index
    %c0_25 = arith.constant 0 : index
    %53 = vector.load %arg3[%c6, %c0_24, %c0_25] : memref<9x8x128xbf16, #tpu.memory_space<vmem>>, vector<1x8x128xbf16>
    %54 = vector.shape_cast %53 : vector<1x8x128xbf16> to vector<8x128xbf16>
    %cst_26 = arith.constant dense<0.000000e+00> : vector<80x128xf32>
    %55 = tpu.matmul %52, %54, %cst_26 {dimension_numbers = #tpu.dot_dimension_numbers<[1], [0], [0], [1], [0, 0, 1, 1], [], []>} : vector<80x8xbf16>, vector<8x128xbf16>, vector<80x128xf32> -> vector<80x128xf32>
    %56 = arith.addf %48, %55 : vector<80x128xf32>
    %c21_i32 = arith.constant 21 : i32
    %57 = arith.addi %1, %c21_i32 : i32
    %58 = arith.index_cast %57 : i32 to index
    %c0_27 = arith.constant 0 : index
    %59 = vector.load %arg2[%58, %c0_27] : memref<104x8xf32, #tpu.memory_space<vmem>>, vector<80x8xf32>
    %60 = arith.truncf %59 : vector<80x8xf32> to vector<80x8xbf16>
    %c7 = arith.constant 7 : index
    %c0_28 = arith.constant 0 : index
    %c0_29 = arith.constant 0 : index
    %61 = vector.load %arg3[%c7, %c0_28, %c0_29] : memref<9x8x128xbf16, #tpu.memory_space<vmem>>, vector<1x8x128xbf16>
    %62 = vector.shape_cast %61 : vector<1x8x128xbf16> to vector<8x128xbf16>
    %cst_30 = arith.constant dense<0.000000e+00> : vector<80x128xf32>
    %63 = tpu.matmul %60, %62, %cst_30 {dimension_numbers = #tpu.dot_dimension_numbers<[1], [0], [0], [1], [0, 0, 1, 1], [], []>} : vector<80x8xbf16>, vector<8x128xbf16>, vector<80x128xf32> -> vector<80x128xf32>
    %64 = arith.addf %56, %63 : vector<80x128xf32>
    %c22_i32 = arith.constant 22 : i32
    %65 = arith.addi %1, %c22_i32 : i32
    %66 = arith.index_cast %65 : i32 to index
    %c0_31 = arith.constant 0 : index
    %67 = vector.load %arg2[%66, %c0_31] : memref<104x8xf32, #tpu.memory_space<vmem>>, vector<80x8xf32>
    %68 = arith.truncf %67 : vector<80x8xf32> to vector<80x8xbf16>
    %c8 = arith.constant 8 : index
    %c0_32 = arith.constant 0 : index
    %c0_33 = arith.constant 0 : index
    %69 = vector.load %arg3[%c8, %c0_32, %c0_33] : memref<9x8x128xbf16, #tpu.memory_space<vmem>>, vector<1x8x128xbf16>
    %70 = vector.shape_cast %69 : vector<1x8x128xbf16> to vector<8x128xbf16>
    %cst_34 = arith.constant dense<0.000000e+00> : vector<80x128xf32>
    %71 = tpu.matmul %68, %70, %cst_34 {dimension_numbers = #tpu.dot_dimension_numbers<[1], [0], [0], [1], [0, 0, 1, 1], [], []>} : vector<80x8xbf16>, vector<8x128xbf16>, vector<80x128xf32> -> vector<80x128xf32>
    %72 = arith.addf %64, %71 : vector<80x128xf32>
    %c0_35 = arith.constant 0 : index
    %c0_36 = arith.constant 0 : index
    %73 = vector.load %arg4[%c0_35, %c0_36] : memref<1x128xf32, #tpu.memory_space<vmem>>, vector<1x128xf32>
    %74 = vector.broadcast %73 : vector<1x128xf32> to vector<80x128xf32>
    %75 = arith.addf %72, %74 : vector<80x128xf32>
    %c0_37 = arith.constant 0 : index
    %c0_38 = arith.constant 0 : index
    %76 = vector.load %arg5[%c0_37, %c0_38] : memref<80x128xf32, #tpu.memory_space<vmem>>, vector<80x128xf32>
    tpu.vector_store %arg5[%c0_37, %c0_38], %75 {strides = array<i32>} : memref<80x128xf32, #tpu.memory_space<vmem>>, vector<80x128xf32>,
    return
  }
  func.func @transform_0(%arg0: i32, %arg1: i32) -> (i32, i32) {
    %c0_i32 = arith.constant 0 : i32
    %c0_i32_0 = arith.constant 0 : i32
    return %arg0, %c0_i32 : i32, i32
  }
  func.func @transform_1(%arg0: i32, %arg1: i32) -> (i32, i32, i32) {
    %c0_i32 = arith.constant 0 : i32
    %c0_i32_0 = arith.constant 0 : i32
    %c0_i32_1 = arith.constant 0 : i32
    %c0_i32_2 = arith.constant 0 : i32
    return %c0_i32, %c0_i32_0, %c0_i32_1 : i32, i32, i32
  }
  func.func @transform_2(%arg0: i32, %arg1: i32) -> (i32, i32) {
    %c0_i32 = arith.constant 0 : i32
    %c0_i32_0 = arith.constant 0 : i32
    %c0_i32_1 = arith.constant 0 : i32
    return %c0_i32, %c0_i32_0 : i32, i32
  }
  func.func @transform_3(%arg0: i32, %arg1: i32) -> (i32, i32) {
    %c1_i32 = arith.constant 1 : i32
    %0 = arith.muli %arg0, %c1_i32 : i32
    %1 = arith.addi %0, %arg1 : i32
    %c0_i32 = arith.constant 0 : i32
    %c0_i32_0 = arith.constant 0 : i32
    return %1, %c0_i32 : i32, i32
  }
}

module attributes {stable_mosaic.version = 11 : i64} {
  func.func @_conv3x3_kernel(%arg0: i32, %arg1: i32, %arg2: memref<128x8xf32, #tpu.memory_space<vmem>>, %arg3: memref<9x8x128xbf16, #tpu.memory_space<vmem>>, %arg4: memref<1x128xf32, #tpu.memory_space<vmem>>, %arg5: memref<24x128xf32, #tpu.memory_space<vmem>>) attributes {dimension_semantics = [#tpu.dimension_semantics<parallel>, #tpu.dimension_semantics<parallel>], iteration_bounds = array<i64: 2, 1>, scalar_prefetch = 0 : i64, scratch_operands = 0 : i64, tpu.core_type = #tpu.core_type<tc>, window_params = [{transform_indices = @transform_0, window_bounds = array<i64: 128, 8>}, {pipeline_mode = #tpu.pipeline_mode<synchronous>, transform_indices = @transform_1, window_bounds = array<i64: 9, 8, 128>}, {pipeline_mode = #tpu.pipeline_mode<synchronous>, transform_indices = @transform_2, window_bounds = array<i64: 1, 128>}, {transform_indices = @transform_3, window_bounds = array<i64: 24, 128>}]} {
    %c24_i32 = arith.constant 24 : i32
    %0 = arith.muli %arg1, %c24_i32 : i32
    %1 = tpu.assume_multiple %0, 8 : i32
    %c0_i32 = arith.constant 0 : i32
    %2 = arith.addi %c0_i32, %1 : i32
    %c0_i32_0 = arith.constant 0 : i32
    %3 = arith.addi %2, %c0_i32_0 : i32
    %4 = arith.index_cast %3 : i32 to index
    %c0 = arith.constant 0 : index
    %5 = vector.load %arg2[%4, %c0] : memref<128x8xf32, #tpu.memory_space<vmem>>, vector<24x8xf32>
    %6 = arith.truncf %5 : vector<24x8xf32> to vector<24x8xbf16>
    %c0_1 = arith.constant 0 : index
    %c0_2 = arith.constant 0 : index
    %c0_3 = arith.constant 0 : index
    %7 = vector.load %arg3[%c0_1, %c0_2, %c0_3] : memref<9x8x128xbf16, #tpu.memory_space<vmem>>, vector<1x8x128xbf16>
    %8 = vector.shape_cast %7 : vector<1x8x128xbf16> to vector<8x128xbf16>
    %cst = arith.constant dense<0.000000e+00> : vector<24x128xf32>
    %9 = tpu.matmul %6, %8, %cst {dimension_numbers = #tpu.dot_dimension_numbers<[1], [0], [0], [1], [0, 0, 1, 1], [], []>} : vector<24x8xbf16>, vector<8x128xbf16>, vector<24x128xf32> -> vector<24x128xf32>
    %c32_i32 = arith.constant 32 : i32
    %10 = arith.addi %c32_i32, %1 : i32
    %c0_i32_4 = arith.constant 0 : i32
    %11 = arith.addi %10, %c0_i32_4 : i32
    %12 = arith.index_cast %11 : i32 to index
    %c0_5 = arith.constant 0 : index
    %13 = vector.load %arg2[%12, %c0_5] : memref<128x8xf32, #tpu.memory_space<vmem>>, vector<24x8xf32>
    %14 = arith.truncf %13 : vector<24x8xf32> to vector<24x8xbf16>
    %c1 = arith.constant 1 : index
    %c0_6 = arith.constant 0 : index
    %c0_7 = arith.constant 0 : index
    %15 = vector.load %arg3[%c1, %c0_6, %c0_7] : memref<9x8x128xbf16, #tpu.memory_space<vmem>>, vector<1x8x128xbf16>
    %16 = vector.shape_cast %15 : vector<1x8x128xbf16> to vector<8x128xbf16>
    %cst_8 = arith.constant dense<0.000000e+00> : vector<24x128xf32>
    %17 = tpu.matmul %14, %16, %cst_8 {dimension_numbers = #tpu.dot_dimension_numbers<[1], [0], [0], [1], [0, 0, 1, 1], [], []>} : vector<24x8xbf16>, vector<8x128xbf16>, vector<24x128xf32> -> vector<24x128xf32>
    %18 = arith.addf %9, %17 : vector<24x128xf32>
    %c0_i32_9 = arith.constant 0 : i32
    %19 = arith.addi %c0_i32_9, %1 : i32
    %c1_i32 = arith.constant 1 : i32
    %20 = arith.addi %19, %c1_i32 : i32
    %21 = arith.index_cast %20 : i32 to index
    %c0_10 = arith.constant 0 : index
    %22 = vector.load %arg2[%21, %c0_10] : memref<128x8xf32, #tpu.memory_space<vmem>>, vector<24x8xf32>
    %23 = arith.truncf %22 : vector<24x8xf32> to vector<24x8xbf16>
    %c2 = arith.constant 2 : index
    %c0_11 = arith.constant 0 : index
    %c0_12 = arith.constant 0 : index
    %24 = vector.load %arg3[%c2, %c0_11, %c0_12] : memref<9x8x128xbf16, #tpu.memory_space<vmem>>, vector<1x8x128xbf16>
    %25 = vector.shape_cast %24 : vector<1x8x128xbf16> to vector<8x128xbf16>
    %cst_13 = arith.constant dense<0.000000e+00> : vector<24x128xf32>
    %26 = tpu.matmul %23, %25, %cst_13 {dimension_numbers = #tpu.dot_dimension_numbers<[1], [0], [0], [1], [0, 0, 1, 1], [], []>} : vector<24x8xbf16>, vector<8x128xbf16>, vector<24x128xf32> -> vector<24x128xf32>
    %27 = arith.addf %18, %26 : vector<24x128xf32>
    %c64_i32 = arith.constant 64 : i32
    %28 = arith.addi %c64_i32, %1 : i32
    %c0_i32_14 = arith.constant 0 : i32
    %29 = arith.addi %28, %c0_i32_14 : i32
    %30 = arith.index_cast %29 : i32 to index
    %c0_15 = arith.constant 0 : index
    %31 = vector.load %arg2[%30, %c0_15] : memref<128x8xf32, #tpu.memory_space<vmem>>, vector<24x8xf32>
    %32 = arith.truncf %31 : vector<24x8xf32> to vector<24x8xbf16>
    %c3 = arith.constant 3 : index
    %c0_16 = arith.constant 0 : index
    %c0_17 = arith.constant 0 : index
    %33 = vector.load %arg3[%c3, %c0_16, %c0_17] : memref<9x8x128xbf16, #tpu.memory_space<vmem>>, vector<1x8x128xbf16>
    %34 = vector.shape_cast %33 : vector<1x8x128xbf16> to vector<8x128xbf16>
    %cst_18 = arith.constant dense<0.000000e+00> : vector<24x128xf32>
    %35 = tpu.matmul %32, %34, %cst_18 {dimension_numbers = #tpu.dot_dimension_numbers<[1], [0], [0], [1], [0, 0, 1, 1], [], []>} : vector<24x8xbf16>, vector<8x128xbf16>, vector<24x128xf32> -> vector<24x128xf32>
    %36 = arith.addf %27, %35 : vector<24x128xf32>
    %c96_i32 = arith.constant 96 : i32
    %37 = arith.addi %c96_i32, %1 : i32
    %c0_i32_19 = arith.constant 0 : i32
    %38 = arith.addi %37, %c0_i32_19 : i32
    %39 = arith.index_cast %38 : i32 to index
    %c0_20 = arith.constant 0 : index
    %40 = vector.load %arg2[%39, %c0_20] : memref<128x8xf32, #tpu.memory_space<vmem>>, vector<24x8xf32>
    %41 = arith.truncf %40 : vector<24x8xf32> to vector<24x8xbf16>
    %c4 = arith.constant 4 : index
    %c0_21 = arith.constant 0 : index
    %c0_22 = arith.constant 0 : index
    %42 = vector.load %arg3[%c4, %c0_21, %c0_22] : memref<9x8x128xbf16, #tpu.memory_space<vmem>>, vector<1x8x128xbf16>
    %43 = vector.shape_cast %42 : vector<1x8x128xbf16> to vector<8x128xbf16>
    %cst_23 = arith.constant dense<0.000000e+00> : vector<24x128xf32>
    %44 = tpu.matmul %41, %43, %cst_23 {dimension_numbers = #tpu.dot_dimension_numbers<[1], [0], [0], [1], [0, 0, 1, 1], [], []>} : vector<24x8xbf16>, vector<8x128xbf16>, vector<24x128xf32> -> vector<24x128xf32>
    %45 = arith.addf %36, %44 : vector<24x128xf32>
    %c64_i32_24 = arith.constant 64 : i32
    %46 = arith.addi %c64_i32_24, %1 : i32
    %c1_i32_25 = arith.constant 1 : i32
    %47 = arith.addi %46, %c1_i32_25 : i32
    %48 = arith.index_cast %47 : i32 to index
    %c0_26 = arith.constant 0 : index
    %49 = vector.load %arg2[%48, %c0_26] : memref<128x8xf32, #tpu.memory_space<vmem>>, vector<24x8xf32>
    %50 = arith.truncf %49 : vector<24x8xf32> to vector<24x8xbf16>
    %c5 = arith.constant 5 : index
    %c0_27 = arith.constant 0 : index
    %c0_28 = arith.constant 0 : index
    %51 = vector.load %arg3[%c5, %c0_27, %c0_28] : memref<9x8x128xbf16, #tpu.memory_space<vmem>>, vector<1x8x128xbf16>
    %52 = vector.shape_cast %51 : vector<1x8x128xbf16> to vector<8x128xbf16>
    %cst_29 = arith.constant dense<0.000000e+00> : vector<24x128xf32>
    %53 = tpu.matmul %50, %52, %cst_29 {dimension_numbers = #tpu.dot_dimension_numbers<[1], [0], [0], [1], [0, 0, 1, 1], [], []>} : vector<24x8xbf16>, vector<8x128xbf16>, vector<24x128xf32> -> vector<24x128xf32>
    %54 = arith.addf %45, %53 : vector<24x128xf32>
    %c0_i32_30 = arith.constant 0 : i32
    %55 = arith.addi %c0_i32_30, %1 : i32
    %c5_i32 = arith.constant 5 : i32
    %56 = arith.addi %55, %c5_i32 : i32
    %57 = arith.index_cast %56 : i32 to index
    %c0_31 = arith.constant 0 : index
    %58 = vector.load %arg2[%57, %c0_31] : memref<128x8xf32, #tpu.memory_space<vmem>>, vector<24x8xf32>
    %59 = arith.truncf %58 : vector<24x8xf32> to vector<24x8xbf16>
    %c6 = arith.constant 6 : index
    %c0_32 = arith.constant 0 : index
    %c0_33 = arith.constant 0 : index
    %60 = vector.load %arg3[%c6, %c0_32, %c0_33] : memref<9x8x128xbf16, #tpu.memory_space<vmem>>, vector<1x8x128xbf16>
    %61 = vector.shape_cast %60 : vector<1x8x128xbf16> to vector<8x128xbf16>
    %cst_34 = arith.constant dense<0.000000e+00> : vector<24x128xf32>
    %62 = tpu.matmul %59, %61, %cst_34 {dimension_numbers = #tpu.dot_dimension_numbers<[1], [0], [0], [1], [0, 0, 1, 1], [], []>} : vector<24x8xbf16>, vector<8x128xbf16>, vector<24x128xf32> -> vector<24x128xf32>
    %63 = arith.addf %54, %62 : vector<24x128xf32>
    %c32_i32_35 = arith.constant 32 : i32
    %64 = arith.addi %c32_i32_35, %1 : i32
    %c5_i32_36 = arith.constant 5 : i32
    %65 = arith.addi %64, %c5_i32_36 : i32
    %66 = arith.index_cast %65 : i32 to index
    %c0_37 = arith.constant 0 : index
    %67 = vector.load %arg2[%66, %c0_37] : memref<128x8xf32, #tpu.memory_space<vmem>>, vector<24x8xf32>
    %68 = arith.truncf %67 : vector<24x8xf32> to vector<24x8xbf16>
    %c7 = arith.constant 7 : index
    %c0_38 = arith.constant 0 : index
    %c0_39 = arith.constant 0 : index
    %69 = vector.load %arg3[%c7, %c0_38, %c0_39] : memref<9x8x128xbf16, #tpu.memory_space<vmem>>, vector<1x8x128xbf16>
    %70 = vector.shape_cast %69 : vector<1x8x128xbf16> to vector<8x128xbf16>
    %cst_40 = arith.constant dense<0.000000e+00> : vector<24x128xf32>
    %71 = tpu.matmul %68, %70, %cst_40 {dimension_numbers = #tpu.dot_dimension_numbers<[1], [0], [0], [1], [0, 0, 1, 1], [], []>} : vector<24x8xbf16>, vector<8x128xbf16>, vector<24x128xf32> -> vector<24x128xf32>
    %72 = arith.addf %63, %71 : vector<24x128xf32>
    %c0_i32_41 = arith.constant 0 : i32
    %73 = arith.addi %c0_i32_41, %1 : i32
    %c6_i32 = arith.constant 6 : i32
    %74 = arith.addi %73, %c6_i32 : i32
    %75 = arith.index_cast %74 : i32 to index
    %c0_42 = arith.constant 0 : index
    %76 = vector.load %arg2[%75, %c0_42] : memref<128x8xf32, #tpu.memory_space<vmem>>, vector<24x8xf32>
    %77 = arith.truncf %76 : vector<24x8xf32> to vector<24x8xbf16>
    %c8 = arith.constant 8 : index
    %c0_43 = arith.constant 0 : index
    %c0_44 = arith.constant 0 : index
    %78 = vector.load %arg3[%c8, %c0_43, %c0_44] : memref<9x8x128xbf16, #tpu.memory_space<vmem>>, vector<1x8x128xbf16>
    %79 = vector.shape_cast %78 : vector<1x8x128xbf16> to vector<8x128xbf16>
    %cst_45 = arith.constant dense<0.000000e+00> : vector<24x128xf32>
    %80 = tpu.matmul %77, %79, %cst_45 {dimension_numbers = #tpu.dot_dimension_numbers<[1], [0], [0], [1], [0, 0, 1, 1], [], []>} : vector<24x8xbf16>, vector<8x128xbf16>, vector<24x128xf32> -> vector<24x128xf32>
    %81 = arith.addf %72, %80 : vector<24x128xf32>
    %c0_46 = arith.constant 0 : index
    %c0_47 = arith.constant 0 : index
    %82 = vector.load %arg4[%c0_46, %c0_47] : memref<1x128xf32, #tpu.memory_space<vmem>>, vector<1x128xf32>
    %83 = vector.broadcast %82 : vector<1x128xf32> to vector<24x128xf32>
    %84 = arith.addf %81, %83 : vector<24x128xf32>
    %c0_48 = arith.constant 0 : index
    %c0_49 = arith.constant 0 : index
    %85 = vector.load %arg5[%c0_48, %c0_49] : memref<24x128xf32, #tpu.memory_space<vmem>>, vector<24x128xf32>
    tpu.vector_store %arg5[%c0_48, %c0_49], %84 {strides = array<i32>} : memref<24x128xf32, #tpu.memory_space<vmem>>, vector<24x128xf32>,
    return
  }
  func.func @transform_0(%arg0: i32, %arg1: i32) -> (i32, i32) {
    %c0_i32 = arith.constant 0 : i32
    %c0_i32_0 = arith.constant 0 : i32
    return %arg0, %c0_i32 : i32, i32
  }
  func.func @transform_1(%arg0: i32, %arg1: i32) -> (i32, i32, i32) {
    %c0_i32 = arith.constant 0 : i32
    %c0_i32_0 = arith.constant 0 : i32
    %c0_i32_1 = arith.constant 0 : i32
    %c0_i32_2 = arith.constant 0 : i32
    return %c0_i32, %c0_i32_0, %c0_i32_1 : i32, i32, i32
  }
  func.func @transform_2(%arg0: i32, %arg1: i32) -> (i32, i32) {
    %c0_i32 = arith.constant 0 : i32
    %c0_i32_0 = arith.constant 0 : i32
    %c0_i32_1 = arith.constant 0 : i32
    return %c0_i32, %c0_i32_0 : i32, i32
  }
  func.func @transform_3(%arg0: i32, %arg1: i32) -> (i32, i32) {
    %c1_i32 = arith.constant 1 : i32
    %0 = arith.muli %arg0, %c1_i32 : i32
    %1 = arith.addi %0, %arg1 : i32
    %c0_i32 = arith.constant 0 : i32
    %c0_i32_0 = arith.constant 0 : i32
    return %1, %c0_i32 : i32, i32
  }
}

module attributes {stable_mosaic.version = 11 : i64} {
  func.func @_conv3x3_kernel(%arg0: i32, %arg1: i32, %arg2: memref<40x8xf32, #tpu.memory_space<vmem>>, %arg3: memref<9x8x128xbf16, #tpu.memory_space<vmem>>, %arg4: memref<1x128xf32, #tpu.memory_space<vmem>>, %arg5: memref<24x128xf32, #tpu.memory_space<vmem>>) attributes {dimension_semantics = [#tpu.dimension_semantics<parallel>, #tpu.dimension_semantics<parallel>], iteration_bounds = array<i64: 2, 1>, scalar_prefetch = 0 : i64, scratch_operands = 0 : i64, tpu.core_type = #tpu.core_type<tc>, window_params = [{transform_indices = @transform_0, window_bounds = array<i64: 40, 8>}, {pipeline_mode = #tpu.pipeline_mode<synchronous>, transform_indices = @transform_1, window_bounds = array<i64: 9, 8, 128>}, {pipeline_mode = #tpu.pipeline_mode<synchronous>, transform_indices = @transform_2, window_bounds = array<i64: 1, 128>}, {transform_indices = @transform_3, window_bounds = array<i64: 24, 128>}]} {
    %c24_i32 = arith.constant 24 : i32
    %0 = arith.muli %arg1, %c24_i32 : i32
    %1 = tpu.assume_multiple %0, 8 : i32
    %c0_i32 = arith.constant 0 : i32
    %2 = arith.addi %1, %c0_i32 : i32
    %3 = arith.index_cast %2 : i32 to index
    %c0 = arith.constant 0 : index
    %4 = vector.load %arg2[%3, %c0] : memref<40x8xf32, #tpu.memory_space<vmem>>, vector<24x8xf32>
    %5 = arith.truncf %4 : vector<24x8xf32> to vector<24x8xbf16>
    %c0_0 = arith.constant 0 : index
    %c0_1 = arith.constant 0 : index
    %c0_2 = arith.constant 0 : index
    %6 = vector.load %arg3[%c0_0, %c0_1, %c0_2] : memref<9x8x128xbf16, #tpu.memory_space<vmem>>, vector<1x8x128xbf16>
    %7 = vector.shape_cast %6 : vector<1x8x128xbf16> to vector<8x128xbf16>
    %cst = arith.constant dense<0.000000e+00> : vector<24x128xf32>
    %8 = tpu.matmul %5, %7, %cst {dimension_numbers = #tpu.dot_dimension_numbers<[1], [0], [0], [1], [0, 0, 1, 1], [], []>} : vector<24x8xbf16>, vector<8x128xbf16>, vector<24x128xf32> -> vector<24x128xf32>
    %c1_i32 = arith.constant 1 : i32
    %9 = arith.addi %1, %c1_i32 : i32
    %10 = arith.index_cast %9 : i32 to index
    %c0_3 = arith.constant 0 : index
    %11 = vector.load %arg2[%10, %c0_3] : memref<40x8xf32, #tpu.memory_space<vmem>>, vector<24x8xf32>
    %12 = arith.truncf %11 : vector<24x8xf32> to vector<24x8xbf16>
    %c1 = arith.constant 1 : index
    %c0_4 = arith.constant 0 : index
    %c0_5 = arith.constant 0 : index
    %13 = vector.load %arg3[%c1, %c0_4, %c0_5] : memref<9x8x128xbf16, #tpu.memory_space<vmem>>, vector<1x8x128xbf16>
    %14 = vector.shape_cast %13 : vector<1x8x128xbf16> to vector<8x128xbf16>
    %cst_6 = arith.constant dense<0.000000e+00> : vector<24x128xf32>
    %15 = tpu.matmul %12, %14, %cst_6 {dimension_numbers = #tpu.dot_dimension_numbers<[1], [0], [0], [1], [0, 0, 1, 1], [], []>} : vector<24x8xbf16>, vector<8x128xbf16>, vector<24x128xf32> -> vector<24x128xf32>
    %16 = arith.addf %8, %15 : vector<24x128xf32>
    %c2_i32 = arith.constant 2 : i32
    %17 = arith.addi %1, %c2_i32 : i32
    %18 = arith.index_cast %17 : i32 to index
    %c0_7 = arith.constant 0 : index
    %19 = vector.load %arg2[%18, %c0_7] : memref<40x8xf32, #tpu.memory_space<vmem>>, vector<24x8xf32>
    %20 = arith.truncf %19 : vector<24x8xf32> to vector<24x8xbf16>
    %c2 = arith.constant 2 : index
    %c0_8 = arith.constant 0 : index
    %c0_9 = arith.constant 0 : index
    %21 = vector.load %arg3[%c2, %c0_8, %c0_9] : memref<9x8x128xbf16, #tpu.memory_space<vmem>>, vector<1x8x128xbf16>
    %22 = vector.shape_cast %21 : vector<1x8x128xbf16> to vector<8x128xbf16>
    %cst_10 = arith.constant dense<0.000000e+00> : vector<24x128xf32>
    %23 = tpu.matmul %20, %22, %cst_10 {dimension_numbers = #tpu.dot_dimension_numbers<[1], [0], [0], [1], [0, 0, 1, 1], [], []>} : vector<24x8xbf16>, vector<8x128xbf16>, vector<24x128xf32> -> vector<24x128xf32>
    %24 = arith.addf %16, %23 : vector<24x128xf32>
    %c6_i32 = arith.constant 6 : i32
    %25 = arith.addi %1, %c6_i32 : i32
    %26 = arith.index_cast %25 : i32 to index
    %c0_11 = arith.constant 0 : index
    %27 = vector.load %arg2[%26, %c0_11] : memref<40x8xf32, #tpu.memory_space<vmem>>, vector<24x8xf32>
    %28 = arith.truncf %27 : vector<24x8xf32> to vector<24x8xbf16>
    %c3 = arith.constant 3 : index
    %c0_12 = arith.constant 0 : index
    %c0_13 = arith.constant 0 : index
    %29 = vector.load %arg3[%c3, %c0_12, %c0_13] : memref<9x8x128xbf16, #tpu.memory_space<vmem>>, vector<1x8x128xbf16>
    %30 = vector.shape_cast %29 : vector<1x8x128xbf16> to vector<8x128xbf16>
    %cst_14 = arith.constant dense<0.000000e+00> : vector<24x128xf32>
    %31 = tpu.matmul %28, %30, %cst_14 {dimension_numbers = #tpu.dot_dimension_numbers<[1], [0], [0], [1], [0, 0, 1, 1], [], []>} : vector<24x8xbf16>, vector<8x128xbf16>, vector<24x128xf32> -> vector<24x128xf32>
    %32 = arith.addf %24, %31 : vector<24x128xf32>
    %c7_i32 = arith.constant 7 : i32
    %33 = arith.addi %1, %c7_i32 : i32
    %34 = arith.index_cast %33 : i32 to index
    %c0_15 = arith.constant 0 : index
    %35 = vector.load %arg2[%34, %c0_15] : memref<40x8xf32, #tpu.memory_space<vmem>>, vector<24x8xf32>
    %36 = arith.truncf %35 : vector<24x8xf32> to vector<24x8xbf16>
    %c4 = arith.constant 4 : index
    %c0_16 = arith.constant 0 : index
    %c0_17 = arith.constant 0 : index
    %37 = vector.load %arg3[%c4, %c0_16, %c0_17] : memref<9x8x128xbf16, #tpu.memory_space<vmem>>, vector<1x8x128xbf16>
    %38 = vector.shape_cast %37 : vector<1x8x128xbf16> to vector<8x128xbf16>
    %cst_18 = arith.constant dense<0.000000e+00> : vector<24x128xf32>
    %39 = tpu.matmul %36, %38, %cst_18 {dimension_numbers = #tpu.dot_dimension_numbers<[1], [0], [0], [1], [0, 0, 1, 1], [], []>} : vector<24x8xbf16>, vector<8x128xbf16>, vector<24x128xf32> -> vector<24x128xf32>
    %40 = arith.addf %32, %39 : vector<24x128xf32>
    %c8_i32 = arith.constant 8 : i32
    %41 = arith.addi %1, %c8_i32 : i32
    %42 = arith.index_cast %41 : i32 to index
    %c0_19 = arith.constant 0 : index
    %43 = vector.load %arg2[%42, %c0_19] : memref<40x8xf32, #tpu.memory_space<vmem>>, vector<24x8xf32>
    %44 = arith.truncf %43 : vector<24x8xf32> to vector<24x8xbf16>
    %c5 = arith.constant 5 : index
    %c0_20 = arith.constant 0 : index
    %c0_21 = arith.constant 0 : index
    %45 = vector.load %arg3[%c5, %c0_20, %c0_21] : memref<9x8x128xbf16, #tpu.memory_space<vmem>>, vector<1x8x128xbf16>
    %46 = vector.shape_cast %45 : vector<1x8x128xbf16> to vector<8x128xbf16>
    %cst_22 = arith.constant dense<0.000000e+00> : vector<24x128xf32>
    %47 = tpu.matmul %44, %46, %cst_22 {dimension_numbers = #tpu.dot_dimension_numbers<[1], [0], [0], [1], [0, 0, 1, 1], [], []>} : vector<24x8xbf16>, vector<8x128xbf16>, vector<24x128xf32> -> vector<24x128xf32>
    %48 = arith.addf %40, %47 : vector<24x128xf32>
    %c12_i32 = arith.constant 12 : i32
    %49 = arith.addi %1, %c12_i32 : i32
    %50 = arith.index_cast %49 : i32 to index
    %c0_23 = arith.constant 0 : index
    %51 = vector.load %arg2[%50, %c0_23] : memref<40x8xf32, #tpu.memory_space<vmem>>, vector<24x8xf32>
    %52 = arith.truncf %51 : vector<24x8xf32> to vector<24x8xbf16>
    %c6 = arith.constant 6 : index
    %c0_24 = arith.constant 0 : index
    %c0_25 = arith.constant 0 : index
    %53 = vector.load %arg3[%c6, %c0_24, %c0_25] : memref<9x8x128xbf16, #tpu.memory_space<vmem>>, vector<1x8x128xbf16>
    %54 = vector.shape_cast %53 : vector<1x8x128xbf16> to vector<8x128xbf16>
    %cst_26 = arith.constant dense<0.000000e+00> : vector<24x128xf32>
    %55 = tpu.matmul %52, %54, %cst_26 {dimension_numbers = #tpu.dot_dimension_numbers<[1], [0], [0], [1], [0, 0, 1, 1], [], []>} : vector<24x8xbf16>, vector<8x128xbf16>, vector<24x128xf32> -> vector<24x128xf32>
    %56 = arith.addf %48, %55 : vector<24x128xf32>
    %c13_i32 = arith.constant 13 : i32
    %57 = arith.addi %1, %c13_i32 : i32
    %58 = arith.index_cast %57 : i32 to index
    %c0_27 = arith.constant 0 : index
    %59 = vector.load %arg2[%58, %c0_27] : memref<40x8xf32, #tpu.memory_space<vmem>>, vector<24x8xf32>
    %60 = arith.truncf %59 : vector<24x8xf32> to vector<24x8xbf16>
    %c7 = arith.constant 7 : index
    %c0_28 = arith.constant 0 : index
    %c0_29 = arith.constant 0 : index
    %61 = vector.load %arg3[%c7, %c0_28, %c0_29] : memref<9x8x128xbf16, #tpu.memory_space<vmem>>, vector<1x8x128xbf16>
    %62 = vector.shape_cast %61 : vector<1x8x128xbf16> to vector<8x128xbf16>
    %cst_30 = arith.constant dense<0.000000e+00> : vector<24x128xf32>
    %63 = tpu.matmul %60, %62, %cst_30 {dimension_numbers = #tpu.dot_dimension_numbers<[1], [0], [0], [1], [0, 0, 1, 1], [], []>} : vector<24x8xbf16>, vector<8x128xbf16>, vector<24x128xf32> -> vector<24x128xf32>
    %64 = arith.addf %56, %63 : vector<24x128xf32>
    %c14_i32 = arith.constant 14 : i32
    %65 = arith.addi %1, %c14_i32 : i32
    %66 = arith.index_cast %65 : i32 to index
    %c0_31 = arith.constant 0 : index
    %67 = vector.load %arg2[%66, %c0_31] : memref<40x8xf32, #tpu.memory_space<vmem>>, vector<24x8xf32>
    %68 = arith.truncf %67 : vector<24x8xf32> to vector<24x8xbf16>
    %c8 = arith.constant 8 : index
    %c0_32 = arith.constant 0 : index
    %c0_33 = arith.constant 0 : index
    %69 = vector.load %arg3[%c8, %c0_32, %c0_33] : memref<9x8x128xbf16, #tpu.memory_space<vmem>>, vector<1x8x128xbf16>
    %70 = vector.shape_cast %69 : vector<1x8x128xbf16> to vector<8x128xbf16>
    %cst_34 = arith.constant dense<0.000000e+00> : vector<24x128xf32>
    %71 = tpu.matmul %68, %70, %cst_34 {dimension_numbers = #tpu.dot_dimension_numbers<[1], [0], [0], [1], [0, 0, 1, 1], [], []>} : vector<24x8xbf16>, vector<8x128xbf16>, vector<24x128xf32> -> vector<24x128xf32>
    %72 = arith.addf %64, %71 : vector<24x128xf32>
    %c0_35 = arith.constant 0 : index
    %c0_36 = arith.constant 0 : index
    %73 = vector.load %arg4[%c0_35, %c0_36] : memref<1x128xf32, #tpu.memory_space<vmem>>, vector<1x128xf32>
    %74 = vector.broadcast %73 : vector<1x128xf32> to vector<24x128xf32>
    %75 = arith.addf %72, %74 : vector<24x128xf32>
    %c0_37 = arith.constant 0 : index
    %c0_38 = arith.constant 0 : index
    %76 = vector.load %arg5[%c0_37, %c0_38] : memref<24x128xf32, #tpu.memory_space<vmem>>, vector<24x128xf32>
    tpu.vector_store %arg5[%c0_37, %c0_38], %75 {strides = array<i32>} : memref<24x128xf32, #tpu.memory_space<vmem>>, vector<24x128xf32>,
    return
  }
  func.func @transform_0(%arg0: i32, %arg1: i32) -> (i32, i32) {
    %c0_i32 = arith.constant 0 : i32
    %c0_i32_0 = arith.constant 0 : i32
    return %arg0, %c0_i32 : i32, i32
  }
  func.func @transform_1(%arg0: i32, %arg1: i32) -> (i32, i32, i32) {
    %c0_i32 = arith.constant 0 : i32
    %c0_i32_0 = arith.constant 0 : i32
    %c0_i32_1 = arith.constant 0 : i32
    %c0_i32_2 = arith.constant 0 : i32
    return %c0_i32, %c0_i32_0, %c0_i32_1 : i32, i32, i32
  }
  func.func @transform_2(%arg0: i32, %arg1: i32) -> (i32, i32) {
    %c0_i32 = arith.constant 0 : i32
    %c0_i32_0 = arith.constant 0 : i32
    %c0_i32_1 = arith.constant 0 : i32
    return %c0_i32, %c0_i32_0 : i32, i32
  }
  func.func @transform_3(%arg0: i32, %arg1: i32) -> (i32, i32) {
    %c1_i32 = arith.constant 1 : i32
    %0 = arith.muli %arg0, %c1_i32 : i32
    %1 = arith.addi %0, %arg1 : i32
    %c0_i32 = arith.constant 0 : i32
    %c0_i32_0 = arith.constant 0 : i32
    return %1, %c0_i32 : i32, i32
  }
}

module attributes {stable_mosaic.version = 11 : i64} {
  func.func @_conv3x3_kernel(%arg0: i32, %arg1: i32, %arg2: memref<40x8xf32, #tpu.memory_space<vmem>>, %arg3: memref<9x8x128xbf16, #tpu.memory_space<vmem>>, %arg4: memref<1x128xf32, #tpu.memory_space<vmem>>, %arg5: memref<24x128xf32, #tpu.memory_space<vmem>>, %arg6: memref<24x128xf32, #tpu.memory_space<vmem>>) attributes {dimension_semantics = [#tpu.dimension_semantics<parallel>, #tpu.dimension_semantics<parallel>], iteration_bounds = array<i64: 2, 1>, scalar_prefetch = 0 : i64, scratch_operands = 0 : i64, tpu.core_type = #tpu.core_type<tc>, window_params = [{transform_indices = @transform_0, window_bounds = array<i64: 40, 8>}, {pipeline_mode = #tpu.pipeline_mode<synchronous>, transform_indices = @transform_1, window_bounds = array<i64: 9, 8, 128>}, {pipeline_mode = #tpu.pipeline_mode<synchronous>, transform_indices = @transform_2, window_bounds = array<i64: 1, 128>}, {transform_indices = @transform_3, window_bounds = array<i64: 24, 128>}, {transform_indices = @transform_4, window_bounds = array<i64: 24, 128>}]} {
    %c24_i32 = arith.constant 24 : i32
    %0 = arith.muli %arg1, %c24_i32 : i32
    %1 = tpu.assume_multiple %0, 8 : i32
    %c0_i32 = arith.constant 0 : i32
    %2 = arith.addi %1, %c0_i32 : i32
    %3 = arith.index_cast %2 : i32 to index
    %c0 = arith.constant 0 : index
    %4 = vector.load %arg2[%3, %c0] : memref<40x8xf32, #tpu.memory_space<vmem>>, vector<24x8xf32>
    %5 = arith.truncf %4 : vector<24x8xf32> to vector<24x8xbf16>
    %c0_0 = arith.constant 0 : index
    %c0_1 = arith.constant 0 : index
    %c0_2 = arith.constant 0 : index
    %6 = vector.load %arg3[%c0_0, %c0_1, %c0_2] : memref<9x8x128xbf16, #tpu.memory_space<vmem>>, vector<1x8x128xbf16>
    %7 = vector.shape_cast %6 : vector<1x8x128xbf16> to vector<8x128xbf16>
    %cst = arith.constant dense<0.000000e+00> : vector<24x128xf32>
    %8 = tpu.matmul %5, %7, %cst {dimension_numbers = #tpu.dot_dimension_numbers<[1], [0], [0], [1], [0, 0, 1, 1], [], []>} : vector<24x8xbf16>, vector<8x128xbf16>, vector<24x128xf32> -> vector<24x128xf32>
    %c1_i32 = arith.constant 1 : i32
    %9 = arith.addi %1, %c1_i32 : i32
    %10 = arith.index_cast %9 : i32 to index
    %c0_3 = arith.constant 0 : index
    %11 = vector.load %arg2[%10, %c0_3] : memref<40x8xf32, #tpu.memory_space<vmem>>, vector<24x8xf32>
    %12 = arith.truncf %11 : vector<24x8xf32> to vector<24x8xbf16>
    %c1 = arith.constant 1 : index
    %c0_4 = arith.constant 0 : index
    %c0_5 = arith.constant 0 : index
    %13 = vector.load %arg3[%c1, %c0_4, %c0_5] : memref<9x8x128xbf16, #tpu.memory_space<vmem>>, vector<1x8x128xbf16>
    %14 = vector.shape_cast %13 : vector<1x8x128xbf16> to vector<8x128xbf16>
    %cst_6 = arith.constant dense<0.000000e+00> : vector<24x128xf32>
    %15 = tpu.matmul %12, %14, %cst_6 {dimension_numbers = #tpu.dot_dimension_numbers<[1], [0], [0], [1], [0, 0, 1, 1], [], []>} : vector<24x8xbf16>, vector<8x128xbf16>, vector<24x128xf32> -> vector<24x128xf32>
    %16 = arith.addf %8, %15 : vector<24x128xf32>
    %c2_i32 = arith.constant 2 : i32
    %17 = arith.addi %1, %c2_i32 : i32
    %18 = arith.index_cast %17 : i32 to index
    %c0_7 = arith.constant 0 : index
    %19 = vector.load %arg2[%18, %c0_7] : memref<40x8xf32, #tpu.memory_space<vmem>>, vector<24x8xf32>
    %20 = arith.truncf %19 : vector<24x8xf32> to vector<24x8xbf16>
    %c2 = arith.constant 2 : index
    %c0_8 = arith.constant 0 : index
    %c0_9 = arith.constant 0 : index
    %21 = vector.load %arg3[%c2, %c0_8, %c0_9] : memref<9x8x128xbf16, #tpu.memory_space<vmem>>, vector<1x8x128xbf16>
    %22 = vector.shape_cast %21 : vector<1x8x128xbf16> to vector<8x128xbf16>
    %cst_10 = arith.constant dense<0.000000e+00> : vector<24x128xf32>
    %23 = tpu.matmul %20, %22, %cst_10 {dimension_numbers = #tpu.dot_dimension_numbers<[1], [0], [0], [1], [0, 0, 1, 1], [], []>} : vector<24x8xbf16>, vector<8x128xbf16>, vector<24x128xf32> -> vector<24x128xf32>
    %24 = arith.addf %16, %23 : vector<24x128xf32>
    %c6_i32 = arith.constant 6 : i32
    %25 = arith.addi %1, %c6_i32 : i32
    %26 = arith.index_cast %25 : i32 to index
    %c0_11 = arith.constant 0 : index
    %27 = vector.load %arg2[%26, %c0_11] : memref<40x8xf32, #tpu.memory_space<vmem>>, vector<24x8xf32>
    %28 = arith.truncf %27 : vector<24x8xf32> to vector<24x8xbf16>
    %c3 = arith.constant 3 : index
    %c0_12 = arith.constant 0 : index
    %c0_13 = arith.constant 0 : index
    %29 = vector.load %arg3[%c3, %c0_12, %c0_13] : memref<9x8x128xbf16, #tpu.memory_space<vmem>>, vector<1x8x128xbf16>
    %30 = vector.shape_cast %29 : vector<1x8x128xbf16> to vector<8x128xbf16>
    %cst_14 = arith.constant dense<0.000000e+00> : vector<24x128xf32>
    %31 = tpu.matmul %28, %30, %cst_14 {dimension_numbers = #tpu.dot_dimension_numbers<[1], [0], [0], [1], [0, 0, 1, 1], [], []>} : vector<24x8xbf16>, vector<8x128xbf16>, vector<24x128xf32> -> vector<24x128xf32>
    %32 = arith.addf %24, %31 : vector<24x128xf32>
    %c7_i32 = arith.constant 7 : i32
    %33 = arith.addi %1, %c7_i32 : i32
    %34 = arith.index_cast %33 : i32 to index
    %c0_15 = arith.constant 0 : index
    %35 = vector.load %arg2[%34, %c0_15] : memref<40x8xf32, #tpu.memory_space<vmem>>, vector<24x8xf32>
    %36 = arith.truncf %35 : vector<24x8xf32> to vector<24x8xbf16>
    %c4 = arith.constant 4 : index
    %c0_16 = arith.constant 0 : index
    %c0_17 = arith.constant 0 : index
    %37 = vector.load %arg3[%c4, %c0_16, %c0_17] : memref<9x8x128xbf16, #tpu.memory_space<vmem>>, vector<1x8x128xbf16>
    %38 = vector.shape_cast %37 : vector<1x8x128xbf16> to vector<8x128xbf16>
    %cst_18 = arith.constant dense<0.000000e+00> : vector<24x128xf32>
    %39 = tpu.matmul %36, %38, %cst_18 {dimension_numbers = #tpu.dot_dimension_numbers<[1], [0], [0], [1], [0, 0, 1, 1], [], []>} : vector<24x8xbf16>, vector<8x128xbf16>, vector<24x128xf32> -> vector<24x128xf32>
    %40 = arith.addf %32, %39 : vector<24x128xf32>
    %c8_i32 = arith.constant 8 : i32
    %41 = arith.addi %1, %c8_i32 : i32
    %42 = arith.index_cast %41 : i32 to index
    %c0_19 = arith.constant 0 : index
    %43 = vector.load %arg2[%42, %c0_19] : memref<40x8xf32, #tpu.memory_space<vmem>>, vector<24x8xf32>
    %44 = arith.truncf %43 : vector<24x8xf32> to vector<24x8xbf16>
    %c5 = arith.constant 5 : index
    %c0_20 = arith.constant 0 : index
    %c0_21 = arith.constant 0 : index
    %45 = vector.load %arg3[%c5, %c0_20, %c0_21] : memref<9x8x128xbf16, #tpu.memory_space<vmem>>, vector<1x8x128xbf16>
    %46 = vector.shape_cast %45 : vector<1x8x128xbf16> to vector<8x128xbf16>
    %cst_22 = arith.constant dense<0.000000e+00> : vector<24x128xf32>
    %47 = tpu.matmul %44, %46, %cst_22 {dimension_numbers = #tpu.dot_dimension_numbers<[1], [0], [0], [1], [0, 0, 1, 1], [], []>} : vector<24x8xbf16>, vector<8x128xbf16>, vector<24x128xf32> -> vector<24x128xf32>
    %48 = arith.addf %40, %47 : vector<24x128xf32>
    %c12_i32 = arith.constant 12 : i32
    %49 = arith.addi %1, %c12_i32 : i32
    %50 = arith.index_cast %49 : i32 to index
    %c0_23 = arith.constant 0 : index
    %51 = vector.load %arg2[%50, %c0_23] : memref<40x8xf32, #tpu.memory_space<vmem>>, vector<24x8xf32>
    %52 = arith.truncf %51 : vector<24x8xf32> to vector<24x8xbf16>
    %c6 = arith.constant 6 : index
    %c0_24 = arith.constant 0 : index
    %c0_25 = arith.constant 0 : index
    %53 = vector.load %arg3[%c6, %c0_24, %c0_25] : memref<9x8x128xbf16, #tpu.memory_space<vmem>>, vector<1x8x128xbf16>
    %54 = vector.shape_cast %53 : vector<1x8x128xbf16> to vector<8x128xbf16>
    %cst_26 = arith.constant dense<0.000000e+00> : vector<24x128xf32>
    %55 = tpu.matmul %52, %54, %cst_26 {dimension_numbers = #tpu.dot_dimension_numbers<[1], [0], [0], [1], [0, 0, 1, 1], [], []>} : vector<24x8xbf16>, vector<8x128xbf16>, vector<24x128xf32> -> vector<24x128xf32>
    %56 = arith.addf %48, %55 : vector<24x128xf32>
    %c13_i32 = arith.constant 13 : i32
    %57 = arith.addi %1, %c13_i32 : i32
    %58 = arith.index_cast %57 : i32 to index
    %c0_27 = arith.constant 0 : index
    %59 = vector.load %arg2[%58, %c0_27] : memref<40x8xf32, #tpu.memory_space<vmem>>, vector<24x8xf32>
    %60 = arith.truncf %59 : vector<24x8xf32> to vector<24x8xbf16>
    %c7 = arith.constant 7 : index
    %c0_28 = arith.constant 0 : index
    %c0_29 = arith.constant 0 : index
    %61 = vector.load %arg3[%c7, %c0_28, %c0_29] : memref<9x8x128xbf16, #tpu.memory_space<vmem>>, vector<1x8x128xbf16>
    %62 = vector.shape_cast %61 : vector<1x8x128xbf16> to vector<8x128xbf16>
    %cst_30 = arith.constant dense<0.000000e+00> : vector<24x128xf32>
    %63 = tpu.matmul %60, %62, %cst_30 {dimension_numbers = #tpu.dot_dimension_numbers<[1], [0], [0], [1], [0, 0, 1, 1], [], []>} : vector<24x8xbf16>, vector<8x128xbf16>, vector<24x128xf32> -> vector<24x128xf32>
    %64 = arith.addf %56, %63 : vector<24x128xf32>
    %c14_i32 = arith.constant 14 : i32
    %65 = arith.addi %1, %c14_i32 : i32
    %66 = arith.index_cast %65 : i32 to index
    %c0_31 = arith.constant 0 : index
    %67 = vector.load %arg2[%66, %c0_31] : memref<40x8xf32, #tpu.memory_space<vmem>>, vector<24x8xf32>
    %68 = arith.truncf %67 : vector<24x8xf32> to vector<24x8xbf16>
    %c8 = arith.constant 8 : index
    %c0_32 = arith.constant 0 : index
    %c0_33 = arith.constant 0 : index
    %69 = vector.load %arg3[%c8, %c0_32, %c0_33] : memref<9x8x128xbf16, #tpu.memory_space<vmem>>, vector<1x8x128xbf16>
    %70 = vector.shape_cast %69 : vector<1x8x128xbf16> to vector<8x128xbf16>
    %cst_34 = arith.constant dense<0.000000e+00> : vector<24x128xf32>
    %71 = tpu.matmul %68, %70, %cst_34 {dimension_numbers = #tpu.dot_dimension_numbers<[1], [0], [0], [1], [0, 0, 1, 1], [], []>} : vector<24x8xbf16>, vector<8x128xbf16>, vector<24x128xf32> -> vector<24x128xf32>
    %72 = arith.addf %64, %71 : vector<24x128xf32>
    %c0_35 = arith.constant 0 : index
    %c0_36 = arith.constant 0 : index
    %73 = vector.load %arg4[%c0_35, %c0_36] : memref<1x128xf32, #tpu.memory_space<vmem>>, vector<1x128xf32>
    %74 = vector.broadcast %73 : vector<1x128xf32> to vector<24x128xf32>
    %75 = arith.addf %72, %74 : vector<24x128xf32>
    %c0_37 = arith.constant 0 : index
    %c0_38 = arith.constant 0 : index
    %76 = vector.load %arg5[%c0_37, %c0_38] : memref<24x128xf32, #tpu.memory_space<vmem>>, vector<24x128xf32>
    %77 = arith.addf %75, %76 : vector<24x128xf32>
    %c0_39 = arith.constant 0 : index
    %c0_40 = arith.constant 0 : index
    %78 = vector.load %arg6[%c0_39, %c0_40] : memref<24x128xf32, #tpu.memory_space<vmem>>, vector<24x128xf32>
    tpu.vector_store %arg6[%c0_39, %c0_40], %77 {strides = array<i32>} : memref<24x128xf32, #tpu.memory_space<vmem>>, vector<24x128xf32>,
    return
  }
  func.func @transform_0(%arg0: i32, %arg1: i32) -> (i32, i32) {
    %c0_i32 = arith.constant 0 : i32
    %c0_i32_0 = arith.constant 0 : i32
    return %arg0, %c0_i32 : i32, i32
  }
  func.func @transform_1(%arg0: i32, %arg1: i32) -> (i32, i32, i32) {
    %c0_i32 = arith.constant 0 : i32
    %c0_i32_0 = arith.constant 0 : i32
    %c0_i32_1 = arith.constant 0 : i32
    %c0_i32_2 = arith.constant 0 : i32
    return %c0_i32, %c0_i32_0, %c0_i32_1 : i32, i32, i32
  }
  func.func @transform_2(%arg0: i32, %arg1: i32) -> (i32, i32) {
    %c0_i32 = arith.constant 0 : i32
    %c0_i32_0 = arith.constant 0 : i32
    %c0_i32_1 = arith.constant 0 : i32
    return %c0_i32, %c0_i32_0 : i32, i32
  }
  func.func @transform_3(%arg0: i32, %arg1: i32) -> (i32, i32) {
    %c1_i32 = arith.constant 1 : i32
    %0 = arith.muli %arg0, %c1_i32 : i32
    %1 = arith.addi %0, %arg1 : i32
    %c0_i32 = arith.constant 0 : i32
    %c0_i32_0 = arith.constant 0 : i32
    return %1, %c0_i32 : i32, i32
  }
  func.func @transform_4(%arg0: i32, %arg1: i32) -> (i32, i32) {
    %c1_i32 = arith.constant 1 : i32
    %0 = arith.muli %arg0, %c1_i32 : i32
    %1 = arith.addi %0, %arg1 : i32
    %c0_i32 = arith.constant 0 : i32
    %c0_i32_0 = arith.constant 0 : i32
    return %1, %c0_i32 : i32, i32
  }
}

module attributes {stable_mosaic.version = 11 : i64} {
  func.func @_conv3x3_kernel(%arg0: i32, %arg1: i32, %arg2: memref<40x8xf32, #tpu.memory_space<vmem>>, %arg3: memref<9x8x128xbf16, #tpu.memory_space<vmem>>, %arg4: memref<1x128xf32, #tpu.memory_space<vmem>>, %arg5: memref<24x128xf32, #tpu.memory_space<vmem>>) attributes {dimension_semantics = [#tpu.dimension_semantics<parallel>, #tpu.dimension_semantics<parallel>], iteration_bounds = array<i64: 2, 1>, scalar_prefetch = 0 : i64, scratch_operands = 0 : i64, tpu.core_type = #tpu.core_type<tc>, window_params = [{transform_indices = @transform_0, window_bounds = array<i64: 40, 8>}, {pipeline_mode = #tpu.pipeline_mode<synchronous>, transform_indices = @transform_1, window_bounds = array<i64: 9, 8, 128>}, {pipeline_mode = #tpu.pipeline_mode<synchronous>, transform_indices = @transform_2, window_bounds = array<i64: 1, 128>}, {transform_indices = @transform_3, window_bounds = array<i64: 24, 128>}]} {
    %c24_i32 = arith.constant 24 : i32
    %0 = arith.muli %arg1, %c24_i32 : i32
    %1 = tpu.assume_multiple %0, 8 : i32
    %c0_i32 = arith.constant 0 : i32
    %2 = arith.addi %1, %c0_i32 : i32
    %3 = arith.index_cast %2 : i32 to index
    %c0 = arith.constant 0 : index
    %4 = vector.load %arg2[%3, %c0] : memref<40x8xf32, #tpu.memory_space<vmem>>, vector<24x8xf32>
    %5 = arith.truncf %4 : vector<24x8xf32> to vector<24x8xbf16>
    %c0_0 = arith.constant 0 : index
    %c0_1 = arith.constant 0 : index
    %c0_2 = arith.constant 0 : index
    %6 = vector.load %arg3[%c0_0, %c0_1, %c0_2] : memref<9x8x128xbf16, #tpu.memory_space<vmem>>, vector<1x8x128xbf16>
    %7 = vector.shape_cast %6 : vector<1x8x128xbf16> to vector<8x128xbf16>
    %cst = arith.constant dense<0.000000e+00> : vector<24x128xf32>
    %8 = tpu.matmul %5, %7, %cst {dimension_numbers = #tpu.dot_dimension_numbers<[1], [0], [0], [1], [0, 0, 1, 1], [], []>} : vector<24x8xbf16>, vector<8x128xbf16>, vector<24x128xf32> -> vector<24x128xf32>
    %c1_i32 = arith.constant 1 : i32
    %9 = arith.addi %1, %c1_i32 : i32
    %10 = arith.index_cast %9 : i32 to index
    %c0_3 = arith.constant 0 : index
    %11 = vector.load %arg2[%10, %c0_3] : memref<40x8xf32, #tpu.memory_space<vmem>>, vector<24x8xf32>
    %12 = arith.truncf %11 : vector<24x8xf32> to vector<24x8xbf16>
    %c1 = arith.constant 1 : index
    %c0_4 = arith.constant 0 : index
    %c0_5 = arith.constant 0 : index
    %13 = vector.load %arg3[%c1, %c0_4, %c0_5] : memref<9x8x128xbf16, #tpu.memory_space<vmem>>, vector<1x8x128xbf16>
    %14 = vector.shape_cast %13 : vector<1x8x128xbf16> to vector<8x128xbf16>
    %cst_6 = arith.constant dense<0.000000e+00> : vector<24x128xf32>
    %15 = tpu.matmul %12, %14, %cst_6 {dimension_numbers = #tpu.dot_dimension_numbers<[1], [0], [0], [1], [0, 0, 1, 1], [], []>} : vector<24x8xbf16>, vector<8x128xbf16>, vector<24x128xf32> -> vector<24x128xf32>
    %16 = arith.addf %8, %15 : vector<24x128xf32>
    %c2_i32 = arith.constant 2 : i32
    %17 = arith.addi %1, %c2_i32 : i32
    %18 = arith.index_cast %17 : i32 to index
    %c0_7 = arith.constant 0 : index
    %19 = vector.load %arg2[%18, %c0_7] : memref<40x8xf32, #tpu.memory_space<vmem>>, vector<24x8xf32>
    %20 = arith.truncf %19 : vector<24x8xf32> to vector<24x8xbf16>
    %c2 = arith.constant 2 : index
    %c0_8 = arith.constant 0 : index
    %c0_9 = arith.constant 0 : index
    %21 = vector.load %arg3[%c2, %c0_8, %c0_9] : memref<9x8x128xbf16, #tpu.memory_space<vmem>>, vector<1x8x128xbf16>
    %22 = vector.shape_cast %21 : vector<1x8x128xbf16> to vector<8x128xbf16>
    %cst_10 = arith.constant dense<0.000000e+00> : vector<24x128xf32>
    %23 = tpu.matmul %20, %22, %cst_10 {dimension_numbers = #tpu.dot_dimension_numbers<[1], [0], [0], [1], [0, 0, 1, 1], [], []>} : vector<24x8xbf16>, vector<8x128xbf16>, vector<24x128xf32> -> vector<24x128xf32>
    %24 = arith.addf %16, %23 : vector<24x128xf32>
    %c6_i32 = arith.constant 6 : i32
    %25 = arith.addi %1, %c6_i32 : i32
    %26 = arith.index_cast %25 : i32 to index
    %c0_11 = arith.constant 0 : index
    %27 = vector.load %arg2[%26, %c0_11] : memref<40x8xf32, #tpu.memory_space<vmem>>, vector<24x8xf32>
    %28 = arith.truncf %27 : vector<24x8xf32> to vector<24x8xbf16>
    %c3 = arith.constant 3 : index
    %c0_12 = arith.constant 0 : index
    %c0_13 = arith.constant 0 : index
    %29 = vector.load %arg3[%c3, %c0_12, %c0_13] : memref<9x8x128xbf16, #tpu.memory_space<vmem>>, vector<1x8x128xbf16>
    %30 = vector.shape_cast %29 : vector<1x8x128xbf16> to vector<8x128xbf16>
    %cst_14 = arith.constant dense<0.000000e+00> : vector<24x128xf32>
    %31 = tpu.matmul %28, %30, %cst_14 {dimension_numbers = #tpu.dot_dimension_numbers<[1], [0], [0], [1], [0, 0, 1, 1], [], []>} : vector<24x8xbf16>, vector<8x128xbf16>, vector<24x128xf32> -> vector<24x128xf32>
    %32 = arith.addf %24, %31 : vector<24x128xf32>
    %c7_i32 = arith.constant 7 : i32
    %33 = arith.addi %1, %c7_i32 : i32
    %34 = arith.index_cast %33 : i32 to index
    %c0_15 = arith.constant 0 : index
    %35 = vector.load %arg2[%34, %c0_15] : memref<40x8xf32, #tpu.memory_space<vmem>>, vector<24x8xf32>
    %36 = arith.truncf %35 : vector<24x8xf32> to vector<24x8xbf16>
    %c4 = arith.constant 4 : index
    %c0_16 = arith.constant 0 : index
    %c0_17 = arith.constant 0 : index
    %37 = vector.load %arg3[%c4, %c0_16, %c0_17] : memref<9x8x128xbf16, #tpu.memory_space<vmem>>, vector<1x8x128xbf16>
    %38 = vector.shape_cast %37 : vector<1x8x128xbf16> to vector<8x128xbf16>
    %cst_18 = arith.constant dense<0.000000e+00> : vector<24x128xf32>
    %39 = tpu.matmul %36, %38, %cst_18 {dimension_numbers = #tpu.dot_dimension_numbers<[1], [0], [0], [1], [0, 0, 1, 1], [], []>} : vector<24x8xbf16>, vector<8x128xbf16>, vector<24x128xf32> -> vector<24x128xf32>
    %40 = arith.addf %32, %39 : vector<24x128xf32>
    %c8_i32 = arith.constant 8 : i32
    %41 = arith.addi %1, %c8_i32 : i32
    %42 = arith.index_cast %41 : i32 to index
    %c0_19 = arith.constant 0 : index
    %43 = vector.load %arg2[%42, %c0_19] : memref<40x8xf32, #tpu.memory_space<vmem>>, vector<24x8xf32>
    %44 = arith.truncf %43 : vector<24x8xf32> to vector<24x8xbf16>
    %c5 = arith.constant 5 : index
    %c0_20 = arith.constant 0 : index
    %c0_21 = arith.constant 0 : index
    %45 = vector.load %arg3[%c5, %c0_20, %c0_21] : memref<9x8x128xbf16, #tpu.memory_space<vmem>>, vector<1x8x128xbf16>
    %46 = vector.shape_cast %45 : vector<1x8x128xbf16> to vector<8x128xbf16>
    %cst_22 = arith.constant dense<0.000000e+00> : vector<24x128xf32>
    %47 = tpu.matmul %44, %46, %cst_22 {dimension_numbers = #tpu.dot_dimension_numbers<[1], [0], [0], [1], [0, 0, 1, 1], [], []>} : vector<24x8xbf16>, vector<8x128xbf16>, vector<24x128xf32> -> vector<24x128xf32>
    %48 = arith.addf %40, %47 : vector<24x128xf32>
    %c12_i32 = arith.constant 12 : i32
    %49 = arith.addi %1, %c12_i32 : i32
    %50 = arith.index_cast %49 : i32 to index
    %c0_23 = arith.constant 0 : index
    %51 = vector.load %arg2[%50, %c0_23] : memref<40x8xf32, #tpu.memory_space<vmem>>, vector<24x8xf32>
    %52 = arith.truncf %51 : vector<24x8xf32> to vector<24x8xbf16>
    %c6 = arith.constant 6 : index
    %c0_24 = arith.constant 0 : index
    %c0_25 = arith.constant 0 : index
    %53 = vector.load %arg3[%c6, %c0_24, %c0_25] : memref<9x8x128xbf16, #tpu.memory_space<vmem>>, vector<1x8x128xbf16>
    %54 = vector.shape_cast %53 : vector<1x8x128xbf16> to vector<8x128xbf16>
    %cst_26 = arith.constant dense<0.000000e+00> : vector<24x128xf32>
    %55 = tpu.matmul %52, %54, %cst_26 {dimension_numbers = #tpu.dot_dimension_numbers<[1], [0], [0], [1], [0, 0, 1, 1], [], []>} : vector<24x8xbf16>, vector<8x128xbf16>, vector<24x128xf32> -> vector<24x128xf32>
    %56 = arith.addf %48, %55 : vector<24x128xf32>
    %c13_i32 = arith.constant 13 : i32
    %57 = arith.addi %1, %c13_i32 : i32
    %58 = arith.index_cast %57 : i32 to index
    %c0_27 = arith.constant 0 : index
    %59 = vector.load %arg2[%58, %c0_27] : memref<40x8xf32, #tpu.memory_space<vmem>>, vector<24x8xf32>
    %60 = arith.truncf %59 : vector<24x8xf32> to vector<24x8xbf16>
    %c7 = arith.constant 7 : index
    %c0_28 = arith.constant 0 : index
    %c0_29 = arith.constant 0 : index
    %61 = vector.load %arg3[%c7, %c0_28, %c0_29] : memref<9x8x128xbf16, #tpu.memory_space<vmem>>, vector<1x8x128xbf16>
    %62 = vector.shape_cast %61 : vector<1x8x128xbf16> to vector<8x128xbf16>
    %cst_30 = arith.constant dense<0.000000e+00> : vector<24x128xf32>
    %63 = tpu.matmul %60, %62, %cst_30 {dimension_numbers = #tpu.dot_dimension_numbers<[1], [0], [0], [1], [0, 0, 1, 1], [], []>} : vector<24x8xbf16>, vector<8x128xbf16>, vector<24x128xf32> -> vector<24x128xf32>
    %64 = arith.addf %56, %63 : vector<24x128xf32>
    %c14_i32 = arith.constant 14 : i32
    %65 = arith.addi %1, %c14_i32 : i32
    %66 = arith.index_cast %65 : i32 to index
    %c0_31 = arith.constant 0 : index
    %67 = vector.load %arg2[%66, %c0_31] : memref<40x8xf32, #tpu.memory_space<vmem>>, vector<24x8xf32>
    %68 = arith.truncf %67 : vector<24x8xf32> to vector<24x8xbf16>
    %c8 = arith.constant 8 : index
    %c0_32 = arith.constant 0 : index
    %c0_33 = arith.constant 0 : index
    %69 = vector.load %arg3[%c8, %c0_32, %c0_33] : memref<9x8x128xbf16, #tpu.memory_space<vmem>>, vector<1x8x128xbf16>
    %70 = vector.shape_cast %69 : vector<1x8x128xbf16> to vector<8x128xbf16>
    %cst_34 = arith.constant dense<0.000000e+00> : vector<24x128xf32>
    %71 = tpu.matmul %68, %70, %cst_34 {dimension_numbers = #tpu.dot_dimension_numbers<[1], [0], [0], [1], [0, 0, 1, 1], [], []>} : vector<24x8xbf16>, vector<8x128xbf16>, vector<24x128xf32> -> vector<24x128xf32>
    %72 = arith.addf %64, %71 : vector<24x128xf32>
    %c0_35 = arith.constant 0 : index
    %c0_36 = arith.constant 0 : index
    %73 = vector.load %arg4[%c0_35, %c0_36] : memref<1x128xf32, #tpu.memory_space<vmem>>, vector<1x128xf32>
    %74 = vector.broadcast %73 : vector<1x128xf32> to vector<24x128xf32>
    %75 = arith.addf %72, %74 : vector<24x128xf32>
    %cst_37 = arith.constant 0.000000e+00 : f32
    %76 = vector.broadcast %cst_37 : f32 to vector<24x128xf32>
    %77 = arith.maximumf %75, %76 : vector<24x128xf32>
    %c0_38 = arith.constant 0 : index
    %c0_39 = arith.constant 0 : index
    %78 = vector.load %arg5[%c0_38, %c0_39] : memref<24x128xf32, #tpu.memory_space<vmem>>, vector<24x128xf32>
    tpu.vector_store %arg5[%c0_38, %c0_39], %77 {strides = array<i32>} : memref<24x128xf32, #tpu.memory_space<vmem>>, vector<24x128xf32>,
    return
  }
  func.func @transform_0(%arg0: i32, %arg1: i32) -> (i32, i32) {
    %c0_i32 = arith.constant 0 : i32
    %c0_i32_0 = arith.constant 0 : i32
    return %arg0, %c0_i32 : i32, i32
  }
  func.func @transform_1(%arg0: i32, %arg1: i32) -> (i32, i32, i32) {
    %c0_i32 = arith.constant 0 : i32
    %c0_i32_0 = arith.constant 0 : i32
    %c0_i32_1 = arith.constant 0 : i32
    %c0_i32_2 = arith.constant 0 : i32
    return %c0_i32, %c0_i32_0, %c0_i32_1 : i32, i32, i32
  }
  func.func @transform_2(%arg0: i32, %arg1: i32) -> (i32, i32) {
    %c0_i32 = arith.constant 0 : i32
    %c0_i32_0 = arith.constant 0 : i32
    %c0_i32_1 = arith.constant 0 : i32
    return %c0_i32, %c0_i32_0 : i32, i32
  }
  func.func @transform_3(%arg0: i32, %arg1: i32) -> (i32, i32) {
    %c1_i32 = arith.constant 1 : i32
    %0 = arith.muli %arg0, %c1_i32 : i32
    %1 = arith.addi %0, %arg1 : i32
    %c0_i32 = arith.constant 0 : i32
    %c0_i32_0 = arith.constant 0 : i32
    return %1, %c0_i32 : i32, i32
  }
}

</mosaic_0001>

<llo_original>
// kernel: adapter_forward.10
$region0: #{adapter_forward.10}
  #allocation0 [shape = 'u32[]', space=smem, size = 0x4, offset = 0x4, fixed_abs, tag = 'smem constant byte address 0x4 - core index']
  #allocation1 [shape = 'u32[144,128]{1,0:T(1,128)}', space=vmem, size = 0x12000, scoped, tag = 'internal scratch']
  %s0 = inlined_call_operand.vmem [shape: f32[208,64], index: 0, kind: input, shape index: {}]
  %s1 = inlined_call_operand.vmem [shape: bf16[9,64,128], index: 1, kind: input, shape index: {}]
  %s2 = inlined_call_operand.vmem [shape: f32[1,128], index: 2, kind: input, shape index: {}]
  %s3 = inlined_call_operand.vmem [shape: f32[160,128], index: 3, kind: output, shape index: {}]
  %s4 = sld [smem:[#allocation0]]
  $region45: #{adapter_forward.10} parent=0
    _
  %s6 = ssub.s32 1, %s4
  %s7 = scalar_select 0, %s6, %s4
  loop: start=0, step=1, limit=4
  $region2: #{adapter_forward.10} parent=0 // loop_pre_header
    _
  $region3: #{adapter_forward.10} parent=0 // loop_header
    %s9 = sphi 0, %s13
    %p10 = scmp.ge.s32.totalorder %s9, 4
    %s16 = sphi 0, %s28
    %s17 = sphi 0, %s24
    %s18 = sphi 0, %s16
    %s19 = sphi 0, %s17
    %s20 = sphi 0, %s18
    %s21 = sphi 0, %s19
    %s31 = sphi 0, %s33
    %s34 = sphi 0, %s31
    %s35 = sphi 0, %s34
    %s51 = sphi 0, %s35
    %s55 = sphi 0, %s55
    %s57 = sphi 0, %s55
    %s58 = sphi 0, %s57
    %s72 = sphi 0, %s58
    %s76 = sphi 0, %s76
    %s78 = sphi 0, %s76
    %s79 = sphi 0, %s78
    %s93 = sphi 0, %s79
    %s101 = sphi 0, %s103
    %s104 = sphi 0, %s101
    %s105 = sphi 0, %s104
    %s121 = sphi 0, %s105
  $region4: #{adapter_forward.10} parent=0 // loop_header_branch
    %12 = sbr.rel (%p10) target = $region8
  $region5: #{adapter_forward.10} parent=0 // loop_body
    %s14 = ssub.s32 %s9, 1
    %s15 = ssub.s32 %s9, 2
    %s22 = sadd.s32 1, %s17
    %p23 = scmp.ge.s32.totalorder %s22, 1
    %s24 = scalar_select %p23, 0, %s22
    %s25 = sadd.s32 1, %s16
    %s26 = scalar_select %p23, %s25, %s16
    %p27 = scmp.ge.s32.totalorder %s26, 2
    %s28 = scalar_select %p27, 0, %s26
    %s29 = ssub.s32 %s16, %s28
    %p30 = scmp.eq.s32.totalorder %s29, 0
    %s32 = sadd.s32 %s31, 1
    %s33 = scalar_select %p30, %s31, %s32
    %p36 = pneg %p30
    %p37 = scmp.eq.s32.totalorder %s9, 1
    %p38 = por %p36, %p37
    %p39 = scmp.ne.s32.totalorder %s31, %s34
    %p40 = scmp.eq.s32.totalorder %s9, 0
    %p41 = por %p39, %p40
    %p42 = scmp.ne.s32.totalorder %s31, %s34
    %p43 = scmp.eq.s32.totalorder %s14, 1
    %p44 = por %p42, %p43
    %p45 = scmp.ne.s32.totalorder %s34, %s35
    %p46 = scmp.eq.s32.totalorder %s14, 0
    %p47 = por %p45, %p46
    %p48 = scmp.ne.s32.totalorder %s34, %s35
    %p49 = scmp.eq.s32.totalorder %s15, 1
    %p50 = por %p48, %p49
    %p52 = scmp.ne.s32.totalorder %s35, %s51
    %p53 = scmp.eq.s32.totalorder %s15, 0
    %p54 = por %p52, %p53
    %s56 = sadd.s32 %s55, 1
    %p59 = scmp.eq.s32.totalorder %s9, 1
    %p60 = scmp.ne.s32.totalorder %s55, %s57
    %p61 = scmp.eq.s32.totalorder %s9, 0
    %p62 = por %p60, %p61
    %p63 = scmp.ne.s32.totalorder %s55, %s57
    %p64 = scmp.eq.s32.totalorder %s14, 1
    %p65 = por %p63, %p64
    %p66 = scmp.ne.s32.totalorder %s57, %s58
    %p67 = scmp.eq.s32.totalorder %s14, 0
    %p68 = por %p66, %p67
    %p69 = scmp.ne.s32.totalorder %s57, %s58
    %p70 = scmp.eq.s32.totalorder %s15, 1
    %p71 = por %p69, %p70
    %p73 = scmp.ne.s32.totalorder %s58, %s72
    %p74 = scmp.eq.s32.totalorder %s15, 0
    %p75 = por %p73, %p74
    %s77 = sadd.s32 %s76, 1
    %p80 = scmp.eq.s32.totalorder %s9, 1
    %p81 = scmp.ne.s32.totalorder %s76, %s78
    %p82 = scmp.eq.s32.totalorder %s9, 0
    %p83 = por %p81, %p82
    %p84 = scmp.ne.s32.totalorder %s76, %s78
    %p85 = scmp.eq.s32.totalorder %s14, 1
    %p86 = por %p84, %p85
    %p87 = scmp.ne.s32.totalorder %s78, %s79
    %p88 = scmp.eq.s32.totalorder %s14, 0
    %p89 = por %p87, %p88
    %p90 = scmp.ne.s32.totalorder %s78, %s79
    %p91 = scmp.eq.s32.totalorder %s15, 1
    %p92 = por %p90, %p91
    %p94 = scmp.ne.s32.totalorder %s79, %s93
    %p95 = scmp.eq.s32.totalorder %s15, 0
    %p96 = por %p94, %p95
    %s97 = sadd.s32 %s16, %s17
    %s98 = sadd.s32 %s28, %s24
    %s99 = ssub.s32 %s97, %s98
    %p100 = scmp.eq.s32.totalorder %s99, 0
    %s102 = sadd.s32 %s101, 1
    %s103 = scalar_select %p100, %s101, %s102
    %p106 = pneg %p100
    %p107 = scmp.eq.s32.totalorder %s9, 1
    %p108 = por %p106, %p107
    %p109 = scmp.ne.s32.totalorder %s101, %s104
    %p110 = scmp.eq.s32.totalorder %s9, 0
    %p111 = por %p109, %p110
    %p112 = scmp.ne.s32.totalorder %s101, %s104
    %p113 = scmp.eq.s32.totalorder %s14, 1
    %p114 = por %p112, %p113
    %p115 = scmp.ne.s32.totalorder %s104, %s105
    %p116 = scmp.eq.s32.totalorder %s14, 0
    %p117 = por %p115, %p116
    %p118 = scmp.ne.s32.totalorder %s104, %s105
    %p119 = scmp.eq.s32.totalorder %s15, 1
    %p120 = por %p118, %p119
    %p122 = scmp.ne.s32.totalorder %s105, %s121
    %p123 = scmp.eq.s32.totalorder %s15, 0
    %p124 = por %p122, %p123
    %p125 = scmp.le.s32.totalorder 1, %s9
    %p126 = scmp.lt.s32.totalorder %s9, 3
    %p127 = pnand %p125, %p126
    %p128 = pneg %p127
    // Predicated region
    $region9: #{adapter_forward.10} parent=5 // pred_check
      _
    $region10: #{adapter_forward.10} parent=5 // pred_check_branch
      %130 = sbr.rel (%p127) target = $region12
    $region11: #{adapter_forward.10} parent=5 // pred_region
      %s131 = ssub.s32 %s9, 1
      // Predicated region
      $region13: #{adapter_forward.10} parent=11 // pred_check
        %p132 = pneg %p68
      $region14: #{adapter_forward.10} parent=11 // pred_check_branch
        %134 = sbr.rel (%p132) target = $region16
      $region15: #{adapter_forward.10} parent=11 // pred_region
        _
      $region16: #{adapter_forward.10} parent=11 // pred_fallthru
        _
      // Predicated region
      $region17: #{adapter_forward.10} parent=11 // pred_check
        %p135 = pneg %p89
      $region18: #{adapter_forward.10} parent=11 // pred_check_branch
        %137 = sbr.rel (%p135) target = $region20
      $region19: #{adapter_forward.10} parent=11 // pred_region
        _
      $region20: #{adapter_forward.10} parent=11 // pred_fallthru
        _
    $region12: #{adapter_forward.10} parent=5 // pred_fallthru
      _
    %p138 = scmp.lt.s32.totalorder %s9, 2
    // Predicated region
    $region21: #{adapter_forward.10} parent=5 // pred_check
      %p139 = pneg %p138
    $region22: #{adapter_forward.10} parent=5 // pred_check_branch
      %141 = sbr.rel (%p139) target = $region24
    $region23: #{adapter_forward.10} parent=5 // pred_region
      // Predicated region
      $region25: #{adapter_forward.10} parent=23 // pred_check
        %p142 = pneg %p41
      $region26: #{adapter_forward.10} parent=23 // pred_check_branch
        %144 = sbr.rel (%p142) target = $region28
      $region27: #{adapter_forward.10} parent=23 // pred_region
        %s145 = smul.u32 13, %s16
        %p146 = scmp.lt.s32.totalorder %s145, 25
        %s147 = scalar_select %p146, %s145, 25
        %s148 = smul.addr %s147, 8
        %s149 = scalar_lea.vmem %s0, %s148
        %s150 = smul.u32 13, %s16
      $region28: #{adapter_forward.10} parent=23 // pred_fallthru
        _
    $region24: #{adapter_forward.10} parent=5 // pred_fallthru
      _
    %p151 = scmp.le.s32.totalorder 1, %s9
    %p152 = scmp.lt.s32.totalorder %s9, 3
    %p153 = pnand %p151, %p152
    %p154 = pneg %p153
    // Predicated region
    $region29: #{adapter_forward.10} parent=5 // pred_check
      _
    $region30: #{adapter_forward.10} parent=5 // pred_check_branch
      %156 = sbr.rel (%p153) target = $region32
    $region31: #{adapter_forward.10} parent=5 // pred_region
      %s157 = ssub.s32 %s9, 1
      %s158 = smul.u32 13, %s18
      %p159 = scmp.lt.s32.totalorder %s158, 25
      %s160 = scalar_select %p159, %s158, 25
      %s161 = smul.addr %s160, 8
      %s162 = scalar_lea.vmem %s0, %s161
      %p163 = pneg %p47
      %p164 = pneg %p44
      %p165 = pneg %p68
      %p166 = pneg %p65
      %p167 = pneg %p89
      %p168 = pneg %p86
      %p169 = pneg %p117
      %p170 = pneg %p114
      %s171 = sadd.s32 %s18, %s19
      %s172 = smul.u32 10, %s171
      %p173 = scmp.lt.s32.totalorder %s172, 19
      %s174 = scalar_select %p173, %s172, 19
      %s175 = smul.addr %s174, 8
      %s176 = scalar_lea.vmem %s3, %s175
      %s177 = smul.u32 13, %s18
      %p178 = scmp.lt.s32.totalorder %s177, 25
      %s179 = scalar_select %p178, %s177, 25
      %s180 = smul.addr %s179, 8
      %s181 = scalar_lea.vmem %s0, %s180
      %s182 = smul.u32 13, %s18
      %s183 = sadd.s32 %s18, %s19
      %s184 = smul.u32 10, %s183
      %p185 = scmp.lt.s32.totalorder %s184, 19
      %s186 = scalar_select %p185, %s184, 19
      %s187 = smul.addr %s186, 8
      %s188 = scalar_lea.vmem %s3, %s187
      %s189 = sadd.s32 %s18, %s19
      %s190 = smul.u32 10, %s189
      %s192 = smul.u32 %s19, 80
      %s193 = scalar_lea.vmem %s181, %s192
      %v194 = vld [vmem:[%s193] sm:$0xff]
      %v195 = vld [vmem:[%s193 + $0x8] sm:$0xff]
      %v196 = vld [vmem:[%s193 + $0x10] sm:$0xff]
      %v197 = vld [vmem:[%s193 + $0x18] sm:$0xff]
      %v198 = vld [vmem:[%s193 + $0x20] sm:$0xff]
      %v199 = vld [vmem:[%s193 + $0x28] sm:$0xff]
      %v200 = vld [vmem:[%s193 + $0x30] sm:$0xff]
      %v201 = vld [vmem:[%s193 + $0x38] sm:$0xff]
      %v202 = vld [vmem:[%s193 + $0x40] sm:$0xff]
      %v203 = vld [vmem:[%s193 + $0x48] sm:$0xff]
      %v204 = vpack.c.bf16 %v195, %v194
      %v205 = vpack.c.bf16 %v197, %v196
      %v206 = vpack.c.bf16 %v199, %v198
      %v207 = vpack.c.bf16 %v201, %v200
      %v208 = vpack.c.bf16 %v203, %v202
      %v209 = vld [vmem:[%s1] sm:$0xf]
      %v210 = vld [vmem:[%s1 + $0x4] sm:$0xf]
      %v211 = vld [vmem:[%s1 + $0x8] sm:$0xf]
      %v212 = vld [vmem:[%s1 + $0xc] sm:$0xf]
      %v213 = vld [vmem:[%s1 + $0x10] sm:$0xf]
      %v214 = vld [vmem:[%s1 + $0x14] sm:$0xf]
      %v215 = vld [vmem:[%s1 + $0x18] sm:$0xf]
      %v216 = vld [vmem:[%s1 + $0x1c] sm:$0xf]
      %s217 = sadd.s32 %s192, 1
      %s218 = scalar_lea.vmem %s181, %s217
      %v219 = vld [vmem:[%s218] sm:$0xff]
      %v220 = vld [vmem:[%s218 + $0x8] sm:$0xff]
      %v221 = vld [vmem:[%s218 + $0x10] sm:$0xff]
      %v222 = vld [vmem:[%s218 + $0x18] sm:$0xff]
      %v223 = vld [vmem:[%s218 + $0x20] sm:$0xff]
      %v224 = vld [vmem:[%s218 + $0x28] sm:$0xff]
      %v225 = vld [vmem:[%s218 + $0x30] sm:$0xff]
      %v226 = vld [vmem:[%s218 + $0x38] sm:$0xff]
      %v227 = vld [vmem:[%s218 + $0x40] sm:$0xff]
      %v228 = vld [vmem:[%s218 + $0x48] sm:$0xff]
      %v229 = vpack.c.bf16 %v220, %v219
      %v230 = vpack.c.bf16 %v222, %v221
      %v231 = vpack.c.bf16 %v224, %v223
      %v232 = vpack.c.bf16 %v226, %v225
      %v233 = vpack.c.bf16 %v228, %v227
      %s234 = scalar_lea.vmem %s1, 32
      %v235 = vld [vmem:[%s234] sm:$0xf]
      %v236 = vld [vmem:[%s234 + $0x4] sm:$0xf]
      %v237 = vld [vmem:[%s234 + $0x8] sm:$0xf]
      %v238 = vld [vmem:[%s234 + $0xc] sm:$0xf]
      %v239 = vld [vmem:[%s234 + $0x10] sm:$0xf]
      %v240 = vld [vmem:[%s234 + $0x14] sm:$0xf]
      %v241 = vld [vmem:[%s234 + $0x18] sm:$0xf]
      %v242 = vld [vmem:[%s234 + $0x1c] sm:$0xf]
      %v251 = vunpack.c.l.b16 %v235
      %v252 = vunpack.c.l.b16 %v236
      %v253 = vunpack.c.l.b16 %v237
      %v254 = vunpack.c.l.b16 %v238
      %v255 = vunpack.c.l.b16 %v239
      %v256 = vunpack.c.l.b16 %v240
      %v257 = vunpack.c.l.b16 %v241
      %v258 = vunpack.c.l.b16 %v242
      %v259 = vpack.c.b16 %v252, %v251
      %v260 = vpack.c.b16 %v254, %v253
      %v261 = vpack.c.b16 %v256, %v255
      %v262 = vpack.c.b16 %v258, %v257
      %vm267 = vcmask 523264
      %v269 = vsel %vm267, %v229, 0
      %v272 = vsel %vm267, %v230, 0
      %v275 = vsel %vm267, %v231, 0
      %v278 = vsel %vm267, %v232, 0
      %v281 = vsel %vm267, %v233, 0
      %283 = vmatprep.subr.bf16.mxu0 0
      %284 = vmatpush1.bf16.msra.mxu0 %v259
      %285 = vmatprep.subr.bf16.mxu0 0
      %286 = vmatpush1.bf16.msra.mxu0 %v260
      %287 = vmatprep.subr.bf16.mxu0 0
      %288 = vmatpush1.bf16.msra.mxu0 %v261
      %289 = vmatprep.subr.bf16.mxu0 0
      %290 = vmatpush1.bf16.msra.mxu0 %v262
      %291 = vmatprep.subr.bf16.mxu0 0
      %292 = vmatpush1.bf16.msra.mxu0 0
      %293 = vmatprep.subr.bf16.mxu0 0
      %294 = vmatpush1.bf16.msra.mxu0 0
      %295 = vmatprep.subr.bf16.mxu0 0
      %296 = vmatpush1.bf16.msra.mxu0 0
      %297 = vmatprep.subr.bf16.mxu0 0
      %298 = vmatpush1.bf16.msra.mxu0 0
      %299 = vmatprep.subr.bf16.mxu0 0
      %300 = vmatpush1.bf16.msra.mxu0 0
      %301 = vmatprep.subr.bf16.mxu0 0
      %302 = vmatpush1.bf16.msra.mxu0 0
      %303 = vmatprep.subr.bf16.mxu0 0
      %304 = vmatpush1.bf16.msra.mxu0 0
      %305 = vmatprep.subr.bf16.mxu0 0
      %306 = vmatpush1.bf16.msra.mxu0 0
      %307 = vmatprep.subr.bf16.mxu0 0
      %308 = vmatpush1.bf16.msra.mxu0 0
      %309 = vmatprep.subr.bf16.mxu0 0
      %310 = vmatpush1.bf16.msra.mxu0 0
      %311 = vmatprep.subr.bf16.mxu0 0
      %312 = vmatpush1.bf16.msra.mxu0 0
      %313 = vmatprep.subr.bf16.mxu0 0
      %314 = vmatpush1.bf16.msra.mxu0 0
      %315 = vmatprep.mubr.bf16.mxu0 0
      %316 = vmatmul.mubr.bf16.gmra.mrb[0].mxu0 %v269
      %v317 = vpop.f32.mrb[0].mxu0
      %v318 = vadd.f32 0.0, %v317
      %v319 = vpop.f32.mrb[0].mxu0
      %v320 = vpop.f32.mrb[0].mxu0
      %v321 = vadd.f32 0.0, %v320
      %v322 = vpop.f32.mrb[0].mxu0
      %323 = vmatprep.mubr.bf16.mxu0 0
      %324 = vmatmul.mubr.bf16.gmra.mrb[0].mxu0 %v272
      %v325 = vpop.f32.mrb[0].mxu0
      %v326 = vadd.f32 0.0, %v325
      %v327 = vpop.f32.mrb[0].mxu0
      %v328 = vpop.f32.mrb[0].mxu0
      %v329 = vadd.f32 0.0, %v328
      %v330 = vpop.f32.mrb[0].mxu0
      %331 = vmatprep.mubr.bf16.mxu0 0
      %332 = vmatmul.mubr.bf16.gmra.mrb[0].mxu0 %v275
      %v333 = vpop.f32.mrb[0].mxu0
      %v334 = vadd.f32 0.0, %v333
      %v335 = vpop.f32.mrb[0].mxu0
      %v336 = vpop.f32.mrb[0].mxu0
      %v337 = vadd.f32 0.0, %v336
      %v338 = vpop.f32.mrb[0].mxu0
      %339 = vmatprep.mubr.bf16.mxu0 0
      %340 = vmatmul.mubr.bf16.gmra.mrb[0].mxu0 %v278
      %v341 = vpop.f32.mrb[0].mxu0
      %v342 = vadd.f32 0.0, %v341
      %v343 = vpop.f32.mrb[0].mxu0
      %v344 = vpop.f32.mrb[0].mxu0
      %v345 = vadd.f32 0.0, %v344
      %v346 = vpop.f32.mrb[0].mxu0
      %347 = vmatprep.mubr.bf16.mxu0 0
      %348 = vmatmul.mubr.bf16.gmra.mrb[0].mxu0 %v281
      %v349 = vpop.f32.mrb[0].mxu0
      %v350 = vadd.f32 0.0, %v349
      %v351 = vpop.f32.mrb[0].mxu0
      %v352 = vpop.f32.mrb[0].mxu0
      %v353 = vadd.f32 0.0, %v352
      %v354 = vpop.f32.mrb[0].mxu0
      %355 = vdwg.mxu0
      %v364 = vunpack.c.l.b16 %v209
      %v365 = vunpack.c.l.b16 %v210
      %v366 = vunpack.c.l.b16 %v211
      %v367 = vunpack.c.l.b16 %v212
      %v368 = vunpack.c.l.b16 %v213
      %v369 = vunpack.c.l.b16 %v214
      %v370 = vunpack.c.l.b16 %v215
      %v371 = vunpack.c.l.b16 %v216
      %v372 = vpack.c.b16 %v365, %v364
      %v373 = vpack.c.b16 %v367, %v366
      %v374 = vpack.c.b16 %v369, %v368
      %v375 = vpack.c.b16 %v371, %v370
      %v381 = vsel %vm267, %v204, 0
      %v384 = vsel %vm267, %v205, 0
      %v387 = vsel %vm267, %v206, 0
      %v390 = vsel %vm267, %v207, 0
      %v393 = vsel %vm267, %v208, 0
      %395 = vmatprep.subr.bf16.mxu0 0
      %396 = vmatpush1.bf16.msra.mxu0 %v372
      %397 = vmatprep.subr.bf16.mxu0 0
      %398 = vmatpush1.bf16.msra.mxu0 %v373
      %399 = vmatprep.subr.bf16.mxu0 0
      %400 = vmatpush1.bf16.msra.mxu0 %v374
      %401 = vmatprep.subr.bf16.mxu0 0
      %402 = vmatpush1.bf16.msra.mxu0 %v375
      %403 = vmatprep.subr.bf16.mxu0 0
      %404 = vmatpush1.bf16.msra.mxu0 0
      %405 = vmatprep.subr.bf16.mxu0 0
      %406 = vmatpush1.bf16.msra.mxu0 0
      %407 = vmatprep.subr.bf16.mxu0 0
      %408 = vmatpush1.bf16.msra.mxu0 0
      %409 = vmatprep.subr.bf16.mxu0 0
      %410 = vmatpush1.bf16.msra.mxu0 0
      %411 = vmatprep.subr.bf16.mxu0 0
      %412 = vmatpush1.bf16.msra.mxu0 0
      %413 = vmatprep.subr.bf16.mxu0 0
      %414 = vmatpush1.bf16.msra.mxu0 0
      %415 = vmatprep.subr.bf16.mxu0 0
      %416 = vmatpush1.bf16.msra.mxu0 0
      %417 = vmatprep.subr.bf16.mxu0 0
      %418 = vmatpush1.bf16.msra.mxu0 0
      %419 = vmatprep.subr.bf16.mxu0 0
      %420 = vmatpush1.bf16.msra.mxu0 0
      %421 = vmatprep.subr.bf16.mxu0 0
      %422 = vmatpush1.bf16.msra.mxu0 0
      %423 = vmatprep.subr.bf16.mxu0 0
      %424 = vmatpush1.bf16.msra.mxu0 0
      %425 = vmatprep.subr.bf16.mxu0 0
      %426 = vmatpush1.bf16.msra.mxu0 0
      %427 = vmatprep.mubr.bf16.mxu0 0
      %428 = vmatmul.mubr.bf16.gmra.mrb[0].mxu0 %v381
      %v429 = vpop.f32.mrb[0].mxu0
      %v430 = vadd.f32 %v318, %v429
      %v431 = vpop.f32.mrb[0].mxu0
      %v432 = vpop.f32.mrb[0].mxu0
      %v433 = vadd.f32 %v321, %v432
      %v434 = vpop.f32.mrb[0].mxu0
      %435 = vmatprep.mubr.bf16.mxu0 0
      %436 = vmatmul.mubr.bf16.gmra.mrb[0].mxu0 %v384
      %v437 = vpop.f32.mrb[0].mxu0
      %v438 = vadd.f32 %v326, %v437
      %v439 = vpop.f32.mrb[0].mxu0
      %v440 = vpop.f32.mrb[0].mxu0
      %v441 = vadd.f32 %v329, %v440
      %v442 = vpop.f32.mrb[0].mxu0
      %443 = vmatprep.mubr.bf16.mxu0 0
      %444 = vmatmul.mubr.bf16.gmra.mrb[0].mxu0 %v387
      %v445 = vpop.f32.mrb[0].mxu0
      %v446 = vadd.f32 %v334, %v445
      %v447 = vpop.f32.mrb[0].mxu0
      %v448 = vpop.f32.mrb[0].mxu0
      %v449 = vadd.f32 %v337, %v448
      %v450 = vpop.f32.mrb[0].mxu0
      %451 = vmatprep.mubr.bf16.mxu0 0
      %452 = vmatmul.mubr.bf16.gmra.mrb[0].mxu0 %v390
      %v453 = vpop.f32.mrb[0].mxu0
      %v454 = vadd.f32 %v342, %v453
      %v455 = vpop.f32.mrb[0].mxu0
      %v456 = vpop.f32.mrb[0].mxu0
      %v457 = vadd.f32 %v345, %v456
      %v458 = vpop.f32.mrb[0].mxu0
      %459 = vmatprep.mubr.bf16.mxu0 0
      %460 = vmatmul.mubr.bf16.gmra.mrb[0].mxu0 %v393
      %v461 = vpop.f32.mrb[0].mxu0
      %v462 = vadd.f32 %v350, %v461
      %v463 = vpop.f32.mrb[0].mxu0
      %v464 = vpop.f32.mrb[0].mxu0
      %v465 = vadd.f32 %v353, %v464
      %v466 = vpop.f32.mrb[0].mxu0
      %467 = vdwg.mxu0
      %s468 = sadd.s32 %s192, 2
      %s469 = scalar_lea.vmem %s181, %s468
      %v470 = vld [vmem:[%s469] sm:$0xff]
      %v471 = vld [vmem:[%s469 + $0x8] sm:$0xff]
      %v472 = vld [vmem:[%s469 + $0x10] sm:$0xff]
      %v473 = vld [vmem:[%s469 + $0x18] sm:$0xff]
      %v474 = vld [vmem:[%s469 + $0x20] sm:$0xff]
      %v475 = vld [vmem:[%s469 + $0x28] sm:$0xff]
      %v476 = vld [vmem:[%s469 + $0x30] sm:$0xff]
      %v477 = vld [vmem:[%s469 + $0x38] sm:$0xff]
      %v478 = vld [vmem:[%s469 + $0x40] sm:$0xff]
      %v479 = vld [vmem:[%s469 + $0x48] sm:$0xff]
      %v480 = vpack.c.bf16 %v471, %v470
      %v481 = vpack.c.bf16 %v473, %v472
      %v482 = vpack.c.bf16 %v475, %v474
      %v483 = vpack.c.bf16 %v477, %v476
      %v484 = vpack.c.bf16 %v479, %v478
      %s485 = scalar_lea.vmem %s1, 64
      %v486 = vld [vmem:[%s485] sm:$0xf]
      %v487 = vld [vmem:[%s485 + $0x4] sm:$0xf]
      %v488 = vld [vmem:[%s485 + $0x8] sm:$0xf]
      %v489 = vld [vmem:[%s485 + $0xc] sm:$0xf]
      %v490 = vld [vmem:[%s485 + $0x10] sm:$0xf]
      %v491 = vld [vmem:[%s485 + $0x14] sm:$0xf]
      %v492 = vld [vmem:[%s485 + $0x18] sm:$0xf]
      %v493 = vld [vmem:[%s485 + $0x1c] sm:$0xf]
      %v502 = vunpack.c.l.b16 %v486
      %v503 = vunpack.c.l.b16 %v487
      %v504 = vunpack.c.l.b16 %v488
      %v505 = vunpack.c.l.b16 %v489
      %v506 = vunpack.c.l.b16 %v490
      %v507 = vunpack.c.l.b16 %v491
      %v508 = vunpack.c.l.b16 %v492
      %v509 = vunpack.c.l.b16 %v493
      %v510 = vpack.c.b16 %v503, %v502
      %v511 = vpack.c.b16 %v505, %v504
      %v512 = vpack.c.b16 %v507, %v506
      %v513 = vpack.c.b16 %v509, %v508
      %v519 = vsel %vm267, %v480, 0
      %v522 = vsel %vm267, %v481, 0
      %v525 = vsel %vm267, %v482, 0
      %v528 = vsel %vm267, %v483, 0
      %v531 = vsel %vm267, %v484, 0
      %533 = vmatprep.subr.bf16.mxu0 0
      %534 = vmatpush1.bf16.msra.mxu0 %v510
      %535 = vmatprep.subr.bf16.mxu0 0
      %536 = vmatpush1.bf16.msra.mxu0 %v511
      %537 = vmatprep.subr.bf16.mxu0 0
      %538 = vmatpush1.bf16.msra.mxu0 %v512
      %539 = vmatprep.subr.bf16.mxu0 0
      %540 = vmatpush1.bf16.msra.mxu0 %v513
      %541 = vmatprep.subr.bf16.mxu0 0
      %542 = vmatpush1.bf16.msra.mxu0 0
      %543 = vmatprep.subr.bf16.mxu0 0
      %544 = vmatpush1.bf16.msra.mxu0 0
      %545 = vmatprep.subr.bf16.mxu0 0
      %546 = vmatpush1.bf16.msra.mxu0 0
      %547 = vmatprep.subr.bf16.mxu0 0
      %548 = vmatpush1.bf16.msra.mxu0 0
      %549 = vmatprep.subr.bf16.mxu0 0
      %550 = vmatpush1.bf16.msra.mxu0 0
      %551 = vmatprep.subr.bf16.mxu0 0
      %552 = vmatpush1.bf16.msra.mxu0 0
      %553 = vmatprep.subr.bf16.mxu0 0
      %554 = vmatpush1.bf16.msra.mxu0 0
      %555 = vmatprep.subr.bf16.mxu0 0
      %556 = vmatpush1.bf16.msra.mxu0 0
      %557 = vmatprep.subr.bf16.mxu0 0
      %558 = vmatpush1.bf16.msra.mxu0 0
      %559 = vmatprep.subr.bf16.mxu0 0
      %560 = vmatpush1.bf16.msra.mxu0 0
      %561 = vmatprep.subr.bf16.mxu0 0
      %562 = vmatpush1.bf16.msra.mxu0 0
      %563 = vmatprep.subr.bf16.mxu0 0
      %564 = vmatpush1.bf16.msra.mxu0 0
      %565 = vmatprep.mubr.bf16.mxu0 0
      %566 = vmatmul.mubr.bf16.gmra.mrb[0].mxu0 %v519
      %v567 = vpop.f32.mrb[0].mxu0
      %v568 = vadd.f32 0.0, %v567
      %v569 = vpop.f32.mrb[0].mxu0
      %v570 = vpop.f32.mrb[0].mxu0
      %v571 = vadd.f32 0.0, %v570
      %v572 = vpop.f32.mrb[0].mxu0
      %573 = vmatprep.mubr.bf16.mxu0 0
      %574 = vmatmul.mubr.bf16.gmra.mrb[0].mxu0 %v522
      %v575 = vpop.f32.mrb[0].mxu0
      %v576 = vadd.f32 0.0, %v575
      %v577 = vpop.f32.mrb[0].mxu0
      %v578 = vpop.f32.mrb[0].mxu0
      %v579 = vadd.f32 0.0, %v578
      %v580 = vpop.f32.mrb[0].mxu0
      %581 = vmatprep.mubr.bf16.mxu0 0
      %582 = vmatmul.mubr.bf16.gmra.mrb[0].mxu0 %v525
      %v583 = vpop.f32.mrb[0].mxu0
      %v584 = vadd.f32 0.0, %v583
      %v585 = vpop.f32.mrb[0].mxu0
      %v586 = vpop.f32.mrb[0].mxu0
      %v587 = vadd.f32 0.0, %v586
      %v588 = vpop.f32.mrb[0].mxu0
      %589 = vmatprep.mubr.bf16.mxu0 0
      %590 = vmatmul.mubr.bf16.gmra.mrb[0].mxu0 %v528
      %v591 = vpop.f32.mrb[0].mxu0
      %v592 = vadd.f32 0.0, %v591
      %v593 = vpop.f32.mrb[0].mxu0
      %v594 = vpop.f32.mrb[0].mxu0
      %v595 = vadd.f32 0.0, %v594
      %v596 = vpop.f32.mrb[0].mxu0
      %597 = vmatprep.mubr.bf16.mxu0 0
      %598 = vmatmul.mubr.bf16.gmra.mrb[0].mxu0 %v531
      %v599 = vpop.f32.mrb[0].mxu0
      %v600 = vadd.f32 0.0, %v599
      %v601 = vpop.f32.mrb[0].mxu0
      %v602 = vpop.f32.mrb[0].mxu0
      %v603 = vadd.f32 0.0, %v602
      %v604 = vpop.f32.mrb[0].mxu0
      %605 = vdwg.mxu0
      %v606 = vadd.f32 %v430, %v568
      %v607 = vadd.f32 %v433, %v571
      %v608 = vadd.f32 %v438, %v576
      %v609 = vadd.f32 %v441, %v579
      %v610 = vadd.f32 %v446, %v584
      %v611 = vadd.f32 %v449, %v587
      %v612 = vadd.f32 %v454, %v592
      %v613 = vadd.f32 %v457, %v595
      %v614 = vadd.f32 %v462, %v600
      %v615 = vadd.f32 %v465, %v603
      %s616 = sadd.s32 %s192, 10
      %s617 = scalar_lea.vmem %s181, %s616
      %v618 = vld [vmem:[%s617] sm:$0xff]
      %v619 = vld [vmem:[%s617 + $0x8] sm:$0xff]
      %v620 = vld [vmem:[%s617 + $0x10] sm:$0xff]
      %v621 = vld [vmem:[%s617 + $0x18] sm:$0xff]
      %v622 = vld [vmem:[%s617 + $0x20] sm:$0xff]
      %v623 = vld [vmem:[%s617 + $0x28] sm:$0xff]
      %v624 = vld [vmem:[%s617 + $0x30] sm:$0xff]
      %v625 = vld [vmem:[%s617 + $0x38] sm:$0xff]
      %v626 = vld [vmem:[%s617 + $0x40] sm:$0xff]
      %v627 = vld [vmem:[%s617 + $0x48] sm:$0xff]
      %v628 = vpack.c.bf16 %v619, %v618
      %v629 = vpack.c.bf16 %v621, %v620
      %v630 = vpack.c.bf16 %v623, %v622
      %v631 = vpack.c.bf16 %v625, %v624
      %v632 = vpack.c.bf16 %v627, %v626
      %s633 = scalar_lea.vmem %s1, 96
      %v634 = vld [vmem:[%s633] sm:$0xf]
      %v635 = vld [vmem:[%s633 + $0x4] sm:$0xf]
      %v636 = vld [vmem:[%s633 + $0x8] sm:$0xf]
      %v637 = vld [vmem:[%s633 + $0xc] sm:$0xf]
      %v638 = vld [vmem:[%s633 + $0x10] sm:$0xf]
      %v639 = vld [vmem:[%s633 + $0x14] sm:$0xf]
      %v640 = vld [vmem:[%s633 + $0x18] sm:$0xf]
      %v641 = vld [vmem:[%s633 + $0x1c] sm:$0xf]
      %v650 = vunpack.c.l.b16 %v634
      %v651 = vunpack.c.l.b16 %v635
      %v652 = vunpack.c.l.b16 %v636
      %v653 = vunpack.c.l.b16 %v637
      %v654 = vunpack.c.l.b16 %v638
      %v655 = vunpack.c.l.b16 %v639
      %v656 = vunpack.c.l.b16 %v640
      %v657 = vunpack.c.l.b16 %v641
      %v658 = vpack.c.b16 %v651, %v650
      %v659 = vpack.c.b16 %v653, %v652
      %v660 = vpack.c.b16 %v655, %v654
      %v661 = vpack.c.b16 %v657, %v656
      %v667 = vsel %vm267, %v628, 0
      %v670 = vsel %vm267, %v629, 0
      %v673 = vsel %vm267, %v630, 0
      %v676 = vsel %vm267, %v631, 0
      %v679 = vsel %vm267, %v632, 0
      %681 = vmatprep.subr.bf16.mxu0 0
      %682 = vmatpush1.bf16.msra.mxu0 %v658
      %683 = vmatprep.subr.bf16.mxu0 0
      %684 = vmatpush1.bf16.msra.mxu0 %v659
      %685 = vmatprep.subr.bf16.mxu0 0
      %686 = vmatpush1.bf16.msra.mxu0 %v660
      %687 = vmatprep.subr.bf16.mxu0 0
      %688 = vmatpush1.bf16.msra.mxu0 %v661
      %689 = vmatprep.subr.bf16.mxu0 0
      %690 = vmatpush1.bf16.msra.mxu0 0
      %691 = vmatprep.subr.bf16.mxu0 0
      %692 = vmatpush1.bf16.msra.mxu0 0
      %693 = vmatprep.subr.bf16.mxu0 0
      %694 = vmatpush1.bf16.msra.mxu0 0
      %695 = vmatprep.subr.bf16.mxu0 0
      %696 = vmatpush1.bf16.msra.mxu0 0
      %697 = vmatprep.subr.bf16.mxu0 0
      %698 = vmatpush1.bf16.msra.mxu0 0
      %699 = vmatprep.subr.bf16.mxu0 0
      %700 = vmatpush1.bf16.msra.mxu0 0
      %701 = vmatprep.subr.bf16.mxu0 0
      %702 = vmatpush1.bf16.msra.mxu0 0
      %703 = vmatprep.subr.bf16.mxu0 0
      %704 = vmatpush1.bf16.msra.mxu0 0
      %705 = vmatprep.subr.bf16.mxu0 0
      %706 = vmatpush1.bf16.msra.mxu0 0
      %707 = vmatprep.subr.bf16.mxu0 0
      %708 = vmatpush1.bf16.msra.mxu0 0
      %709 = vmatprep.subr.bf16.mxu0 0
      %710 = vmatpush1.bf16.msra.mxu0 0
      %711 = vmatprep.subr.bf16.mxu0 0
      %712 = vmatpush1.bf16.msra.mxu0 0
      %713 = vmatprep.mubr.bf16.mxu0 0
      %714 = vmatmul.mubr.bf16.gmra.mrb[0].mxu0 %v667
      %v715 = vpop.f32.mrb[0].mxu0
      %v716 = vadd.f32 0.0, %v715
      %v717 = vpop.f32.mrb[0].mxu0
      %v718 = vpop.f32.mrb[0].mxu0
      %v719 = vadd.f32 0.0, %v718
      %v720 = vpop.f32.mrb[0].mxu0
      %721 = vmatprep.mubr.bf16.mxu0 0
      %722 = vmatmul.mubr.bf16.gmra.mrb[0].mxu0 %v670
      %v723 = vpop.f32.mrb[0].mxu0
      %v724 = vadd.f32 0.0, %v723
      %v725 = vpop.f32.mrb[0].mxu0
      %v726 = vpop.f32.mrb[0].mxu0
      %v727 = vadd.f32 0.0, %v726
      %v728 = vpop.f32.mrb[0].mxu0
      %729 = vmatprep.mubr.bf16.mxu0 0
      %730 = vmatmul.mubr.bf16.gmra.mrb[0].mxu0 %v673
      %v731 = vpop.f32.mrb[0].mxu0
      %v732 = vadd.f32 0.0, %v731
      %v733 = vpop.f32.mrb[0].mxu0
      %v734 = vpop.f32.mrb[0].mxu0
      %v735 = vadd.f32 0.0, %v734
      %v736 = vpop.f32.mrb[0].mxu0
      %737 = vmatprep.mubr.bf16.mxu0 0
      %738 = vmatmul.mubr.bf16.gmra.mrb[0].mxu0 %v676
      %v739 = vpop.f32.mrb[0].mxu0
      %v740 = vadd.f32 0.0, %v739
      %v741 = vpop.f32.mrb[0].mxu0
      %v742 = vpop.f32.mrb[0].mxu0
      %v743 = vadd.f32 0.0, %v742
      %v744 = vpop.f32.mrb[0].mxu0
      %745 = vmatprep.mubr.bf16.mxu0 0
      %746 = vmatmul.mubr.bf16.gmra.mrb[0].mxu0 %v679
      %v747 = vpop.f32.mrb[0].mxu0
      %v748 = vadd.f32 0.0, %v747
      %v749 = vpop.f32.mrb[0].mxu0
      %v750 = vpop.f32.mrb[0].mxu0
      %v751 = vadd.f32 0.0, %v750
      %v752 = vpop.f32.mrb[0].mxu0
      %753 = vdwg.mxu0
      %v754 = vadd.f32 %v606, %v716
      %v755 = vadd.f32 %v607, %v719
      %v756 = vadd.f32 %v608, %v724
      %v757 = vadd.f32 %v609, %v727
      %v758 = vadd.f32 %v610, %v732
      %v759 = vadd.f32 %v611, %v735
      %v760 = vadd.f32 %v612, %v740
      %v761 = vadd.f32 %v613, %v743
      %v762 = vadd.f32 %v614, %v748
      %v763 = vadd.f32 %v615, %v751
      %s764 = sadd.s32 %s192, 11
      %s765 = scalar_lea.vmem %s181, %s764
      %v766 = vld [vmem:[%s765] sm:$0xff]
      %v767 = vld [vmem:[%s765 + $0x8] sm:$0xff]
      %v768 = vld [vmem:[%s765 + $0x10] sm:$0xff]
      %v769 = vld [vmem:[%s765 + $0x18] sm:$0xff]
      %v770 = vld [vmem:[%s765 + $0x20] sm:$0xff]
      %v771 = vld [vmem:[%s765 + $0x28] sm:$0xff]
      %v772 = vld [vmem:[%s765 + $0x30] sm:$0xff]
      %v773 = vld [vmem:[%s765 + $0x38] sm:$0xff]
      %v774 = vld [vmem:[%s765 + $0x40] sm:$0xff]
      %v775 = vld [vmem:[%s765 + $0x48] sm:$0xff]
      %v776 = vpack.c.bf16 %v767, %v766
      %v777 = vpack.c.bf16 %v769, %v768
      %v778 = vpack.c.bf16 %v771, %v770
      %v779 = vpack.c.bf16 %v773, %v772
      %v780 = vpack.c.bf16 %v775, %v774
      %s781 = scalar_lea.vmem %s1, 128
      %v782 = vld [vmem:[%s781] sm:$0xf]
      %v783 = vld [vmem:[%s781 + $0x4] sm:$0xf]
      %v784 = vld [vmem:[%s781 + $0x8] sm:$0xf]
      %v785 = vld [vmem:[%s781 + $0xc] sm:$0xf]
      %v786 = vld [vmem:[%s781 + $0x10] sm:$0xf]
      %v787 = vld [vmem:[%s781 + $0x14] sm:$0xf]
      %v788 = vld [vmem:[%s781 + $0x18] sm:$0xf]
      %v789 = vld [vmem:[%s781 + $0x1c] sm:$0xf]
      %v798 = vunpack.c.l.b16 %v782
      %v799 = vunpack.c.l.b16 %v783
      %v800 = vunpack.c.l.b16 %v784
      %v801 = vunpack.c.l.b16 %v785
      %v802 = vunpack.c.l.b16 %v786
      %v803 = vunpack.c.l.b16 %v787
      %v804 = vunpack.c.l.b16 %v788
      %v805 = vunpack.c.l.b16 %v789
      %v806 = vpack.c.b16 %v799, %v798
      %v807 = vpack.c.b16 %v801, %v800
      %v808 = vpack.c.b16 %v803, %v802
      %v809 = vpack.c.b16 %v805, %v804
      %v815 = vsel %vm267, %v776, 0
      %v818 = vsel %vm267, %v777, 0
      %v821 = vsel %vm267, %v778, 0
      %v824 = vsel %vm267, %v779, 0
      %v827 = vsel %vm267, %v780, 0
      %829 = vmatprep.subr.bf16.mxu0 0
      %830 = vmatpush1.bf16.msra.mxu0 %v806
      %831 = vmatprep.subr.bf16.mxu0 0
      %832 = vmatpush1.bf16.msra.mxu0 %v807
      %833 = vmatprep.subr.bf16.mxu0 0
      %834 = vmatpush1.bf16.msra.mxu0 %v808
      %835 = vmatprep.subr.bf16.mxu0 0
      %836 = vmatpush1.bf16.msra.mxu0 %v809
      %837 = vmatprep.subr.bf16.mxu0 0
      %838 = vmatpush1.bf16.msra.mxu0 0
      %839 = vmatprep.subr.bf16.mxu0 0
      %840 = vmatpush1.bf16.msra.mxu0 0
      %841 = vmatprep.subr.bf16.mxu0 0
      %842 = vmatpush1.bf16.msra.mxu0 0
      %843 = vmatprep.subr.bf16.mxu0 0
      %844 = vmatpush1.bf16.msra.mxu0 0
      %845 = vmatprep.subr.bf16.mxu0 0
      %846 = vmatpush1.bf16.msra.mxu0 0
      %847 = vmatprep.subr.bf16.mxu0 0
      %848 = vmatpush1.bf16.msra.mxu0 0
      %849 = vmatprep.subr.bf16.mxu0 0
      %850 = vmatpush1.bf16.msra.mxu0 0
      %851 = vmatprep.subr.bf16.mxu0 0
      %852 = vmatpush1.bf16.msra.mxu0 0
      %853 = vmatprep.subr.bf16.mxu0 0
      %854 = vmatpush1.bf16.msra.mxu0 0
      %855 = vmatprep.subr.bf16.mxu0 0
      %856 = vmatpush1.bf16.msra.mxu0 0
      %857 = vmatprep.subr.bf16.mxu0 0
      %858 = vmatpush1.bf16.msra.mxu0 0
      %859 = vmatprep.subr.bf16.mxu0 0
      %860 = vmatpush1.bf16.msra.mxu0 0
      %861 = vmatprep.mubr.bf16.mxu0 0
      %862 = vmatmul.mubr.bf16.gmra.mrb[0].mxu0 %v815
      %v863 = vpop.f32.mrb[0].mxu0
      %v864 = vadd.f32 0.0, %v863
      %v865 = vpop.f32.mrb[0].mxu0
      %v866 = vpop.f32.mrb[0].mxu0
      %v867 = vadd.f32 0.0, %v866
      %v868 = vpop.f32.mrb[0].mxu0
      %869 = vmatprep.mubr.bf16.mxu0 0
      %870 = vmatmul.mubr.bf16.gmra.mrb[0].mxu0 %v818
      %v871 = vpop.f32.mrb[0].mxu0
      %v872 = vadd.f32 0.0, %v871
      %v873 = vpop.f32.mrb[0].mxu0
      %v874 = vpop.f32.mrb[0].mxu0
      %v875 = vadd.f32 0.0, %v874
      %v876 = vpop.f32.mrb[0].mxu0
      %877 = vmatprep.mubr.bf16.mxu0 0
      %878 = vmatmul.mubr.bf16.gmra.mrb[0].mxu0 %v821
      %v879 = vpop.f32.mrb[0].mxu0
      %v880 = vadd.f32 0.0, %v879
      %v881 = vpop.f32.mrb[0].mxu0
      %v882 = vpop.f32.mrb[0].mxu0
      %v883 = vadd.f32 0.0, %v882
      %v884 = vpop.f32.mrb[0].mxu0
      %885 = vmatprep.mubr.bf16.mxu0 0
      %886 = vmatmul.mubr.bf16.gmra.mrb[0].mxu0 %v824
      %v887 = vpop.f32.mrb[0].mxu0
      %v888 = vadd.f32 0.0, %v887
      %v889 = vpop.f32.mrb[0].mxu0
      %v890 = vpop.f32.mrb[0].mxu0
      %v891 = vadd.f32 0.0, %v890
      %v892 = vpop.f32.mrb[0].mxu0
      %893 = vmatprep.mubr.bf16.mxu0 0
      %894 = vmatmul.mubr.bf16.gmra.mrb[0].mxu0 %v827
      %v895 = vpop.f32.mrb[0].mxu0
      %v896 = vadd.f32 0.0, %v895
      %v897 = vpop.f32.mrb[0].mxu0
      %v898 = vpop.f32.mrb[0].mxu0
      %v899 = vadd.f32 0.0, %v898
      %v900 = vpop.f32.mrb[0].mxu0
      %901 = vdwg.mxu0
      %v902 = vadd.f32 %v754, %v864
      %v903 = vadd.f32 %v755, %v867
      %v904 = vadd.f32 %v756, %v872
      %v905 = vadd.f32 %v757, %v875
      %v906 = vadd.f32 %v758, %v880
      %v907 = vadd.f32 %v759, %v883
      %v908 = vadd.f32 %v760, %v888
      %v909 = vadd.f32 %v761, %v891
      %v910 = vadd.f32 %v762, %v896
      %v911 = vadd.f32 %v763, %v899
      %s912 = sadd.s32 %s192, 12
      %s913 = scalar_lea.vmem %s181, %s912
      %v914 = vld [vmem:[%s913] sm:$0xff]
      %v915 = vld [vmem:[%s913 + $0x8] sm:$0xff]
      %v916 = vld [vmem:[%s913 + $0x10] sm:$0xff]
      %v917 = vld [vmem:[%s913 + $0x18] sm:$0xff]
      %v918 = vld [vmem:[%s913 + $0x20] sm:$0xff]
      %v919 = vld [vmem:[%s913 + $0x28] sm:$0xff]
      %v920 = vld [vmem:[%s913 + $0x30] sm:$0xff]
      %v921 = vld [vmem:[%s913 + $0x38] sm:$0xff]
      %v922 = vld [vmem:[%s913 + $0x40] sm:$0xff]
      %v923 = vld [vmem:[%s913 + $0x48] sm:$0xff]
      %v924 = vpack.c.bf16 %v915, %v914
      %v925 = vpack.c.bf16 %v917, %v916
      %v926 = vpack.c.bf16 %v919, %v918
      %v927 = vpack.c.bf16 %v921, %v920
      %v928 = vpack.c.bf16 %v923, %v922
      %s929 = scalar_lea.vmem %s1, 160
      %v930 = vld [vmem:[%s929] sm:$0xf]
      %v931 = vld [vmem:[%s929 + $0x4] sm:$0xf]
      %v932 = vld [vmem:[%s929 + $0x8] sm:$0xf]
      %v933 = vld [vmem:[%s929 + $0xc] sm:$0xf]
      %v934 = vld [vmem:[%s929 + $0x10] sm:$0xf]
      %v935 = vld [vmem:[%s929 + $0x14] sm:$0xf]
      %v936 = vld [vmem:[%s929 + $0x18] sm:$0xf]
      %v937 = vld [vmem:[%s929 + $0x1c] sm:$0xf]
      %v946 = vunpack.c.l.b16 %v930
      %v947 = vunpack.c.l.b16 %v931
      %v948 = vunpack.c.l.b16 %v932
      %v949 = vunpack.c.l.b16 %v933
      %v950 = vunpack.c.l.b16 %v934
      %v951 = vunpack.c.l.b16 %v935
      %v952 = vunpack.c.l.b16 %v936
      %v953 = vunpack.c.l.b16 %v937
      %v954 = vpack.c.b16 %v947, %v946
      %v955 = vpack.c.b16 %v949, %v948
      %v956 = vpack.c.b16 %v951, %v950
      %v957 = vpack.c.b16 %v953, %v952
      %v963 = vsel %vm267, %v924, 0
      %v966 = vsel %vm267, %v925, 0
      %v969 = vsel %vm267, %v926, 0
      %v972 = vsel %vm267, %v927, 0
      %v975 = vsel %vm267, %v928, 0
      %977 = vmatprep.subr.bf16.mxu0 0
      %978 = vmatpush1.bf16.msra.mxu0 %v954
      %979 = vmatprep.subr.bf16.mxu0 0
      %980 = vmatpush1.bf16.msra.mxu0 %v955
      %981 = vmatprep.subr.bf16.mxu0 0
      %982 = vmatpush1.bf16.msra.mxu0 %v956
      %983 = vmatprep.subr.bf16.mxu0 0
      %984 = vmatpush1.bf16.msra.mxu0 %v957
      %985 = vmatprep.subr.bf16.mxu0 0
      %986 = vmatpush1.bf16.msra.mxu0 0
      %987 = vmatprep.subr.bf16.mxu0 0
      %988 = vmatpush1.bf16.msra.mxu0 0
      %989 = vmatprep.subr.bf16.mxu0 0
      %990 = vmatpush1.bf16.msra.mxu0 0
      %991 = vmatprep.subr.bf16.mxu0 0
      %992 = vmatpush1.bf16.msra.mxu0 0
      %993 = vmatprep.subr.bf16.mxu0 0
      %994 = vmatpush1.bf16.msra.mxu0 0
      %995 = vmatprep.subr.bf16.mxu0 0
      %996 = vmatpush1.bf16.msra.mxu0 0
      %997 = vmatprep.subr.bf16.mxu0 0
      %998 = vmatpush1.bf16.msra.mxu0 0
      %999 = vmatprep.subr.bf16.mxu0 0
      %1000 = vmatpush1.bf16.msra.mxu0 0
      %1001 = vmatprep.subr.bf16.mxu0 0
      %1002 = vmatpush1.bf16.msra.mxu0 0
      %1003 = vmatprep.subr.bf16.mxu0 0
      %1004 = vmatpush1.bf16.msra.mxu0 0
      %1005 = vmatprep.subr.bf16.mxu0 0
      %1006 = vmatpush1.bf16.msra.mxu0 0
      %1007 = vmatprep.subr.bf16.mxu0 0
      %1008 = vmatpush1.bf16.msra.mxu0 0
      %1009 = vmatprep.mubr.bf16.mxu0 0
      %1010 = vmatmul.mubr.bf16.gmra.mrb[0].mxu0 %v963
      %v1011 = vpop.f32.mrb[0].mxu0
      %v1012 = vadd.f32 0.0, %v1011
      %v1013 = vpop.f32.mrb[0].mxu0
      %v1014 = vpop.f32.mrb[0].mxu0
      %v1015 = vadd.f32 0.0, %v1014
      %v1016 = vpop.f32.mrb[0].mxu0
      %1017 = vmatprep.mubr.bf16.mxu0 0
      %1018 = vmatmul.mubr.bf16.gmra.mrb[0].mxu0 %v966
      %v1019 = vpop.f32.mrb[0].mxu0
      %v1020 = vadd.f32 0.0, %v1019
      %v1021 = vpop.f32.mrb[0].mxu0
      %v1022 = vpop.f32.mrb[0].mxu0
      %v1023 = vadd.f32 0.0, %v1022
      %v1024 = vpop.f32.mrb[0].mxu0
      %1025 = vmatprep.mubr.bf16.mxu0 0
      %1026 = vmatmul.mubr.bf16.gmra.mrb[0].mxu0 %v969
      %v1027 = vpop.f32.mrb[0].mxu0
      %v1028 = vadd.f32 0.0, %v1027
      %v1029 = vpop.f32.mrb[0].mxu0
      %v1030 = vpop.f32.mrb[0].mxu0
      %v1031 = vadd.f32 0.0, %v1030
      %v1032 = vpop.f32.mrb[0].mxu0
      %1033 = vmatprep.mubr.bf16.mxu0 0
      %1034 = vmatmul.mubr.bf16.gmra.mrb[0].mxu0 %v972
      %v1035 = vpop.f32.mrb[0].mxu0
      %v1036 = vadd.f32 0.0, %v1035
      %v1037 = vpop.f32.mrb[0].mxu0
      %v1038 = vpop.f32.mrb[0].mxu0
      %v1039 = vadd.f32 0.0, %v1038
      %v1040 = vpop.f32.mrb[0].mxu0
      %1041 = vmatprep.mubr.bf16.mxu0 0
      %1042 = vmatmul.mubr.bf16.gmra.mrb[0].mxu0 %v975
      %v1043 = vpop.f32.mrb[0].mxu0
      %v1044 = vadd.f32 0.0, %v1043
      %v1045 = vpop.f32.mrb[0].mxu0
      %v1046 = vpop.f32.mrb[0].mxu0
      %v1047 = vadd.f32 0.0, %v1046
      %v1048 = vpop.f32.mrb[0].mxu0
      %1049 = vdwg.mxu0
      %v1050 = vadd.f32 %v902, %v1012
      %v1051 = vadd.f32 %v903, %v1015
      %v1052 = vadd.f32 %v904, %v1020
      %v1053 = vadd.f32 %v905, %v1023
      %v1054 = vadd.f32 %v906, %v1028
      %v1055 = vadd.f32 %v907, %v1031
      %v1056 = vadd.f32 %v908, %v1036
      %v1057 = vadd.f32 %v909, %v1039
      %v1058 = vadd.f32 %v910, %v1044
      %v1059 = vadd.f32 %v911, %v1047
      %s1060 = sadd.s32 %s192, 20
      %s1061 = scalar_lea.vmem %s181, %s1060
      %v1062 = vld [vmem:[%s1061] sm:$0xff]
      %v1063 = vld [vmem:[%s1061 + $0x8] sm:$0xff]
      %v1064 = vld [vmem:[%s1061 + $0x10] sm:$0xff]
      %v1065 = vld [vmem:[%s1061 + $0x18] sm:$0xff]
      %v1066 = vld [vmem:[%s1061 + $0x20] sm:$0xff]
      %v1067 = vld [vmem:[%s1061 + $0x28] sm:$0xff]
      %v1068 = vld [vmem:[%s1061 + $0x30] sm:$0xff]
      %v1069 = vld [vmem:[%s1061 + $0x38] sm:$0xff]
      %v1070 = vld [vmem:[%s1061 + $0x40] sm:$0xff]
      %v1071 = vld [vmem:[%s1061 + $0x48] sm:$0xff]
      %v1072 = vpack.c.bf16 %v1063, %v1062
      %v1073 = vpack.c.bf16 %v1065, %v1064
      %v1074 = vpack.c.bf16 %v1067, %v1066
      %v1075 = vpack.c.bf16 %v1069, %v1068
      %v1076 = vpack.c.bf16 %v1071, %v1070
      %s1077 = scalar_lea.vmem %s1, 192
      %v1078 = vld [vmem:[%s1077] sm:$0xf]
      %v1079 = vld [vmem:[%s1077 + $0x4] sm:$0xf]
      %v1080 = vld [vmem:[%s1077 + $0x8] sm:$0xf]
      %v1081 = vld [vmem:[%s1077 + $0xc] sm:$0xf]
      %v1082 = vld [vmem:[%s1077 + $0x10] sm:$0xf]
      %v1083 = vld [vmem:[%s1077 + $0x14] sm:$0xf]
      %v1084 = vld [vmem:[%s1077 + $0x18] sm:$0xf]
      %v1085 = vld [vmem:[%s1077 + $0x1c] sm:$0xf]
      %v1094 = vunpack.c.l.b16 %v1078
      %v1095 = vunpack.c.l.b16 %v1079
      %v1096 = vunpack.c.l.b16 %v1080
      %v1097 = vunpack.c.l.b16 %v1081
      %v1098 = vunpack.c.l.b16 %v1082
      %v1099 = vunpack.c.l.b16 %v1083
      %v1100 = vunpack.c.l.b16 %v1084
      %v1101 = vunpack.c.l.b16 %v1085
      %v1102 = vpack.c.b16 %v1095, %v1094
      %v1103 = vpack.c.b16 %v1097, %v1096
      %v1104 = vpack.c.b16 %v1099, %v1098
      %v1105 = vpack.c.b16 %v1101, %v1100
      %v1111 = vsel %vm267, %v1072, 0
      %v1114 = vsel %vm267, %v1073, 0
      %v1117 = vsel %vm267, %v1074, 0
      %v1120 = vsel %vm267, %v1075, 0
      %v1123 = vsel %vm267, %v1076, 0
      %1125 = vmatprep.subr.bf16.mxu0 0
      %1126 = vmatpush1.bf16.msra.mxu0 %v1102
      %1127 = vmatprep.subr.bf16.mxu0 0
      %1128 = vmatpush1.bf16.msra.mxu0 %v1103
      %1129 = vmatprep.subr.bf16.mxu0 0
      %1130 = vmatpush1.bf16.msra.mxu0 %v1104
      %1131 = vmatprep.subr.bf16.mxu0 0
      %1132 = vmatpush1.bf16.msra.mxu0 %v1105
      %1133 = vmatprep.subr.bf16.mxu0 0
      %1134 = vmatpush1.bf16.msra.mxu0 0
      %1135 = vmatprep.subr.bf16.mxu0 0
      %1136 = vmatpush1.bf16.msra.mxu0 0
      %1137 = vmatprep.subr.bf16.mxu0 0
      %1138 = vmatpush1.bf16.msra.mxu0 0
      %1139 = vmatprep.subr.bf16.mxu0 0
      %1140 = vmatpush1.bf16.msra.mxu0 0
      %1141 = vmatprep.subr.bf16.mxu0 0
      %1142 = vmatpush1.bf16.msra.mxu0 0
      %1143 = vmatprep.subr.bf16.mxu0 0
      %1144 = vmatpush1.bf16.msra.mxu0 0
      %1145 = vmatprep.subr.bf16.mxu0 0
      %1146 = vmatpush1.bf16.msra.mxu0 0
      %1147 = vmatprep.subr.bf16.mxu0 0
      %1148 = vmatpush1.bf16.msra.mxu0 0
      %1149 = vmatprep.subr.bf16.mxu0 0
      %1150 = vmatpush1.bf16.msra.mxu0 0
      %1151 = vmatprep.subr.bf16.mxu0 0
      %1152 = vmatpush1.bf16.msra.mxu0 0
      %1153 = vmatprep.subr.bf16.mxu0 0
      %1154 = vmatpush1.bf16.msra.mxu0 0
      %1155 = vmatprep.subr.bf16.mxu0 0
      %1156 = vmatpush1.bf16.msra.mxu0 0
      %1157 = vmatprep.mubr.bf16.mxu0 0
      %1158 = vmatmul.mubr.bf16.gmra.mrb[0].mxu0 %v1111
      %v1159 = vpop.f32.mrb[0].mxu0
      %v1160 = vadd.f32 0.0, %v1159
      %v1161 = vpop.f32.mrb[0].mxu0
      %v1162 = vpop.f32.mrb[0].mxu0
      %v1163 = vadd.f32 0.0, %v1162
      %v1164 = vpop.f32.mrb[0].mxu0
      %1165 = vmatprep.mubr.bf16.mxu0 0
      %1166 = vmatmul.mubr.bf16.gmra.mrb[0].mxu0 %v1114
      %v1167 = vpop.f32.mrb[0].mxu0
      %v1168 = vadd.f32 0.0, %v1167
      %v1169 = vpop.f32.mrb[0].mxu0
      %v1170 = vpop.f32.mrb[0].mxu0
      %v1171 = vadd.f32 0.0, %v1170
      %v1172 = vpop.f32.mrb[0].mxu0
      %1173 = vmatprep.mubr.bf16.mxu0 0
      %1174 = vmatmul.mubr.bf16.gmra.mrb[0].mxu0 %v1117
      %v1175 = vpop.f32.mrb[0].mxu0
      %v1176 = vadd.f32 0.0, %v1175
      %v1177 = vpop.f32.mrb[0].mxu0
      %v1178 = vpop.f32.mrb[0].mxu0
      %v1179 = vadd.f32 0.0, %v1178
      %v1180 = vpop.f32.mrb[0].mxu0
      %1181 = vmatprep.mubr.bf16.mxu0 0
      %1182 = vmatmul.mubr.bf16.gmra.mrb[0].mxu0 %v1120
      %v1183 = vpop.f32.mrb[0].mxu0
      %v1184 = vadd.f32 0.0, %v1183
      %v1185 = vpop.f32.mrb[0].mxu0
      %v1186 = vpop.f32.mrb[0].mxu0
      %v1187 = vadd.f32 0.0, %v1186
      %v1188 = vpop.f32.mrb[0].mxu0
      %1189 = vmatprep.mubr.bf16.mxu0 0
      %1190 = vmatmul.mubr.bf16.gmra.mrb[0].mxu0 %v1123
      %v1191 = vpop.f32.mrb[0].mxu0
      %v1192 = vadd.f32 0.0, %v1191
      %v1193 = vpop.f32.mrb[0].mxu0
      %v1194 = vpop.f32.mrb[0].mxu0
      %v1195 = vadd.f32 0.0, %v1194
      %v1196 = vpop.f32.mrb[0].mxu0
      %1197 = vdwg.mxu0
      %v1198 = vadd.f32 %v1050, %v1160
      %v1199 = vadd.f32 %v1051, %v1163
      %v1200 = vadd.f32 %v1052, %v1168
      %v1201 = vadd.f32 %v1053, %v1171
      %v1202 = vadd.f32 %v1054, %v1176
      %v1203 = vadd.f32 %v1055, %v1179
      %v1204 = vadd.f32 %v1056, %v1184
      %v1205 = vadd.f32 %v1057, %v1187
      %v1206 = vadd.f32 %v1058, %v1192
      %v1207 = vadd.f32 %v1059, %v1195
      %s1208 = sadd.s32 %s192, 21
      %s1209 = scalar_lea.vmem %s181, %s1208
      %v1210 = vld [vmem:[%s1209] sm:$0xff]
      %v1211 = vld [vmem:[%s1209 + $0x8] sm:$0xff]
      %v1212 = vld [vmem:[%s1209 + $0x10] sm:$0xff]
      %v1213 = vld [vmem:[%s1209 + $0x18] sm:$0xff]
      %v1214 = vld [vmem:[%s1209 + $0x20] sm:$0xff]
      %v1215 = vld [vmem:[%s1209 + $0x28] sm:$0xff]
      %v1216 = vld [vmem:[%s1209 + $0x30] sm:$0xff]
      %v1217 = vld [vmem:[%s1209 + $0x38] sm:$0xff]
      %v1218 = vld [vmem:[%s1209 + $0x40] sm:$0xff]
      %v1219 = vld [vmem:[%s1209 + $0x48] sm:$0xff]
      %v1220 = vpack.c.bf16 %v1211, %v1210
      %v1221 = vpack.c.bf16 %v1213, %v1212
      %v1222 = vpack.c.bf16 %v1215, %v1214
      %v1223 = vpack.c.bf16 %v1217, %v1216
      %v1224 = vpack.c.bf16 %v1219, %v1218
      %s1225 = scalar_lea.vmem %s1, 224
      %v1226 = vld [vmem:[%s1225] sm:$0xf]
      %v1227 = vld [vmem:[%s1225 + $0x4] sm:$0xf]
      %v1228 = vld [vmem:[%s1225 + $0x8] sm:$0xf]
      %v1229 = vld [vmem:[%s1225 + $0xc] sm:$0xf]
      %v1230 = vld [vmem:[%s1225 + $0x10] sm:$0xf]
      %v1231 = vld [vmem:[%s1225 + $0x14] sm:$0xf]
      %v1232 = vld [vmem:[%s1225 + $0x18] sm:$0xf]
      %v1233 = vld [vmem:[%s1225 + $0x1c] sm:$0xf]
      %v1242 = vunpack.c.l.b16 %v1226
      %v1243 = vunpack.c.l.b16 %v1227
      %v1244 = vunpack.c.l.b16 %v1228
      %v1245 = vunpack.c.l.b16 %v1229
      %v1246 = vunpack.c.l.b16 %v1230
      %v1247 = vunpack.c.l.b16 %v1231
      %v1248 = vunpack.c.l.b16 %v1232
      %v1249 = vunpack.c.l.b16 %v1233
      %v1250 = vpack.c.b16 %v1243, %v1242
      %v1251 = vpack.c.b16 %v1245, %v1244
      %v1252 = vpack.c.b16 %v1247, %v1246
      %v1253 = vpack.c.b16 %v1249, %v1248
      %v1259 = vsel %vm267, %v1220, 0
      %v1262 = vsel %vm267, %v1221, 0
      %v1265 = vsel %vm267, %v1222, 0
      %v1268 = vsel %vm267, %v1223, 0
      %v1271 = vsel %vm267, %v1224, 0
      %1273 = vmatprep.subr.bf16.mxu0 0
      %1274 = vmatpush1.bf16.msra.mxu0 %v1250
      %1275 = vmatprep.subr.bf16.mxu0 0
      %1276 = vmatpush1.bf16.msra.mxu0 %v1251
      %1277 = vmatprep.subr.bf16.mxu0 0
      %1278 = vmatpush1.bf16.msra.mxu0 %v1252
      %1279 = vmatprep.subr.bf16.mxu0 0
      %1280 = vmatpush1.bf16.msra.mxu0 %v1253
      %1281 = vmatprep.subr.bf16.mxu0 0
      %1282 = vmatpush1.bf16.msra.mxu0 0
      %1283 = vmatprep.subr.bf16.mxu0 0
      %1284 = vmatpush1.bf16.msra.mxu0 0
      %1285 = vmatprep.subr.bf16.mxu0 0
      %1286 = vmatpush1.bf16.msra.mxu0 0
      %1287 = vmatprep.subr.bf16.mxu0 0
      %1288 = vmatpush1.bf16.msra.mxu0 0
      %1289 = vmatprep.subr.bf16.mxu0 0
      %1290 = vmatpush1.bf16.msra.mxu0 0
      %1291 = vmatprep.subr.bf16.mxu0 0
      %1292 = vmatpush1.bf16.msra.mxu0 0
      %1293 = vmatprep.subr.bf16.mxu0 0
      %1294 = vmatpush1.bf16.msra.mxu0 0
      %1295 = vmatprep.subr.bf16.mxu0 0
      %1296 = vmatpush1.bf16.msra.mxu0 0
      %1297 = vmatprep.subr.bf16.mxu0 0
      %1298 = vmatpush1.bf16.msra.mxu0 0
      %1299 = vmatprep.subr.bf16.mxu0 0
      %1300 = vmatpush1.bf16.msra.mxu0 0
      %1301 = vmatprep.subr.bf16.mxu0 0
      %1302 = vmatpush1.bf16.msra.mxu0 0
      %1303 = vmatprep.subr.bf16.mxu0 0
      %1304 = vmatpush1.bf16.msra.mxu0 0
      %1305 = vmatprep.mubr.bf16.mxu0 0
      %1306 = vmatmul.mubr.bf16.gmra.mrb[0].mxu0 %v1259
      %v1307 = vpop.f32.mrb[0].mxu0
      %v1308 = vadd.f32 0.0, %v1307
      %v1309 = vpop.f32.mrb[0].mxu0
      %v1310 = vpop.f32.mrb[0].mxu0
      %v1311 = vadd.f32 0.0, %v1310
      %v1312 = vpop.f32.mrb[0].mxu0
      %1313 = vmatprep.mubr.bf16.mxu0 0
      %1314 = vmatmul.mubr.bf16.gmra.mrb[0].mxu0 %v1262
      %v1315 = vpop.f32.mrb[0].mxu0
      %v1316 = vadd.f32 0.0, %v1315
      %v1317 = vpop.f32.mrb[0].mxu0
      %v1318 = vpop.f32.mrb[0].mxu0
      %v1319 = vadd.f32 0.0, %v1318
      %v1320 = vpop.f32.mrb[0].mxu0
      %1321 = vmatprep.mubr.bf16.mxu0 0
      %1322 = vmatmul.mubr.bf16.gmra.mrb[0].mxu0 %v1265
      %v1323 = vpop.f32.mrb[0].mxu0
      %v1324 = vadd.f32 0.0, %v1323
      %v1325 = vpop.f32.mrb[0].mxu0
      %v1326 = vpop.f32.mrb[0].mxu0
      %v1327 = vadd.f32 0.0, %v1326
      %v1328 = vpop.f32.mrb[0].mxu0
      %1329 = vmatprep.mubr.bf16.mxu0 0
      %1330 = vmatmul.mubr.bf16.gmra.mrb[0].mxu0 %v1268
      %v1331 = vpop.f32.mrb[0].mxu0
      %v1332 = vadd.f32 0.0, %v1331
      %v1333 = vpop.f32.mrb[0].mxu0
      %v1334 = vpop.f32.mrb[0].mxu0
      %v1335 = vadd.f32 0.0, %v1334
      %v1336 = vpop.f32.mrb[0].mxu0
      %1337 = vmatprep.mubr.bf16.mxu0 0
      %1338 = vmatmul.mubr.bf16.gmra.mrb[0].mxu0 %v1271
      %v1339 = vpop.f32.mrb[0].mxu0
      %v1340 = vadd.f32 0.0, %v1339
      %v1341 = vpop.f32.mrb[0].mxu0
      %v1342 = vpop.f32.mrb[0].mxu0
      %v1343 = vadd.f32 0.0, %v1342
      %v1344 = vpop.f32.mrb[0].mxu0
      %1345 = vdwg.mxu0
      %v1346 = vadd.f32 %v1198, %v1308
      %v1347 = vadd.f32 %v1199, %v1311
      %v1348 = vadd.f32 %v1200, %v1316
      %v1349 = vadd.f32 %v1201, %v1319
      %v1350 = vadd.f32 %v1202, %v1324
      %v1351 = vadd.f32 %v1203, %v1327
      %v1352 = vadd.f32 %v1204, %v1332
      %v1353 = vadd.f32 %v1205, %v1335
      %v1354 = vadd.f32 %v1206, %v1340
      %v1355 = vadd.f32 %v1207, %v1343
      %s1356 = sadd.s32 %s192, 22
      %s1357 = scalar_lea.vmem %s181, %s1356
      %v1358 = vld [vmem:[%s1357] sm:$0xff]
      %v1359 = vld [vmem:[%s1357 + $0x8] sm:$0xff]
      %v1360 = vld [vmem:[%s1357 + $0x10] sm:$0xff]
      %v1361 = vld [vmem:[%s1357 + $0x18] sm:$0xff]
      %v1362 = vld [vmem:[%s1357 + $0x20] sm:$0xff]
      %v1363 = vld [vmem:[%s1357 + $0x28] sm:$0xff]
      %v1364 = vld [vmem:[%s1357 + $0x30] sm:$0xff]
      %v1365 = vld [vmem:[%s1357 + $0x38] sm:$0xff]
      %v1366 = vld [vmem:[%s1357 + $0x40] sm:$0xff]
      %v1367 = vld [vmem:[%s1357 + $0x48] sm:$0xff]
      %v1368 = vpack.c.bf16 %v1359, %v1358
      %v1369 = vpack.c.bf16 %v1361, %v1360
      %v1370 = vpack.c.bf16 %v1363, %v1362
      %v1371 = vpack.c.bf16 %v1365, %v1364
      %v1372 = vpack.c.bf16 %v1367, %v1366
      %s1373 = scalar_lea.vmem %s1, 256
      %v1374 = vld [vmem:[%s1373] sm:$0xf]
      %v1375 = vld [vmem:[%s1373 + $0x4] sm:$0xf]
      %v1376 = vld [vmem:[%s1373 + $0x8] sm:$0xf]
      %v1377 = vld [vmem:[%s1373 + $0xc] sm:$0xf]
      %v1378 = vld [vmem:[%s1373 + $0x10] sm:$0xf]
      %v1379 = vld [vmem:[%s1373 + $0x14] sm:$0xf]
      %v1380 = vld [vmem:[%s1373 + $0x18] sm:$0xf]
      %v1381 = vld [vmem:[%s1373 + $0x1c] sm:$0xf]
      %v1390 = vunpack.c.l.b16 %v1374
      %v1391 = vunpack.c.l.b16 %v1375
      %v1392 = vunpack.c.l.b16 %v1376
      %v1393 = vunpack.c.l.b16 %v1377
      %v1394 = vunpack.c.l.b16 %v1378
      %v1395 = vunpack.c.l.b16 %v1379
      %v1396 = vunpack.c.l.b16 %v1380
      %v1397 = vunpack.c.l.b16 %v1381
      %v1398 = vpack.c.b16 %v1391, %v1390
      %v1399 = vpack.c.b16 %v1393, %v1392
      %v1400 = vpack.c.b16 %v1395, %v1394
      %v1401 = vpack.c.b16 %v1397, %v1396
      %v1407 = vsel %vm267, %v1368, 0
      %v1410 = vsel %vm267, %v1369, 0
      %v1413 = vsel %vm267, %v1370, 0
      %v1416 = vsel %vm267, %v1371, 0
      %v1419 = vsel %vm267, %v1372, 0
      %1421 = vmatprep.subr.bf16.mxu0 0
      %1422 = vmatpush1.bf16.msra.mxu0 %v1398
      %1423 = vmatprep.subr.bf16.mxu0 0
      %1424 = vmatpush1.bf16.msra.mxu0 %v1399
      %1425 = vmatprep.subr.bf16.mxu0 0
      %1426 = vmatpush1.bf16.msra.mxu0 %v1400
      %1427 = vmatprep.subr.bf16.mxu0 0
      %1428 = vmatpush1.bf16.msra.mxu0 %v1401
      %1429 = vmatprep.subr.bf16.mxu0 0
      %1430 = vmatpush1.bf16.msra.mxu0 0
      %1431 = vmatprep.subr.bf16.mxu0 0
      %1432 = vmatpush1.bf16.msra.mxu0 0
      %1433 = vmatprep.subr.bf16.mxu0 0
      %1434 = vmatpush1.bf16.msra.mxu0 0
      %1435 = vmatprep.subr.bf16.mxu0 0
      %1436 = vmatpush1.bf16.msra.mxu0 0
      %1437 = vmatprep.subr.bf16.mxu0 0
      %1438 = vmatpush1.bf16.msra.mxu0 0
      %1439 = vmatprep.subr.bf16.mxu0 0
      %1440 = vmatpush1.bf16.msra.mxu0 0
      %1441 = vmatprep.subr.bf16.mxu0 0
      %1442 = vmatpush1.bf16.msra.mxu0 0
      %1443 = vmatprep.subr.bf16.mxu0 0
      %1444 = vmatpush1.bf16.msra.mxu0 0
      %1445 = vmatprep.subr.bf16.mxu0 0
      %1446 = vmatpush1.bf16.msra.mxu0 0
      %1447 = vmatprep.subr.bf16.mxu0 0
      %1448 = vmatpush1.bf16.msra.mxu0 0
      %1449 = vmatprep.subr.bf16.mxu0 0
      %1450 = vmatpush1.bf16.msra.mxu0 0
      %1451 = vmatprep.subr.bf16.mxu0 0
      %1452 = vmatpush1.bf16.msra.mxu0 0
      %1453 = vmatprep.mubr.bf16.mxu0 0
      %1454 = vmatmul.mubr.bf16.gmra.mrb[0].mxu0 %v1407
      %v1455 = vpop.f32.mrb[0].mxu0
      %v1456 = vadd.f32 0.0, %v1455
      %v1457 = vpop.f32.mrb[0].mxu0
      %v1458 = vpop.f32.mrb[0].mxu0
      %v1459 = vadd.f32 0.0, %v1458
      %v1460 = vpop.f32.mrb[0].mxu0
      %1461 = vmatprep.mubr.bf16.mxu0 0
      %1462 = vmatmul.mubr.bf16.gmra.mrb[0].mxu0 %v1410
      %v1463 = vpop.f32.mrb[0].mxu0
      %v1464 = vadd.f32 0.0, %v1463
      %v1465 = vpop.f32.mrb[0].mxu0
      %v1466 = vpop.f32.mrb[0].mxu0
      %v1467 = vadd.f32 0.0, %v1466
      %v1468 = vpop.f32.mrb[0].mxu0
      %1469 = vmatprep.mubr.bf16.mxu0 0
      %1470 = vmatmul.mubr.bf16.gmra.mrb[0].mxu0 %v1413
      %v1471 = vpop.f32.mrb[0].mxu0
      %v1472 = vadd.f32 0.0, %v1471
      %v1473 = vpop.f32.mrb[0].mxu0
      %v1474 = vpop.f32.mrb[0].mxu0
      %v1475 = vadd.f32 0.0, %v1474
      %v1476 = vpop.f32.mrb[0].mxu0
      %1477 = vmatprep.mubr.bf16.mxu0 0
      %1478 = vmatmul.mubr.bf16.gmra.mrb[0].mxu0 %v1416
      %v1479 = vpop.f32.mrb[0].mxu0
      %v1480 = vadd.f32 0.0, %v1479
      %v1481 = vpop.f32.mrb[0].mxu0
      %v1482 = vpop.f32.mrb[0].mxu0
      %v1483 = vadd.f32 0.0, %v1482
      %v1484 = vpop.f32.mrb[0].mxu0
      %1485 = vmatprep.mubr.bf16.mxu0 0
      %1486 = vmatmul.mubr.bf16.gmra.mrb[0].mxu0 %v1419
      %v1487 = vpop.f32.mrb[0].mxu0
      %v1488 = vadd.f32 0.0, %v1487
      %v1489 = vpop.f32.mrb[0].mxu0
      %v1490 = vpop.f32.mrb[0].mxu0
      %v1491 = vadd.f32 0.0, %v1490
      %v1492 = vpop.f32.mrb[0].mxu0
      %1493 = vdwg.mxu0
      %v1494 = vadd.f32 %v1346, %v1456
      %v1495 = vadd.f32 %v1347, %v1459
      %v1496 = vadd.f32 %v1348, %v1464
      %v1497 = vadd.f32 %v1349, %v1467
      %v1498 = vadd.f32 %v1350, %v1472
      %v1499 = vadd.f32 %v1351, %v1475
      %v1500 = vadd.f32 %v1352, %v1480
      %v1501 = vadd.f32 %v1353, %v1483
      %v1502 = vadd.f32 %v1354, %v1488
      %v1503 = vadd.f32 %v1355, %v1491
      %v1504 = vld [vmem:[%s2] sm:$0x1]
      %v1506 = vlaneseq
      %v1507 = vshrl.u32 %v1506, 7
      %v1508 = vsub.s32 0, %v1507
      %v1509 = vrot.slane %v1504, %v1508
      %v1511 = vadd.f32 %v1494, %v1509
      %v1512 = vadd.f32 %v1495, %v1509
      %v1513 = vadd.f32 %v1496, %v1509
      %v1514 = vadd.f32 %v1497, %v1509
      %v1515 = vadd.f32 %v1498, %v1509
      %v1516 = vadd.f32 %v1499, %v1509
      %v1517 = vadd.f32 %v1500, %v1509
      %v1518 = vadd.f32 %v1501, %v1509
      %v1519 = vadd.f32 %v1502, %v1509
      %v1520 = vadd.f32 %v1503, %v1509
      %1521 = vst [vmem:[%s188] sm:$0xff] %v1511
      %1522 = vst [vmem:[%s188 + $0x8] sm:$0xff] %v1512
      %1523 = vst [vmem:[%s188 + $0x10] sm:$0xff] %v1513
      %1524 = vst [vmem:[%s188 + $0x18] sm:$0xff] %v1514
      %1525 = vst [vmem:[%s188 + $0x20] sm:$0xff] %v1515
      %1526 = vst [vmem:[%s188 + $0x28] sm:$0xff] %v1516
      %1527 = vst [vmem:[%s188 + $0x30] sm:$0xff] %v1517
      %1528 = vst [vmem:[%s188 + $0x38] sm:$0xff] %v1518
      %1529 = vst [vmem:[%s188 + $0x40] sm:$0xff] %v1519
      %1530 = vst [vmem:[%s188 + $0x48] sm:$0xff] %v1520
      %s1531 = sadd.s32 %s18, %s19
      %s1532 = smul.u32 10, %s1531
      %p1533 = scmp.lt.s32.totalorder %s1532, 19
      %s1534 = scalar_select %p1533, %s1532, 19
      %s1535 = smul.addr %s1534, 8
      %s1536 = scalar_lea.vmem %s3, %s1535
      // Predicated region
      $region33: #{adapter_forward.10} parent=31 // pred_check
        %p1537 = pneg %p114
      $region34: #{adapter_forward.10} parent=31 // pred_check_branch
        %1539 = sbr.rel (%p1537) target = $region36
      $region35: #{adapter_forward.10} parent=31 // pred_region
        %s1540 = sadd.s32 %s18, %s19
        %s1541 = smul.u32 10, %s1540
      $region36: #{adapter_forward.10} parent=31 // pred_fallthru
        _
    $region32: #{adapter_forward.10} parent=5 // pred_fallthru
      _
    %p1542 = scmp.le.s32.totalorder 2, %s9
    // Predicated region
    $region37: #{adapter_forward.10} parent=5 // pred_check
      %p1543 = pneg %p1542
    $region38: #{adapter_forward.10} parent=5 // pred_check_branch
      %1545 = sbr.rel (%p1543) target = $region40
    $region39: #{adapter_forward.10} parent=5 // pred_region
      %s1546 = ssub.s32 %s9, 2
      // Predicated region
      $region41: #{adapter_forward.10} parent=39 // pred_check
        %p1547 = pneg %p120
      $region42: #{adapter_forward.10} parent=39 // pred_check_branch
        %1549 = sbr.rel (%p1547) target = $region44
      $region43: #{adapter_forward.10} parent=39 // pred_region
        %s1550 = sadd.s32 %s20, %s21
        %s1551 = smul.u32 10, %s1550
        %p1552 = scmp.lt.s32.totalorder %s1551, 19
        %s1553 = scalar_select %p1552, %s1551, 19
        %s1554 = smul.addr %s1553, 8
        %s1555 = scalar_lea.vmem %s3, %s1554
      $region44: #{adapter_forward.10} parent=39 // pred_fallthru
        _
    $region40: #{adapter_forward.10} parent=5 // pred_fallthru
      _
  $region6: #{adapter_forward.10} parent=0 // loop_footer
    %s13 = sadd.s32 1, %s9
  $region7: #{adapter_forward.10} parent=0 // loop_footer_branch
    %8 = sbr.rel target = $region3
  $region8: #{adapter_forward.10} parent=0 // loop_exit
    _

// kernel: adapter_forward.14
$region0: #{adapter_forward.14}
  #allocation0 [shape = 'u32[]', space=smem, size = 0x4, offset = 0x4, fixed_abs, tag = 'smem constant byte address 0x4 - core index']
  #allocation1 [shape = 'u32[144,128]{1,0:T(1,128)}', space=vmem, size = 0x12000, scoped, tag = 'internal scratch']
  %s0 = inlined_call_operand.vmem [shape: f32[208,8], index: 0, kind: input, shape index: {}]
  %s1 = inlined_call_operand.vmem [shape: bf16[9,8,128], index: 1, kind: input, shape index: {}]
  %s2 = inlined_call_operand.vmem [shape: f32[1,128], index: 2, kind: input, shape index: {}]
  %s3 = inlined_call_operand.vmem [shape: f32[160,128], index: 3, kind: input, shape index: {}, may-alias: {3,4}]
  %s4 = inlined_call_operand.vmem [shape: f32[160,128], index: 4, kind: output, shape index: {}, may-alias: {3,4}]
  %s5 = sld [smem:[#allocation0]]
  $region49: #{adapter_forward.14} parent=0
    _
  %s7 = ssub.s32 1, %s5
  %s8 = scalar_select 0, %s7, %s5
  loop: start=0, step=1, limit=4
  $region2: #{adapter_forward.14} parent=0 // loop_pre_header
    _
  $region3: #{adapter_forward.14} parent=0 // loop_header
    %s10 = sphi 0, %s14
    %p11 = scmp.ge.s32.totalorder %s10, 4
    %s17 = sphi 0, %s29
    %s18 = sphi 0, %s25
    %s19 = sphi 0, %s17
    %s20 = sphi 0, %s18
    %s21 = sphi 0, %s19
    %s22 = sphi 0, %s20
    %s32 = sphi 0, %s34
    %s35 = sphi 0, %s32
    %s36 = sphi 0, %s35
    %s52 = sphi 0, %s36
    %s56 = sphi 0, %s56
    %s58 = sphi 0, %s56
    %s59 = sphi 0, %s58
    %s73 = sphi 0, %s59
    %s77 = sphi 0, %s77
    %s79 = sphi 0, %s77
    %s80 = sphi 0, %s79
    %s94 = sphi 0, %s80
    %s102 = sphi 0, %s104
    %s105 = sphi 0, %s102
    %s106 = sphi 0, %s105
    %s122 = sphi 0, %s106
    %s130 = sphi 0, %s132
    %s133 = sphi 0, %s130
    %s134 = sphi 0, %s133
    %s150 = sphi 0, %s134
  $region4: #{adapter_forward.14} parent=0 // loop_header_branch
    %13 = sbr.rel (%p11) target = $region8
  $region5: #{adapter_forward.14} parent=0 // loop_body
    %s15 = ssub.s32 %s10, 1
    %s16 = ssub.s32 %s10, 2
    %s23 = sadd.s32 1, %s18
    %p24 = scmp.ge.s32.totalorder %s23, 1
    %s25 = scalar_select %p24, 0, %s23
    %s26 = sadd.s32 1, %s17
    %s27 = scalar_select %p24, %s26, %s17
    %p28 = scmp.ge.s32.totalorder %s27, 2
    %s29 = scalar_select %p28, 0, %s27
    %s30 = ssub.s32 %s17, %s29
    %p31 = scmp.eq.s32.totalorder %s30, 0
    %s33 = sadd.s32 %s32, 1
    %s34 = scalar_select %p31, %s32, %s33
    %p37 = pneg %p31
    %p38 = scmp.eq.s32.totalorder %s10, 1
    %p39 = por %p37, %p38
    %p40 = scmp.ne.s32.totalorder %s32, %s35
    %p41 = scmp.eq.s32.totalorder %s10, 0
    %p42 = por %p40, %p41
    %p43 = scmp.ne.s32.totalorder %s32, %s35
    %p44 = scmp.eq.s32.totalorder %s15, 1
    %p45 = por %p43, %p44
    %p46 = scmp.ne.s32.totalorder %s35, %s36
    %p47 = scmp.eq.s32.totalorder %s15, 0
    %p48 = por %p46, %p47
    %p49 = scmp.ne.s32.totalorder %s35, %s36
    %p50 = scmp.eq.s32.totalorder %s16, 1
    %p51 = por %p49, %p50
    %p53 = scmp.ne.s32.totalorder %s36, %s52
    %p54 = scmp.eq.s32.totalorder %s16, 0
    %p55 = por %p53, %p54
    %s57 = sadd.s32 %s56, 1
    %p60 = scmp.eq.s32.totalorder %s10, 1
    %p61 = scmp.ne.s32.totalorder %s56, %s58
    %p62 = scmp.eq.s32.totalorder %s10, 0
    %p63 = por %p61, %p62
    %p64 = scmp.ne.s32.totalorder %s56, %s58
    %p65 = scmp.eq.s32.totalorder %s15, 1
    %p66 = por %p64, %p65
    %p67 = scmp.ne.s32.totalorder %s58, %s59
    %p68 = scmp.eq.s32.totalorder %s15, 0
    %p69 = por %p67, %p68
    %p70 = scmp.ne.s32.totalorder %s58, %s59
    %p71 = scmp.eq.s32.totalorder %s16, 1
    %p72 = por %p70, %p71
    %p74 = scmp.ne.s32.totalorder %s59, %s73
    %p75 = scmp.eq.s32.totalorder %s16, 0
    %p76 = por %p74, %p75
    %s78 = sadd.s32 %s77, 1
    %p81 = scmp.eq.s32.totalorder %s10, 1
    %p82 = scmp.ne.s32.totalorder %s77, %s79
    %p83 = scmp.eq.s32.totalorder %s10, 0
    %p84 = por %p82, %p83
    %p85 = scmp.ne.s32.totalorder %s77, %s79
    %p86 = scmp.eq.s32.totalorder %s15, 1
    %p87 = por %p85, %p86
    %p88 = scmp.ne.s32.totalorder %s79, %s80
    %p89 = scmp.eq.s32.totalorder %s15, 0
    %p90 = por %p88, %p89
    %p91 = scmp.ne.s32.totalorder %s79, %s80
    %p92 = scmp.eq.s32.totalorder %s16, 1
    %p93 = por %p91, %p92
    %p95 = scmp.ne.s32.totalorder %s80, %s94
    %p96 = scmp.eq.s32.totalorder %s16, 0
    %p97 = por %p95, %p96
    %s98 = sadd.s32 %s17, %s18
    %s99 = sadd.s32 %s29, %s25
    %s100 = ssub.s32 %s98, %s99
    %p101 = scmp.eq.s32.totalorder %s100, 0
    %s103 = sadd.s32 %s102, 1
    %s104 = scalar_select %p101, %s102, %s103
    %p107 = pneg %p101
    %p108 = scmp.eq.s32.totalorder %s10, 1
    %p109 = por %p107, %p108
    %p110 = scmp.ne.s32.totalorder %s102, %s105
    %p111 = scmp.eq.s32.totalorder %s10, 0
    %p112 = por %p110, %p111
    %p113 = scmp.ne.s32.totalorder %s102, %s105
    %p114 = scmp.eq.s32.totalorder %s15, 1
    %p115 = por %p113, %p114
    %p116 = scmp.ne.s32.totalorder %s105, %s106
    %p117 = scmp.eq.s32.totalorder %s15, 0
    %p118 = por %p116, %p117
    %p119 = scmp.ne.s32.totalorder %s105, %s106
    %p120 = scmp.eq.s32.totalorder %s16, 1
    %p121 = por %p119, %p120
    %p123 = scmp.ne.s32.totalorder %s106, %s122
    %p124 = scmp.eq.s32.totalorder %s16, 0
    %p125 = por %p123, %p124
    %s126 = sadd.s32 %s17, %s18
    %s127 = sadd.s32 %s29, %s25
    %s128 = ssub.s32 %s126, %s127
    %p129 = scmp.eq.s32.totalorder %s128, 0
    %s131 = sadd.s32 %s130, 1
    %s132 = scalar_select %p129, %s130, %s131
    %p135 = pneg %p129
    %p136 = scmp.eq.s32.totalorder %s10, 1
    %p137 = por %p135, %p136
    %p138 = scmp.ne.s32.totalorder %s130, %s133
    %p139 = scmp.eq.s32.totalorder %s10, 0
    %p140 = por %p138, %p139
    %p141 = scmp.ne.s32.totalorder %s130, %s133
    %p142 = scmp.eq.s32.totalorder %s15, 1
    %p143 = por %p141, %p142
    %p144 = scmp.ne.s32.totalorder %s133, %s134
    %p145 = scmp.eq.s32.totalorder %s15, 0
    %p146 = por %p144, %p145
    %p147 = scmp.ne.s32.totalorder %s133, %s134
    %p148 = scmp.eq.s32.totalorder %s16, 1
    %p149 = por %p147, %p148
    %p151 = scmp.ne.s32.totalorder %s134, %s150
    %p152 = scmp.eq.s32.totalorder %s16, 0
    %p153 = por %p151, %p152
    %p154 = scmp.le.s32.totalorder 1, %s10
    %p155 = scmp.lt.s32.totalorder %s10, 3
    %p156 = pnand %p154, %p155
    %p157 = pneg %p156
    // Predicated region
    $region9: #{adapter_forward.14} parent=5 // pred_check
      _
    $region10: #{adapter_forward.14} parent=5 // pred_check_branch
      %159 = sbr.rel (%p156) target = $region12
    $region11: #{adapter_forward.14} parent=5 // pred_region
      %s160 = ssub.s32 %s10, 1
      // Predicated region
      $region13: #{adapter_forward.14} parent=11 // pred_check
        %p161 = pneg %p69
      $region14: #{adapter_forward.14} parent=11 // pred_check_branch
        %163 = sbr.rel (%p161) target = $region16
      $region15: #{adapter_forward.14} parent=11 // pred_region
        _
      $region16: #{adapter_forward.14} parent=11 // pred_fallthru
        _
      // Predicated region
      $region17: #{adapter_forward.14} parent=11 // pred_check
        %p164 = pneg %p90
      $region18: #{adapter_forward.14} parent=11 // pred_check_branch
        %166 = sbr.rel (%p164) target = $region20
      $region19: #{adapter_forward.14} parent=11 // pred_region
        _
      $region20: #{adapter_forward.14} parent=11 // pred_fallthru
        _
    $region12: #{adapter_forward.14} parent=5 // pred_fallthru
      _
    %p167 = scmp.lt.s32.totalorder %s10, 2
    // Predicated region
    $region21: #{adapter_forward.14} parent=5 // pred_check
      %p168 = pneg %p167
    $region22: #{adapter_forward.14} parent=5 // pred_check_branch
      %170 = sbr.rel (%p168) target = $region24
    $region23: #{adapter_forward.14} parent=5 // pred_region
      // Predicated region
      $region25: #{adapter_forward.14} parent=23 // pred_check
        %p171 = pneg %p42
      $region26: #{adapter_forward.14} parent=23 // pred_check_branch
        %173 = sbr.rel (%p171) target = $region28
      $region27: #{adapter_forward.14} parent=23 // pred_region
        %s174 = smul.u32 13, %s17
        %p175 = scmp.lt.s32.totalorder %s174, 25
        %s176 = scalar_select %p175, %s174, 25
        %s177 = smul.addr %s176, 8
        %s178 = scalar_lea.vmem %s0, %s177
        %s179 = smul.u32 13, %s17
      $region28: #{adapter_forward.14} parent=23 // pred_fallthru
        _
      // Predicated region
      $region29: #{adapter_forward.14} parent=23 // pred_check
        %p180 = pneg %p112
      $region30: #{adapter_forward.14} parent=23 // pred_check_branch
        %182 = sbr.rel (%p180) target = $region32
      $region31: #{adapter_forward.14} parent=23 // pred_region
        %s183 = sadd.s32 %s17, %s18
        %s184 = smul.u32 10, %s183
        %p185 = scmp.lt.s32.totalorder %s184, 19
        %s186 = scalar_select %p185, %s184, 19
        %s187 = smul.addr %s186, 8
        %s188 = scalar_lea.vmem %s3, %s187
        %s189 = sadd.s32 %s17, %s18
        %s190 = smul.u32 10, %s189
      $region32: #{adapter_forward.14} parent=23 // pred_fallthru
        _
    $region24: #{adapter_forward.14} parent=5 // pred_fallthru
      _
    %p191 = scmp.le.s32.totalorder 1, %s10
    %p192 = scmp.lt.s32.totalorder %s10, 3
    %p193 = pnand %p191, %p192
    %p194 = pneg %p193
    // Predicated region
    $region33: #{adapter_forward.14} parent=5 // pred_check
      _
    $region34: #{adapter_forward.14} parent=5 // pred_check_branch
      %196 = sbr.rel (%p193) target = $region36
    $region35: #{adapter_forward.14} parent=5 // pred_region
      %s197 = ssub.s32 %s10, 1
      %s198 = smul.u32 13, %s19
      %p199 = scmp.lt.s32.totalorder %s198, 25
      %s200 = scalar_select %p199, %s198, 25
      %s201 = smul.addr %s200, 8
      %s202 = scalar_lea.vmem %s0, %s201
      %p203 = pneg %p48
      %p204 = pneg %p45
      %p205 = pneg %p69
      %p206 = pneg %p66
      %p207 = pneg %p90
      %p208 = pneg %p87
      %s209 = sadd.s32 %s19, %s20
      %s210 = smul.u32 10, %s209
      %p211 = scmp.lt.s32.totalorder %s210, 19
      %s212 = scalar_select %p211, %s210, 19
      %s213 = smul.addr %s212, 8
      %s214 = scalar_lea.vmem %s3, %s213
      %p215 = pneg %p118
      %p216 = pneg %p115
      %p217 = pneg %p146
      %p218 = pneg %p143
      %s219 = sadd.s32 %s19, %s20
      %s220 = smul.u32 10, %s219
      %p221 = scmp.lt.s32.totalorder %s220, 19
      %s222 = scalar_select %p221, %s220, 19
      %s223 = smul.addr %s222, 8
      %s224 = scalar_lea.vmem %s4, %s223
      %s225 = smul.u32 13, %s19
      %p226 = scmp.lt.s32.totalorder %s225, 25
      %s227 = scalar_select %p226, %s225, 25
      %s228 = smul.addr %s227, 8
      %s229 = scalar_lea.vmem %s0, %s228
      %s230 = smul.u32 13, %s19
      %s231 = sadd.s32 %s19, %s20
      %s232 = smul.u32 10, %s231
      %p233 = scmp.lt.s32.totalorder %s232, 19
      %s234 = scalar_select %p233, %s232, 19
      %s235 = smul.addr %s234, 8
      %s236 = scalar_lea.vmem %s3, %s235
      %s237 = sadd.s32 %s19, %s20
      %s238 = smul.u32 10, %s237
      %s239 = sadd.s32 %s19, %s20
      %s240 = smul.u32 10, %s239
      %p241 = scmp.lt.s32.totalorder %s240, 19
      %s242 = scalar_select %p241, %s240, 19
      %s243 = smul.addr %s242, 8
      %s244 = scalar_lea.vmem %s4, %s243
      %s245 = sadd.s32 %s19, %s20
      %s246 = smul.u32 10, %s245
      %s248 = smul.u32 %s20, 80
      %s249 = scalar_lea.vmem %s229, %s248
      %v250 = vld [vmem:[%s249] sm:$0xff]
      %v251 = vld [vmem:[%s249 + $0x8] sm:$0xff]
      %v252 = vld [vmem:[%s249 + $0x10] sm:$0xff]
      %v253 = vld [vmem:[%s249 + $0x18] sm:$0xff]
      %v254 = vld [vmem:[%s249 + $0x20] sm:$0xff]
      %v255 = vld [vmem:[%s249 + $0x28] sm:$0xff]
      %v256 = vld [vmem:[%s249 + $0x30] sm:$0xff]
      %v257 = vld [vmem:[%s249 + $0x38] sm:$0xff]
      %v258 = vld [vmem:[%s249 + $0x40] sm:$0xff]
      %v259 = vld [vmem:[%s249 + $0x48] sm:$0xff]
      %v260 = vpack.c.bf16 %v251, %v250
      %v261 = vpack.c.bf16 %v253, %v252
      %v262 = vpack.c.bf16 %v255, %v254
      %v263 = vpack.c.bf16 %v257, %v256
      %v264 = vpack.c.bf16 %v259, %v258
      %v265 = vld [vmem:[%s1] sm:$0xf]
      %s266 = sadd.s32 %s248, 1
      %s267 = scalar_lea.vmem %s229, %s266
      %v268 = vld [vmem:[%s267] sm:$0xff]
      %v269 = vld [vmem:[%s267 + $0x8] sm:$0xff]
      %v270 = vld [vmem:[%s267 + $0x10] sm:$0xff]
      %v271 = vld [vmem:[%s267 + $0x18] sm:$0xff]
      %v272 = vld [vmem:[%s267 + $0x20] sm:$0xff]
      %v273 = vld [vmem:[%s267 + $0x28] sm:$0xff]
      %v274 = vld [vmem:[%s267 + $0x30] sm:$0xff]
      %v275 = vld [vmem:[%s267 + $0x38] sm:$0xff]
      %v276 = vld [vmem:[%s267 + $0x40] sm:$0xff]
      %v277 = vld [vmem:[%s267 + $0x48] sm:$0xff]
      %v278 = vpack.c.bf16 %v269, %v268
      %v279 = vpack.c.bf16 %v271, %v270
      %v280 = vpack.c.bf16 %v273, %v272
      %v281 = vpack.c.bf16 %v275, %v274
      %v282 = vpack.c.bf16 %v277, %v276
      %s283 = scalar_lea.vmem %s1, 4
      %v284 = vld [vmem:[%s283] sm:$0xf]
      %vm285 = vcmask 64512
      %v287 = vsel %vm285, %v278, 0
      %v290 = vsel %vm285, %v279, 0
      %v293 = vsel %vm285, %v280, 0
      %v296 = vsel %vm285, %v281, 0
      %v299 = vsel %vm285, %v282, 0
      %vm301 = vcmask 1043456
      %v303 = vsel %vm301, %v284, 0
      %305 = vmatprep.subr.bf16.mxu0 0
      %306 = vmatpush1.bf16.msra.mxu0 %v303
      %307 = vmatprep.subr.bf16.mxu0 0
      %308 = vmatpush1.bf16.msra.mxu0 0
      %309 = vmatprep.subr.bf16.mxu0 0
      %310 = vmatpush1.bf16.msra.mxu0 0
      %311 = vmatprep.subr.bf16.mxu0 0
      %312 = vmatpush1.bf16.msra.mxu0 0
      %313 = vmatprep.subr.bf16.mxu0 0
      %314 = vmatpush1.bf16.msra.mxu0 0
      %315 = vmatprep.subr.bf16.mxu0 0
      %316 = vmatpush1.bf16.msra.mxu0 0
      %317 = vmatprep.subr.bf16.mxu0 0
      %318 = vmatpush1.bf16.msra.mxu0 0
      %319 = vmatprep.subr.bf16.mxu0 0
      %320 = vmatpush1.bf16.msra.mxu0 0
      %321 = vmatprep.subr.bf16.mxu0 0
      %322 = vmatpush1.bf16.msra.mxu0 0
      %323 = vmatprep.subr.bf16.mxu0 0
      %324 = vmatpush1.bf16.msra.mxu0 0
      %325 = vmatprep.subr.bf16.mxu0 0
      %326 = vmatpush1.bf16.msra.mxu0 0
      %327 = vmatprep.subr.bf16.mxu0 0
      %328 = vmatpush1.bf16.msra.mxu0 0
      %329 = vmatprep.subr.bf16.mxu0 0
      %330 = vmatpush1.bf16.msra.mxu0 0
      %331 = vmatprep.subr.bf16.mxu0 0
      %332 = vmatpush1.bf16.msra.mxu0 0
      %333 = vmatprep.subr.bf16.mxu0 0
      %334 = vmatpush1.bf16.msra.mxu0 0
      %335 = vmatprep.subr.bf16.mxu0 0
      %336 = vmatpush1.bf16.msra.mxu0 0
      %337 = vmatprep.mubr.bf16.mxu0 0
      %338 = vmatmul.mubr.bf16.gmra.mrb[0].mxu0 %v287
      %v339 = vpop.f32.mrb[0].mxu0
      %v340 = vadd.f32 0.0, %v339
      %v341 = vpop.f32.mrb[0].mxu0
      %v342 = vpop.f32.mrb[0].mxu0
      %v343 = vadd.f32 0.0, %v342
      %v344 = vpop.f32.mrb[0].mxu0
      %345 = vmatprep.mubr.bf16.mxu0 0
      %346 = vmatmul.mubr.bf16.gmra.mrb[0].mxu0 %v290
      %v347 = vpop.f32.mrb[0].mxu0
      %v348 = vadd.f32 0.0, %v347
      %v349 = vpop.f32.mrb[0].mxu0
      %v350 = vpop.f32.mrb[0].mxu0
      %v351 = vadd.f32 0.0, %v350
      %v352 = vpop.f32.mrb[0].mxu0
      %353 = vmatprep.mubr.bf16.mxu0 0
      %354 = vmatmul.mubr.bf16.gmra.mrb[0].mxu0 %v293
      %v355 = vpop.f32.mrb[0].mxu0
      %v356 = vadd.f32 0.0, %v355
      %v357 = vpop.f32.mrb[0].mxu0
      %v358 = vpop.f32.mrb[0].mxu0
      %v359 = vadd.f32 0.0, %v358
      %v360 = vpop.f32.mrb[0].mxu0
      %361 = vmatprep.mubr.bf16.mxu0 0
      %362 = vmatmul.mubr.bf16.gmra.mrb[0].mxu0 %v296
      %v363 = vpop.f32.mrb[0].mxu0
      %v364 = vadd.f32 0.0, %v363
      %v365 = vpop.f32.mrb[0].mxu0
      %v366 = vpop.f32.mrb[0].mxu0
      %v367 = vadd.f32 0.0, %v366
      %v368 = vpop.f32.mrb[0].mxu0
      %369 = vmatprep.mubr.bf16.mxu0 0
      %370 = vmatmul.mubr.bf16.gmra.mrb[0].mxu0 %v299
      %v371 = vpop.f32.mrb[0].mxu0
      %v372 = vadd.f32 0.0, %v371
      %v373 = vpop.f32.mrb[0].mxu0
      %v374 = vpop.f32.mrb[0].mxu0
      %v375 = vadd.f32 0.0, %v374
      %v376 = vpop.f32.mrb[0].mxu0
      %377 = vdwg.mxu0
      %v379 = vsel %vm285, %v260, 0
      %v382 = vsel %vm285, %v261, 0
      %v385 = vsel %vm285, %v262, 0
      %v388 = vsel %vm285, %v263, 0
      %v391 = vsel %vm285, %v264, 0
      %v394 = vsel %vm301, %v265, 0
      %396 = vmatprep.subr.bf16.mxu0 0
      %397 = vmatpush1.bf16.msra.mxu0 %v394
      %398 = vmatprep.subr.bf16.mxu0 0
      %399 = vmatpush1.bf16.msra.mxu0 0
      %400 = vmatprep.subr.bf16.mxu0 0
      %401 = vmatpush1.bf16.msra.mxu0 0
      %402 = vmatprep.subr.bf16.mxu0 0
      %403 = vmatpush1.bf16.msra.mxu0 0
      %404 = vmatprep.subr.bf16.mxu0 0
      %405 = vmatpush1.bf16.msra.mxu0 0
      %406 = vmatprep.subr.bf16.mxu0 0
      %407 = vmatpush1.bf16.msra.mxu0 0
      %408 = vmatprep.subr.bf16.mxu0 0
      %409 = vmatpush1.bf16.msra.mxu0 0
      %410 = vmatprep.subr.bf16.mxu0 0
      %411 = vmatpush1.bf16.msra.mxu0 0
      %412 = vmatprep.subr.bf16.mxu0 0
      %413 = vmatpush1.bf16.msra.mxu0 0
      %414 = vmatprep.subr.bf16.mxu0 0
      %415 = vmatpush1.bf16.msra.mxu0 0
      %416 = vmatprep.subr.bf16.mxu0 0
      %417 = vmatpush1.bf16.msra.mxu0 0
      %418 = vmatprep.subr.bf16.mxu0 0
      %419 = vmatpush1.bf16.msra.mxu0 0
      %420 = vmatprep.subr.bf16.mxu0 0
      %421 = vmatpush1.bf16.msra.mxu0 0
      %422 = vmatprep.subr.bf16.mxu0 0
      %423 = vmatpush1.bf16.msra.mxu0 0
      %424 = vmatprep.subr.bf16.mxu0 0
      %425 = vmatpush1.bf16.msra.mxu0 0
      %426 = vmatprep.subr.bf16.mxu0 0
      %427 = vmatpush1.bf16.msra.mxu0 0
      %428 = vmatprep.mubr.bf16.mxu0 0
      %429 = vmatmul.mubr.bf16.gmra.mrb[0].mxu0 %v379
      %v430 = vpop.f32.mrb[0].mxu0
      %v431 = vadd.f32 %v340, %v430
      %v432 = vpop.f32.mrb[0].mxu0
      %v433 = vpop.f32.mrb[0].mxu0
      %v434 = vadd.f32 %v343, %v433
      %v435 = vpop.f32.mrb[0].mxu0
      %436 = vmatprep.mubr.bf16.mxu0 0
      %437 = vmatmul.mubr.bf16.gmra.mrb[0].mxu0 %v382
      %v438 = vpop.f32.mrb[0].mxu0
      %v439 = vadd.f32 %v348, %v438
      %v440 = vpop.f32.mrb[0].mxu0
      %v441 = vpop.f32.mrb[0].mxu0
      %v442 = vadd.f32 %v351, %v441
      %v443 = vpop.f32.mrb[0].mxu0
      %444 = vmatprep.mubr.bf16.mxu0 0
      %445 = vmatmul.mubr.bf16.gmra.mrb[0].mxu0 %v385
      %v446 = vpop.f32.mrb[0].mxu0
      %v447 = vadd.f32 %v356, %v446
      %v448 = vpop.f32.mrb[0].mxu0
      %v449 = vpop.f32.mrb[0].mxu0
      %v450 = vadd.f32 %v359, %v449
      %v451 = vpop.f32.mrb[0].mxu0
      %452 = vmatprep.mubr.bf16.mxu0 0
      %453 = vmatmul.mubr.bf16.gmra.mrb[0].mxu0 %v388
      %v454 = vpop.f32.mrb[0].mxu0
      %v455 = vadd.f32 %v364, %v454
      %v456 = vpop.f32.mrb[0].mxu0
      %v457 = vpop.f32.mrb[0].mxu0
      %v458 = vadd.f32 %v367, %v457
      %v459 = vpop.f32.mrb[0].mxu0
      %460 = vmatprep.mubr.bf16.mxu0 0
      %461 = vmatmul.mubr.bf16.gmra.mrb[0].mxu0 %v391
      %v462 = vpop.f32.mrb[0].mxu0
      %v463 = vadd.f32 %v372, %v462
      %v464 = vpop.f32.mrb[0].mxu0
      %v465 = vpop.f32.mrb[0].mxu0
      %v466 = vadd.f32 %v375, %v465
      %v467 = vpop.f32.mrb[0].mxu0
      %468 = vdwg.mxu0
      %s469 = sadd.s32 %s248, 2
      %s470 = scalar_lea.vmem %s229, %s469
      %v471 = vld [vmem:[%s470] sm:$0xff]
      %v472 = vld [vmem:[%s470 + $0x8] sm:$0xff]
      %v473 = vld [vmem:[%s470 + $0x10] sm:$0xff]
      %v474 = vld [vmem:[%s470 + $0x18] sm:$0xff]
      %v475 = vld [vmem:[%s470 + $0x20] sm:$0xff]
      %v476 = vld [vmem:[%s470 + $0x28] sm:$0xff]
      %v477 = vld [vmem:[%s470 + $0x30] sm:$0xff]
      %v478 = vld [vmem:[%s470 + $0x38] sm:$0xff]
      %v479 = vld [vmem:[%s470 + $0x40] sm:$0xff]
      %v480 = vld [vmem:[%s470 + $0x48] sm:$0xff]
      %v481 = vpack.c.bf16 %v472, %v471
      %v482 = vpack.c.bf16 %v474, %v473
      %v483 = vpack.c.bf16 %v476, %v475
      %v484 = vpack.c.bf16 %v478, %v477
      %v485 = vpack.c.bf16 %v480, %v479
      %s486 = scalar_lea.vmem %s1, 8
      %v487 = vld [vmem:[%s486] sm:$0xf]
      %v489 = vsel %vm285, %v481, 0
      %v492 = vsel %vm285, %v482, 0
      %v495 = vsel %vm285, %v483, 0
      %v498 = vsel %vm285, %v484, 0
      %v501 = vsel %vm285, %v485, 0
      %v504 = vsel %vm301, %v487, 0
      %506 = vmatprep.subr.bf16.mxu0 0
      %507 = vmatpush1.bf16.msra.mxu0 %v504
      %508 = vmatprep.subr.bf16.mxu0 0
      %509 = vmatpush1.bf16.msra.mxu0 0
      %510 = vmatprep.subr.bf16.mxu0 0
      %511 = vmatpush1.bf16.msra.mxu0 0
      %512 = vmatprep.subr.bf16.mxu0 0
      %513 = vmatpush1.bf16.msra.mxu0 0
      %514 = vmatprep.subr.bf16.mxu0 0
      %515 = vmatpush1.bf16.msra.mxu0 0
      %516 = vmatprep.subr.bf16.mxu0 0
      %517 = vmatpush1.bf16.msra.mxu0 0
      %518 = vmatprep.subr.bf16.mxu0 0
      %519 = vmatpush1.bf16.msra.mxu0 0
      %520 = vmatprep.subr.bf16.mxu0 0
      %521 = vmatpush1.bf16.msra.mxu0 0
      %522 = vmatprep.subr.bf16.mxu0 0
      %523 = vmatpush1.bf16.msra.mxu0 0
      %524 = vmatprep.subr.bf16.mxu0 0
      %525 = vmatpush1.bf16.msra.mxu0 0
      %526 = vmatprep.subr.bf16.mxu0 0
      %527 = vmatpush1.bf16.msra.mxu0 0
      %528 = vmatprep.subr.bf16.mxu0 0
      %529 = vmatpush1.bf16.msra.mxu0 0
      %530 = vmatprep.subr.bf16.mxu0 0
      %531 = vmatpush1.bf16.msra.mxu0 0
      %532 = vmatprep.subr.bf16.mxu0 0
      %533 = vmatpush1.bf16.msra.mxu0 0
      %534 = vmatprep.subr.bf16.mxu0 0
      %535 = vmatpush1.bf16.msra.mxu0 0
      %536 = vmatprep.subr.bf16.mxu0 0
      %537 = vmatpush1.bf16.msra.mxu0 0
      %538 = vmatprep.mubr.bf16.mxu0 0
      %539 = vmatmul.mubr.bf16.gmra.mrb[0].mxu0 %v489
      %v540 = vpop.f32.mrb[0].mxu0
      %v541 = vadd.f32 0.0, %v540
      %v542 = vpop.f32.mrb[0].mxu0
      %v543 = vpop.f32.mrb[0].mxu0
      %v544 = vadd.f32 0.0, %v543
      %v545 = vpop.f32.mrb[0].mxu0
      %546 = vmatprep.mubr.bf16.mxu0 0
      %547 = vmatmul.mubr.bf16.gmra.mrb[0].mxu0 %v492
      %v548 = vpop.f32.mrb[0].mxu0
      %v549 = vadd.f32 0.0, %v548
      %v550 = vpop.f32.mrb[0].mxu0
      %v551 = vpop.f32.mrb[0].mxu0
      %v552 = vadd.f32 0.0, %v551
      %v553 = vpop.f32.mrb[0].mxu0
      %554 = vmatprep.mubr.bf16.mxu0 0
      %555 = vmatmul.mubr.bf16.gmra.mrb[0].mxu0 %v495
      %v556 = vpop.f32.mrb[0].mxu0
      %v557 = vadd.f32 0.0, %v556
      %v558 = vpop.f32.mrb[0].mxu0
      %v559 = vpop.f32.mrb[0].mxu0
      %v560 = vadd.f32 0.0, %v559
      %v561 = vpop.f32.mrb[0].mxu0
      %562 = vmatprep.mubr.bf16.mxu0 0
      %563 = vmatmul.mubr.bf16.gmra.mrb[0].mxu0 %v498
      %v564 = vpop.f32.mrb[0].mxu0
      %v565 = vadd.f32 0.0, %v564
      %v566 = vpop.f32.mrb[0].mxu0
      %v567 = vpop.f32.mrb[0].mxu0
      %v568 = vadd.f32 0.0, %v567
      %v569 = vpop.f32.mrb[0].mxu0
      %570 = vmatprep.mubr.bf16.mxu0 0
      %571 = vmatmul.mubr.bf16.gmra.mrb[0].mxu0 %v501
      %v572 = vpop.f32.mrb[0].mxu0
      %v573 = vadd.f32 0.0, %v572
      %v574 = vpop.f32.mrb[0].mxu0
      %v575 = vpop.f32.mrb[0].mxu0
      %v576 = vadd.f32 0.0, %v575
      %v577 = vpop.f32.mrb[0].mxu0
      %578 = vdwg.mxu0
      %v579 = vadd.f32 %v431, %v541
      %v580 = vadd.f32 %v434, %v544
      %v581 = vadd.f32 %v439, %v549
      %v582 = vadd.f32 %v442, %v552
      %v583 = vadd.f32 %v447, %v557
      %v584 = vadd.f32 %v450, %v560
      %v585 = vadd.f32 %v455, %v565
      %v586 = vadd.f32 %v458, %v568
      %v587 = vadd.f32 %v463, %v573
      %v588 = vadd.f32 %v466, %v576
      %s589 = sadd.s32 %s248, 10
      %s590 = scalar_lea.vmem %s229, %s589
      %v591 = vld [vmem:[%s590] sm:$0xff]
      %v592 = vld [vmem:[%s590 + $0x8] sm:$0xff]
      %v593 = vld [vmem:[%s590 + $0x10] sm:$0xff]
      %v594 = vld [vmem:[%s590 + $0x18] sm:$0xff]
      %v595 = vld [vmem:[%s590 + $0x20] sm:$0xff]
      %v596 = vld [vmem:[%s590 + $0x28] sm:$0xff]
      %v597 = vld [vmem:[%s590 + $0x30] sm:$0xff]
      %v598 = vld [vmem:[%s590 + $0x38] sm:$0xff]
      %v599 = vld [vmem:[%s590 + $0x40] sm:$0xff]
      %v600 = vld [vmem:[%s590 + $0x48] sm:$0xff]
      %v601 = vpack.c.bf16 %v592, %v591
      %v602 = vpack.c.bf16 %v594, %v593
      %v603 = vpack.c.bf16 %v596, %v595
      %v604 = vpack.c.bf16 %v598, %v597
      %v605 = vpack.c.bf16 %v600, %v599
      %s606 = scalar_lea.vmem %s1, 12
      %v607 = vld [vmem:[%s606] sm:$0xf]
      %v609 = vsel %vm285, %v601, 0
      %v612 = vsel %vm285, %v602, 0
      %v615 = vsel %vm285, %v603, 0
      %v618 = vsel %vm285, %v604, 0
      %v621 = vsel %vm285, %v605, 0
      %v624 = vsel %vm301, %v607, 0
      %626 = vmatprep.subr.bf16.mxu0 0
      %627 = vmatpush1.bf16.msra.mxu0 %v624
      %628 = vmatprep.subr.bf16.mxu0 0
      %629 = vmatpush1.bf16.msra.mxu0 0
      %630 = vmatprep.subr.bf16.mxu0 0
      %631 = vmatpush1.bf16.msra.mxu0 0
      %632 = vmatprep.subr.bf16.mxu0 0
      %633 = vmatpush1.bf16.msra.mxu0 0
      %634 = vmatprep.subr.bf16.mxu0 0
      %635 = vmatpush1.bf16.msra.mxu0 0
      %636 = vmatprep.subr.bf16.mxu0 0
      %637 = vmatpush1.bf16.msra.mxu0 0
      %638 = vmatprep.subr.bf16.mxu0 0
      %639 = vmatpush1.bf16.msra.mxu0 0
      %640 = vmatprep.subr.bf16.mxu0 0
      %641 = vmatpush1.bf16.msra.mxu0 0
      %642 = vmatprep.subr.bf16.mxu0 0
      %643 = vmatpush1.bf16.msra.mxu0 0
      %644 = vmatprep.subr.bf16.mxu0 0
      %645 = vmatpush1.bf16.msra.mxu0 0
      %646 = vmatprep.subr.bf16.mxu0 0
      %647 = vmatpush1.bf16.msra.mxu0 0
      %648 = vmatprep.subr.bf16.mxu0 0
      %649 = vmatpush1.bf16.msra.mxu0 0
      %650 = vmatprep.subr.bf16.mxu0 0
      %651 = vmatpush1.bf16.msra.mxu0 0
      %652 = vmatprep.subr.bf16.mxu0 0
      %653 = vmatpush1.bf16.msra.mxu0 0
      %654 = vmatprep.subr.bf16.mxu0 0
      %655 = vmatpush1.bf16.msra.mxu0 0
      %656 = vmatprep.subr.bf16.mxu0 0
      %657 = vmatpush1.bf16.msra.mxu0 0
      %658 = vmatprep.mubr.bf16.mxu0 0
      %659 = vmatmul.mubr.bf16.gmra.mrb[0].mxu0 %v609
      %v660 = vpop.f32.mrb[0].mxu0
      %v661 = vadd.f32 0.0, %v660
      %v662 = vpop.f32.mrb[0].mxu0
      %v663 = vpop.f32.mrb[0].mxu0
      %v664 = vadd.f32 0.0, %v663
      %v665 = vpop.f32.mrb[0].mxu0
      %666 = vmatprep.mubr.bf16.mxu0 0
      %667 = vmatmul.mubr.bf16.gmra.mrb[0].mxu0 %v612
      %v668 = vpop.f32.mrb[0].mxu0
      %v669 = vadd.f32 0.0, %v668
      %v670 = vpop.f32.mrb[0].mxu0
      %v671 = vpop.f32.mrb[0].mxu0
      %v672 = vadd.f32 0.0, %v671
      %v673 = vpop.f32.mrb[0].mxu0
      %674 = vmatprep.mubr.bf16.mxu0 0
      %675 = vmatmul.mubr.bf16.gmra.mrb[0].mxu0 %v615
      %v676 = vpop.f32.mrb[0].mxu0
      %v677 = vadd.f32 0.0, %v676
      %v678 = vpop.f32.mrb[0].mxu0
      %v679 = vpop.f32.mrb[0].mxu0
      %v680 = vadd.f32 0.0, %v679
      %v681 = vpop.f32.mrb[0].mxu0
      %682 = vmatprep.mubr.bf16.mxu0 0
      %683 = vmatmul.mubr.bf16.gmra.mrb[0].mxu0 %v618
      %v684 = vpop.f32.mrb[0].mxu0
      %v685 = vadd.f32 0.0, %v684
      %v686 = vpop.f32.mrb[0].mxu0
      %v687 = vpop.f32.mrb[0].mxu0
      %v688 = vadd.f32 0.0, %v687
      %v689 = vpop.f32.mrb[0].mxu0
      %690 = vmatprep.mubr.bf16.mxu0 0
      %691 = vmatmul.mubr.bf16.gmra.mrb[0].mxu0 %v621
      %v692 = vpop.f32.mrb[0].mxu0
      %v693 = vadd.f32 0.0, %v692
      %v694 = vpop.f32.mrb[0].mxu0
      %v695 = vpop.f32.mrb[0].mxu0
      %v696 = vadd.f32 0.0, %v695
      %v697 = vpop.f32.mrb[0].mxu0
      %698 = vdwg.mxu0
      %v699 = vadd.f32 %v579, %v661
      %v700 = vadd.f32 %v580, %v664
      %v701 = vadd.f32 %v581, %v669
      %v702 = vadd.f32 %v582, %v672
      %v703 = vadd.f32 %v583, %v677
      %v704 = vadd.f32 %v584, %v680
      %v705 = vadd.f32 %v585, %v685
      %v706 = vadd.f32 %v586, %v688
      %v707 = vadd.f32 %v587, %v693
      %v708 = vadd.f32 %v588, %v696
      %s709 = sadd.s32 %s248, 11
      %s710 = scalar_lea.vmem %s229, %s709
      %v711 = vld [vmem:[%s710] sm:$0xff]
      %v712 = vld [vmem:[%s710 + $0x8] sm:$0xff]
      %v713 = vld [vmem:[%s710 + $0x10] sm:$0xff]
      %v714 = vld [vmem:[%s710 + $0x18] sm:$0xff]
      %v715 = vld [vmem:[%s710 + $0x20] sm:$0xff]
      %v716 = vld [vmem:[%s710 + $0x28] sm:$0xff]
      %v717 = vld [vmem:[%s710 + $0x30] sm:$0xff]
      %v718 = vld [vmem:[%s710 + $0x38] sm:$0xff]
      %v719 = vld [vmem:[%s710 + $0x40] sm:$0xff]
      %v720 = vld [vmem:[%s710 + $0x48] sm:$0xff]
      %v721 = vpack.c.bf16 %v712, %v711
      %v722 = vpack.c.bf16 %v714, %v713
      %v723 = vpack.c.bf16 %v716, %v715
      %v724 = vpack.c.bf16 %v718, %v717
      %v725 = vpack.c.bf16 %v720, %v719
      %s726 = scalar_lea.vmem %s1, 16
      %v727 = vld [vmem:[%s726] sm:$0xf]
      %v729 = vsel %vm285, %v721, 0
      %v732 = vsel %vm285, %v722, 0
      %v735 = vsel %vm285, %v723, 0
      %v738 = vsel %vm285, %v724, 0
      %v741 = vsel %vm285, %v725, 0
      %v744 = vsel %vm301, %v727, 0
      %746 = vmatprep.subr.bf16.mxu0 0
      %747 = vmatpush1.bf16.msra.mxu0 %v744
      %748 = vmatprep.subr.bf16.mxu0 0
      %749 = vmatpush1.bf16.msra.mxu0 0
      %750 = vmatprep.subr.bf16.mxu0 0
      %751 = vmatpush1.bf16.msra.mxu0 0
      %752 = vmatprep.subr.bf16.mxu0 0
      %753 = vmatpush1.bf16.msra.mxu0 0
      %754 = vmatprep.subr.bf16.mxu0 0
      %755 = vmatpush1.bf16.msra.mxu0 0
      %756 = vmatprep.subr.bf16.mxu0 0
      %757 = vmatpush1.bf16.msra.mxu0 0
      %758 = vmatprep.subr.bf16.mxu0 0
      %759 = vmatpush1.bf16.msra.mxu0 0
      %760 = vmatprep.subr.bf16.mxu0 0
      %761 = vmatpush1.bf16.msra.mxu0 0
      %762 = vmatprep.subr.bf16.mxu0 0
      %763 = vmatpush1.bf16.msra.mxu0 0
      %764 = vmatprep.subr.bf16.mxu0 0
      %765 = vmatpush1.bf16.msra.mxu0 0
      %766 = vmatprep.subr.bf16.mxu0 0
      %767 = vmatpush1.bf16.msra.mxu0 0
      %768 = vmatprep.subr.bf16.mxu0 0
      %769 = vmatpush1.bf16.msra.mxu0 0
      %770 = vmatprep.subr.bf16.mxu0 0
      %771 = vmatpush1.bf16.msra.mxu0 0
      %772 = vmatprep.subr.bf16.mxu0 0
      %773 = vmatpush1.bf16.msra.mxu0 0
      %774 = vmatprep.subr.bf16.mxu0 0
      %775 = vmatpush1.bf16.msra.mxu0 0
      %776 = vmatprep.subr.bf16.mxu0 0
      %777 = vmatpush1.bf16.msra.mxu0 0
      %778 = vmatprep.mubr.bf16.mxu0 0
      %779 = vmatmul.mubr.bf16.gmra.mrb[0].mxu0 %v729
      %v780 = vpop.f32.mrb[0].mxu0
      %v781 = vadd.f32 0.0, %v780
      %v782 = vpop.f32.mrb[0].mxu0
      %v783 = vpop.f32.mrb[0].mxu0
      %v784 = vadd.f32 0.0, %v783
      %v785 = vpop.f32.mrb[0].mxu0
      %786 = vmatprep.mubr.bf16.mxu0 0
      %787 = vmatmul.mubr.bf16.gmra.mrb[0].mxu0 %v732
      %v788 = vpop.f32.mrb[0].mxu0
      %v789 = vadd.f32 0.0, %v788
      %v790 = vpop.f32.mrb[0].mxu0
      %v791 = vpop.f32.mrb[0].mxu0
      %v792 = vadd.f32 0.0, %v791
      %v793 = vpop.f32.mrb[0].mxu0
      %794 = vmatprep.mubr.bf16.mxu0 0
      %795 = vmatmul.mubr.bf16.gmra.mrb[0].mxu0 %v735
      %v796 = vpop.f32.mrb[0].mxu0
      %v797 = vadd.f32 0.0, %v796
      %v798 = vpop.f32.mrb[0].mxu0
      %v799 = vpop.f32.mrb[0].mxu0
      %v800 = vadd.f32 0.0, %v799
      %v801 = vpop.f32.mrb[0].mxu0
      %802 = vmatprep.mubr.bf16.mxu0 0
      %803 = vmatmul.mubr.bf16.gmra.mrb[0].mxu0 %v738
      %v804 = vpop.f32.mrb[0].mxu0
      %v805 = vadd.f32 0.0, %v804
      %v806 = vpop.f32.mrb[0].mxu0
      %v807 = vpop.f32.mrb[0].mxu0
      %v808 = vadd.f32 0.0, %v807
      %v809 = vpop.f32.mrb[0].mxu0
      %810 = vmatprep.mubr.bf16.mxu0 0
      %811 = vmatmul.mubr.bf16.gmra.mrb[0].mxu0 %v741
      %v812 = vpop.f32.mrb[0].mxu0
      %v813 = vadd.f32 0.0, %v812
      %v814 = vpop.f32.mrb[0].mxu0
      %v815 = vpop.f32.mrb[0].mxu0
      %v816 = vadd.f32 0.0, %v815
      %v817 = vpop.f32.mrb[0].mxu0
      %818 = vdwg.mxu0
      %v819 = vadd.f32 %v699, %v781
      %v820 = vadd.f32 %v700, %v784
      %v821 = vadd.f32 %v701, %v789
      %v822 = vadd.f32 %v702, %v792
      %v823 = vadd.f32 %v703, %v797
      %v824 = vadd.f32 %v704, %v800
      %v825 = vadd.f32 %v705, %v805
      %v826 = vadd.f32 %v706, %v808
      %v827 = vadd.f32 %v707, %v813
      %v828 = vadd.f32 %v708, %v816
      %s829 = sadd.s32 %s248, 12
      %s830 = scalar_lea.vmem %s229, %s829
      %v831 = vld [vmem:[%s830] sm:$0xff]
      %v832 = vld [vmem:[%s830 + $0x8] sm:$0xff]
      %v833 = vld [vmem:[%s830 + $0x10] sm:$0xff]
      %v834 = vld [vmem:[%s830 + $0x18] sm:$0xff]
      %v835 = vld [vmem:[%s830 + $0x20] sm:$0xff]
      %v836 = vld [vmem:[%s830 + $0x28] sm:$0xff]
      %v837 = vld [vmem:[%s830 + $0x30] sm:$0xff]
      %v838 = vld [vmem:[%s830 + $0x38] sm:$0xff]
      %v839 = vld [vmem:[%s830 + $0x40] sm:$0xff]
      %v840 = vld [vmem:[%s830 + $0x48] sm:$0xff]
      %v841 = vpack.c.bf16 %v832, %v831
      %v842 = vpack.c.bf16 %v834, %v833
      %v843 = vpack.c.bf16 %v836, %v835
      %v844 = vpack.c.bf16 %v838, %v837
      %v845 = vpack.c.bf16 %v840, %v839
      %s846 = scalar_lea.vmem %s1, 20
      %v847 = vld [vmem:[%s846] sm:$0xf]
      %v849 = vsel %vm285, %v841, 0
      %v852 = vsel %vm285, %v842, 0
      %v855 = vsel %vm285, %v843, 0
      %v858 = vsel %vm285, %v844, 0
      %v861 = vsel %vm285, %v845, 0
      %v864 = vsel %vm301, %v847, 0
      %866 = vmatprep.subr.bf16.mxu0 0
      %867 = vmatpush1.bf16.msra.mxu0 %v864
      %868 = vmatprep.subr.bf16.mxu0 0
      %869 = vmatpush1.bf16.msra.mxu0 0
      %870 = vmatprep.subr.bf16.mxu0 0
      %871 = vmatpush1.bf16.msra.mxu0 0
      %872 = vmatprep.subr.bf16.mxu0 0
      %873 = vmatpush1.bf16.msra.mxu0 0
      %874 = vmatprep.subr.bf16.mxu0 0
      %875 = vmatpush1.bf16.msra.mxu0 0
      %876 = vmatprep.subr.bf16.mxu0 0
      %877 = vmatpush1.bf16.msra.mxu0 0
      %878 = vmatprep.subr.bf16.mxu0 0
      %879 = vmatpush1.bf16.msra.mxu0 0
      %880 = vmatprep.subr.bf16.mxu0 0
      %881 = vmatpush1.bf16.msra.mxu0 0
      %882 = vmatprep.subr.bf16.mxu0 0
      %883 = vmatpush1.bf16.msra.mxu0 0
      %884 = vmatprep.subr.bf16.mxu0 0
      %885 = vmatpush1.bf16.msra.mxu0 0
      %886 = vmatprep.subr.bf16.mxu0 0
      %887 = vmatpush1.bf16.msra.mxu0 0
      %888 = vmatprep.subr.bf16.mxu0 0
      %889 = vmatpush1.bf16.msra.mxu0 0
      %890 = vmatprep.subr.bf16.mxu0 0
      %891 = vmatpush1.bf16.msra.mxu0 0
      %892 = vmatprep.subr.bf16.mxu0 0
      %893 = vmatpush1.bf16.msra.mxu0 0
      %894 = vmatprep.subr.bf16.mxu0 0
      %895 = vmatpush1.bf16.msra.mxu0 0
      %896 = vmatprep.subr.bf16.mxu0 0
      %897 = vmatpush1.bf16.msra.mxu0 0
      %898 = vmatprep.mubr.bf16.mxu0 0
      %899 = vmatmul.mubr.bf16.gmra.mrb[0].mxu0 %v849
      %v900 = vpop.f32.mrb[0].mxu0
      %v901 = vadd.f32 0.0, %v900
      %v902 = vpop.f32.mrb[0].mxu0
      %v903 = vpop.f32.mrb[0].mxu0
      %v904 = vadd.f32 0.0, %v903
      %v905 = vpop.f32.mrb[0].mxu0
      %906 = vmatprep.mubr.bf16.mxu0 0
      %907 = vmatmul.mubr.bf16.gmra.mrb[0].mxu0 %v852
      %v908 = vpop.f32.mrb[0].mxu0
      %v909 = vadd.f32 0.0, %v908
      %v910 = vpop.f32.mrb[0].mxu0
      %v911 = vpop.f32.mrb[0].mxu0
      %v912 = vadd.f32 0.0, %v911
      %v913 = vpop.f32.mrb[0].mxu0
      %914 = vmatprep.mubr.bf16.mxu0 0
      %915 = vmatmul.mubr.bf16.gmra.mrb[0].mxu0 %v855
      %v916 = vpop.f32.mrb[0].mxu0
      %v917 = vadd.f32 0.0, %v916
      %v918 = vpop.f32.mrb[0].mxu0
      %v919 = vpop.f32.mrb[0].mxu0
      %v920 = vadd.f32 0.0, %v919
      %v921 = vpop.f32.mrb[0].mxu0
      %922 = vmatprep.mubr.bf16.mxu0 0
      %923 = vmatmul.mubr.bf16.gmra.mrb[0].mxu0 %v858
      %v924 = vpop.f32.mrb[0].mxu0
      %v925 = vadd.f32 0.0, %v924
      %v926 = vpop.f32.mrb[0].mxu0
      %v927 = vpop.f32.mrb[0].mxu0
      %v928 = vadd.f32 0.0, %v927
      %v929 = vpop.f32.mrb[0].mxu0
      %930 = vmatprep.mubr.bf16.mxu0 0
      %931 = vmatmul.mubr.bf16.gmra.mrb[0].mxu0 %v861
      %v932 = vpop.f32.mrb[0].mxu0
      %v933 = vadd.f32 0.0, %v932
      %v934 = vpop.f32.mrb[0].mxu0
      %v935 = vpop.f32.mrb[0].mxu0
      %v936 = vadd.f32 0.0, %v935
      %v937 = vpop.f32.mrb[0].mxu0
      %938 = vdwg.mxu0
      %v939 = vadd.f32 %v819, %v901
      %v940 = vadd.f32 %v820, %v904
      %v941 = vadd.f32 %v821, %v909
      %v942 = vadd.f32 %v822, %v912
      %v943 = vadd.f32 %v823, %v917
      %v944 = vadd.f32 %v824, %v920
      %v945 = vadd.f32 %v825, %v925
      %v946 = vadd.f32 %v826, %v928
      %v947 = vadd.f32 %v827, %v933
      %v948 = vadd.f32 %v828, %v936
      %s949 = sadd.s32 %s248, 20
      %s950 = scalar_lea.vmem %s229, %s949
      %v951 = vld [vmem:[%s950] sm:$0xff]
      %v952 = vld [vmem:[%s950 + $0x8] sm:$0xff]
      %v953 = vld [vmem:[%s950 + $0x10] sm:$0xff]
      %v954 = vld [vmem:[%s950 + $0x18] sm:$0xff]
      %v955 = vld [vmem:[%s950 + $0x20] sm:$0xff]
      %v956 = vld [vmem:[%s950 + $0x28] sm:$0xff]
      %v957 = vld [vmem:[%s950 + $0x30] sm:$0xff]
      %v958 = vld [vmem:[%s950 + $0x38] sm:$0xff]
      %v959 = vld [vmem:[%s950 + $0x40] sm:$0xff]
      %v960 = vld [vmem:[%s950 + $0x48] sm:$0xff]
      %v961 = vpack.c.bf16 %v952, %v951
      %v962 = vpack.c.bf16 %v954, %v953
      %v963 = vpack.c.bf16 %v956, %v955
      %v964 = vpack.c.bf16 %v958, %v957
      %v965 = vpack.c.bf16 %v960, %v959
      %s966 = scalar_lea.vmem %s1, 24
      %v967 = vld [vmem:[%s966] sm:$0xf]
      %v969 = vsel %vm285, %v961, 0
      %v972 = vsel %vm285, %v962, 0
      %v975 = vsel %vm285, %v963, 0
      %v978 = vsel %vm285, %v964, 0
      %v981 = vsel %vm285, %v965, 0
      %v984 = vsel %vm301, %v967, 0
      %986 = vmatprep.subr.bf16.mxu0 0
      %987 = vmatpush1.bf16.msra.mxu0 %v984
      %988 = vmatprep.subr.bf16.mxu0 0
      %989 = vmatpush1.bf16.msra.mxu0 0
      %990 = vmatprep.subr.bf16.mxu0 0
      %991 = vmatpush1.bf16.msra.mxu0 0
      %992 = vmatprep.subr.bf16.mxu0 0
      %993 = vmatpush1.bf16.msra.mxu0 0
      %994 = vmatprep.subr.bf16.mxu0 0
      %995 = vmatpush1.bf16.msra.mxu0 0
      %996 = vmatprep.subr.bf16.mxu0 0
      %997 = vmatpush1.bf16.msra.mxu0 0
      %998 = vmatprep.subr.bf16.mxu0 0
      %999 = vmatpush1.bf16.msra.mxu0 0
      %1000 = vmatprep.subr.bf16.mxu0 0
      %1001 = vmatpush1.bf16.msra.mxu0 0
      %1002 = vmatprep.subr.bf16.mxu0 0
      %1003 = vmatpush1.bf16.msra.mxu0 0
      %1004 = vmatprep.subr.bf16.mxu0 0
      %1005 = vmatpush1.bf16.msra.mxu0 0
      %1006 = vmatprep.subr.bf16.mxu0 0
      %1007 = vmatpush1.bf16.msra.mxu0 0
      %1008 = vmatprep.subr.bf16.mxu0 0
      %1009 = vmatpush1.bf16.msra.mxu0 0
      %1010 = vmatprep.subr.bf16.mxu0 0
      %1011 = vmatpush1.bf16.msra.mxu0 0
      %1012 = vmatprep.subr.bf16.mxu0 0
      %1013 = vmatpush1.bf16.msra.mxu0 0
      %1014 = vmatprep.subr.bf16.mxu0 0
      %1015 = vmatpush1.bf16.msra.mxu0 0
      %1016 = vmatprep.subr.bf16.mxu0 0
      %1017 = vmatpush1.bf16.msra.mxu0 0
      %1018 = vmatprep.mubr.bf16.mxu0 0
      %1019 = vmatmul.mubr.bf16.gmra.mrb[0].mxu0 %v969
      %v1020 = vpop.f32.mrb[0].mxu0
      %v1021 = vadd.f32 0.0, %v1020
      %v1022 = vpop.f32.mrb[0].mxu0
      %v1023 = vpop.f32.mrb[0].mxu0
      %v1024 = vadd.f32 0.0, %v1023
      %v1025 = vpop.f32.mrb[0].mxu0
      %1026 = vmatprep.mubr.bf16.mxu0 0
      %1027 = vmatmul.mubr.bf16.gmra.mrb[0].mxu0 %v972
      %v1028 = vpop.f32.mrb[0].mxu0
      %v1029 = vadd.f32 0.0, %v1028
      %v1030 = vpop.f32.mrb[0].mxu0
      %v1031 = vpop.f32.mrb[0].mxu0
      %v1032 = vadd.f32 0.0, %v1031
      %v1033 = vpop.f32.mrb[0].mxu0
      %1034 = vmatprep.mubr.bf16.mxu0 0
      %1035 = vmatmul.mubr.bf16.gmra.mrb[0].mxu0 %v975
      %v1036 = vpop.f32.mrb[0].mxu0
      %v1037 = vadd.f32 0.0, %v1036
      %v1038 = vpop.f32.mrb[0].mxu0
      %v1039 = vpop.f32.mrb[0].mxu0
      %v1040 = vadd.f32 0.0, %v1039
      %v1041 = vpop.f32.mrb[0].mxu0
      %1042 = vmatprep.mubr.bf16.mxu0 0
      %1043 = vmatmul.mubr.bf16.gmra.mrb[0].mxu0 %v978
      %v1044 = vpop.f32.mrb[0].mxu0
      %v1045 = vadd.f32 0.0, %v1044
      %v1046 = vpop.f32.mrb[0].mxu0
      %v1047 = vpop.f32.mrb[0].mxu0
      %v1048 = vadd.f32 0.0, %v1047
      %v1049 = vpop.f32.mrb[0].mxu0
      %1050 = vmatprep.mubr.bf16.mxu0 0
      %1051 = vmatmul.mubr.bf16.gmra.mrb[0].mxu0 %v981
      %v1052 = vpop.f32.mrb[0].mxu0
      %v1053 = vadd.f32 0.0, %v1052
      %v1054 = vpop.f32.mrb[0].mxu0
      %v1055 = vpop.f32.mrb[0].mxu0
      %v1056 = vadd.f32 0.0, %v1055
      %v1057 = vpop.f32.mrb[0].mxu0
      %1058 = vdwg.mxu0
      %v1059 = vadd.f32 %v939, %v1021
      %v1060 = vadd.f32 %v940, %v1024
      %v1061 = vadd.f32 %v941, %v1029
      %v1062 = vadd.f32 %v942, %v1032
      %v1063 = vadd.f32 %v943, %v1037
      %v1064 = vadd.f32 %v944, %v1040
      %v1065 = vadd.f32 %v945, %v1045
      %v1066 = vadd.f32 %v946, %v1048
      %v1067 = vadd.f32 %v947, %v1053
      %v1068 = vadd.f32 %v948, %v1056
      %s1069 = sadd.s32 %s248, 21
      %s1070 = scalar_lea.vmem %s229, %s1069
      %v1071 = vld [vmem:[%s1070] sm:$0xff]
      %v1072 = vld [vmem:[%s1070 + $0x8] sm:$0xff]
      %v1073 = vld [vmem:[%s1070 + $0x10] sm:$0xff]
      %v1074 = vld [vmem:[%s1070 + $0x18] sm:$0xff]
      %v1075 = vld [vmem:[%s1070 + $0x20] sm:$0xff]
      %v1076 = vld [vmem:[%s1070 + $0x28] sm:$0xff]
      %v1077 = vld [vmem:[%s1070 + $0x30] sm:$0xff]
      %v1078 = vld [vmem:[%s1070 + $0x38] sm:$0xff]
      %v1079 = vld [vmem:[%s1070 + $0x40] sm:$0xff]
      %v1080 = vld [vmem:[%s1070 + $0x48] sm:$0xff]
      %v1081 = vpack.c.bf16 %v1072, %v1071
      %v1082 = vpack.c.bf16 %v1074, %v1073
      %v1083 = vpack.c.bf16 %v1076, %v1075
      %v1084 = vpack.c.bf16 %v1078, %v1077
      %v1085 = vpack.c.bf16 %v1080, %v1079
      %s1086 = scalar_lea.vmem %s1, 28
      %v1087 = vld [vmem:[%s1086] sm:$0xf]
      %v1089 = vsel %vm285, %v1081, 0
      %v1092 = vsel %vm285, %v1082, 0
      %v1095 = vsel %vm285, %v1083, 0
      %v1098 = vsel %vm285, %v1084, 0
      %v1101 = vsel %vm285, %v1085, 0
      %v1104 = vsel %vm301, %v1087, 0
      %1106 = vmatprep.subr.bf16.mxu0 0
      %1107 = vmatpush1.bf16.msra.mxu0 %v1104
      %1108 = vmatprep.subr.bf16.mxu0 0
      %1109 = vmatpush1.bf16.msra.mxu0 0
      %1110 = vmatprep.subr.bf16.mxu0 0
      %1111 = vmatpush1.bf16.msra.mxu0 0
      %1112 = vmatprep.subr.bf16.mxu0 0
      %1113 = vmatpush1.bf16.msra.mxu0 0
      %1114 = vmatprep.subr.bf16.mxu0 0
      %1115 = vmatpush1.bf16.msra.mxu0 0
      %1116 = vmatprep.subr.bf16.mxu0 0
      %1117 = vmatpush1.bf16.msra.mxu0 0
      %1118 = vmatprep.subr.bf16.mxu0 0
      %1119 = vmatpush1.bf16.msra.mxu0 0
      %1120 = vmatprep.subr.bf16.mxu0 0
      %1121 = vmatpush1.bf16.msra.mxu0 0
      %1122 = vmatprep.subr.bf16.mxu0 0
      %1123 = vmatpush1.bf16.msra.mxu0 0
      %1124 = vmatprep.subr.bf16.mxu0 0
      %1125 = vmatpush1.bf16.msra.mxu0 0
      %1126 = vmatprep.subr.bf16.mxu0 0
      %1127 = vmatpush1.bf16.msra.mxu0 0
      %1128 = vmatprep.subr.bf16.mxu0 0
      %1129 = vmatpush1.bf16.msra.mxu0 0
      %1130 = vmatprep.subr.bf16.mxu0 0
      %1131 = vmatpush1.bf16.msra.mxu0 0
      %1132 = vmatprep.subr.bf16.mxu0 0
      %1133 = vmatpush1.bf16.msra.mxu0 0
      %1134 = vmatprep.subr.bf16.mxu0 0
      %1135 = vmatpush1.bf16.msra.mxu0 0
      %1136 = vmatprep.subr.bf16.mxu0 0
      %1137 = vmatpush1.bf16.msra.mxu0 0
      %1138 = vmatprep.mubr.bf16.mxu0 0
      %1139 = vmatmul.mubr.bf16.gmra.mrb[0].mxu0 %v1089
      %v1140 = vpop.f32.mrb[0].mxu0
      %v1141 = vadd.f32 0.0, %v1140
      %v1142 = vpop.f32.mrb[0].mxu0
      %v1143 = vpop.f32.mrb[0].mxu0
      %v1144 = vadd.f32 0.0, %v1143
      %v1145 = vpop.f32.mrb[0].mxu0
      %1146 = vmatprep.mubr.bf16.mxu0 0
      %1147 = vmatmul.mubr.bf16.gmra.mrb[0].mxu0 %v1092
      %v1148 = vpop.f32.mrb[0].mxu0
      %v1149 = vadd.f32 0.0, %v1148
      %v1150 = vpop.f32.mrb[0].mxu0
      %v1151 = vpop.f32.mrb[0].mxu0
      %v1152 = vadd.f32 0.0, %v1151
      %v1153 = vpop.f32.mrb[0].mxu0
      %1154 = vmatprep.mubr.bf16.mxu0 0
      %1155 = vmatmul.mubr.bf16.gmra.mrb[0].mxu0 %v1095
      %v1156 = vpop.f32.mrb[0].mxu0
      %v1157 = vadd.f32 0.0, %v1156
      %v1158 = vpop.f32.mrb[0].mxu0
      %v1159 = vpop.f32.mrb[0].mxu0
      %v1160 = vadd.f32 0.0, %v1159
      %v1161 = vpop.f32.mrb[0].mxu0
      %1162 = vmatprep.mubr.bf16.mxu0 0
      %1163 = vmatmul.mubr.bf16.gmra.mrb[0].mxu0 %v1098
      %v1164 = vpop.f32.mrb[0].mxu0
      %v1165 = vadd.f32 0.0, %v1164
      %v1166 = vpop.f32.mrb[0].mxu0
      %v1167 = vpop.f32.mrb[0].mxu0
      %v1168 = vadd.f32 0.0, %v1167
      %v1169 = vpop.f32.mrb[0].mxu0
      %1170 = vmatprep.mubr.bf16.mxu0 0
      %1171 = vmatmul.mubr.bf16.gmra.mrb[0].mxu0 %v1101
      %v1172 = vpop.f32.mrb[0].mxu0
      %v1173 = vadd.f32 0.0, %v1172
      %v1174 = vpop.f32.mrb[0].mxu0
      %v1175 = vpop.f32.mrb[0].mxu0
      %v1176 = vadd.f32 0.0, %v1175
      %v1177 = vpop.f32.mrb[0].mxu0
      %1178 = vdwg.mxu0
      %v1179 = vadd.f32 %v1059, %v1141
      %v1180 = vadd.f32 %v1060, %v1144
      %v1181 = vadd.f32 %v1061, %v1149
      %v1182 = vadd.f32 %v1062, %v1152
      %v1183 = vadd.f32 %v1063, %v1157
      %v1184 = vadd.f32 %v1064, %v1160
      %v1185 = vadd.f32 %v1065, %v1165
      %v1186 = vadd.f32 %v1066, %v1168
      %v1187 = vadd.f32 %v1067, %v1173
      %v1188 = vadd.f32 %v1068, %v1176
      %s1189 = sadd.s32 %s248, 22
      %s1190 = scalar_lea.vmem %s229, %s1189
      %v1191 = vld [vmem:[%s1190] sm:$0xff]
      %v1192 = vld [vmem:[%s1190 + $0x8] sm:$0xff]
      %v1193 = vld [vmem:[%s1190 + $0x10] sm:$0xff]
      %v1194 = vld [vmem:[%s1190 + $0x18] sm:$0xff]
      %v1195 = vld [vmem:[%s1190 + $0x20] sm:$0xff]
      %v1196 = vld [vmem:[%s1190 + $0x28] sm:$0xff]
      %v1197 = vld [vmem:[%s1190 + $0x30] sm:$0xff]
      %v1198 = vld [vmem:[%s1190 + $0x38] sm:$0xff]
      %v1199 = vld [vmem:[%s1190 + $0x40] sm:$0xff]
      %v1200 = vld [vmem:[%s1190 + $0x48] sm:$0xff]
      %v1201 = vpack.c.bf16 %v1192, %v1191
      %v1202 = vpack.c.bf16 %v1194, %v1193
      %v1203 = vpack.c.bf16 %v1196, %v1195
      %v1204 = vpack.c.bf16 %v1198, %v1197
      %v1205 = vpack.c.bf16 %v1200, %v1199
      %s1206 = scalar_lea.vmem %s1, 32
      %v1207 = vld [vmem:[%s1206] sm:$0xf]
      %v1209 = vsel %vm285, %v1201, 0
      %v1212 = vsel %vm285, %v1202, 0
      %v1215 = vsel %vm285, %v1203, 0
      %v1218 = vsel %vm285, %v1204, 0
      %v1221 = vsel %vm285, %v1205, 0
      %v1224 = vsel %vm301, %v1207, 0
      %1226 = vmatprep.subr.bf16.mxu0 0
      %1227 = vmatpush1.bf16.msra.mxu0 %v1224
      %1228 = vmatprep.subr.bf16.mxu0 0
      %1229 = vmatpush1.bf16.msra.mxu0 0
      %1230 = vmatprep.subr.bf16.mxu0 0
      %1231 = vmatpush1.bf16.msra.mxu0 0
      %1232 = vmatprep.subr.bf16.mxu0 0
      %1233 = vmatpush1.bf16.msra.mxu0 0
      %1234 = vmatprep.subr.bf16.mxu0 0
      %1235 = vmatpush1.bf16.msra.mxu0 0
      %1236 = vmatprep.subr.bf16.mxu0 0
      %1237 = vmatpush1.bf16.msra.mxu0 0
      %1238 = vmatprep.subr.bf16.mxu0 0
      %1239 = vmatpush1.bf16.msra.mxu0 0
      %1240 = vmatprep.subr.bf16.mxu0 0
      %1241 = vmatpush1.bf16.msra.mxu0 0
      %1242 = vmatprep.subr.bf16.mxu0 0
      %1243 = vmatpush1.bf16.msra.mxu0 0
      %1244 = vmatprep.subr.bf16.mxu0 0
      %1245 = vmatpush1.bf16.msra.mxu0 0
      %1246 = vmatprep.subr.bf16.mxu0 0
      %1247 = vmatpush1.bf16.msra.mxu0 0
      %1248 = vmatprep.subr.bf16.mxu0 0
      %1249 = vmatpush1.bf16.msra.mxu0 0
      %1250 = vmatprep.subr.bf16.mxu0 0
      %1251 = vmatpush1.bf16.msra.mxu0 0
      %1252 = vmatprep.subr.bf16.mxu0 0
      %1253 = vmatpush1.bf16.msra.mxu0 0
      %1254 = vmatprep.subr.bf16.mxu0 0
      %1255 = vmatpush1.bf16.msra.mxu0 0
      %1256 = vmatprep.subr.bf16.mxu0 0
      %1257 = vmatpush1.bf16.msra.mxu0 0
      %1258 = vmatprep.mubr.bf16.mxu0 0
      %1259 = vmatmul.mubr.bf16.gmra.mrb[0].mxu0 %v1209
      %v1260 = vpop.f32.mrb[0].mxu0
      %v1261 = vadd.f32 0.0, %v1260
      %v1262 = vpop.f32.mrb[0].mxu0
      %v1263 = vpop.f32.mrb[0].mxu0
      %v1264 = vadd.f32 0.0, %v1263
      %v1265 = vpop.f32.mrb[0].mxu0
      %1266 = vmatprep.mubr.bf16.mxu0 0
      %1267 = vmatmul.mubr.bf16.gmra.mrb[0].mxu0 %v1212
      %v1268 = vpop.f32.mrb[0].mxu0
      %v1269 = vadd.f32 0.0, %v1268
      %v1270 = vpop.f32.mrb[0].mxu0
      %v1271 = vpop.f32.mrb[0].mxu0
      %v1272 = vadd.f32 0.0, %v1271
      %v1273 = vpop.f32.mrb[0].mxu0
      %1274 = vmatprep.mubr.bf16.mxu0 0
      %1275 = vmatmul.mubr.bf16.gmra.mrb[0].mxu0 %v1215
      %v1276 = vpop.f32.mrb[0].mxu0
      %v1277 = vadd.f32 0.0, %v1276
      %v1278 = vpop.f32.mrb[0].mxu0
      %v1279 = vpop.f32.mrb[0].mxu0
      %v1280 = vadd.f32 0.0, %v1279
      %v1281 = vpop.f32.mrb[0].mxu0
      %1282 = vmatprep.mubr.bf16.mxu0 0
      %1283 = vmatmul.mubr.bf16.gmra.mrb[0].mxu0 %v1218
      %v1284 = vpop.f32.mrb[0].mxu0
      %v1285 = vadd.f32 0.0, %v1284
      %v1286 = vpop.f32.mrb[0].mxu0
      %v1287 = vpop.f32.mrb[0].mxu0
      %v1288 = vadd.f32 0.0, %v1287
      %v1289 = vpop.f32.mrb[0].mxu0
      %1290 = vmatprep.mubr.bf16.mxu0 0
      %1291 = vmatmul.mubr.bf16.gmra.mrb[0].mxu0 %v1221
      %v1292 = vpop.f32.mrb[0].mxu0
      %v1293 = vadd.f32 0.0, %v1292
      %v1294 = vpop.f32.mrb[0].mxu0
      %v1295 = vpop.f32.mrb[0].mxu0
      %v1296 = vadd.f32 0.0, %v1295
      %v1297 = vpop.f32.mrb[0].mxu0
      %1298 = vdwg.mxu0
      %v1299 = vadd.f32 %v1179, %v1261
      %v1300 = vadd.f32 %v1180, %v1264
      %v1301 = vadd.f32 %v1181, %v1269
      %v1302 = vadd.f32 %v1182, %v1272
      %v1303 = vadd.f32 %v1183, %v1277
      %v1304 = vadd.f32 %v1184, %v1280
      %v1305 = vadd.f32 %v1185, %v1285
      %v1306 = vadd.f32 %v1186, %v1288
      %v1307 = vadd.f32 %v1187, %v1293
      %v1308 = vadd.f32 %v1188, %v1296
      %v1309 = vld [vmem:[%s2] sm:$0x1]
      %v1311 = vlaneseq
      %v1312 = vshrl.u32 %v1311, 7
      %v1313 = vsub.s32 0, %v1312
      %v1314 = vrot.slane %v1309, %v1313
      %v1316 = vadd.f32 %v1299, %v1314
      %v1317 = vadd.f32 %v1300, %v1314
      %v1318 = vadd.f32 %v1301, %v1314
      %v1319 = vadd.f32 %v1302, %v1314
      %v1320 = vadd.f32 %v1303, %v1314
      %v1321 = vadd.f32 %v1304, %v1314
      %v1322 = vadd.f32 %v1305, %v1314
      %v1323 = vadd.f32 %v1306, %v1314
      %v1324 = vadd.f32 %v1307, %v1314
      %v1325 = vadd.f32 %v1308, %v1314
      %v1326 = vld [vmem:[%s236] sm:$0xff]
      %v1327 = vld [vmem:[%s236 + $0x8] sm:$0xff]
      %v1328 = vld [vmem:[%s236 + $0x10] sm:$0xff]
      %v1329 = vld [vmem:[%s236 + $0x18] sm:$0xff]
      %v1330 = vld [vmem:[%s236 + $0x20] sm:$0xff]
      %v1331 = vld [vmem:[%s236 + $0x28] sm:$0xff]
      %v1332 = vld [vmem:[%s236 + $0x30] sm:$0xff]
      %v1333 = vld [vmem:[%s236 + $0x38] sm:$0xff]
      %v1334 = vld [vmem:[%s236 + $0x40] sm:$0xff]
      %v1335 = vld [vmem:[%s236 + $0x48] sm:$0xff]
      %v1336 = vadd.f32 %v1316, %v1326
      %v1337 = vadd.f32 %v1317, %v1327
      %v1338 = vadd.f32 %v1318, %v1328
      %v1339 = vadd.f32 %v1319, %v1329
      %v1340 = vadd.f32 %v1320, %v1330
      %v1341 = vadd.f32 %v1321, %v1331
      %v1342 = vadd.f32 %v1322, %v1332
      %v1343 = vadd.f32 %v1323, %v1333
      %v1344 = vadd.f32 %v1324, %v1334
      %v1345 = vadd.f32 %v1325, %v1335
      %1346 = vst [vmem:[%s244] sm:$0xff] %v1336
      %1347 = vst [vmem:[%s244 + $0x8] sm:$0xff] %v1337
      %1348 = vst [vmem:[%s244 + $0x10] sm:$0xff] %v1338
      %1349 = vst [vmem:[%s244 + $0x18] sm:$0xff] %v1339
      %1350 = vst [vmem:[%s244 + $0x20] sm:$0xff] %v1340
      %1351 = vst [vmem:[%s244 + $0x28] sm:$0xff] %v1341
      %1352 = vst [vmem:[%s244 + $0x30] sm:$0xff] %v1342
      %1353 = vst [vmem:[%s244 + $0x38] sm:$0xff] %v1343
      %1354 = vst [vmem:[%s244 + $0x40] sm:$0xff] %v1344
      %1355 = vst [vmem:[%s244 + $0x48] sm:$0xff] %v1345
      %s1356 = sadd.s32 %s19, %s20
      %s1357 = smul.u32 10, %s1356
      %p1358 = scmp.lt.s32.totalorder %s1357, 19
      %s1359 = scalar_select %p1358, %s1357, 19
      %s1360 = smul.addr %s1359, 8
      %s1361 = scalar_lea.vmem %s4, %s1360
      // Predicated region
      $region37: #{adapter_forward.14} parent=35 // pred_check
        %p1362 = pneg %p143
      $region38: #{adapter_forward.14} parent=35 // pred_check_branch
        %1364 = sbr.rel (%p1362) target = $region40
      $region39: #{adapter_forward.14} parent=35 // pred_region
        %s1365 = sadd.s32 %s19, %s20
        %s1366 = smul.u32 10, %s1365
      $region40: #{adapter_forward.14} parent=35 // pred_fallthru
        _
    $region36: #{adapter_forward.14} parent=5 // pred_fallthru
      _
    %p1367 = scmp.le.s32.totalorder 2, %s10
    // Predicated region
    $region41: #{adapter_forward.14} parent=5 // pred_check
      %p1368 = pneg %p1367
    $region42: #{adapter_forward.14} parent=5 // pred_check_branch
      %1370 = sbr.rel (%p1368) target = $region44
    $region43: #{adapter_forward.14} parent=5 // pred_region
      %s1371 = ssub.s32 %s10, 2
      // Predicated region
      $region45: #{adapter_forward.14} parent=43 // pred_check
        %p1372 = pneg %p149
      $region46: #{adapter_forward.14} parent=43 // pred_check_branch
        %1374 = sbr.rel (%p1372) target = $region48
      $region47: #{adapter_forward.14} parent=43 // pred_region
        %s1375 = sadd.s32 %s21, %s22
        %s1376 = smul.u32 10, %s1375
        %p1377 = scmp.lt.s32.totalorder %s1376, 19
        %s1378 = scalar_select %p1377, %s1376, 19
        %s1379 = smul.addr %s1378, 8
        %s1380 = scalar_lea.vmem %s4, %s1379
      $region48: #{adapter_forward.14} parent=43 // pred_fallthru
        _
    $region44: #{adapter_forward.14} parent=5 // pred_fallthru
      _
  $region6: #{adapter_forward.14} parent=0 // loop_footer
    %s14 = sadd.s32 1, %s10
  $region7: #{adapter_forward.14} parent=0 // loop_footer_branch
    %9 = sbr.rel target = $region3
  $region8: #{adapter_forward.14} parent=0 // loop_exit
    _

// kernel: adapter_forward.12
$region0: #{adapter_forward.12}
  #allocation0 [shape = 'u32[]', space=smem, size = 0x4, offset = 0x4, fixed_abs, tag = 'smem constant byte address 0x4 - core index']
  #allocation1 [shape = 'u32[144,128]{1,0:T(1,128)}', space=vmem, size = 0x12000, scoped, tag = 'internal scratch']
  %s0 = inlined_call_operand.vmem [shape: f32[208,8], index: 0, kind: input, shape index: {}]
  %s1 = inlined_call_operand.vmem [shape: bf16[9,8,128], index: 1, kind: input, shape index: {}]
  %s2 = inlined_call_operand.vmem [shape: f32[1,128], index: 2, kind: input, shape index: {}]
  %s3 = inlined_call_operand.vmem [shape: f32[160,128], index: 3, kind: output, shape index: {}]
  %s4 = sld [smem:[#allocation0]]
  $region45: #{adapter_forward.12} parent=0
    _
  %s6 = ssub.s32 1, %s4
  %s7 = scalar_select 0, %s6, %s4
  loop: start=0, step=1, limit=4
  $region2: #{adapter_forward.12} parent=0 // loop_pre_header
    _
  $region3: #{adapter_forward.12} parent=0 // loop_header
    %s9 = sphi 0, %s13
    %p10 = scmp.ge.s32.totalorder %s9, 4
    %s16 = sphi 0, %s28
    %s17 = sphi 0, %s24
    %s18 = sphi 0, %s16
    %s19 = sphi 0, %s17
    %s20 = sphi 0, %s18
    %s21 = sphi 0, %s19
    %s31 = sphi 0, %s33
    %s34 = sphi 0, %s31
    %s35 = sphi 0, %s34
    %s51 = sphi 0, %s35
    %s55 = sphi 0, %s55
    %s57 = sphi 0, %s55
    %s58 = sphi 0, %s57
    %s72 = sphi 0, %s58
    %s76 = sphi 0, %s76
    %s78 = sphi 0, %s76
    %s79 = sphi 0, %s78
    %s93 = sphi 0, %s79
    %s101 = sphi 0, %s103
    %s104 = sphi 0, %s101
    %s105 = sphi 0, %s104
    %s121 = sphi 0, %s105
  $region4: #{adapter_forward.12} parent=0 // loop_header_branch
    %12 = sbr.rel (%p10) target = $region8
  $region5: #{adapter_forward.12} parent=0 // loop_body
    %s14 = ssub.s32 %s9, 1
    %s15 = ssub.s32 %s9, 2
    %s22 = sadd.s32 1, %s17
    %p23 = scmp.ge.s32.totalorder %s22, 1
    %s24 = scalar_select %p23, 0, %s22
    %s25 = sadd.s32 1, %s16
    %s26 = scalar_select %p23, %s25, %s16
    %p27 = scmp.ge.s32.totalorder %s26, 2
    %s28 = scalar_select %p27, 0, %s26
    %s29 = ssub.s32 %s16, %s28
    %p30 = scmp.eq.s32.totalorder %s29, 0
    %s32 = sadd.s32 %s31, 1
    %s33 = scalar_select %p30, %s31, %s32
    %p36 = pneg %p30
    %p37 = scmp.eq.s32.totalorder %s9, 1
    %p38 = por %p36, %p37
    %p39 = scmp.ne.s32.totalorder %s31, %s34
    %p40 = scmp.eq.s32.totalorder %s9, 0
    %p41 = por %p39, %p40
    %p42 = scmp.ne.s32.totalorder %s31, %s34
    %p43 = scmp.eq.s32.totalorder %s14, 1
    %p44 = por %p42, %p43
    %p45 = scmp.ne.s32.totalorder %s34, %s35
    %p46 = scmp.eq.s32.totalorder %s14, 0
    %p47 = por %p45, %p46
    %p48 = scmp.ne.s32.totalorder %s34, %s35
    %p49 = scmp.eq.s32.totalorder %s15, 1
    %p50 = por %p48, %p49
    %p52 = scmp.ne.s32.totalorder %s35, %s51
    %p53 = scmp.eq.s32.totalorder %s15, 0
    %p54 = por %p52, %p53
    %s56 = sadd.s32 %s55, 1
    %p59 = scmp.eq.s32.totalorder %s9, 1
    %p60 = scmp.ne.s32.totalorder %s55, %s57
    %p61 = scmp.eq.s32.totalorder %s9, 0
    %p62 = por %p60, %p61
    %p63 = scmp.ne.s32.totalorder %s55, %s57
    %p64 = scmp.eq.s32.totalorder %s14, 1
    %p65 = por %p63, %p64
    %p66 = scmp.ne.s32.totalorder %s57, %s58
    %p67 = scmp.eq.s32.totalorder %s14, 0
    %p68 = por %p66, %p67
    %p69 = scmp.ne.s32.totalorder %s57, %s58
    %p70 = scmp.eq.s32.totalorder %s15, 1
    %p71 = por %p69, %p70
    %p73 = scmp.ne.s32.totalorder %s58, %s72
    %p74 = scmp.eq.s32.totalorder %s15, 0
    %p75 = por %p73, %p74
    %s77 = sadd.s32 %s76, 1
    %p80 = scmp.eq.s32.totalorder %s9, 1
    %p81 = scmp.ne.s32.totalorder %s76, %s78
    %p82 = scmp.eq.s32.totalorder %s9, 0
    %p83 = por %p81, %p82
    %p84 = scmp.ne.s32.totalorder %s76, %s78
    %p85 = scmp.eq.s32.totalorder %s14, 1
    %p86 = por %p84, %p85
    %p87 = scmp.ne.s32.totalorder %s78, %s79
    %p88 = scmp.eq.s32.totalorder %s14, 0
    %p89 = por %p87, %p88
    %p90 = scmp.ne.s32.totalorder %s78, %s79
    %p91 = scmp.eq.s32.totalorder %s15, 1
    %p92 = por %p90, %p91
    %p94 = scmp.ne.s32.totalorder %s79, %s93
    %p95 = scmp.eq.s32.totalorder %s15, 0
    %p96 = por %p94, %p95
    %s97 = sadd.s32 %s16, %s17
    %s98 = sadd.s32 %s28, %s24
    %s99 = ssub.s32 %s97, %s98
    %p100 = scmp.eq.s32.totalorder %s99, 0
    %s102 = sadd.s32 %s101, 1
    %s103 = scalar_select %p100, %s101, %s102
    %p106 = pneg %p100
    %p107 = scmp.eq.s32.totalorder %s9, 1
    %p108 = por %p106, %p107
    %p109 = scmp.ne.s32.totalorder %s101, %s104
    %p110 = scmp.eq.s32.totalorder %s9, 0
    %p111 = por %p109, %p110
    %p112 = scmp.ne.s32.totalorder %s101, %s104
    %p113 = scmp.eq.s32.totalorder %s14, 1
    %p114 = por %p112, %p113
    %p115 = scmp.ne.s32.totalorder %s104, %s105
    %p116 = scmp.eq.s32.totalorder %s14, 0
    %p117 = por %p115, %p116
    %p118 = scmp.ne.s32.totalorder %s104, %s105
    %p119 = scmp.eq.s32.totalorder %s15, 1
    %p120 = por %p118, %p119
    %p122 = scmp.ne.s32.totalorder %s105, %s121
    %p123 = scmp.eq.s32.totalorder %s15, 0
    %p124 = por %p122, %p123
    %p125 = scmp.le.s32.totalorder 1, %s9
    %p126 = scmp.lt.s32.totalorder %s9, 3
    %p127 = pnand %p125, %p126
    %p128 = pneg %p127
    // Predicated region
    $region9: #{adapter_forward.12} parent=5 // pred_check
      _
    $region10: #{adapter_forward.12} parent=5 // pred_check_branch
      %130 = sbr.rel (%p127) target = $region12
    $region11: #{adapter_forward.12} parent=5 // pred_region
      %s131 = ssub.s32 %s9, 1
      // Predicated region
      $region13: #{adapter_forward.12} parent=11 // pred_check
        %p132 = pneg %p68
      $region14: #{adapter_forward.12} parent=11 // pred_check_branch
        %134 = sbr.rel (%p132) target = $region16
      $region15: #{adapter_forward.12} parent=11 // pred_region
        _
      $region16: #{adapter_forward.12} parent=11 // pred_fallthru
        _
      // Predicated region
      $region17: #{adapter_forward.12} parent=11 // pred_check
        %p135 = pneg %p89
      $region18: #{adapter_forward.12} parent=11 // pred_check_branch
        %137 = sbr.rel (%p135) target = $region20
      $region19: #{adapter_forward.12} parent=11 // pred_region
        _
      $region20: #{adapter_forward.12} parent=11 // pred_fallthru
        _
    $region12: #{adapter_forward.12} parent=5 // pred_fallthru
      _
    %p138 = scmp.lt.s32.totalorder %s9, 2
    // Predicated region
    $region21: #{adapter_forward.12} parent=5 // pred_check
      %p139 = pneg %p138
    $region22: #{adapter_forward.12} parent=5 // pred_check_branch
      %141 = sbr.rel (%p139) target = $region24
    $region23: #{adapter_forward.12} parent=5 // pred_region
      // Predicated region
      $region25: #{adapter_forward.12} parent=23 // pred_check
        %p142 = pneg %p41
      $region26: #{adapter_forward.12} parent=23 // pred_check_branch
        %144 = sbr.rel (%p142) target = $region28
      $region27: #{adapter_forward.12} parent=23 // pred_region
        %s145 = smul.u32 13, %s16
        %p146 = scmp.lt.s32.totalorder %s145, 25
        %s147 = scalar_select %p146, %s145, 25
        %s148 = smul.addr %s147, 8
        %s149 = scalar_lea.vmem %s0, %s148
        %s150 = smul.u32 13, %s16
      $region28: #{adapter_forward.12} parent=23 // pred_fallthru
        _
    $region24: #{adapter_forward.12} parent=5 // pred_fallthru
      _
    %p151 = scmp.le.s32.totalorder 1, %s9
    %p152 = scmp.lt.s32.totalorder %s9, 3
    %p153 = pnand %p151, %p152
    %p154 = pneg %p153
    // Predicated region
    $region29: #{adapter_forward.12} parent=5 // pred_check
      _
    $region30: #{adapter_forward.12} parent=5 // pred_check_branch
      %156 = sbr.rel (%p153) target = $region32
    $region31: #{adapter_forward.12} parent=5 // pred_region
      %s157 = ssub.s32 %s9, 1
      %s158 = smul.u32 13, %s18
      %p159 = scmp.lt.s32.totalorder %s158, 25
      %s160 = scalar_select %p159, %s158, 25
      %s161 = smul.addr %s160, 8
      %s162 = scalar_lea.vmem %s0, %s161
      %p163 = pneg %p47
      %p164 = pneg %p44
      %p165 = pneg %p68
      %p166 = pneg %p65
      %p167 = pneg %p89
      %p168 = pneg %p86
      %p169 = pneg %p117
      %p170 = pneg %p114
      %s171 = sadd.s32 %s18, %s19
      %s172 = smul.u32 10, %s171
      %p173 = scmp.lt.s32.totalorder %s172, 19
      %s174 = scalar_select %p173, %s172, 19
      %s175 = smul.addr %s174, 8
      %s176 = scalar_lea.vmem %s3, %s175
      %s177 = smul.u32 13, %s18
      %p178 = scmp.lt.s32.totalorder %s177, 25
      %s179 = scalar_select %p178, %s177, 25
      %s180 = smul.addr %s179, 8
      %s181 = scalar_lea.vmem %s0, %s180
      %s182 = smul.u32 13, %s18
      %s183 = sadd.s32 %s18, %s19
      %s184 = smul.u32 10, %s183
      %p185 = scmp.lt.s32.totalorder %s184, 19
      %s186 = scalar_select %p185, %s184, 19
      %s187 = smul.addr %s186, 8
      %s188 = scalar_lea.vmem %s3, %s187
      %s189 = sadd.s32 %s18, %s19
      %s190 = smul.u32 10, %s189
      %s192 = smul.u32 %s19, 80
      %s193 = scalar_lea.vmem %s181, %s192
      %v194 = vld [vmem:[%s193] sm:$0xff]
      %v195 = vld [vmem:[%s193 + $0x8] sm:$0xff]
      %v196 = vld [vmem:[%s193 + $0x10] sm:$0xff]
      %v197 = vld [vmem:[%s193 + $0x18] sm:$0xff]
      %v198 = vld [vmem:[%s193 + $0x20] sm:$0xff]
      %v199 = vld [vmem:[%s193 + $0x28] sm:$0xff]
      %v200 = vld [vmem:[%s193 + $0x30] sm:$0xff]
      %v201 = vld [vmem:[%s193 + $0x38] sm:$0xff]
      %v202 = vld [vmem:[%s193 + $0x40] sm:$0xff]
      %v203 = vld [vmem:[%s193 + $0x48] sm:$0xff]
      %v204 = vpack.c.bf16 %v195, %v194
      %v205 = vpack.c.bf16 %v197, %v196
      %v206 = vpack.c.bf16 %v199, %v198
      %v207 = vpack.c.bf16 %v201, %v200
      %v208 = vpack.c.bf16 %v203, %v202
      %v209 = vld [vmem:[%s1] sm:$0xf]
      %s210 = sadd.s32 %s192, 1
      %s211 = scalar_lea.vmem %s181, %s210
      %v212 = vld [vmem:[%s211] sm:$0xff]
      %v213 = vld [vmem:[%s211 + $0x8] sm:$0xff]
      %v214 = vld [vmem:[%s211 + $0x10] sm:$0xff]
      %v215 = vld [vmem:[%s211 + $0x18] sm:$0xff]
      %v216 = vld [vmem:[%s211 + $0x20] sm:$0xff]
      %v217 = vld [vmem:[%s211 + $0x28] sm:$0xff]
      %v218 = vld [vmem:[%s211 + $0x30] sm:$0xff]
      %v219 = vld [vmem:[%s211 + $0x38] sm:$0xff]
      %v220 = vld [vmem:[%s211 + $0x40] sm:$0xff]
      %v221 = vld [vmem:[%s211 + $0x48] sm:$0xff]
      %v222 = vpack.c.bf16 %v213, %v212
      %v223 = vpack.c.bf16 %v215, %v214
      %v224 = vpack.c.bf16 %v217, %v216
      %v225 = vpack.c.bf16 %v219, %v218
      %v226 = vpack.c.bf16 %v221, %v220
      %s227 = scalar_lea.vmem %s1, 4
      %v228 = vld [vmem:[%s227] sm:$0xf]
      %vm229 = vcmask 64512
      %v231 = vsel %vm229, %v222, 0
      %v234 = vsel %vm229, %v223, 0
      %v237 = vsel %vm229, %v224, 0
      %v240 = vsel %vm229, %v225, 0
      %v243 = vsel %vm229, %v226, 0
      %vm245 = vcmask 1043456
      %v247 = vsel %vm245, %v228, 0
      %249 = vmatprep.subr.bf16.mxu0 0
      %250 = vmatpush1.bf16.msra.mxu0 %v247
      %251 = vmatprep.subr.bf16.mxu0 0
      %252 = vmatpush1.bf16.msra.mxu0 0
      %253 = vmatprep.subr.bf16.mxu0 0
      %254 = vmatpush1.bf16.msra.mxu0 0
      %255 = vmatprep.subr.bf16.mxu0 0
      %256 = vmatpush1.bf16.msra.mxu0 0
      %257 = vmatprep.subr.bf16.mxu0 0
      %258 = vmatpush1.bf16.msra.mxu0 0
      %259 = vmatprep.subr.bf16.mxu0 0
      %260 = vmatpush1.bf16.msra.mxu0 0
      %261 = vmatprep.subr.bf16.mxu0 0
      %262 = vmatpush1.bf16.msra.mxu0 0
      %263 = vmatprep.subr.bf16.mxu0 0
      %264 = vmatpush1.bf16.msra.mxu0 0
      %265 = vmatprep.subr.bf16.mxu0 0
      %266 = vmatpush1.bf16.msra.mxu0 0
      %267 = vmatprep.subr.bf16.mxu0 0
      %268 = vmatpush1.bf16.msra.mxu0 0
      %269 = vmatprep.subr.bf16.mxu0 0
      %270 = vmatpush1.bf16.msra.mxu0 0
      %271 = vmatprep.subr.bf16.mxu0 0
      %272 = vmatpush1.bf16.msra.mxu0 0
      %273 = vmatprep.subr.bf16.mxu0 0
      %274 = vmatpush1.bf16.msra.mxu0 0
      %275 = vmatprep.subr.bf16.mxu0 0
      %276 = vmatpush1.bf16.msra.mxu0 0
      %277 = vmatprep.subr.bf16.mxu0 0
      %278 = vmatpush1.bf16.msra.mxu0 0
      %279 = vmatprep.subr.bf16.mxu0 0
      %280 = vmatpush1.bf16.msra.mxu0 0
      %281 = vmatprep.mubr.bf16.mxu0 0
      %282 = vmatmul.mubr.bf16.gmra.mrb[0].mxu0 %v231
      %v283 = vpop.f32.mrb[0].mxu0
      %v284 = vadd.f32 0.0, %v283
      %v285 = vpop.f32.mrb[0].mxu0
      %v286 = vpop.f32.mrb[0].mxu0
      %v287 = vadd.f32 0.0, %v286
      %v288 = vpop.f32.mrb[0].mxu0
      %289 = vmatprep.mubr.bf16.mxu0 0
      %290 = vmatmul.mubr.bf16.gmra.mrb[0].mxu0 %v234
      %v291 = vpop.f32.mrb[0].mxu0
      %v292 = vadd.f32 0.0, %v291
      %v293 = vpop.f32.mrb[0].mxu0
      %v294 = vpop.f32.mrb[0].mxu0
      %v295 = vadd.f32 0.0, %v294
      %v296 = vpop.f32.mrb[0].mxu0
      %297 = vmatprep.mubr.bf16.mxu0 0
      %298 = vmatmul.mubr.bf16.gmra.mrb[0].mxu0 %v237
      %v299 = vpop.f32.mrb[0].mxu0
      %v300 = vadd.f32 0.0, %v299
      %v301 = vpop.f32.mrb[0].mxu0
      %v302 = vpop.f32.mrb[0].mxu0
      %v303 = vadd.f32 0.0, %v302
      %v304 = vpop.f32.mrb[0].mxu0
      %305 = vmatprep.mubr.bf16.mxu0 0
      %306 = vmatmul.mubr.bf16.gmra.mrb[0].mxu0 %v240
      %v307 = vpop.f32.mrb[0].mxu0
      %v308 = vadd.f32 0.0, %v307
      %v309 = vpop.f32.mrb[0].mxu0
      %v310 = vpop.f32.mrb[0].mxu0
      %v311 = vadd.f32 0.0, %v310
      %v312 = vpop.f32.mrb[0].mxu0
      %313 = vmatprep.mubr.bf16.mxu0 0
      %314 = vmatmul.mubr.bf16.gmra.mrb[0].mxu0 %v243
      %v315 = vpop.f32.mrb[0].mxu0
      %v316 = vadd.f32 0.0, %v315
      %v317 = vpop.f32.mrb[0].mxu0
      %v318 = vpop.f32.mrb[0].mxu0
      %v319 = vadd.f32 0.0, %v318
      %v320 = vpop.f32.mrb[0].mxu0
      %321 = vdwg.mxu0
      %v323 = vsel %vm229, %v204, 0
      %v326 = vsel %vm229, %v205, 0
      %v329 = vsel %vm229, %v206, 0
      %v332 = vsel %vm229, %v207, 0
      %v335 = vsel %vm229, %v208, 0
      %v338 = vsel %vm245, %v209, 0
      %340 = vmatprep.subr.bf16.mxu0 0
      %341 = vmatpush1.bf16.msra.mxu0 %v338
      %342 = vmatprep.subr.bf16.mxu0 0
      %343 = vmatpush1.bf16.msra.mxu0 0
      %344 = vmatprep.subr.bf16.mxu0 0
      %345 = vmatpush1.bf16.msra.mxu0 0
      %346 = vmatprep.subr.bf16.mxu0 0
      %347 = vmatpush1.bf16.msra.mxu0 0
      %348 = vmatprep.subr.bf16.mxu0 0
      %349 = vmatpush1.bf16.msra.mxu0 0
      %350 = vmatprep.subr.bf16.mxu0 0
      %351 = vmatpush1.bf16.msra.mxu0 0
      %352 = vmatprep.subr.bf16.mxu0 0
      %353 = vmatpush1.bf16.msra.mxu0 0
      %354 = vmatprep.subr.bf16.mxu0 0
      %355 = vmatpush1.bf16.msra.mxu0 0
      %356 = vmatprep.subr.bf16.mxu0 0
      %357 = vmatpush1.bf16.msra.mxu0 0
      %358 = vmatprep.subr.bf16.mxu0 0
      %359 = vmatpush1.bf16.msra.mxu0 0
      %360 = vmatprep.subr.bf16.mxu0 0
      %361 = vmatpush1.bf16.msra.mxu0 0
      %362 = vmatprep.subr.bf16.mxu0 0
      %363 = vmatpush1.bf16.msra.mxu0 0
      %364 = vmatprep.subr.bf16.mxu0 0
      %365 = vmatpush1.bf16.msra.mxu0 0
      %366 = vmatprep.subr.bf16.mxu0 0
      %367 = vmatpush1.bf16.msra.mxu0 0
      %368 = vmatprep.subr.bf16.mxu0 0
      %369 = vmatpush1.bf16.msra.mxu0 0
      %370 = vmatprep.subr.bf16.mxu0 0
      %371 = vmatpush1.bf16.msra.mxu0 0
      %372 = vmatprep.mubr.bf16.mxu0 0
      %373 = vmatmul.mubr.bf16.gmra.mrb[0].mxu0 %v323
      %v374 = vpop.f32.mrb[0].mxu0
      %v375 = vadd.f32 %v284, %v374
      %v376 = vpop.f32.mrb[0].mxu0
      %v377 = vpop.f32.mrb[0].mxu0
      %v378 = vadd.f32 %v287, %v377
      %v379 = vpop.f32.mrb[0].mxu0
      %380 = vmatprep.mubr.bf16.mxu0 0
      %381 = vmatmul.mubr.bf16.gmra.mrb[0].mxu0 %v326
      %v382 = vpop.f32.mrb[0].mxu0
      %v383 = vadd.f32 %v292, %v382
      %v384 = vpop.f32.mrb[0].mxu0
      %v385 = vpop.f32.mrb[0].mxu0
      %v386 = vadd.f32 %v295, %v385
      %v387 = vpop.f32.mrb[0].mxu0
      %388 = vmatprep.mubr.bf16.mxu0 0
      %389 = vmatmul.mubr.bf16.gmra.mrb[0].mxu0 %v329
      %v390 = vpop.f32.mrb[0].mxu0
      %v391 = vadd.f32 %v300, %v390
      %v392 = vpop.f32.mrb[0].mxu0
      %v393 = vpop.f32.mrb[0].mxu0
      %v394 = vadd.f32 %v303, %v393
      %v395 = vpop.f32.mrb[0].mxu0
      %396 = vmatprep.mubr.bf16.mxu0 0
      %397 = vmatmul.mubr.bf16.gmra.mrb[0].mxu0 %v332
      %v398 = vpop.f32.mrb[0].mxu0
      %v399 = vadd.f32 %v308, %v398
      %v400 = vpop.f32.mrb[0].mxu0
      %v401 = vpop.f32.mrb[0].mxu0
      %v402 = vadd.f32 %v311, %v401
      %v403 = vpop.f32.mrb[0].mxu0
      %404 = vmatprep.mubr.bf16.mxu0 0
      %405 = vmatmul.mubr.bf16.gmra.mrb[0].mxu0 %v335
      %v406 = vpop.f32.mrb[0].mxu0
      %v407 = vadd.f32 %v316, %v406
      %v408 = vpop.f32.mrb[0].mxu0
      %v409 = vpop.f32.mrb[0].mxu0
      %v410 = vadd.f32 %v319, %v409
      %v411 = vpop.f32.mrb[0].mxu0
      %412 = vdwg.mxu0
      %s413 = sadd.s32 %s192, 2
      %s414 = scalar_lea.vmem %s181, %s413
      %v415 = vld [vmem:[%s414] sm:$0xff]
      %v416 = vld [vmem:[%s414 + $0x8] sm:$0xff]
      %v417 = vld [vmem:[%s414 + $0x10] sm:$0xff]
      %v418 = vld [vmem:[%s414 + $0x18] sm:$0xff]
      %v419 = vld [vmem:[%s414 + $0x20] sm:$0xff]
      %v420 = vld [vmem:[%s414 + $0x28] sm:$0xff]
      %v421 = vld [vmem:[%s414 + $0x30] sm:$0xff]
      %v422 = vld [vmem:[%s414 + $0x38] sm:$0xff]
      %v423 = vld [vmem:[%s414 + $0x40] sm:$0xff]
      %v424 = vld [vmem:[%s414 + $0x48] sm:$0xff]
      %v425 = vpack.c.bf16 %v416, %v415
      %v426 = vpack.c.bf16 %v418, %v417
      %v427 = vpack.c.bf16 %v420, %v419
      %v428 = vpack.c.bf16 %v422, %v421
      %v429 = vpack.c.bf16 %v424, %v423
      %s430 = scalar_lea.vmem %s1, 8
      %v431 = vld [vmem:[%s430] sm:$0xf]
      %v433 = vsel %vm229, %v425, 0
      %v436 = vsel %vm229, %v426, 0
      %v439 = vsel %vm229, %v427, 0
      %v442 = vsel %vm229, %v428, 0
      %v445 = vsel %vm229, %v429, 0
      %v448 = vsel %vm245, %v431, 0
      %450 = vmatprep.subr.bf16.mxu0 0
      %451 = vmatpush1.bf16.msra.mxu0 %v448
      %452 = vmatprep.subr.bf16.mxu0 0
      %453 = vmatpush1.bf16.msra.mxu0 0
      %454 = vmatprep.subr.bf16.mxu0 0
      %455 = vmatpush1.bf16.msra.mxu0 0
      %456 = vmatprep.subr.bf16.mxu0 0
      %457 = vmatpush1.bf16.msra.mxu0 0
      %458 = vmatprep.subr.bf16.mxu0 0
      %459 = vmatpush1.bf16.msra.mxu0 0
      %460 = vmatprep.subr.bf16.mxu0 0
      %461 = vmatpush1.bf16.msra.mxu0 0
      %462 = vmatprep.subr.bf16.mxu0 0
      %463 = vmatpush1.bf16.msra.mxu0 0
      %464 = vmatprep.subr.bf16.mxu0 0
      %465 = vmatpush1.bf16.msra.mxu0 0
      %466 = vmatprep.subr.bf16.mxu0 0
      %467 = vmatpush1.bf16.msra.mxu0 0
      %468 = vmatprep.subr.bf16.mxu0 0
      %469 = vmatpush1.bf16.msra.mxu0 0
      %470 = vmatprep.subr.bf16.mxu0 0
      %471 = vmatpush1.bf16.msra.mxu0 0
      %472 = vmatprep.subr.bf16.mxu0 0
      %473 = vmatpush1.bf16.msra.mxu0 0
      %474 = vmatprep.subr.bf16.mxu0 0
      %475 = vmatpush1.bf16.msra.mxu0 0
      %476 = vmatprep.subr.bf16.mxu0 0
      %477 = vmatpush1.bf16.msra.mxu0 0
      %478 = vmatprep.subr.bf16.mxu0 0
      %479 = vmatpush1.bf16.msra.mxu0 0
      %480 = vmatprep.subr.bf16.mxu0 0
      %481 = vmatpush1.bf16.msra.mxu0 0
      %482 = vmatprep.mubr.bf16.mxu0 0
      %483 = vmatmul.mubr.bf16.gmra.mrb[0].mxu0 %v433
      %v484 = vpop.f32.mrb[0].mxu0
      %v485 = vadd.f32 0.0, %v484
      %v486 = vpop.f32.mrb[0].mxu0
      %v487 = vpop.f32.mrb[0].mxu0
      %v488 = vadd.f32 0.0, %v487
      %v489 = vpop.f32.mrb[0].mxu0
      %490 = vmatprep.mubr.bf16.mxu0 0
      %491 = vmatmul.mubr.bf16.gmra.mrb[0].mxu0 %v436
      %v492 = vpop.f32.mrb[0].mxu0
      %v493 = vadd.f32 0.0, %v492
      %v494 = vpop.f32.mrb[0].mxu0
      %v495 = vpop.f32.mrb[0].mxu0
      %v496 = vadd.f32 0.0, %v495
      %v497 = vpop.f32.mrb[0].mxu0
      %498 = vmatprep.mubr.bf16.mxu0 0
      %499 = vmatmul.mubr.bf16.gmra.mrb[0].mxu0 %v439
      %v500 = vpop.f32.mrb[0].mxu0
      %v501 = vadd.f32 0.0, %v500
      %v502 = vpop.f32.mrb[0].mxu0
      %v503 = vpop.f32.mrb[0].mxu0
      %v504 = vadd.f32 0.0, %v503
      %v505 = vpop.f32.mrb[0].mxu0
      %506 = vmatprep.mubr.bf16.mxu0 0
      %507 = vmatmul.mubr.bf16.gmra.mrb[0].mxu0 %v442
      %v508 = vpop.f32.mrb[0].mxu0
      %v509 = vadd.f32 0.0, %v508
      %v510 = vpop.f32.mrb[0].mxu0
      %v511 = vpop.f32.mrb[0].mxu0
      %v512 = vadd.f32 0.0, %v511
      %v513 = vpop.f32.mrb[0].mxu0
      %514 = vmatprep.mubr.bf16.mxu0 0
      %515 = vmatmul.mubr.bf16.gmra.mrb[0].mxu0 %v445
      %v516 = vpop.f32.mrb[0].mxu0
      %v517 = vadd.f32 0.0, %v516
      %v518 = vpop.f32.mrb[0].mxu0
      %v519 = vpop.f32.mrb[0].mxu0
      %v520 = vadd.f32 0.0, %v519
      %v521 = vpop.f32.mrb[0].mxu0
      %522 = vdwg.mxu0
      %v523 = vadd.f32 %v375, %v485
      %v524 = vadd.f32 %v378, %v488
      %v525 = vadd.f32 %v383, %v493
      %v526 = vadd.f32 %v386, %v496
      %v527 = vadd.f32 %v391, %v501
      %v528 = vadd.f32 %v394, %v504
      %v529 = vadd.f32 %v399, %v509
      %v530 = vadd.f32 %v402, %v512
      %v531 = vadd.f32 %v407, %v517
      %v532 = vadd.f32 %v410, %v520
      %s533 = sadd.s32 %s192, 10
      %s534 = scalar_lea.vmem %s181, %s533
      %v535 = vld [vmem:[%s534] sm:$0xff]
      %v536 = vld [vmem:[%s534 + $0x8] sm:$0xff]
      %v537 = vld [vmem:[%s534 + $0x10] sm:$0xff]
      %v538 = vld [vmem:[%s534 + $0x18] sm:$0xff]
      %v539 = vld [vmem:[%s534 + $0x20] sm:$0xff]
      %v540 = vld [vmem:[%s534 + $0x28] sm:$0xff]
      %v541 = vld [vmem:[%s534 + $0x30] sm:$0xff]
      %v542 = vld [vmem:[%s534 + $0x38] sm:$0xff]
      %v543 = vld [vmem:[%s534 + $0x40] sm:$0xff]
      %v544 = vld [vmem:[%s534 + $0x48] sm:$0xff]
      %v545 = vpack.c.bf16 %v536, %v535
      %v546 = vpack.c.bf16 %v538, %v537
      %v547 = vpack.c.bf16 %v540, %v539
      %v548 = vpack.c.bf16 %v542, %v541
      %v549 = vpack.c.bf16 %v544, %v543
      %s550 = scalar_lea.vmem %s1, 12
      %v551 = vld [vmem:[%s550] sm:$0xf]
      %v553 = vsel %vm229, %v545, 0
      %v556 = vsel %vm229, %v546, 0
      %v559 = vsel %vm229, %v547, 0
      %v562 = vsel %vm229, %v548, 0
      %v565 = vsel %vm229, %v549, 0
      %v568 = vsel %vm245, %v551, 0
      %570 = vmatprep.subr.bf16.mxu0 0
      %571 = vmatpush1.bf16.msra.mxu0 %v568
      %572 = vmatprep.subr.bf16.mxu0 0
      %573 = vmatpush1.bf16.msra.mxu0 0
      %574 = vmatprep.subr.bf16.mxu0 0
      %575 = vmatpush1.bf16.msra.mxu0 0
      %576 = vmatprep.subr.bf16.mxu0 0
      %577 = vmatpush1.bf16.msra.mxu0 0
      %578 = vmatprep.subr.bf16.mxu0 0
      %579 = vmatpush1.bf16.msra.mxu0 0
      %580 = vmatprep.subr.bf16.mxu0 0
      %581 = vmatpush1.bf16.msra.mxu0 0
      %582 = vmatprep.subr.bf16.mxu0 0
      %583 = vmatpush1.bf16.msra.mxu0 0
      %584 = vmatprep.subr.bf16.mxu0 0
      %585 = vmatpush1.bf16.msra.mxu0 0
      %586 = vmatprep.subr.bf16.mxu0 0
      %587 = vmatpush1.bf16.msra.mxu0 0
      %588 = vmatprep.subr.bf16.mxu0 0
      %589 = vmatpush1.bf16.msra.mxu0 0
      %590 = vmatprep.subr.bf16.mxu0 0
      %591 = vmatpush1.bf16.msra.mxu0 0
      %592 = vmatprep.subr.bf16.mxu0 0
      %593 = vmatpush1.bf16.msra.mxu0 0
      %594 = vmatprep.subr.bf16.mxu0 0
      %595 = vmatpush1.bf16.msra.mxu0 0
      %596 = vmatprep.subr.bf16.mxu0 0
      %597 = vmatpush1.bf16.msra.mxu0 0
      %598 = vmatprep.subr.bf16.mxu0 0
      %599 = vmatpush1.bf16.msra.mxu0 0
      %600 = vmatprep.subr.bf16.mxu0 0
      %601 = vmatpush1.bf16.msra.mxu0 0
      %602 = vmatprep.mubr.bf16.mxu0 0
      %603 = vmatmul.mubr.bf16.gmra.mrb[0].mxu0 %v553
      %v604 = vpop.f32.mrb[0].mxu0
      %v605 = vadd.f32 0.0, %v604
      %v606 = vpop.f32.mrb[0].mxu0
      %v607 = vpop.f32.mrb[0].mxu0
      %v608 = vadd.f32 0.0, %v607
      %v609 = vpop.f32.mrb[0].mxu0
      %610 = vmatprep.mubr.bf16.mxu0 0
      %611 = vmatmul.mubr.bf16.gmra.mrb[0].mxu0 %v556
      %v612 = vpop.f32.mrb[0].mxu0
      %v613 = vadd.f32 0.0, %v612
      %v614 = vpop.f32.mrb[0].mxu0
      %v615 = vpop.f32.mrb[0].mxu0
      %v616 = vadd.f32 0.0, %v615
      %v617 = vpop.f32.mrb[0].mxu0
      %618 = vmatprep.mubr.bf16.mxu0 0
      %619 = vmatmul.mubr.bf16.gmra.mrb[0].mxu0 %v559
      %v620 = vpop.f32.mrb[0].mxu0
      %v621 = vadd.f32 0.0, %v620
      %v622 = vpop.f32.mrb[0].mxu0
      %v623 = vpop.f32.mrb[0].mxu0
      %v624 = vadd.f32 0.0, %v623
      %v625 = vpop.f32.mrb[0].mxu0
      %626 = vmatprep.mubr.bf16.mxu0 0
      %627 = vmatmul.mubr.bf16.gmra.mrb[0].mxu0 %v562
      %v628 = vpop.f32.mrb[0].mxu0
      %v629 = vadd.f32 0.0, %v628
      %v630 = vpop.f32.mrb[0].mxu0
      %v631 = vpop.f32.mrb[0].mxu0
      %v632 = vadd.f32 0.0, %v631
      %v633 = vpop.f32.mrb[0].mxu0
      %634 = vmatprep.mubr.bf16.mxu0 0
      %635 = vmatmul.mubr.bf16.gmra.mrb[0].mxu0 %v565
      %v636 = vpop.f32.mrb[0].mxu0
      %v637 = vadd.f32 0.0, %v636
      %v638 = vpop.f32.mrb[0].mxu0
      %v639 = vpop.f32.mrb[0].mxu0
      %v640 = vadd.f32 0.0, %v639
      %v641 = vpop.f32.mrb[0].mxu0
      %642 = vdwg.mxu0
      %v643 = vadd.f32 %v523, %v605
      %v644 = vadd.f32 %v524, %v608
      %v645 = vadd.f32 %v525, %v613
      %v646 = vadd.f32 %v526, %v616
      %v647 = vadd.f32 %v527, %v621
      %v648 = vadd.f32 %v528, %v624
      %v649 = vadd.f32 %v529, %v629
      %v650 = vadd.f32 %v530, %v632
      %v651 = vadd.f32 %v531, %v637
      %v652 = vadd.f32 %v532, %v640
      %s653 = sadd.s32 %s192, 11
      %s654 = scalar_lea.vmem %s181, %s653
      %v655 = vld [vmem:[%s654] sm:$0xff]
      %v656 = vld [vmem:[%s654 + $0x8] sm:$0xff]
      %v657 = vld [vmem:[%s654 + $0x10] sm:$0xff]
      %v658 = vld [vmem:[%s654 + $0x18] sm:$0xff]
      %v659 = vld [vmem:[%s654 + $0x20] sm:$0xff]
      %v660 = vld [vmem:[%s654 + $0x28] sm:$0xff]
      %v661 = vld [vmem:[%s654 + $0x30] sm:$0xff]
      %v662 = vld [vmem:[%s654 + $0x38] sm:$0xff]
      %v663 = vld [vmem:[%s654 + $0x40] sm:$0xff]
      %v664 = vld [vmem:[%s654 + $0x48] sm:$0xff]
      %v665 = vpack.c.bf16 %v656, %v655
      %v666 = vpack.c.bf16 %v658, %v657
      %v667 = vpack.c.bf16 %v660, %v659
      %v668 = vpack.c.bf16 %v662, %v661
      %v669 = vpack.c.bf16 %v664, %v663
      %s670 = scalar_lea.vmem %s1, 16
      %v671 = vld [vmem:[%s670] sm:$0xf]
      %v673 = vsel %vm229, %v665, 0
      %v676 = vsel %vm229, %v666, 0
      %v679 = vsel %vm229, %v667, 0
      %v682 = vsel %vm229, %v668, 0
      %v685 = vsel %vm229, %v669, 0
      %v688 = vsel %vm245, %v671, 0
      %690 = vmatprep.subr.bf16.mxu0 0
      %691 = vmatpush1.bf16.msra.mxu0 %v688
      %692 = vmatprep.subr.bf16.mxu0 0
      %693 = vmatpush1.bf16.msra.mxu0 0
      %694 = vmatprep.subr.bf16.mxu0 0
      %695 = vmatpush1.bf16.msra.mxu0 0
      %696 = vmatprep.subr.bf16.mxu0 0
      %697 = vmatpush1.bf16.msra.mxu0 0
      %698 = vmatprep.subr.bf16.mxu0 0
      %699 = vmatpush1.bf16.msra.mxu0 0
      %700 = vmatprep.subr.bf16.mxu0 0
      %701 = vmatpush1.bf16.msra.mxu0 0
      %702 = vmatprep.subr.bf16.mxu0 0
      %703 = vmatpush1.bf16.msra.mxu0 0
      %704 = vmatprep.subr.bf16.mxu0 0
      %705 = vmatpush1.bf16.msra.mxu0 0
      %706 = vmatprep.subr.bf16.mxu0 0
      %707 = vmatpush1.bf16.msra.mxu0 0
      %708 = vmatprep.subr.bf16.mxu0 0
      %709 = vmatpush1.bf16.msra.mxu0 0
      %710 = vmatprep.subr.bf16.mxu0 0
      %711 = vmatpush1.bf16.msra.mxu0 0
      %712 = vmatprep.subr.bf16.mxu0 0
      %713 = vmatpush1.bf16.msra.mxu0 0
      %714 = vmatprep.subr.bf16.mxu0 0
      %715 = vmatpush1.bf16.msra.mxu0 0
      %716 = vmatprep.subr.bf16.mxu0 0
      %717 = vmatpush1.bf16.msra.mxu0 0
      %718 = vmatprep.subr.bf16.mxu0 0
      %719 = vmatpush1.bf16.msra.mxu0 0
      %720 = vmatprep.subr.bf16.mxu0 0
      %721 = vmatpush1.bf16.msra.mxu0 0
      %722 = vmatprep.mubr.bf16.mxu0 0
      %723 = vmatmul.mubr.bf16.gmra.mrb[0].mxu0 %v673
      %v724 = vpop.f32.mrb[0].mxu0
      %v725 = vadd.f32 0.0, %v724
      %v726 = vpop.f32.mrb[0].mxu0
      %v727 = vpop.f32.mrb[0].mxu0
      %v728 = vadd.f32 0.0, %v727
      %v729 = vpop.f32.mrb[0].mxu0
      %730 = vmatprep.mubr.bf16.mxu0 0
      %731 = vmatmul.mubr.bf16.gmra.mrb[0].mxu0 %v676
      %v732 = vpop.f32.mrb[0].mxu0
      %v733 = vadd.f32 0.0, %v732
      %v734 = vpop.f32.mrb[0].mxu0
      %v735 = vpop.f32.mrb[0].mxu0
      %v736 = vadd.f32 0.0, %v735
      %v737 = vpop.f32.mrb[0].mxu0
      %738 = vmatprep.mubr.bf16.mxu0 0
      %739 = vmatmul.mubr.bf16.gmra.mrb[0].mxu0 %v679
      %v740 = vpop.f32.mrb[0].mxu0
      %v741 = vadd.f32 0.0, %v740
      %v742 = vpop.f32.mrb[0].mxu0
      %v743 = vpop.f32.mrb[0].mxu0
      %v744 = vadd.f32 0.0, %v743
      %v745 = vpop.f32.mrb[0].mxu0
      %746 = vmatprep.mubr.bf16.mxu0 0
      %747 = vmatmul.mubr.bf16.gmra.mrb[0].mxu0 %v682
      %v748 = vpop.f32.mrb[0].mxu0
      %v749 = vadd.f32 0.0, %v748
      %v750 = vpop.f32.mrb[0].mxu0
      %v751 = vpop.f32.mrb[0].mxu0
      %v752 = vadd.f32 0.0, %v751
      %v753 = vpop.f32.mrb[0].mxu0
      %754 = vmatprep.mubr.bf16.mxu0 0
      %755 = vmatmul.mubr.bf16.gmra.mrb[0].mxu0 %v685
      %v756 = vpop.f32.mrb[0].mxu0
      %v757 = vadd.f32 0.0, %v756
      %v758 = vpop.f32.mrb[0].mxu0
      %v759 = vpop.f32.mrb[0].mxu0
      %v760 = vadd.f32 0.0, %v759
      %v761 = vpop.f32.mrb[0].mxu0
      %762 = vdwg.mxu0
      %v763 = vadd.f32 %v643, %v725
      %v764 = vadd.f32 %v644, %v728
      %v765 = vadd.f32 %v645, %v733
      %v766 = vadd.f32 %v646, %v736
      %v767 = vadd.f32 %v647, %v741
      %v768 = vadd.f32 %v648, %v744
      %v769 = vadd.f32 %v649, %v749
      %v770 = vadd.f32 %v650, %v752
      %v771 = vadd.f32 %v651, %v757
      %v772 = vadd.f32 %v652, %v760
      %s773 = sadd.s32 %s192, 12
      %s774 = scalar_lea.vmem %s181, %s773
      %v775 = vld [vmem:[%s774] sm:$0xff]
      %v776 = vld [vmem:[%s774 + $0x8] sm:$0xff]
      %v777 = vld [vmem:[%s774 + $0x10] sm:$0xff]
      %v778 = vld [vmem:[%s774 + $0x18] sm:$0xff]
      %v779 = vld [vmem:[%s774 + $0x20] sm:$0xff]
      %v780 = vld [vmem:[%s774 + $0x28] sm:$0xff]
      %v781 = vld [vmem:[%s774 + $0x30] sm:$0xff]
      %v782 = vld [vmem:[%s774 + $0x38] sm:$0xff]
      %v783 = vld [vmem:[%s774 + $0x40] sm:$0xff]
      %v784 = vld [vmem:[%s774 + $0x48] sm:$0xff]
      %v785 = vpack.c.bf16 %v776, %v775
      %v786 = vpack.c.bf16 %v778, %v777
      %v787 = vpack.c.bf16 %v780, %v779
      %v788 = vpack.c.bf16 %v782, %v781
      %v789 = vpack.c.bf16 %v784, %v783
      %s790 = scalar_lea.vmem %s1, 20
      %v791 = vld [vmem:[%s790] sm:$0xf]
      %v793 = vsel %vm229, %v785, 0
      %v796 = vsel %vm229, %v786, 0
      %v799 = vsel %vm229, %v787, 0
      %v802 = vsel %vm229, %v788, 0
      %v805 = vsel %vm229, %v789, 0
      %v808 = vsel %vm245, %v791, 0
      %810 = vmatprep.subr.bf16.mxu0 0
      %811 = vmatpush1.bf16.msra.mxu0 %v808
      %812 = vmatprep.subr.bf16.mxu0 0
      %813 = vmatpush1.bf16.msra.mxu0 0
      %814 = vmatprep.subr.bf16.mxu0 0
      %815 = vmatpush1.bf16.msra.mxu0 0
      %816 = vmatprep.subr.bf16.mxu0 0
      %817 = vmatpush1.bf16.msra.mxu0 0
      %818 = vmatprep.subr.bf16.mxu0 0
      %819 = vmatpush1.bf16.msra.mxu0 0
      %820 = vmatprep.subr.bf16.mxu0 0
      %821 = vmatpush1.bf16.msra.mxu0 0
      %822 = vmatprep.subr.bf16.mxu0 0
      %823 = vmatpush1.bf16.msra.mxu0 0
      %824 = vmatprep.subr.bf16.mxu0 0
      %825 = vmatpush1.bf16.msra.mxu0 0
      %826 = vmatprep.subr.bf16.mxu0 0
      %827 = vmatpush1.bf16.msra.mxu0 0
      %828 = vmatprep.subr.bf16.mxu0 0
      %829 = vmatpush1.bf16.msra.mxu0 0
      %830 = vmatprep.subr.bf16.mxu0 0
      %831 = vmatpush1.bf16.msra.mxu0 0
      %832 = vmatprep.subr.bf16.mxu0 0
      %833 = vmatpush1.bf16.msra.mxu0 0
      %834 = vmatprep.subr.bf16.mxu0 0
      %835 = vmatpush1.bf16.msra.mxu0 0
      %836 = vmatprep.subr.bf16.mxu0 0
      %837 = vmatpush1.bf16.msra.mxu0 0
      %838 = vmatprep.subr.bf16.mxu0 0
      %839 = vmatpush1.bf16.msra.mxu0 0
      %840 = vmatprep.subr.bf16.mxu0 0
      %841 = vmatpush1.bf16.msra.mxu0 0
      %842 = vmatprep.mubr.bf16.mxu0 0
      %843 = vmatmul.mubr.bf16.gmra.mrb[0].mxu0 %v793
      %v844 = vpop.f32.mrb[0].mxu0
      %v845 = vadd.f32 0.0, %v844
      %v846 = vpop.f32.mrb[0].mxu0
      %v847 = vpop.f32.mrb[0].mxu0
      %v848 = vadd.f32 0.0, %v847
      %v849 = vpop.f32.mrb[0].mxu0
      %850 = vmatprep.mubr.bf16.mxu0 0
      %851 = vmatmul.mubr.bf16.gmra.mrb[0].mxu0 %v796
      %v852 = vpop.f32.mrb[0].mxu0
      %v853 = vadd.f32 0.0, %v852
      %v854 = vpop.f32.mrb[0].mxu0
      %v855 = vpop.f32.mrb[0].mxu0
      %v856 = vadd.f32 0.0, %v855
      %v857 = vpop.f32.mrb[0].mxu0
      %858 = vmatprep.mubr.bf16.mxu0 0
      %859 = vmatmul.mubr.bf16.gmra.mrb[0].mxu0 %v799
      %v860 = vpop.f32.mrb[0].mxu0
      %v861 = vadd.f32 0.0, %v860
      %v862 = vpop.f32.mrb[0].mxu0
      %v863 = vpop.f32.mrb[0].mxu0
      %v864 = vadd.f32 0.0, %v863
      %v865 = vpop.f32.mrb[0].mxu0
      %866 = vmatprep.mubr.bf16.mxu0 0
      %867 = vmatmul.mubr.bf16.gmra.mrb[0].mxu0 %v802
      %v868 = vpop.f32.mrb[0].mxu0
      %v869 = vadd.f32 0.0, %v868
      %v870 = vpop.f32.mrb[0].mxu0
      %v871 = vpop.f32.mrb[0].mxu0
      %v872 = vadd.f32 0.0, %v871
      %v873 = vpop.f32.mrb[0].mxu0
      %874 = vmatprep.mubr.bf16.mxu0 0
      %875 = vmatmul.mubr.bf16.gmra.mrb[0].mxu0 %v805
      %v876 = vpop.f32.mrb[0].mxu0
      %v877 = vadd.f32 0.0, %v876
      %v878 = vpop.f32.mrb[0].mxu0
      %v879 = vpop.f32.mrb[0].mxu0
      %v880 = vadd.f32 0.0, %v879
      %v881 = vpop.f32.mrb[0].mxu0
      %882 = vdwg.mxu0
      %v883 = vadd.f32 %v763, %v845
      %v884 = vadd.f32 %v764, %v848
      %v885 = vadd.f32 %v765, %v853
      %v886 = vadd.f32 %v766, %v856
      %v887 = vadd.f32 %v767, %v861
      %v888 = vadd.f32 %v768, %v864
      %v889 = vadd.f32 %v769, %v869
      %v890 = vadd.f32 %v770, %v872
      %v891 = vadd.f32 %v771, %v877
      %v892 = vadd.f32 %v772, %v880
      %s893 = sadd.s32 %s192, 20
      %s894 = scalar_lea.vmem %s181, %s893
      %v895 = vld [vmem:[%s894] sm:$0xff]
      %v896 = vld [vmem:[%s894 + $0x8] sm:$0xff]
      %v897 = vld [vmem:[%s894 + $0x10] sm:$0xff]
      %v898 = vld [vmem:[%s894 + $0x18] sm:$0xff]
      %v899 = vld [vmem:[%s894 + $0x20] sm:$0xff]
      %v900 = vld [vmem:[%s894 + $0x28] sm:$0xff]
      %v901 = vld [vmem:[%s894 + $0x30] sm:$0xff]
      %v902 = vld [vmem:[%s894 + $0x38] sm:$0xff]
      %v903 = vld [vmem:[%s894 + $0x40] sm:$0xff]
      %v904 = vld [vmem:[%s894 + $0x48] sm:$0xff]
      %v905 = vpack.c.bf16 %v896, %v895
      %v906 = vpack.c.bf16 %v898, %v897
      %v907 = vpack.c.bf16 %v900, %v899
      %v908 = vpack.c.bf16 %v902, %v901
      %v909 = vpack.c.bf16 %v904, %v903
      %s910 = scalar_lea.vmem %s1, 24
      %v911 = vld [vmem:[%s910] sm:$0xf]
      %v913 = vsel %vm229, %v905, 0
      %v916 = vsel %vm229, %v906, 0
      %v919 = vsel %vm229, %v907, 0
      %v922 = vsel %vm229, %v908, 0
      %v925 = vsel %vm229, %v909, 0
      %v928 = vsel %vm245, %v911, 0
      %930 = vmatprep.subr.bf16.mxu0 0
      %931 = vmatpush1.bf16.msra.mxu0 %v928
      %932 = vmatprep.subr.bf16.mxu0 0
      %933 = vmatpush1.bf16.msra.mxu0 0
      %934 = vmatprep.subr.bf16.mxu0 0
      %935 = vmatpush1.bf16.msra.mxu0 0
      %936 = vmatprep.subr.bf16.mxu0 0
      %937 = vmatpush1.bf16.msra.mxu0 0
      %938 = vmatprep.subr.bf16.mxu0 0
      %939 = vmatpush1.bf16.msra.mxu0 0
      %940 = vmatprep.subr.bf16.mxu0 0
      %941 = vmatpush1.bf16.msra.mxu0 0
      %942 = vmatprep.subr.bf16.mxu0 0
      %943 = vmatpush1.bf16.msra.mxu0 0
      %944 = vmatprep.subr.bf16.mxu0 0
      %945 = vmatpush1.bf16.msra.mxu0 0
      %946 = vmatprep.subr.bf16.mxu0 0
      %947 = vmatpush1.bf16.msra.mxu0 0
      %948 = vmatprep.subr.bf16.mxu0 0
      %949 = vmatpush1.bf16.msra.mxu0 0
      %950 = vmatprep.subr.bf16.mxu0 0
      %951 = vmatpush1.bf16.msra.mxu0 0
      %952 = vmatprep.subr.bf16.mxu0 0
      %953 = vmatpush1.bf16.msra.mxu0 0
      %954 = vmatprep.subr.bf16.mxu0 0
      %955 = vmatpush1.bf16.msra.mxu0 0
      %956 = vmatprep.subr.bf16.mxu0 0
      %957 = vmatpush1.bf16.msra.mxu0 0
      %958 = vmatprep.subr.bf16.mxu0 0
      %959 = vmatpush1.bf16.msra.mxu0 0
      %960 = vmatprep.subr.bf16.mxu0 0
      %961 = vmatpush1.bf16.msra.mxu0 0
      %962 = vmatprep.mubr.bf16.mxu0 0
      %963 = vmatmul.mubr.bf16.gmra.mrb[0].mxu0 %v913
      %v964 = vpop.f32.mrb[0].mxu0
      %v965 = vadd.f32 0.0, %v964
      %v966 = vpop.f32.mrb[0].mxu0
      %v967 = vpop.f32.mrb[0].mxu0
      %v968 = vadd.f32 0.0, %v967
      %v969 = vpop.f32.mrb[0].mxu0
      %970 = vmatprep.mubr.bf16.mxu0 0
      %971 = vmatmul.mubr.bf16.gmra.mrb[0].mxu0 %v916
      %v972 = vpop.f32.mrb[0].mxu0
      %v973 = vadd.f32 0.0, %v972
      %v974 = vpop.f32.mrb[0].mxu0
      %v975 = vpop.f32.mrb[0].mxu0
      %v976 = vadd.f32 0.0, %v975
      %v977 = vpop.f32.mrb[0].mxu0
      %978 = vmatprep.mubr.bf16.mxu0 0
      %979 = vmatmul.mubr.bf16.gmra.mrb[0].mxu0 %v919
      %v980 = vpop.f32.mrb[0].mxu0
      %v981 = vadd.f32 0.0, %v980
      %v982 = vpop.f32.mrb[0].mxu0
      %v983 = vpop.f32.mrb[0].mxu0
      %v984 = vadd.f32 0.0, %v983
      %v985 = vpop.f32.mrb[0].mxu0
      %986 = vmatprep.mubr.bf16.mxu0 0
      %987 = vmatmul.mubr.bf16.gmra.mrb[0].mxu0 %v922
      %v988 = vpop.f32.mrb[0].mxu0
      %v989 = vadd.f32 0.0, %v988
      %v990 = vpop.f32.mrb[0].mxu0
      %v991 = vpop.f32.mrb[0].mxu0
      %v992 = vadd.f32 0.0, %v991
      %v993 = vpop.f32.mrb[0].mxu0
      %994 = vmatprep.mubr.bf16.mxu0 0
      %995 = vmatmul.mubr.bf16.gmra.mrb[0].mxu0 %v925
      %v996 = vpop.f32.mrb[0].mxu0
      %v997 = vadd.f32 0.0, %v996
      %v998 = vpop.f32.mrb[0].mxu0
      %v999 = vpop.f32.mrb[0].mxu0
      %v1000 = vadd.f32 0.0, %v999
      %v1001 = vpop.f32.mrb[0].mxu0
      %1002 = vdwg.mxu0
      %v1003 = vadd.f32 %v883, %v965
      %v1004 = vadd.f32 %v884, %v968
      %v1005 = vadd.f32 %v885, %v973
      %v1006 = vadd.f32 %v886, %v976
      %v1007 = vadd.f32 %v887, %v981
      %v1008 = vadd.f32 %v888, %v984
      %v1009 = vadd.f32 %v889, %v989
      %v1010 = vadd.f32 %v890, %v992
      %v1011 = vadd.f32 %v891, %v997
      %v1012 = vadd.f32 %v892, %v1000
      %s1013 = sadd.s32 %s192, 21
      %s1014 = scalar_lea.vmem %s181, %s1013
      %v1015 = vld [vmem:[%s1014] sm:$0xff]
      %v1016 = vld [vmem:[%s1014 + $0x8] sm:$0xff]
      %v1017 = vld [vmem:[%s1014 + $0x10] sm:$0xff]
      %v1018 = vld [vmem:[%s1014 + $0x18] sm:$0xff]
      %v1019 = vld [vmem:[%s1014 + $0x20] sm:$0xff]
      %v1020 = vld [vmem:[%s1014 + $0x28] sm:$0xff]
      %v1021 = vld [vmem:[%s1014 + $0x30] sm:$0xff]
      %v1022 = vld [vmem:[%s1014 + $0x38] sm:$0xff]
      %v1023 = vld [vmem:[%s1014 + $0x40] sm:$0xff]
      %v1024 = vld [vmem:[%s1014 + $0x48] sm:$0xff]
      %v1025 = vpack.c.bf16 %v1016, %v1015
      %v1026 = vpack.c.bf16 %v1018, %v1017
      %v1027 = vpack.c.bf16 %v1020, %v1019
      %v1028 = vpack.c.bf16 %v1022, %v1021
      %v1029 = vpack.c.bf16 %v1024, %v1023
      %s1030 = scalar_lea.vmem %s1, 28
      %v1031 = vld [vmem:[%s1030] sm:$0xf]
      %v1033 = vsel %vm229, %v1025, 0
      %v1036 = vsel %vm229, %v1026, 0
      %v1039 = vsel %vm229, %v1027, 0
      %v1042 = vsel %vm229, %v1028, 0
      %v1045 = vsel %vm229, %v1029, 0
      %v1048 = vsel %vm245, %v1031, 0
      %1050 = vmatprep.subr.bf16.mxu0 0
      %1051 = vmatpush1.bf16.msra.mxu0 %v1048
      %1052 = vmatprep.subr.bf16.mxu0 0
      %1053 = vmatpush1.bf16.msra.mxu0 0
      %1054 = vmatprep.subr.bf16.mxu0 0
      %1055 = vmatpush1.bf16.msra.mxu0 0
      %1056 = vmatprep.subr.bf16.mxu0 0
      %1057 = vmatpush1.bf16.msra.mxu0 0
      %1058 = vmatprep.subr.bf16.mxu0 0
      %1059 = vmatpush1.bf16.msra.mxu0 0
      %1060 = vmatprep.subr.bf16.mxu0 0
      %1061 = vmatpush1.bf16.msra.mxu0 0
      %1062 = vmatprep.subr.bf16.mxu0 0
      %1063 = vmatpush1.bf16.msra.mxu0 0
      %1064 = vmatprep.subr.bf16.mxu0 0
      %1065 = vmatpush1.bf16.msra.mxu0 0
      %1066 = vmatprep.subr.bf16.mxu0 0
      %1067 = vmatpush1.bf16.msra.mxu0 0
      %1068 = vmatprep.subr.bf16.mxu0 0
      %1069 = vmatpush1.bf16.msra.mxu0 0
      %1070 = vmatprep.subr.bf16.mxu0 0
      %1071 = vmatpush1.bf16.msra.mxu0 0
      %1072 = vmatprep.subr.bf16.mxu0 0
      %1073 = vmatpush1.bf16.msra.mxu0 0
      %1074 = vmatprep.subr.bf16.mxu0 0
      %1075 = vmatpush1.bf16.msra.mxu0 0
      %1076 = vmatprep.subr.bf16.mxu0 0
      %1077 = vmatpush1.bf16.msra.mxu0 0
      %1078 = vmatprep.subr.bf16.mxu0 0
      %1079 = vmatpush1.bf16.msra.mxu0 0
      %1080 = vmatprep.subr.bf16.mxu0 0
      %1081 = vmatpush1.bf16.msra.mxu0 0
      %1082 = vmatprep.mubr.bf16.mxu0 0
      %1083 = vmatmul.mubr.bf16.gmra.mrb[0].mxu0 %v1033
      %v1084 = vpop.f32.mrb[0].mxu0
      %v1085 = vadd.f32 0.0, %v1084
      %v1086 = vpop.f32.mrb[0].mxu0
      %v1087 = vpop.f32.mrb[0].mxu0
      %v1088 = vadd.f32 0.0, %v1087
      %v1089 = vpop.f32.mrb[0].mxu0
      %1090 = vmatprep.mubr.bf16.mxu0 0
      %1091 = vmatmul.mubr.bf16.gmra.mrb[0].mxu0 %v1036
      %v1092 = vpop.f32.mrb[0].mxu0
      %v1093 = vadd.f32 0.0, %v1092
      %v1094 = vpop.f32.mrb[0].mxu0
      %v1095 = vpop.f32.mrb[0].mxu0
      %v1096 = vadd.f32 0.0, %v1095
      %v1097 = vpop.f32.mrb[0].mxu0
      %1098 = vmatprep.mubr.bf16.mxu0 0
      %1099 = vmatmul.mubr.bf16.gmra.mrb[0].mxu0 %v1039
      %v1100 = vpop.f32.mrb[0].mxu0
      %v1101 = vadd.f32 0.0, %v1100
      %v1102 = vpop.f32.mrb[0].mxu0
      %v1103 = vpop.f32.mrb[0].mxu0
      %v1104 = vadd.f32 0.0, %v1103
      %v1105 = vpop.f32.mrb[0].mxu0
      %1106 = vmatprep.mubr.bf16.mxu0 0
      %1107 = vmatmul.mubr.bf16.gmra.mrb[0].mxu0 %v1042
      %v1108 = vpop.f32.mrb[0].mxu0
      %v1109 = vadd.f32 0.0, %v1108
      %v1110 = vpop.f32.mrb[0].mxu0
      %v1111 = vpop.f32.mrb[0].mxu0
      %v1112 = vadd.f32 0.0, %v1111
      %v1113 = vpop.f32.mrb[0].mxu0
      %1114 = vmatprep.mubr.bf16.mxu0 0
      %1115 = vmatmul.mubr.bf16.gmra.mrb[0].mxu0 %v1045
      %v1116 = vpop.f32.mrb[0].mxu0
      %v1117 = vadd.f32 0.0, %v1116
      %v1118 = vpop.f32.mrb[0].mxu0
      %v1119 = vpop.f32.mrb[0].mxu0
      %v1120 = vadd.f32 0.0, %v1119
      %v1121 = vpop.f32.mrb[0].mxu0
      %1122 = vdwg.mxu0
      %v1123 = vadd.f32 %v1003, %v1085
      %v1124 = vadd.f32 %v1004, %v1088
      %v1125 = vadd.f32 %v1005, %v1093
      %v1126 = vadd.f32 %v1006, %v1096
      %v1127 = vadd.f32 %v1007, %v1101
      %v1128 = vadd.f32 %v1008, %v1104
      %v1129 = vadd.f32 %v1009, %v1109
      %v1130 = vadd.f32 %v1010, %v1112
      %v1131 = vadd.f32 %v1011, %v1117
      %v1132 = vadd.f32 %v1012, %v1120
      %s1133 = sadd.s32 %s192, 22
      %s1134 = scalar_lea.vmem %s181, %s1133
      %v1135 = vld [vmem:[%s1134] sm:$0xff]
      %v1136 = vld [vmem:[%s1134 + $0x8] sm:$0xff]
      %v1137 = vld [vmem:[%s1134 + $0x10] sm:$0xff]
      %v1138 = vld [vmem:[%s1134 + $0x18] sm:$0xff]
      %v1139 = vld [vmem:[%s1134 + $0x20] sm:$0xff]
      %v1140 = vld [vmem:[%s1134 + $0x28] sm:$0xff]
      %v1141 = vld [vmem:[%s1134 + $0x30] sm:$0xff]
      %v1142 = vld [vmem:[%s1134 + $0x38] sm:$0xff]
      %v1143 = vld [vmem:[%s1134 + $0x40] sm:$0xff]
      %v1144 = vld [vmem:[%s1134 + $0x48] sm:$0xff]
      %v1145 = vpack.c.bf16 %v1136, %v1135
      %v1146 = vpack.c.bf16 %v1138, %v1137
      %v1147 = vpack.c.bf16 %v1140, %v1139
      %v1148 = vpack.c.bf16 %v1142, %v1141
      %v1149 = vpack.c.bf16 %v1144, %v1143
      %s1150 = scalar_lea.vmem %s1, 32
      %v1151 = vld [vmem:[%s1150] sm:$0xf]
      %v1153 = vsel %vm229, %v1145, 0
      %v1156 = vsel %vm229, %v1146, 0
      %v1159 = vsel %vm229, %v1147, 0
      %v1162 = vsel %vm229, %v1148, 0
      %v1165 = vsel %vm229, %v1149, 0
      %v1168 = vsel %vm245, %v1151, 0
      %1170 = vmatprep.subr.bf16.mxu0 0
      %1171 = vmatpush1.bf16.msra.mxu0 %v1168
      %1172 = vmatprep.subr.bf16.mxu0 0
      %1173 = vmatpush1.bf16.msra.mxu0 0
      %1174 = vmatprep.subr.bf16.mxu0 0
      %1175 = vmatpush1.bf16.msra.mxu0 0
      %1176 = vmatprep.subr.bf16.mxu0 0
      %1177 = vmatpush1.bf16.msra.mxu0 0
      %1178 = vmatprep.subr.bf16.mxu0 0
      %1179 = vmatpush1.bf16.msra.mxu0 0
      %1180 = vmatprep.subr.bf16.mxu0 0
      %1181 = vmatpush1.bf16.msra.mxu0 0
      %1182 = vmatprep.subr.bf16.mxu0 0
      %1183 = vmatpush1.bf16.msra.mxu0 0
      %1184 = vmatprep.subr.bf16.mxu0 0
      %1185 = vmatpush1.bf16.msra.mxu0 0
      %1186 = vmatprep.subr.bf16.mxu0 0
      %1187 = vmatpush1.bf16.msra.mxu0 0
      %1188 = vmatprep.subr.bf16.mxu0 0
      %1189 = vmatpush1.bf16.msra.mxu0 0
      %1190 = vmatprep.subr.bf16.mxu0 0
      %1191 = vmatpush1.bf16.msra.mxu0 0
      %1192 = vmatprep.subr.bf16.mxu0 0
      %1193 = vmatpush1.bf16.msra.mxu0 0
      %1194 = vmatprep.subr.bf16.mxu0 0
      %1195 = vmatpush1.bf16.msra.mxu0 0
      %1196 = vmatprep.subr.bf16.mxu0 0
      %1197 = vmatpush1.bf16.msra.mxu0 0
      %1198 = vmatprep.subr.bf16.mxu0 0
      %1199 = vmatpush1.bf16.msra.mxu0 0
      %1200 = vmatprep.subr.bf16.mxu0 0
      %1201 = vmatpush1.bf16.msra.mxu0 0
      %1202 = vmatprep.mubr.bf16.mxu0 0
      %1203 = vmatmul.mubr.bf16.gmra.mrb[0].mxu0 %v1153
      %v1204 = vpop.f32.mrb[0].mxu0
      %v1205 = vadd.f32 0.0, %v1204
      %v1206 = vpop.f32.mrb[0].mxu0
      %v1207 = vpop.f32.mrb[0].mxu0
      %v1208 = vadd.f32 0.0, %v1207
      %v1209 = vpop.f32.mrb[0].mxu0
      %1210 = vmatprep.mubr.bf16.mxu0 0
      %1211 = vmatmul.mubr.bf16.gmra.mrb[0].mxu0 %v1156
      %v1212 = vpop.f32.mrb[0].mxu0
      %v1213 = vadd.f32 0.0, %v1212
      %v1214 = vpop.f32.mrb[0].mxu0
      %v1215 = vpop.f32.mrb[0].mxu0
      %v1216 = vadd.f32 0.0, %v1215
      %v1217 = vpop.f32.mrb[0].mxu0
      %1218 = vmatprep.mubr.bf16.mxu0 0
      %1219 = vmatmul.mubr.bf16.gmra.mrb[0].mxu0 %v1159
      %v1220 = vpop.f32.mrb[0].mxu0
      %v1221 = vadd.f32 0.0, %v1220
      %v1222 = vpop.f32.mrb[0].mxu0
      %v1223 = vpop.f32.mrb[0].mxu0
      %v1224 = vadd.f32 0.0, %v1223
      %v1225 = vpop.f32.mrb[0].mxu0
      %1226 = vmatprep.mubr.bf16.mxu0 0
      %1227 = vmatmul.mubr.bf16.gmra.mrb[0].mxu0 %v1162
      %v1228 = vpop.f32.mrb[0].mxu0
      %v1229 = vadd.f32 0.0, %v1228
      %v1230 = vpop.f32.mrb[0].mxu0
      %v1231 = vpop.f32.mrb[0].mxu0
      %v1232 = vadd.f32 0.0, %v1231
      %v1233 = vpop.f32.mrb[0].mxu0
      %1234 = vmatprep.mubr.bf16.mxu0 0
      %1235 = vmatmul.mubr.bf16.gmra.mrb[0].mxu0 %v1165
      %v1236 = vpop.f32.mrb[0].mxu0
      %v1237 = vadd.f32 0.0, %v1236
      %v1238 = vpop.f32.mrb[0].mxu0
      %v1239 = vpop.f32.mrb[0].mxu0
      %v1240 = vadd.f32 0.0, %v1239
      %v1241 = vpop.f32.mrb[0].mxu0
      %1242 = vdwg.mxu0
      %v1243 = vadd.f32 %v1123, %v1205
      %v1244 = vadd.f32 %v1124, %v1208
      %v1245 = vadd.f32 %v1125, %v1213
      %v1246 = vadd.f32 %v1126, %v1216
      %v1247 = vadd.f32 %v1127, %v1221
      %v1248 = vadd.f32 %v1128, %v1224
      %v1249 = vadd.f32 %v1129, %v1229
      %v1250 = vadd.f32 %v1130, %v1232
      %v1251 = vadd.f32 %v1131, %v1237
      %v1252 = vadd.f32 %v1132, %v1240
      %v1253 = vld [vmem:[%s2] sm:$0x1]
      %v1255 = vlaneseq
      %v1256 = vshrl.u32 %v1255, 7
      %v1257 = vsub.s32 0, %v1256
      %v1258 = vrot.slane %v1253, %v1257
      %v1260 = vadd.f32 %v1243, %v1258
      %v1261 = vadd.f32 %v1244, %v1258
      %v1262 = vadd.f32 %v1245, %v1258
      %v1263 = vadd.f32 %v1246, %v1258
      %v1264 = vadd.f32 %v1247, %v1258
      %v1265 = vadd.f32 %v1248, %v1258
      %v1266 = vadd.f32 %v1249, %v1258
      %v1267 = vadd.f32 %v1250, %v1258
      %v1268 = vadd.f32 %v1251, %v1258
      %v1269 = vadd.f32 %v1252, %v1258
      %v1270 = vmax.f32 %v1260, 0.0
      %v1271 = vmax.f32 %v1261, 0.0
      %v1272 = vmax.f32 %v1262, 0.0
      %v1273 = vmax.f32 %v1263, 0.0
      %v1274 = vmax.f32 %v1264, 0.0
      %v1275 = vmax.f32 %v1265, 0.0
      %v1276 = vmax.f32 %v1266, 0.0
      %v1277 = vmax.f32 %v1267, 0.0
      %v1278 = vmax.f32 %v1268, 0.0
      %v1279 = vmax.f32 %v1269, 0.0
      %1280 = vst [vmem:[%s188] sm:$0xff] %v1270
      %1281 = vst [vmem:[%s188 + $0x8] sm:$0xff] %v1271
      %1282 = vst [vmem:[%s188 + $0x10] sm:$0xff] %v1272
      %1283 = vst [vmem:[%s188 + $0x18] sm:$0xff] %v1273
      %1284 = vst [vmem:[%s188 + $0x20] sm:$0xff] %v1274
      %1285 = vst [vmem:[%s188 + $0x28] sm:$0xff] %v1275
      %1286 = vst [vmem:[%s188 + $0x30] sm:$0xff] %v1276
      %1287 = vst [vmem:[%s188 + $0x38] sm:$0xff] %v1277
      %1288 = vst [vmem:[%s188 + $0x40] sm:$0xff] %v1278
      %1289 = vst [vmem:[%s188 + $0x48] sm:$0xff] %v1279
      %s1290 = sadd.s32 %s18, %s19
      %s1291 = smul.u32 10, %s1290
      %p1292 = scmp.lt.s32.totalorder %s1291, 19
      %s1293 = scalar_select %p1292, %s1291, 19
      %s1294 = smul.addr %s1293, 8
      %s1295 = scalar_lea.vmem %s3, %s1294
      // Predicated region
      $region33: #{adapter_forward.12} parent=31 // pred_check
        %p1296 = pneg %p114
      $region34: #{adapter_forward.12} parent=31 // pred_check_branch
        %1298 = sbr.rel (%p1296) target = $region36
      $region35: #{adapter_forward.12} parent=31 // pred_region
        %s1299 = sadd.s32 %s18, %s19
        %s1300 = smul.u32 10, %s1299
      $region36: #{adapter_forward.12} parent=31 // pred_fallthru
        _
    $region32: #{adapter_forward.12} parent=5 // pred_fallthru
      _
    %p1301 = scmp.le.s32.totalorder 2, %s9
    // Predicated region
    $region37: #{adapter_forward.12} parent=5 // pred_check
      %p1302 = pneg %p1301
    $region38: #{adapter_forward.12} parent=5 // pred_check_branch
      %1304 = sbr.rel (%p1302) target = $region40
    $region39: #{adapter_forward.12} parent=5 // pred_region
      %s1305 = ssub.s32 %s9, 2
      // Predicated region
      $region41: #{adapter_forward.12} parent=39 // pred_check
        %p1306 = pneg %p120
      $region42: #{adapter_forward.12} parent=39 // pred_check_branch
        %1308 = sbr.rel (%p1306) target = $region44
      $region43: #{adapter_forward.12} parent=39 // pred_region
        %s1309 = sadd.s32 %s20, %s21
        %s1310 = smul.u32 10, %s1309
        %p1311 = scmp.lt.s32.totalorder %s1310, 19
        %s1312 = scalar_select %p1311, %s1310, 19
        %s1313 = smul.addr %s1312, 8
        %s1314 = scalar_lea.vmem %s3, %s1313
      $region44: #{adapter_forward.12} parent=39 // pred_fallthru
        _
    $region40: #{adapter_forward.12} parent=5 // pred_fallthru
      _
  $region6: #{adapter_forward.12} parent=0 // loop_footer
    %s13 = sadd.s32 1, %s9
  $region7: #{adapter_forward.12} parent=0 // loop_footer_branch
    %8 = sbr.rel target = $region3
  $region8: #{adapter_forward.12} parent=0 // loop_exit
    _

// kernel: adapter_forward.11
$region0: #{adapter_forward.11}
  #allocation0 [shape = 'u32[]', space=smem, size = 0x4, offset = 0x4, fixed_abs, tag = 'smem constant byte address 0x4 - core index']
  #allocation1 [shape = 'u32[144,128]{1,0:T(1,128)}', space=vmem, size = 0x12000, scoped, tag = 'internal scratch']
  %s0 = inlined_call_operand.vmem [shape: f32[208,8], index: 0, kind: input, shape index: {}]
  %s1 = inlined_call_operand.vmem [shape: bf16[9,8,128], index: 1, kind: input, shape index: {}]
  %s2 = inlined_call_operand.vmem [shape: f32[1,128], index: 2, kind: input, shape index: {}]
  %s3 = inlined_call_operand.vmem [shape: f32[160,128], index: 3, kind: output, shape index: {}]
  %s4 = sld [smem:[#allocation0]]
  $region45: #{adapter_forward.11} parent=0
    _
  %s6 = ssub.s32 1, %s4
  %s7 = scalar_select 0, %s6, %s4
  loop: start=0, step=1, limit=4
  $region2: #{adapter_forward.11} parent=0 // loop_pre_header
    _
  $region3: #{adapter_forward.11} parent=0 // loop_header
    %s9 = sphi 0, %s13
    %p10 = scmp.ge.s32.totalorder %s9, 4
    %s16 = sphi 0, %s28
    %s17 = sphi 0, %s24
    %s18 = sphi 0, %s16
    %s19 = sphi 0, %s17
    %s20 = sphi 0, %s18
    %s21 = sphi 0, %s19
    %s31 = sphi 0, %s33
    %s34 = sphi 0, %s31
    %s35 = sphi 0, %s34
    %s51 = sphi 0, %s35
    %s55 = sphi 0, %s55
    %s57 = sphi 0, %s55
    %s58 = sphi 0, %s57
    %s72 = sphi 0, %s58
    %s76 = sphi 0, %s76
    %s78 = sphi 0, %s76
    %s79 = sphi 0, %s78
    %s93 = sphi 0, %s79
    %s101 = sphi 0, %s103
    %s104 = sphi 0, %s101
    %s105 = sphi 0, %s104
    %s121 = sphi 0, %s105
  $region4: #{adapter_forward.11} parent=0 // loop_header_branch
    %12 = sbr.rel (%p10) target = $region8
  $region5: #{adapter_forward.11} parent=0 // loop_body
    %s14 = ssub.s32 %s9, 1
    %s15 = ssub.s32 %s9, 2
    %s22 = sadd.s32 1, %s17
    %p23 = scmp.ge.s32.totalorder %s22, 1
    %s24 = scalar_select %p23, 0, %s22
    %s25 = sadd.s32 1, %s16
    %s26 = scalar_select %p23, %s25, %s16
    %p27 = scmp.ge.s32.totalorder %s26, 2
    %s28 = scalar_select %p27, 0, %s26
    %s29 = ssub.s32 %s16, %s28
    %p30 = scmp.eq.s32.totalorder %s29, 0
    %s32 = sadd.s32 %s31, 1
    %s33 = scalar_select %p30, %s31, %s32
    %p36 = pneg %p30
    %p37 = scmp.eq.s32.totalorder %s9, 1
    %p38 = por %p36, %p37
    %p39 = scmp.ne.s32.totalorder %s31, %s34
    %p40 = scmp.eq.s32.totalorder %s9, 0
    %p41 = por %p39, %p40
    %p42 = scmp.ne.s32.totalorder %s31, %s34
    %p43 = scmp.eq.s32.totalorder %s14, 1
    %p44 = por %p42, %p43
    %p45 = scmp.ne.s32.totalorder %s34, %s35
    %p46 = scmp.eq.s32.totalorder %s14, 0
    %p47 = por %p45, %p46
    %p48 = scmp.ne.s32.totalorder %s34, %s35
    %p49 = scmp.eq.s32.totalorder %s15, 1
    %p50 = por %p48, %p49
    %p52 = scmp.ne.s32.totalorder %s35, %s51
    %p53 = scmp.eq.s32.totalorder %s15, 0
    %p54 = por %p52, %p53
    %s56 = sadd.s32 %s55, 1
    %p59 = scmp.eq.s32.totalorder %s9, 1
    %p60 = scmp.ne.s32.totalorder %s55, %s57
    %p61 = scmp.eq.s32.totalorder %s9, 0
    %p62 = por %p60, %p61
    %p63 = scmp.ne.s32.totalorder %s55, %s57
    %p64 = scmp.eq.s32.totalorder %s14, 1
    %p65 = por %p63, %p64
    %p66 = scmp.ne.s32.totalorder %s57, %s58
    %p67 = scmp.eq.s32.totalorder %s14, 0
    %p68 = por %p66, %p67
    %p69 = scmp.ne.s32.totalorder %s57, %s58
    %p70 = scmp.eq.s32.totalorder %s15, 1
    %p71 = por %p69, %p70
    %p73 = scmp.ne.s32.totalorder %s58, %s72
    %p74 = scmp.eq.s32.totalorder %s15, 0
    %p75 = por %p73, %p74
    %s77 = sadd.s32 %s76, 1
    %p80 = scmp.eq.s32.totalorder %s9, 1
    %p81 = scmp.ne.s32.totalorder %s76, %s78
    %p82 = scmp.eq.s32.totalorder %s9, 0
    %p83 = por %p81, %p82
    %p84 = scmp.ne.s32.totalorder %s76, %s78
    %p85 = scmp.eq.s32.totalorder %s14, 1
    %p86 = por %p84, %p85
    %p87 = scmp.ne.s32.totalorder %s78, %s79
    %p88 = scmp.eq.s32.totalorder %s14, 0
    %p89 = por %p87, %p88
    %p90 = scmp.ne.s32.totalorder %s78, %s79
    %p91 = scmp.eq.s32.totalorder %s15, 1
    %p92 = por %p90, %p91
    %p94 = scmp.ne.s32.totalorder %s79, %s93
    %p95 = scmp.eq.s32.totalorder %s15, 0
    %p96 = por %p94, %p95
    %s97 = sadd.s32 %s16, %s17
    %s98 = sadd.s32 %s28, %s24
    %s99 = ssub.s32 %s97, %s98
    %p100 = scmp.eq.s32.totalorder %s99, 0
    %s102 = sadd.s32 %s101, 1
    %s103 = scalar_select %p100, %s101, %s102
    %p106 = pneg %p100
    %p107 = scmp.eq.s32.totalorder %s9, 1
    %p108 = por %p106, %p107
    %p109 = scmp.ne.s32.totalorder %s101, %s104
    %p110 = scmp.eq.s32.totalorder %s9, 0
    %p111 = por %p109, %p110
    %p112 = scmp.ne.s32.totalorder %s101, %s104
    %p113 = scmp.eq.s32.totalorder %s14, 1
    %p114 = por %p112, %p113
    %p115 = scmp.ne.s32.totalorder %s104, %s105
    %p116 = scmp.eq.s32.totalorder %s14, 0
    %p117 = por %p115, %p116
    %p118 = scmp.ne.s32.totalorder %s104, %s105
    %p119 = scmp.eq.s32.totalorder %s15, 1
    %p120 = por %p118, %p119
    %p122 = scmp.ne.s32.totalorder %s105, %s121
    %p123 = scmp.eq.s32.totalorder %s15, 0
    %p124 = por %p122, %p123
    %p125 = scmp.le.s32.totalorder 1, %s9
    %p126 = scmp.lt.s32.totalorder %s9, 3
    %p127 = pnand %p125, %p126
    %p128 = pneg %p127
    // Predicated region
    $region9: #{adapter_forward.11} parent=5 // pred_check
      _
    $region10: #{adapter_forward.11} parent=5 // pred_check_branch
      %130 = sbr.rel (%p127) target = $region12
    $region11: #{adapter_forward.11} parent=5 // pred_region
      %s131 = ssub.s32 %s9, 1
      // Predicated region
      $region13: #{adapter_forward.11} parent=11 // pred_check
        %p132 = pneg %p68
      $region14: #{adapter_forward.11} parent=11 // pred_check_branch
        %134 = sbr.rel (%p132) target = $region16
      $region15: #{adapter_forward.11} parent=11 // pred_region
        _
      $region16: #{adapter_forward.11} parent=11 // pred_fallthru
        _
      // Predicated region
      $region17: #{adapter_forward.11} parent=11 // pred_check
        %p135 = pneg %p89
      $region18: #{adapter_forward.11} parent=11 // pred_check_branch
        %137 = sbr.rel (%p135) target = $region20
      $region19: #{adapter_forward.11} parent=11 // pred_region
        _
      $region20: #{adapter_forward.11} parent=11 // pred_fallthru
        _
    $region12: #{adapter_forward.11} parent=5 // pred_fallthru
      _
    %p138 = scmp.lt.s32.totalorder %s9, 2
    // Predicated region
    $region21: #{adapter_forward.11} parent=5 // pred_check
      %p139 = pneg %p138
    $region22: #{adapter_forward.11} parent=5 // pred_check_branch
      %141 = sbr.rel (%p139) target = $region24
    $region23: #{adapter_forward.11} parent=5 // pred_region
      // Predicated region
      $region25: #{adapter_forward.11} parent=23 // pred_check
        %p142 = pneg %p41
      $region26: #{adapter_forward.11} parent=23 // pred_check_branch
        %144 = sbr.rel (%p142) target = $region28
      $region27: #{adapter_forward.11} parent=23 // pred_region
        %s145 = smul.u32 13, %s16
        %p146 = scmp.lt.s32.totalorder %s145, 25
        %s147 = scalar_select %p146, %s145, 25
        %s148 = smul.addr %s147, 8
        %s149 = scalar_lea.vmem %s0, %s148
        %s150 = smul.u32 13, %s16
      $region28: #{adapter_forward.11} parent=23 // pred_fallthru
        _
    $region24: #{adapter_forward.11} parent=5 // pred_fallthru
      _
    %p151 = scmp.le.s32.totalorder 1, %s9
    %p152 = scmp.lt.s32.totalorder %s9, 3
    %p153 = pnand %p151, %p152
    %p154 = pneg %p153
    // Predicated region
    $region29: #{adapter_forward.11} parent=5 // pred_check
      _
    $region30: #{adapter_forward.11} parent=5 // pred_check_branch
      %156 = sbr.rel (%p153) target = $region32
    $region31: #{adapter_forward.11} parent=5 // pred_region
      %s157 = ssub.s32 %s9, 1
      %s158 = smul.u32 13, %s18
      %p159 = scmp.lt.s32.totalorder %s158, 25
      %s160 = scalar_select %p159, %s158, 25
      %s161 = smul.addr %s160, 8
      %s162 = scalar_lea.vmem %s0, %s161
      %p163 = pneg %p47
      %p164 = pneg %p44
      %p165 = pneg %p68
      %p166 = pneg %p65
      %p167 = pneg %p89
      %p168 = pneg %p86
      %p169 = pneg %p117
      %p170 = pneg %p114
      %s171 = sadd.s32 %s18, %s19
      %s172 = smul.u32 10, %s171
      %p173 = scmp.lt.s32.totalorder %s172, 19
      %s174 = scalar_select %p173, %s172, 19
      %s175 = smul.addr %s174, 8
      %s176 = scalar_lea.vmem %s3, %s175
      %s177 = smul.u32 13, %s18
      %p178 = scmp.lt.s32.totalorder %s177, 25
      %s179 = scalar_select %p178, %s177, 25
      %s180 = smul.addr %s179, 8
      %s181 = scalar_lea.vmem %s0, %s180
      %s182 = smul.u32 13, %s18
      %s183 = sadd.s32 %s18, %s19
      %s184 = smul.u32 10, %s183
      %p185 = scmp.lt.s32.totalorder %s184, 19
      %s186 = scalar_select %p185, %s184, 19
      %s187 = smul.addr %s186, 8
      %s188 = scalar_lea.vmem %s3, %s187
      %s189 = sadd.s32 %s18, %s19
      %s190 = smul.u32 10, %s189
      %s192 = smul.u32 %s19, 80
      %s193 = scalar_lea.vmem %s181, %s192
      %v194 = vld [vmem:[%s193] sm:$0xff]
      %v195 = vld [vmem:[%s193 + $0x8] sm:$0xff]
      %v196 = vld [vmem:[%s193 + $0x10] sm:$0xff]
      %v197 = vld [vmem:[%s193 + $0x18] sm:$0xff]
      %v198 = vld [vmem:[%s193 + $0x20] sm:$0xff]
      %v199 = vld [vmem:[%s193 + $0x28] sm:$0xff]
      %v200 = vld [vmem:[%s193 + $0x30] sm:$0xff]
      %v201 = vld [vmem:[%s193 + $0x38] sm:$0xff]
      %v202 = vld [vmem:[%s193 + $0x40] sm:$0xff]
      %v203 = vld [vmem:[%s193 + $0x48] sm:$0xff]
      %v204 = vpack.c.bf16 %v195, %v194
      %v205 = vpack.c.bf16 %v197, %v196
      %v206 = vpack.c.bf16 %v199, %v198
      %v207 = vpack.c.bf16 %v201, %v200
      %v208 = vpack.c.bf16 %v203, %v202
      %v209 = vld [vmem:[%s1] sm:$0xf]
      %s210 = sadd.s32 %s192, 1
      %s211 = scalar_lea.vmem %s181, %s210
      %v212 = vld [vmem:[%s211] sm:$0xff]
      %v213 = vld [vmem:[%s211 + $0x8] sm:$0xff]
      %v214 = vld [vmem:[%s211 + $0x10] sm:$0xff]
      %v215 = vld [vmem:[%s211 + $0x18] sm:$0xff]
      %v216 = vld [vmem:[%s211 + $0x20] sm:$0xff]
      %v217 = vld [vmem:[%s211 + $0x28] sm:$0xff]
      %v218 = vld [vmem:[%s211 + $0x30] sm:$0xff]
      %v219 = vld [vmem:[%s211 + $0x38] sm:$0xff]
      %v220 = vld [vmem:[%s211 + $0x40] sm:$0xff]
      %v221 = vld [vmem:[%s211 + $0x48] sm:$0xff]
      %v222 = vpack.c.bf16 %v213, %v212
      %v223 = vpack.c.bf16 %v215, %v214
      %v224 = vpack.c.bf16 %v217, %v216
      %v225 = vpack.c.bf16 %v219, %v218
      %v226 = vpack.c.bf16 %v221, %v220
      %s227 = scalar_lea.vmem %s1, 4
      %v228 = vld [vmem:[%s227] sm:$0xf]
      %vm229 = vcmask 64512
      %v231 = vsel %vm229, %v222, 0
      %v234 = vsel %vm229, %v223, 0
      %v237 = vsel %vm229, %v224, 0
      %v240 = vsel %vm229, %v225, 0
      %v243 = vsel %vm229, %v226, 0
      %vm245 = vcmask 1043456
      %v247 = vsel %vm245, %v228, 0
      %249 = vmatprep.subr.bf16.mxu0 0
      %250 = vmatpush1.bf16.msra.mxu0 %v247
      %251 = vmatprep.subr.bf16.mxu0 0
      %252 = vmatpush1.bf16.msra.mxu0 0
      %253 = vmatprep.subr.bf16.mxu0 0
      %254 = vmatpush1.bf16.msra.mxu0 0
      %255 = vmatprep.subr.bf16.mxu0 0
      %256 = vmatpush1.bf16.msra.mxu0 0
      %257 = vmatprep.subr.bf16.mxu0 0
      %258 = vmatpush1.bf16.msra.mxu0 0
      %259 = vmatprep.subr.bf16.mxu0 0
      %260 = vmatpush1.bf16.msra.mxu0 0
      %261 = vmatprep.subr.bf16.mxu0 0
      %262 = vmatpush1.bf16.msra.mxu0 0
      %263 = vmatprep.subr.bf16.mxu0 0
      %264 = vmatpush1.bf16.msra.mxu0 0
      %265 = vmatprep.subr.bf16.mxu0 0
      %266 = vmatpush1.bf16.msra.mxu0 0
      %267 = vmatprep.subr.bf16.mxu0 0
      %268 = vmatpush1.bf16.msra.mxu0 0
      %269 = vmatprep.subr.bf16.mxu0 0
      %270 = vmatpush1.bf16.msra.mxu0 0
      %271 = vmatprep.subr.bf16.mxu0 0
      %272 = vmatpush1.bf16.msra.mxu0 0
      %273 = vmatprep.subr.bf16.mxu0 0
      %274 = vmatpush1.bf16.msra.mxu0 0
      %275 = vmatprep.subr.bf16.mxu0 0
      %276 = vmatpush1.bf16.msra.mxu0 0
      %277 = vmatprep.subr.bf16.mxu0 0
      %278 = vmatpush1.bf16.msra.mxu0 0
      %279 = vmatprep.subr.bf16.mxu0 0
      %280 = vmatpush1.bf16.msra.mxu0 0
      %281 = vmatprep.mubr.bf16.mxu0 0
      %282 = vmatmul.mubr.bf16.gmra.mrb[0].mxu0 %v231
      %v283 = vpop.f32.mrb[0].mxu0
      %v284 = vadd.f32 0.0, %v283
      %v285 = vpop.f32.mrb[0].mxu0
      %v286 = vpop.f32.mrb[0].mxu0
      %v287 = vadd.f32 0.0, %v286
      %v288 = vpop.f32.mrb[0].mxu0
      %289 = vmatprep.mubr.bf16.mxu0 0
      %290 = vmatmul.mubr.bf16.gmra.mrb[0].mxu0 %v234
      %v291 = vpop.f32.mrb[0].mxu0
      %v292 = vadd.f32 0.0, %v291
      %v293 = vpop.f32.mrb[0].mxu0
      %v294 = vpop.f32.mrb[0].mxu0
      %v295 = vadd.f32 0.0, %v294
      %v296 = vpop.f32.mrb[0].mxu0
      %297 = vmatprep.mubr.bf16.mxu0 0
      %298 = vmatmul.mubr.bf16.gmra.mrb[0].mxu0 %v237
      %v299 = vpop.f32.mrb[0].mxu0
      %v300 = vadd.f32 0.0, %v299
      %v301 = vpop.f32.mrb[0].mxu0
      %v302 = vpop.f32.mrb[0].mxu0
      %v303 = vadd.f32 0.0, %v302
      %v304 = vpop.f32.mrb[0].mxu0
      %305 = vmatprep.mubr.bf16.mxu0 0
      %306 = vmatmul.mubr.bf16.gmra.mrb[0].mxu0 %v240
      %v307 = vpop.f32.mrb[0].mxu0
      %v308 = vadd.f32 0.0, %v307
      %v309 = vpop.f32.mrb[0].mxu0
      %v310 = vpop.f32.mrb[0].mxu0
      %v311 = vadd.f32 0.0, %v310
      %v312 = vpop.f32.mrb[0].mxu0
      %313 = vmatprep.mubr.bf16.mxu0 0
      %314 = vmatmul.mubr.bf16.gmra.mrb[0].mxu0 %v243
      %v315 = vpop.f32.mrb[0].mxu0
      %v316 = vadd.f32 0.0, %v315
      %v317 = vpop.f32.mrb[0].mxu0
      %v318 = vpop.f32.mrb[0].mxu0
      %v319 = vadd.f32 0.0, %v318
      %v320 = vpop.f32.mrb[0].mxu0
      %321 = vdwg.mxu0
      %v323 = vsel %vm229, %v204, 0
      %v326 = vsel %vm229, %v205, 0
      %v329 = vsel %vm229, %v206, 0
      %v332 = vsel %vm229, %v207, 0
      %v335 = vsel %vm229, %v208, 0
      %v338 = vsel %vm245, %v209, 0
      %340 = vmatprep.subr.bf16.mxu0 0
      %341 = vmatpush1.bf16.msra.mxu0 %v338
      %342 = vmatprep.subr.bf16.mxu0 0
      %343 = vmatpush1.bf16.msra.mxu0 0
      %344 = vmatprep.subr.bf16.mxu0 0
      %345 = vmatpush1.bf16.msra.mxu0 0
      %346 = vmatprep.subr.bf16.mxu0 0
      %347 = vmatpush1.bf16.msra.mxu0 0
      %348 = vmatprep.subr.bf16.mxu0 0
      %349 = vmatpush1.bf16.msra.mxu0 0
      %350 = vmatprep.subr.bf16.mxu0 0
      %351 = vmatpush1.bf16.msra.mxu0 0
      %352 = vmatprep.subr.bf16.mxu0 0
      %353 = vmatpush1.bf16.msra.mxu0 0
      %354 = vmatprep.subr.bf16.mxu0 0
      %355 = vmatpush1.bf16.msra.mxu0 0
      %356 = vmatprep.subr.bf16.mxu0 0
      %357 = vmatpush1.bf16.msra.mxu0 0
      %358 = vmatprep.subr.bf16.mxu0 0
      %359 = vmatpush1.bf16.msra.mxu0 0
      %360 = vmatprep.subr.bf16.mxu0 0
      %361 = vmatpush1.bf16.msra.mxu0 0
      %362 = vmatprep.subr.bf16.mxu0 0
      %363 = vmatpush1.bf16.msra.mxu0 0
      %364 = vmatprep.subr.bf16.mxu0 0
      %365 = vmatpush1.bf16.msra.mxu0 0
      %366 = vmatprep.subr.bf16.mxu0 0
      %367 = vmatpush1.bf16.msra.mxu0 0
      %368 = vmatprep.subr.bf16.mxu0 0
      %369 = vmatpush1.bf16.msra.mxu0 0
      %370 = vmatprep.subr.bf16.mxu0 0
      %371 = vmatpush1.bf16.msra.mxu0 0
      %372 = vmatprep.mubr.bf16.mxu0 0
      %373 = vmatmul.mubr.bf16.gmra.mrb[0].mxu0 %v323
      %v374 = vpop.f32.mrb[0].mxu0
      %v375 = vadd.f32 %v284, %v374
      %v376 = vpop.f32.mrb[0].mxu0
      %v377 = vpop.f32.mrb[0].mxu0
      %v378 = vadd.f32 %v287, %v377
      %v379 = vpop.f32.mrb[0].mxu0
      %380 = vmatprep.mubr.bf16.mxu0 0
      %381 = vmatmul.mubr.bf16.gmra.mrb[0].mxu0 %v326
      %v382 = vpop.f32.mrb[0].mxu0
      %v383 = vadd.f32 %v292, %v382
      %v384 = vpop.f32.mrb[0].mxu0
      %v385 = vpop.f32.mrb[0].mxu0
      %v386 = vadd.f32 %v295, %v385
      %v387 = vpop.f32.mrb[0].mxu0
      %388 = vmatprep.mubr.bf16.mxu0 0
      %389 = vmatmul.mubr.bf16.gmra.mrb[0].mxu0 %v329
      %v390 = vpop.f32.mrb[0].mxu0
      %v391 = vadd.f32 %v300, %v390
      %v392 = vpop.f32.mrb[0].mxu0
      %v393 = vpop.f32.mrb[0].mxu0
      %v394 = vadd.f32 %v303, %v393
      %v395 = vpop.f32.mrb[0].mxu0
      %396 = vmatprep.mubr.bf16.mxu0 0
      %397 = vmatmul.mubr.bf16.gmra.mrb[0].mxu0 %v332
      %v398 = vpop.f32.mrb[0].mxu0
      %v399 = vadd.f32 %v308, %v398
      %v400 = vpop.f32.mrb[0].mxu0
      %v401 = vpop.f32.mrb[0].mxu0
      %v402 = vadd.f32 %v311, %v401
      %v403 = vpop.f32.mrb[0].mxu0
      %404 = vmatprep.mubr.bf16.mxu0 0
      %405 = vmatmul.mubr.bf16.gmra.mrb[0].mxu0 %v335
      %v406 = vpop.f32.mrb[0].mxu0
      %v407 = vadd.f32 %v316, %v406
      %v408 = vpop.f32.mrb[0].mxu0
      %v409 = vpop.f32.mrb[0].mxu0
      %v410 = vadd.f32 %v319, %v409
      %v411 = vpop.f32.mrb[0].mxu0
      %412 = vdwg.mxu0
      %s413 = sadd.s32 %s192, 2
      %s414 = scalar_lea.vmem %s181, %s413
      %v415 = vld [vmem:[%s414] sm:$0xff]
      %v416 = vld [vmem:[%s414 + $0x8] sm:$0xff]
      %v417 = vld [vmem:[%s414 + $0x10] sm:$0xff]
      %v418 = vld [vmem:[%s414 + $0x18] sm:$0xff]
      %v419 = vld [vmem:[%s414 + $0x20] sm:$0xff]
      %v420 = vld [vmem:[%s414 + $0x28] sm:$0xff]
      %v421 = vld [vmem:[%s414 + $0x30] sm:$0xff]
      %v422 = vld [vmem:[%s414 + $0x38] sm:$0xff]
      %v423 = vld [vmem:[%s414 + $0x40] sm:$0xff]
      %v424 = vld [vmem:[%s414 + $0x48] sm:$0xff]
      %v425 = vpack.c.bf16 %v416, %v415
      %v426 = vpack.c.bf16 %v418, %v417
      %v427 = vpack.c.bf16 %v420, %v419
      %v428 = vpack.c.bf16 %v422, %v421
      %v429 = vpack.c.bf16 %v424, %v423
      %s430 = scalar_lea.vmem %s1, 8
      %v431 = vld [vmem:[%s430] sm:$0xf]
      %v433 = vsel %vm229, %v425, 0
      %v436 = vsel %vm229, %v426, 0
      %v439 = vsel %vm229, %v427, 0
      %v442 = vsel %vm229, %v428, 0
      %v445 = vsel %vm229, %v429, 0
      %v448 = vsel %vm245, %v431, 0
      %450 = vmatprep.subr.bf16.mxu0 0
      %451 = vmatpush1.bf16.msra.mxu0 %v448
      %452 = vmatprep.subr.bf16.mxu0 0
      %453 = vmatpush1.bf16.msra.mxu0 0
      %454 = vmatprep.subr.bf16.mxu0 0
      %455 = vmatpush1.bf16.msra.mxu0 0
      %456 = vmatprep.subr.bf16.mxu0 0
      %457 = vmatpush1.bf16.msra.mxu0 0
      %458 = vmatprep.subr.bf16.mxu0 0
      %459 = vmatpush1.bf16.msra.mxu0 0
      %460 = vmatprep.subr.bf16.mxu0 0
      %461 = vmatpush1.bf16.msra.mxu0 0
      %462 = vmatprep.subr.bf16.mxu0 0
      %463 = vmatpush1.bf16.msra.mxu0 0
      %464 = vmatprep.subr.bf16.mxu0 0
      %465 = vmatpush1.bf16.msra.mxu0 0
      %466 = vmatprep.subr.bf16.mxu0 0
      %467 = vmatpush1.bf16.msra.mxu0 0
      %468 = vmatprep.subr.bf16.mxu0 0
      %469 = vmatpush1.bf16.msra.mxu0 0
      %470 = vmatprep.subr.bf16.mxu0 0
      %471 = vmatpush1.bf16.msra.mxu0 0
      %472 = vmatprep.subr.bf16.mxu0 0
      %473 = vmatpush1.bf16.msra.mxu0 0
      %474 = vmatprep.subr.bf16.mxu0 0
      %475 = vmatpush1.bf16.msra.mxu0 0
      %476 = vmatprep.subr.bf16.mxu0 0
      %477 = vmatpush1.bf16.msra.mxu0 0
      %478 = vmatprep.subr.bf16.mxu0 0
      %479 = vmatpush1.bf16.msra.mxu0 0
      %480 = vmatprep.subr.bf16.mxu0 0
      %481 = vmatpush1.bf16.msra.mxu0 0
      %482 = vmatprep.mubr.bf16.mxu0 0
      %483 = vmatmul.mubr.bf16.gmra.mrb[0].mxu0 %v433
      %v484 = vpop.f32.mrb[0].mxu0
      %v485 = vadd.f32 0.0, %v484
      %v486 = vpop.f32.mrb[0].mxu0
      %v487 = vpop.f32.mrb[0].mxu0
      %v488 = vadd.f32 0.0, %v487
      %v489 = vpop.f32.mrb[0].mxu0
      %490 = vmatprep.mubr.bf16.mxu0 0
      %491 = vmatmul.mubr.bf16.gmra.mrb[0].mxu0 %v436
      %v492 = vpop.f32.mrb[0].mxu0
      %v493 = vadd.f32 0.0, %v492
      %v494 = vpop.f32.mrb[0].mxu0
      %v495 = vpop.f32.mrb[0].mxu0
      %v496 = vadd.f32 0.0, %v495
      %v497 = vpop.f32.mrb[0].mxu0
      %498 = vmatprep.mubr.bf16.mxu0 0
      %499 = vmatmul.mubr.bf16.gmra.mrb[0].mxu0 %v439
      %v500 = vpop.f32.mrb[0].mxu0
      %v501 = vadd.f32 0.0, %v500
      %v502 = vpop.f32.mrb[0].mxu0
      %v503 = vpop.f32.mrb[0].mxu0
      %v504 = vadd.f32 0.0, %v503
      %v505 = vpop.f32.mrb[0].mxu0
      %506 = vmatprep.mubr.bf16.mxu0 0
      %507 = vmatmul.mubr.bf16.gmra.mrb[0].mxu0 %v442
      %v508 = vpop.f32.mrb[0].mxu0
      %v509 = vadd.f32 0.0, %v508
      %v510 = vpop.f32.mrb[0].mxu0
      %v511 = vpop.f32.mrb[0].mxu0
      %v512 = vadd.f32 0.0, %v511
      %v513 = vpop.f32.mrb[0].mxu0
      %514 = vmatprep.mubr.bf16.mxu0 0
      %515 = vmatmul.mubr.bf16.gmra.mrb[0].mxu0 %v445
      %v516 = vpop.f32.mrb[0].mxu0
      %v517 = vadd.f32 0.0, %v516
      %v518 = vpop.f32.mrb[0].mxu0
      %v519 = vpop.f32.mrb[0].mxu0
      %v520 = vadd.f32 0.0, %v519
      %v521 = vpop.f32.mrb[0].mxu0
      %522 = vdwg.mxu0
      %v523 = vadd.f32 %v375, %v485
      %v524 = vadd.f32 %v378, %v488
      %v525 = vadd.f32 %v383, %v493
      %v526 = vadd.f32 %v386, %v496
      %v527 = vadd.f32 %v391, %v501
      %v528 = vadd.f32 %v394, %v504
      %v529 = vadd.f32 %v399, %v509
      %v530 = vadd.f32 %v402, %v512
      %v531 = vadd.f32 %v407, %v517
      %v532 = vadd.f32 %v410, %v520
      %s533 = sadd.s32 %s192, 10
      %s534 = scalar_lea.vmem %s181, %s533
      %v535 = vld [vmem:[%s534] sm:$0xff]
      %v536 = vld [vmem:[%s534 + $0x8] sm:$0xff]
      %v537 = vld [vmem:[%s534 + $0x10] sm:$0xff]
      %v538 = vld [vmem:[%s534 + $0x18] sm:$0xff]
      %v539 = vld [vmem:[%s534 + $0x20] sm:$0xff]
      %v540 = vld [vmem:[%s534 + $0x28] sm:$0xff]
      %v541 = vld [vmem:[%s534 + $0x30] sm:$0xff]
      %v542 = vld [vmem:[%s534 + $0x38] sm:$0xff]
      %v543 = vld [vmem:[%s534 + $0x40] sm:$0xff]
      %v544 = vld [vmem:[%s534 + $0x48] sm:$0xff]
      %v545 = vpack.c.bf16 %v536, %v535
      %v546 = vpack.c.bf16 %v538, %v537
      %v547 = vpack.c.bf16 %v540, %v539
      %v548 = vpack.c.bf16 %v542, %v541
      %v549 = vpack.c.bf16 %v544, %v543
      %s550 = scalar_lea.vmem %s1, 12
      %v551 = vld [vmem:[%s550] sm:$0xf]
      %v553 = vsel %vm229, %v545, 0
      %v556 = vsel %vm229, %v546, 0
      %v559 = vsel %vm229, %v547, 0
      %v562 = vsel %vm229, %v548, 0
      %v565 = vsel %vm229, %v549, 0
      %v568 = vsel %vm245, %v551, 0
      %570 = vmatprep.subr.bf16.mxu0 0
      %571 = vmatpush1.bf16.msra.mxu0 %v568
      %572 = vmatprep.subr.bf16.mxu0 0
      %573 = vmatpush1.bf16.msra.mxu0 0
      %574 = vmatprep.subr.bf16.mxu0 0
      %575 = vmatpush1.bf16.msra.mxu0 0
      %576 = vmatprep.subr.bf16.mxu0 0
      %577 = vmatpush1.bf16.msra.mxu0 0
      %578 = vmatprep.subr.bf16.mxu0 0
      %579 = vmatpush1.bf16.msra.mxu0 0
      %580 = vmatprep.subr.bf16.mxu0 0
      %581 = vmatpush1.bf16.msra.mxu0 0
      %582 = vmatprep.subr.bf16.mxu0 0
      %583 = vmatpush1.bf16.msra.mxu0 0
      %584 = vmatprep.subr.bf16.mxu0 0
      %585 = vmatpush1.bf16.msra.mxu0 0
      %586 = vmatprep.subr.bf16.mxu0 0
      %587 = vmatpush1.bf16.msra.mxu0 0
      %588 = vmatprep.subr.bf16.mxu0 0
      %589 = vmatpush1.bf16.msra.mxu0 0
      %590 = vmatprep.subr.bf16.mxu0 0
      %591 = vmatpush1.bf16.msra.mxu0 0
      %592 = vmatprep.subr.bf16.mxu0 0
      %593 = vmatpush1.bf16.msra.mxu0 0
      %594 = vmatprep.subr.bf16.mxu0 0
      %595 = vmatpush1.bf16.msra.mxu0 0
      %596 = vmatprep.subr.bf16.mxu0 0
      %597 = vmatpush1.bf16.msra.mxu0 0
      %598 = vmatprep.subr.bf16.mxu0 0
      %599 = vmatpush1.bf16.msra.mxu0 0
      %600 = vmatprep.subr.bf16.mxu0 0
      %601 = vmatpush1.bf16.msra.mxu0 0
      %602 = vmatprep.mubr.bf16.mxu0 0
      %603 = vmatmul.mubr.bf16.gmra.mrb[0].mxu0 %v553
      %v604 = vpop.f32.mrb[0].mxu0
      %v605 = vadd.f32 0.0, %v604
      %v606 = vpop.f32.mrb[0].mxu0
      %v607 = vpop.f32.mrb[0].mxu0
      %v608 = vadd.f32 0.0, %v607
      %v609 = vpop.f32.mrb[0].mxu0
      %610 = vmatprep.mubr.bf16.mxu0 0
      %611 = vmatmul.mubr.bf16.gmra.mrb[0].mxu0 %v556
      %v612 = vpop.f32.mrb[0].mxu0
      %v613 = vadd.f32 0.0, %v612
      %v614 = vpop.f32.mrb[0].mxu0
      %v615 = vpop.f32.mrb[0].mxu0
      %v616 = vadd.f32 0.0, %v615
      %v617 = vpop.f32.mrb[0].mxu0
      %618 = vmatprep.mubr.bf16.mxu0 0
      %619 = vmatmul.mubr.bf16.gmra.mrb[0].mxu0 %v559
      %v620 = vpop.f32.mrb[0].mxu0
      %v621 = vadd.f32 0.0, %v620
      %v622 = vpop.f32.mrb[0].mxu0
      %v623 = vpop.f32.mrb[0].mxu0
      %v624 = vadd.f32 0.0, %v623
      %v625 = vpop.f32.mrb[0].mxu0
      %626 = vmatprep.mubr.bf16.mxu0 0
      %627 = vmatmul.mubr.bf16.gmra.mrb[0].mxu0 %v562
      %v628 = vpop.f32.mrb[0].mxu0
      %v629 = vadd.f32 0.0, %v628
      %v630 = vpop.f32.mrb[0].mxu0
      %v631 = vpop.f32.mrb[0].mxu0
      %v632 = vadd.f32 0.0, %v631
      %v633 = vpop.f32.mrb[0].mxu0
      %634 = vmatprep.mubr.bf16.mxu0 0
      %635 = vmatmul.mubr.bf16.gmra.mrb[0].mxu0 %v565
      %v636 = vpop.f32.mrb[0].mxu0
      %v637 = vadd.f32 0.0, %v636
      %v638 = vpop.f32.mrb[0].mxu0
      %v639 = vpop.f32.mrb[0].mxu0
      %v640 = vadd.f32 0.0, %v639
      %v641 = vpop.f32.mrb[0].mxu0
      %642 = vdwg.mxu0
      %v643 = vadd.f32 %v523, %v605
      %v644 = vadd.f32 %v524, %v608
      %v645 = vadd.f32 %v525, %v613
      %v646 = vadd.f32 %v526, %v616
      %v647 = vadd.f32 %v527, %v621
      %v648 = vadd.f32 %v528, %v624
      %v649 = vadd.f32 %v529, %v629
      %v650 = vadd.f32 %v530, %v632
      %v651 = vadd.f32 %v531, %v637
      %v652 = vadd.f32 %v532, %v640
      %s653 = sadd.s32 %s192, 11
      %s654 = scalar_lea.vmem %s181, %s653
      %v655 = vld [vmem:[%s654] sm:$0xff]
      %v656 = vld [vmem:[%s654 + $0x8] sm:$0xff]
      %v657 = vld [vmem:[%s654 + $0x10] sm:$0xff]
      %v658 = vld [vmem:[%s654 + $0x18] sm:$0xff]
      %v659 = vld [vmem:[%s654 + $0x20] sm:$0xff]
      %v660 = vld [vmem:[%s654 + $0x28] sm:$0xff]
      %v661 = vld [vmem:[%s654 + $0x30] sm:$0xff]
      %v662 = vld [vmem:[%s654 + $0x38] sm:$0xff]
      %v663 = vld [vmem:[%s654 + $0x40] sm:$0xff]
      %v664 = vld [vmem:[%s654 + $0x48] sm:$0xff]
      %v665 = vpack.c.bf16 %v656, %v655
      %v666 = vpack.c.bf16 %v658, %v657
      %v667 = vpack.c.bf16 %v660, %v659
      %v668 = vpack.c.bf16 %v662, %v661
      %v669 = vpack.c.bf16 %v664, %v663
      %s670 = scalar_lea.vmem %s1, 16
      %v671 = vld [vmem:[%s670] sm:$0xf]
      %v673 = vsel %vm229, %v665, 0
      %v676 = vsel %vm229, %v666, 0
      %v679 = vsel %vm229, %v667, 0
      %v682 = vsel %vm229, %v668, 0
      %v685 = vsel %vm229, %v669, 0
      %v688 = vsel %vm245, %v671, 0
      %690 = vmatprep.subr.bf16.mxu0 0
      %691 = vmatpush1.bf16.msra.mxu0 %v688
      %692 = vmatprep.subr.bf16.mxu0 0
      %693 = vmatpush1.bf16.msra.mxu0 0
      %694 = vmatprep.subr.bf16.mxu0 0
      %695 = vmatpush1.bf16.msra.mxu0 0
      %696 = vmatprep.subr.bf16.mxu0 0
      %697 = vmatpush1.bf16.msra.mxu0 0
      %698 = vmatprep.subr.bf16.mxu0 0
      %699 = vmatpush1.bf16.msra.mxu0 0
      %700 = vmatprep.subr.bf16.mxu0 0
      %701 = vmatpush1.bf16.msra.mxu0 0
      %702 = vmatprep.subr.bf16.mxu0 0
      %703 = vmatpush1.bf16.msra.mxu0 0
      %704 = vmatprep.subr.bf16.mxu0 0
      %705 = vmatpush1.bf16.msra.mxu0 0
      %706 = vmatprep.subr.bf16.mxu0 0
      %707 = vmatpush1.bf16.msra.mxu0 0
      %708 = vmatprep.subr.bf16.mxu0 0
      %709 = vmatpush1.bf16.msra.mxu0 0
      %710 = vmatprep.subr.bf16.mxu0 0
      %711 = vmatpush1.bf16.msra.mxu0 0
      %712 = vmatprep.subr.bf16.mxu0 0
      %713 = vmatpush1.bf16.msra.mxu0 0
      %714 = vmatprep.subr.bf16.mxu0 0
      %715 = vmatpush1.bf16.msra.mxu0 0
      %716 = vmatprep.subr.bf16.mxu0 0
      %717 = vmatpush1.bf16.msra.mxu0 0
      %718 = vmatprep.subr.bf16.mxu0 0
      %719 = vmatpush1.bf16.msra.mxu0 0
      %720 = vmatprep.subr.bf16.mxu0 0
      %721 = vmatpush1.bf16.msra.mxu0 0
      %722 = vmatprep.mubr.bf16.mxu0 0
      %723 = vmatmul.mubr.bf16.gmra.mrb[0].mxu0 %v673
      %v724 = vpop.f32.mrb[0].mxu0
      %v725 = vadd.f32 0.0, %v724
      %v726 = vpop.f32.mrb[0].mxu0
      %v727 = vpop.f32.mrb[0].mxu0
      %v728 = vadd.f32 0.0, %v727
      %v729 = vpop.f32.mrb[0].mxu0
      %730 = vmatprep.mubr.bf16.mxu0 0
      %731 = vmatmul.mubr.bf16.gmra.mrb[0].mxu0 %v676
      %v732 = vpop.f32.mrb[0].mxu0
      %v733 = vadd.f32 0.0, %v732
      %v734 = vpop.f32.mrb[0].mxu0
      %v735 = vpop.f32.mrb[0].mxu0
      %v736 = vadd.f32 0.0, %v735
      %v737 = vpop.f32.mrb[0].mxu0
      %738 = vmatprep.mubr.bf16.mxu0 0
      %739 = vmatmul.mubr.bf16.gmra.mrb[0].mxu0 %v679
      %v740 = vpop.f32.mrb[0].mxu0
      %v741 = vadd.f32 0.0, %v740
      %v742 = vpop.f32.mrb[0].mxu0
      %v743 = vpop.f32.mrb[0].mxu0
      %v744 = vadd.f32 0.0, %v743
      %v745 = vpop.f32.mrb[0].mxu0
      %746 = vmatprep.mubr.bf16.mxu0 0
      %747 = vmatmul.mubr.bf16.gmra.mrb[0].mxu0 %v682
      %v748 = vpop.f32.mrb[0].mxu0
      %v749 = vadd.f32 0.0, %v748
      %v750 = vpop.f32.mrb[0].mxu0
      %v751 = vpop.f32.mrb[0].mxu0
      %v752 = vadd.f32 0.0, %v751
      %v753 = vpop.f32.mrb[0].mxu0
      %754 = vmatprep.mubr.bf16.mxu0 0
      %755 = vmatmul.mubr.bf16.gmra.mrb[0].mxu0 %v685
      %v756 = vpop.f32.mrb[0].mxu0
      %v757 = vadd.f32 0.0, %v756
      %v758 = vpop.f32.mrb[0].mxu0
      %v759 = vpop.f32.mrb[0].mxu0
      %v760 = vadd.f32 0.0, %v759
      %v761 = vpop.f32.mrb[0].mxu0
      %762 = vdwg.mxu0
      %v763 = vadd.f32 %v643, %v725
      %v764 = vadd.f32 %v644, %v728
      %v765 = vadd.f32 %v645, %v733
      %v766 = vadd.f32 %v646, %v736
      %v767 = vadd.f32 %v647, %v741
      %v768 = vadd.f32 %v648, %v744
      %v769 = vadd.f32 %v649, %v749
      %v770 = vadd.f32 %v650, %v752
      %v771 = vadd.f32 %v651, %v757
      %v772 = vadd.f32 %v652, %v760
      %s773 = sadd.s32 %s192, 12
      %s774 = scalar_lea.vmem %s181, %s773
      %v775 = vld [vmem:[%s774] sm:$0xff]
      %v776 = vld [vmem:[%s774 + $0x8] sm:$0xff]
      %v777 = vld [vmem:[%s774 + $0x10] sm:$0xff]
      %v778 = vld [vmem:[%s774 + $0x18] sm:$0xff]
      %v779 = vld [vmem:[%s774 + $0x20] sm:$0xff]
      %v780 = vld [vmem:[%s774 + $0x28] sm:$0xff]
      %v781 = vld [vmem:[%s774 + $0x30] sm:$0xff]
      %v782 = vld [vmem:[%s774 + $0x38] sm:$0xff]
      %v783 = vld [vmem:[%s774 + $0x40] sm:$0xff]
      %v784 = vld [vmem:[%s774 + $0x48] sm:$0xff]
      %v785 = vpack.c.bf16 %v776, %v775
      %v786 = vpack.c.bf16 %v778, %v777
      %v787 = vpack.c.bf16 %v780, %v779
      %v788 = vpack.c.bf16 %v782, %v781
      %v789 = vpack.c.bf16 %v784, %v783
      %s790 = scalar_lea.vmem %s1, 20
      %v791 = vld [vmem:[%s790] sm:$0xf]
      %v793 = vsel %vm229, %v785, 0
      %v796 = vsel %vm229, %v786, 0
      %v799 = vsel %vm229, %v787, 0
      %v802 = vsel %vm229, %v788, 0
      %v805 = vsel %vm229, %v789, 0
      %v808 = vsel %vm245, %v791, 0
      %810 = vmatprep.subr.bf16.mxu0 0
      %811 = vmatpush1.bf16.msra.mxu0 %v808
      %812 = vmatprep.subr.bf16.mxu0 0
      %813 = vmatpush1.bf16.msra.mxu0 0
      %814 = vmatprep.subr.bf16.mxu0 0
      %815 = vmatpush1.bf16.msra.mxu0 0
      %816 = vmatprep.subr.bf16.mxu0 0
      %817 = vmatpush1.bf16.msra.mxu0 0
      %818 = vmatprep.subr.bf16.mxu0 0
      %819 = vmatpush1.bf16.msra.mxu0 0
      %820 = vmatprep.subr.bf16.mxu0 0
      %821 = vmatpush1.bf16.msra.mxu0 0
      %822 = vmatprep.subr.bf16.mxu0 0
      %823 = vmatpush1.bf16.msra.mxu0 0
      %824 = vmatprep.subr.bf16.mxu0 0
      %825 = vmatpush1.bf16.msra.mxu0 0
      %826 = vmatprep.subr.bf16.mxu0 0
      %827 = vmatpush1.bf16.msra.mxu0 0
      %828 = vmatprep.subr.bf16.mxu0 0
      %829 = vmatpush1.bf16.msra.mxu0 0
      %830 = vmatprep.subr.bf16.mxu0 0
      %831 = vmatpush1.bf16.msra.mxu0 0
      %832 = vmatprep.subr.bf16.mxu0 0
      %833 = vmatpush1.bf16.msra.mxu0 0
      %834 = vmatprep.subr.bf16.mxu0 0
      %835 = vmatpush1.bf16.msra.mxu0 0
      %836 = vmatprep.subr.bf16.mxu0 0
      %837 = vmatpush1.bf16.msra.mxu0 0
      %838 = vmatprep.subr.bf16.mxu0 0
      %839 = vmatpush1.bf16.msra.mxu0 0
      %840 = vmatprep.subr.bf16.mxu0 0
      %841 = vmatpush1.bf16.msra.mxu0 0
      %842 = vmatprep.mubr.bf16.mxu0 0
      %843 = vmatmul.mubr.bf16.gmra.mrb[0].mxu0 %v793
      %v844 = vpop.f32.mrb[0].mxu0
      %v845 = vadd.f32 0.0, %v844
      %v846 = vpop.f32.mrb[0].mxu0
      %v847 = vpop.f32.mrb[0].mxu0
      %v848 = vadd.f32 0.0, %v847
      %v849 = vpop.f32.mrb[0].mxu0
      %850 = vmatprep.mubr.bf16.mxu0 0
      %851 = vmatmul.mubr.bf16.gmra.mrb[0].mxu0 %v796
      %v852 = vpop.f32.mrb[0].mxu0
      %v853 = vadd.f32 0.0, %v852
      %v854 = vpop.f32.mrb[0].mxu0
      %v855 = vpop.f32.mrb[0].mxu0
      %v856 = vadd.f32 0.0, %v855
      %v857 = vpop.f32.mrb[0].mxu0
      %858 = vmatprep.mubr.bf16.mxu0 0
      %859 = vmatmul.mubr.bf16.gmra.mrb[0].mxu0 %v799
      %v860 = vpop.f32.mrb[0].mxu0
      %v861 = vadd.f32 0.0, %v860
      %v862 = vpop.f32.mrb[0].mxu0
      %v863 = vpop.f32.mrb[0].mxu0
      %v864 = vadd.f32 0.0, %v863
      %v865 = vpop.f32.mrb[0].mxu0
      %866 = vmatprep.mubr.bf16.mxu0 0
      %867 = vmatmul.mubr.bf16.gmra.mrb[0].mxu0 %v802
      %v868 = vpop.f32.mrb[0].mxu0
      %v869 = vadd.f32 0.0, %v868
      %v870 = vpop.f32.mrb[0].mxu0
      %v871 = vpop.f32.mrb[0].mxu0
      %v872 = vadd.f32 0.0, %v871
      %v873 = vpop.f32.mrb[0].mxu0
      %874 = vmatprep.mubr.bf16.mxu0 0
      %875 = vmatmul.mubr.bf16.gmra.mrb[0].mxu0 %v805
      %v876 = vpop.f32.mrb[0].mxu0
      %v877 = vadd.f32 0.0, %v876
      %v878 = vpop.f32.mrb[0].mxu0
      %v879 = vpop.f32.mrb[0].mxu0
      %v880 = vadd.f32 0.0, %v879
      %v881 = vpop.f32.mrb[0].mxu0
      %882 = vdwg.mxu0
      %v883 = vadd.f32 %v763, %v845
      %v884 = vadd.f32 %v764, %v848
      %v885 = vadd.f32 %v765, %v853
      %v886 = vadd.f32 %v766, %v856
      %v887 = vadd.f32 %v767, %v861
      %v888 = vadd.f32 %v768, %v864
      %v889 = vadd.f32 %v769, %v869
      %v890 = vadd.f32 %v770, %v872
      %v891 = vadd.f32 %v771, %v877
      %v892 = vadd.f32 %v772, %v880
      %s893 = sadd.s32 %s192, 20
      %s894 = scalar_lea.vmem %s181, %s893
      %v895 = vld [vmem:[%s894] sm:$0xff]
      %v896 = vld [vmem:[%s894 + $0x8] sm:$0xff]
      %v897 = vld [vmem:[%s894 + $0x10] sm:$0xff]
      %v898 = vld [vmem:[%s894 + $0x18] sm:$0xff]
      %v899 = vld [vmem:[%s894 + $0x20] sm:$0xff]
      %v900 = vld [vmem:[%s894 + $0x28] sm:$0xff]
      %v901 = vld [vmem:[%s894 + $0x30] sm:$0xff]
      %v902 = vld [vmem:[%s894 + $0x38] sm:$0xff]
      %v903 = vld [vmem:[%s894 + $0x40] sm:$0xff]
      %v904 = vld [vmem:[%s894 + $0x48] sm:$0xff]
      %v905 = vpack.c.bf16 %v896, %v895
      %v906 = vpack.c.bf16 %v898, %v897
      %v907 = vpack.c.bf16 %v900, %v899
      %v908 = vpack.c.bf16 %v902, %v901
      %v909 = vpack.c.bf16 %v904, %v903
      %s910 = scalar_lea.vmem %s1, 24
      %v911 = vld [vmem:[%s910] sm:$0xf]
      %v913 = vsel %vm229, %v905, 0
      %v916 = vsel %vm229, %v906, 0
      %v919 = vsel %vm229, %v907, 0
      %v922 = vsel %vm229, %v908, 0
      %v925 = vsel %vm229, %v909, 0
      %v928 = vsel %vm245, %v911, 0
      %930 = vmatprep.subr.bf16.mxu0 0
      %931 = vmatpush1.bf16.msra.mxu0 %v928
      %932 = vmatprep.subr.bf16.mxu0 0
      %933 = vmatpush1.bf16.msra.mxu0 0
      %934 = vmatprep.subr.bf16.mxu0 0
      %935 = vmatpush1.bf16.msra.mxu0 0
      %936 = vmatprep.subr.bf16.mxu0 0
      %937 = vmatpush1.bf16.msra.mxu0 0
      %938 = vmatprep.subr.bf16.mxu0 0
      %939 = vmatpush1.bf16.msra.mxu0 0
      %940 = vmatprep.subr.bf16.mxu0 0
      %941 = vmatpush1.bf16.msra.mxu0 0
      %942 = vmatprep.subr.bf16.mxu0 0
      %943 = vmatpush1.bf16.msra.mxu0 0
      %944 = vmatprep.subr.bf16.mxu0 0
      %945 = vmatpush1.bf16.msra.mxu0 0
      %946 = vmatprep.subr.bf16.mxu0 0
      %947 = vmatpush1.bf16.msra.mxu0 0
      %948 = vmatprep.subr.bf16.mxu0 0
      %949 = vmatpush1.bf16.msra.mxu0 0
      %950 = vmatprep.subr.bf16.mxu0 0
      %951 = vmatpush1.bf16.msra.mxu0 0
      %952 = vmatprep.subr.bf16.mxu0 0
      %953 = vmatpush1.bf16.msra.mxu0 0
      %954 = vmatprep.subr.bf16.mxu0 0
      %955 = vmatpush1.bf16.msra.mxu0 0
      %956 = vmatprep.subr.bf16.mxu0 0
      %957 = vmatpush1.bf16.msra.mxu0 0
      %958 = vmatprep.subr.bf16.mxu0 0
      %959 = vmatpush1.bf16.msra.mxu0 0
      %960 = vmatprep.subr.bf16.mxu0 0
      %961 = vmatpush1.bf16.msra.mxu0 0
      %962 = vmatprep.mubr.bf16.mxu0 0
      %963 = vmatmul.mubr.bf16.gmra.mrb[0].mxu0 %v913
      %v964 = vpop.f32.mrb[0].mxu0
      %v965 = vadd.f32 0.0, %v964
      %v966 = vpop.f32.mrb[0].mxu0
      %v967 = vpop.f32.mrb[0].mxu0
      %v968 = vadd.f32 0.0, %v967
      %v969 = vpop.f32.mrb[0].mxu0
      %970 = vmatprep.mubr.bf16.mxu0 0
      %971 = vmatmul.mubr.bf16.gmra.mrb[0].mxu0 %v916
      %v972 = vpop.f32.mrb[0].mxu0
      %v973 = vadd.f32 0.0, %v972
      %v974 = vpop.f32.mrb[0].mxu0
      %v975 = vpop.f32.mrb[0].mxu0
      %v976 = vadd.f32 0.0, %v975
      %v977 = vpop.f32.mrb[0].mxu0
      %978 = vmatprep.mubr.bf16.mxu0 0
      %979 = vmatmul.mubr.bf16.gmra.mrb[0].mxu0 %v919
      %v980 = vpop.f32.mrb[0].mxu0
      %v981 = vadd.f32 0.0, %v980
      %v982 = vpop.f32.mrb[0].mxu0
      %v983 = vpop.f32.mrb[0].mxu0
      %v984 = vadd.f32 0.0, %v983
      %v985 = vpop.f32.mrb[0].mxu0
      %986 = vmatprep.mubr.bf16.mxu0 0
      %987 = vmatmul.mubr.bf16.gmra.mrb[0].mxu0 %v922
      %v988 = vpop.f32.mrb[0].mxu0
      %v989 = vadd.f32 0.0, %v988
      %v990 = vpop.f32.mrb[0].mxu0
      %v991 = vpop.f32.mrb[0].mxu0
      %v992 = vadd.f32 0.0, %v991
      %v993 = vpop.f32.mrb[0].mxu0
      %994 = vmatprep.mubr.bf16.mxu0 0
      %995 = vmatmul.mubr.bf16.gmra.mrb[0].mxu0 %v925
      %v996 = vpop.f32.mrb[0].mxu0
      %v997 = vadd.f32 0.0, %v996
      %v998 = vpop.f32.mrb[0].mxu0
      %v999 = vpop.f32.mrb[0].mxu0
      %v1000 = vadd.f32 0.0, %v999
      %v1001 = vpop.f32.mrb[0].mxu0
      %1002 = vdwg.mxu0
      %v1003 = vadd.f32 %v883, %v965
      %v1004 = vadd.f32 %v884, %v968
      %v1005 = vadd.f32 %v885, %v973
      %v1006 = vadd.f32 %v886, %v976
      %v1007 = vadd.f32 %v887, %v981
      %v1008 = vadd.f32 %v888, %v984
      %v1009 = vadd.f32 %v889, %v989
      %v1010 = vadd.f32 %v890, %v992
      %v1011 = vadd.f32 %v891, %v997
      %v1012 = vadd.f32 %v892, %v1000
      %s1013 = sadd.s32 %s192, 21
      %s1014 = scalar_lea.vmem %s181, %s1013
      %v1015 = vld [vmem:[%s1014] sm:$0xff]
      %v1016 = vld [vmem:[%s1014 + $0x8] sm:$0xff]
      %v1017 = vld [vmem:[%s1014 + $0x10] sm:$0xff]
      %v1018 = vld [vmem:[%s1014 + $0x18] sm:$0xff]
      %v1019 = vld [vmem:[%s1014 + $0x20] sm:$0xff]
      %v1020 = vld [vmem:[%s1014 + $0x28] sm:$0xff]
      %v1021 = vld [vmem:[%s1014 + $0x30] sm:$0xff]
      %v1022 = vld [vmem:[%s1014 + $0x38] sm:$0xff]
      %v1023 = vld [vmem:[%s1014 + $0x40] sm:$0xff]
      %v1024 = vld [vmem:[%s1014 + $0x48] sm:$0xff]
      %v1025 = vpack.c.bf16 %v1016, %v1015
      %v1026 = vpack.c.bf16 %v1018, %v1017
      %v1027 = vpack.c.bf16 %v1020, %v1019
      %v1028 = vpack.c.bf16 %v1022, %v1021
      %v1029 = vpack.c.bf16 %v1024, %v1023
      %s1030 = scalar_lea.vmem %s1, 28
      %v1031 = vld [vmem:[%s1030] sm:$0xf]
      %v1033 = vsel %vm229, %v1025, 0
      %v1036 = vsel %vm229, %v1026, 0
      %v1039 = vsel %vm229, %v1027, 0
      %v1042 = vsel %vm229, %v1028, 0
      %v1045 = vsel %vm229, %v1029, 0
      %v1048 = vsel %vm245, %v1031, 0
      %1050 = vmatprep.subr.bf16.mxu0 0
      %1051 = vmatpush1.bf16.msra.mxu0 %v1048
      %1052 = vmatprep.subr.bf16.mxu0 0
      %1053 = vmatpush1.bf16.msra.mxu0 0
      %1054 = vmatprep.subr.bf16.mxu0 0
      %1055 = vmatpush1.bf16.msra.mxu0 0
      %1056 = vmatprep.subr.bf16.mxu0 0
      %1057 = vmatpush1.bf16.msra.mxu0 0
      %1058 = vmatprep.subr.bf16.mxu0 0
      %1059 = vmatpush1.bf16.msra.mxu0 0
      %1060 = vmatprep.subr.bf16.mxu0 0
      %1061 = vmatpush1.bf16.msra.mxu0 0
      %1062 = vmatprep.subr.bf16.mxu0 0
      %1063 = vmatpush1.bf16.msra.mxu0 0
      %1064 = vmatprep.subr.bf16.mxu0 0
      %1065 = vmatpush1.bf16.msra.mxu0 0
      %1066 = vmatprep.subr.bf16.mxu0 0
      %1067 = vmatpush1.bf16.msra.mxu0 0
      %1068 = vmatprep.subr.bf16.mxu0 0
      %1069 = vmatpush1.bf16.msra.mxu0 0
      %1070 = vmatprep.subr.bf16.mxu0 0
      %1071 = vmatpush1.bf16.msra.mxu0 0
      %1072 = vmatprep.subr.bf16.mxu0 0
      %1073 = vmatpush1.bf16.msra.mxu0 0
      %1074 = vmatprep.subr.bf16.mxu0 0
      %1075 = vmatpush1.bf16.msra.mxu0 0
      %1076 = vmatprep.subr.bf16.mxu0 0
      %1077 = vmatpush1.bf16.msra.mxu0 0
      %1078 = vmatprep.subr.bf16.mxu0 0
      %1079 = vmatpush1.bf16.msra.mxu0 0
      %1080 = vmatprep.subr.bf16.mxu0 0
      %1081 = vmatpush1.bf16.msra.mxu0 0
      %1082 = vmatprep.mubr.bf16.mxu0 0
      %1083 = vmatmul.mubr.bf16.gmra.mrb[0].mxu0 %v1033
      %v1084 = vpop.f32.mrb[0].mxu0
      %v1085 = vadd.f32 0.0, %v1084
      %v1086 = vpop.f32.mrb[0].mxu0
      %v1087 = vpop.f32.mrb[0].mxu0
      %v1088 = vadd.f32 0.0, %v1087
      %v1089 = vpop.f32.mrb[0].mxu0
      %1090 = vmatprep.mubr.bf16.mxu0 0
      %1091 = vmatmul.mubr.bf16.gmra.mrb[0].mxu0 %v1036
      %v1092 = vpop.f32.mrb[0].mxu0
      %v1093 = vadd.f32 0.0, %v1092
      %v1094 = vpop.f32.mrb[0].mxu0
      %v1095 = vpop.f32.mrb[0].mxu0
      %v1096 = vadd.f32 0.0, %v1095
      %v1097 = vpop.f32.mrb[0].mxu0
      %1098 = vmatprep.mubr.bf16.mxu0 0
      %1099 = vmatmul.mubr.bf16.gmra.mrb[0].mxu0 %v1039
      %v1100 = vpop.f32.mrb[0].mxu0
      %v1101 = vadd.f32 0.0, %v1100
      %v1102 = vpop.f32.mrb[0].mxu0
      %v1103 = vpop.f32.mrb[0].mxu0
      %v1104 = vadd.f32 0.0, %v1103
      %v1105 = vpop.f32.mrb[0].mxu0
      %1106 = vmatprep.mubr.bf16.mxu0 0
      %1107 = vmatmul.mubr.bf16.gmra.mrb[0].mxu0 %v1042
      %v1108 = vpop.f32.mrb[0].mxu0
      %v1109 = vadd.f32 0.0, %v1108
      %v1110 = vpop.f32.mrb[0].mxu0
      %v1111 = vpop.f32.mrb[0].mxu0
      %v1112 = vadd.f32 0.0, %v1111
      %v1113 = vpop.f32.mrb[0].mxu0
      %1114 = vmatprep.mubr.bf16.mxu0 0
      %1115 = vmatmul.mubr.bf16.gmra.mrb[0].mxu0 %v1045
      %v1116 = vpop.f32.mrb[0].mxu0
      %v1117 = vadd.f32 0.0, %v1116
      %v1118 = vpop.f32.mrb[0].mxu0
      %v1119 = vpop.f32.mrb[0].mxu0
      %v1120 = vadd.f32 0.0, %v1119
      %v1121 = vpop.f32.mrb[0].mxu0
      %1122 = vdwg.mxu0
      %v1123 = vadd.f32 %v1003, %v1085
      %v1124 = vadd.f32 %v1004, %v1088
      %v1125 = vadd.f32 %v1005, %v1093
      %v1126 = vadd.f32 %v1006, %v1096
      %v1127 = vadd.f32 %v1007, %v1101
      %v1128 = vadd.f32 %v1008, %v1104
      %v1129 = vadd.f32 %v1009, %v1109
      %v1130 = vadd.f32 %v1010, %v1112
      %v1131 = vadd.f32 %v1011, %v1117
      %v1132 = vadd.f32 %v1012, %v1120
      %s1133 = sadd.s32 %s192, 22
      %s1134 = scalar_lea.vmem %s181, %s1133
      %v1135 = vld [vmem:[%s1134] sm:$0xff]
      %v1136 = vld [vmem:[%s1134 + $0x8] sm:$0xff]
      %v1137 = vld [vmem:[%s1134 + $0x10] sm:$0xff]
      %v1138 = vld [vmem:[%s1134 + $0x18] sm:$0xff]
      %v1139 = vld [vmem:[%s1134 + $0x20] sm:$0xff]
      %v1140 = vld [vmem:[%s1134 + $0x28] sm:$0xff]
      %v1141 = vld [vmem:[%s1134 + $0x30] sm:$0xff]
      %v1142 = vld [vmem:[%s1134 + $0x38] sm:$0xff]
      %v1143 = vld [vmem:[%s1134 + $0x40] sm:$0xff]
      %v1144 = vld [vmem:[%s1134 + $0x48] sm:$0xff]
      %v1145 = vpack.c.bf16 %v1136, %v1135
      %v1146 = vpack.c.bf16 %v1138, %v1137
      %v1147 = vpack.c.bf16 %v1140, %v1139
      %v1148 = vpack.c.bf16 %v1142, %v1141
      %v1149 = vpack.c.bf16 %v1144, %v1143
      %s1150 = scalar_lea.vmem %s1, 32
      %v1151 = vld [vmem:[%s1150] sm:$0xf]
      %v1153 = vsel %vm229, %v1145, 0
      %v1156 = vsel %vm229, %v1146, 0
      %v1159 = vsel %vm229, %v1147, 0
      %v1162 = vsel %vm229, %v1148, 0
      %v1165 = vsel %vm229, %v1149, 0
      %v1168 = vsel %vm245, %v1151, 0
      %1170 = vmatprep.subr.bf16.mxu0 0
      %1171 = vmatpush1.bf16.msra.mxu0 %v1168
      %1172 = vmatprep.subr.bf16.mxu0 0
      %1173 = vmatpush1.bf16.msra.mxu0 0
      %1174 = vmatprep.subr.bf16.mxu0 0
      %1175 = vmatpush1.bf16.msra.mxu0 0
      %1176 = vmatprep.subr.bf16.mxu0 0
      %1177 = vmatpush1.bf16.msra.mxu0 0
      %1178 = vmatprep.subr.bf16.mxu0 0
      %1179 = vmatpush1.bf16.msra.mxu0 0
      %1180 = vmatprep.subr.bf16.mxu0 0
      %1181 = vmatpush1.bf16.msra.mxu0 0
      %1182 = vmatprep.subr.bf16.mxu0 0
      %1183 = vmatpush1.bf16.msra.mxu0 0
      %1184 = vmatprep.subr.bf16.mxu0 0
      %1185 = vmatpush1.bf16.msra.mxu0 0
      %1186 = vmatprep.subr.bf16.mxu0 0
      %1187 = vmatpush1.bf16.msra.mxu0 0
      %1188 = vmatprep.subr.bf16.mxu0 0
      %1189 = vmatpush1.bf16.msra.mxu0 0
      %1190 = vmatprep.subr.bf16.mxu0 0
      %1191 = vmatpush1.bf16.msra.mxu0 0
      %1192 = vmatprep.subr.bf16.mxu0 0
      %1193 = vmatpush1.bf16.msra.mxu0 0
      %1194 = vmatprep.subr.bf16.mxu0 0
      %1195 = vmatpush1.bf16.msra.mxu0 0
      %1196 = vmatprep.subr.bf16.mxu0 0
      %1197 = vmatpush1.bf16.msra.mxu0 0
      %1198 = vmatprep.subr.bf16.mxu0 0
      %1199 = vmatpush1.bf16.msra.mxu0 0
      %1200 = vmatprep.subr.bf16.mxu0 0
      %1201 = vmatpush1.bf16.msra.mxu0 0
      %1202 = vmatprep.mubr.bf16.mxu0 0
      %1203 = vmatmul.mubr.bf16.gmra.mrb[0].mxu0 %v1153
      %v1204 = vpop.f32.mrb[0].mxu0
      %v1205 = vadd.f32 0.0, %v1204
      %v1206 = vpop.f32.mrb[0].mxu0
      %v1207 = vpop.f32.mrb[0].mxu0
      %v1208 = vadd.f32 0.0, %v1207
      %v1209 = vpop.f32.mrb[0].mxu0
      %1210 = vmatprep.mubr.bf16.mxu0 0
      %1211 = vmatmul.mubr.bf16.gmra.mrb[0].mxu0 %v1156
      %v1212 = vpop.f32.mrb[0].mxu0
      %v1213 = vadd.f32 0.0, %v1212
      %v1214 = vpop.f32.mrb[0].mxu0
      %v1215 = vpop.f32.mrb[0].mxu0
      %v1216 = vadd.f32 0.0, %v1215
      %v1217 = vpop.f32.mrb[0].mxu0
      %1218 = vmatprep.mubr.bf16.mxu0 0
      %1219 = vmatmul.mubr.bf16.gmra.mrb[0].mxu0 %v1159
      %v1220 = vpop.f32.mrb[0].mxu0
      %v1221 = vadd.f32 0.0, %v1220
      %v1222 = vpop.f32.mrb[0].mxu0
      %v1223 = vpop.f32.mrb[0].mxu0
      %v1224 = vadd.f32 0.0, %v1223
      %v1225 = vpop.f32.mrb[0].mxu0
      %1226 = vmatprep.mubr.bf16.mxu0 0
      %1227 = vmatmul.mubr.bf16.gmra.mrb[0].mxu0 %v1162
      %v1228 = vpop.f32.mrb[0].mxu0
      %v1229 = vadd.f32 0.0, %v1228
      %v1230 = vpop.f32.mrb[0].mxu0
      %v1231 = vpop.f32.mrb[0].mxu0
      %v1232 = vadd.f32 0.0, %v1231
      %v1233 = vpop.f32.mrb[0].mxu0
      %1234 = vmatprep.mubr.bf16.mxu0 0
      %1235 = vmatmul.mubr.bf16.gmra.mrb[0].mxu0 %v1165
      %v1236 = vpop.f32.mrb[0].mxu0
      %v1237 = vadd.f32 0.0, %v1236
      %v1238 = vpop.f32.mrb[0].mxu0
      %v1239 = vpop.f32.mrb[0].mxu0
      %v1240 = vadd.f32 0.0, %v1239
      %v1241 = vpop.f32.mrb[0].mxu0
      %1242 = vdwg.mxu0
      %v1243 = vadd.f32 %v1123, %v1205
      %v1244 = vadd.f32 %v1124, %v1208
      %v1245 = vadd.f32 %v1125, %v1213
      %v1246 = vadd.f32 %v1126, %v1216
      %v1247 = vadd.f32 %v1127, %v1221
      %v1248 = vadd.f32 %v1128, %v1224
      %v1249 = vadd.f32 %v1129, %v1229
      %v1250 = vadd.f32 %v1130, %v1232
      %v1251 = vadd.f32 %v1131, %v1237
      %v1252 = vadd.f32 %v1132, %v1240
      %v1253 = vld [vmem:[%s2] sm:$0x1]
      %v1255 = vlaneseq
      %v1256 = vshrl.u32 %v1255, 7
      %v1257 = vsub.s32 0, %v1256
      %v1258 = vrot.slane %v1253, %v1257
      %v1260 = vadd.f32 %v1243, %v1258
      %v1261 = vadd.f32 %v1244, %v1258
      %v1262 = vadd.f32 %v1245, %v1258
      %v1263 = vadd.f32 %v1246, %v1258
      %v1264 = vadd.f32 %v1247, %v1258
      %v1265 = vadd.f32 %v1248, %v1258
      %v1266 = vadd.f32 %v1249, %v1258
      %v1267 = vadd.f32 %v1250, %v1258
      %v1268 = vadd.f32 %v1251, %v1258
      %v1269 = vadd.f32 %v1252, %v1258
      %1270 = vst [vmem:[%s188] sm:$0xff] %v1260
      %1271 = vst [vmem:[%s188 + $0x8] sm:$0xff] %v1261
      %1272 = vst [vmem:[%s188 + $0x10] sm:$0xff] %v1262
      %1273 = vst [vmem:[%s188 + $0x18] sm:$0xff] %v1263
      %1274 = vst [vmem:[%s188 + $0x20] sm:$0xff] %v1264
      %1275 = vst [vmem:[%s188 + $0x28] sm:$0xff] %v1265
      %1276 = vst [vmem:[%s188 + $0x30] sm:$0xff] %v1266
      %1277 = vst [vmem:[%s188 + $0x38] sm:$0xff] %v1267
      %1278 = vst [vmem:[%s188 + $0x40] sm:$0xff] %v1268
      %1279 = vst [vmem:[%s188 + $0x48] sm:$0xff] %v1269
      %s1280 = sadd.s32 %s18, %s19
      %s1281 = smul.u32 10, %s1280
      %p1282 = scmp.lt.s32.totalorder %s1281, 19
      %s1283 = scalar_select %p1282, %s1281, 19
      %s1284 = smul.addr %s1283, 8
      %s1285 = scalar_lea.vmem %s3, %s1284
      // Predicated region
      $region33: #{adapter_forward.11} parent=31 // pred_check
        %p1286 = pneg %p114
      $region34: #{adapter_forward.11} parent=31 // pred_check_branch
        %1288 = sbr.rel (%p1286) target = $region36
      $region35: #{adapter_forward.11} parent=31 // pred_region
        %s1289 = sadd.s32 %s18, %s19
        %s1290 = smul.u32 10, %s1289
      $region36: #{adapter_forward.11} parent=31 // pred_fallthru
        _
    $region32: #{adapter_forward.11} parent=5 // pred_fallthru
      _
    %p1291 = scmp.le.s32.totalorder 2, %s9
    // Predicated region
    $region37: #{adapter_forward.11} parent=5 // pred_check
      %p1292 = pneg %p1291
    $region38: #{adapter_forward.11} parent=5 // pred_check_branch
      %1294 = sbr.rel (%p1292) target = $region40
    $region39: #{adapter_forward.11} parent=5 // pred_region
      %s1295 = ssub.s32 %s9, 2
      // Predicated region
      $region41: #{adapter_forward.11} parent=39 // pred_check
        %p1296 = pneg %p120
      $region42: #{adapter_forward.11} parent=39 // pred_check_branch
        %1298 = sbr.rel (%p1296) target = $region44
      $region43: #{adapter_forward.11} parent=39 // pred_region
        %s1299 = sadd.s32 %s20, %s21
        %s1300 = smul.u32 10, %s1299
        %p1301 = scmp.lt.s32.totalorder %s1300, 19
        %s1302 = scalar_select %p1301, %s1300, 19
        %s1303 = smul.addr %s1302, 8
        %s1304 = scalar_lea.vmem %s3, %s1303
      $region44: #{adapter_forward.11} parent=39 // pred_fallthru
        _
    $region40: #{adapter_forward.11} parent=5 // pred_fallthru
      _
  $region6: #{adapter_forward.11} parent=0 // loop_footer
    %s13 = sadd.s32 1, %s9
  $region7: #{adapter_forward.11} parent=0 // loop_footer_branch
    %8 = sbr.rel target = $region3
  $region8: #{adapter_forward.11} parent=0 // loop_exit
    _

// kernel: adapter_forward.15
$region0: #{adapter_forward.15}
  #allocation0 [shape = 'u32[]', space=smem, size = 0x4, offset = 0x4, fixed_abs, tag = 'smem constant byte address 0x4 - core index']
  #allocation1 [shape = 'u32[144,128]{1,0:T(1,128)}', space=vmem, size = 0x12000, scoped, tag = 'internal scratch']
  %s0 = inlined_call_operand.vmem [shape: f32[256,8], index: 0, kind: input, shape index: {}]
  %s1 = inlined_call_operand.vmem [shape: bf16[9,8,128], index: 1, kind: input, shape index: {}]
  %s2 = inlined_call_operand.vmem [shape: f32[1,128], index: 2, kind: input, shape index: {}]
  %s3 = inlined_call_operand.vmem [shape: f32[48,128], index: 3, kind: output, shape index: {}]
  %s4 = sld [smem:[#allocation0]]
  $region45: #{adapter_forward.15} parent=0
    _
  %s6 = ssub.s32 1, %s4
  %s7 = scalar_select 0, %s6, %s4
  loop: start=0, step=1, limit=4
  $region2: #{adapter_forward.15} parent=0 // loop_pre_header
    _
  $region3: #{adapter_forward.15} parent=0 // loop_header
    %s9 = sphi 0, %s13
    %p10 = scmp.ge.s32.totalorder %s9, 4
    %s16 = sphi 0, %s28
    %s17 = sphi 0, %s24
    %s18 = sphi 0, %s16
    %s19 = sphi 0, %s17
    %s20 = sphi 0, %s18
    %s21 = sphi 0, %s19
    %s31 = sphi 0, %s33
    %s34 = sphi 0, %s31
    %s35 = sphi 0, %s34
    %s51 = sphi 0, %s35
    %s55 = sphi 0, %s55
    %s57 = sphi 0, %s55
    %s58 = sphi 0, %s57
    %s72 = sphi 0, %s58
    %s76 = sphi 0, %s76
    %s78 = sphi 0, %s76
    %s79 = sphi 0, %s78
    %s93 = sphi 0, %s79
    %s101 = sphi 0, %s103
    %s104 = sphi 0, %s101
    %s105 = sphi 0, %s104
    %s121 = sphi 0, %s105
  $region4: #{adapter_forward.15} parent=0 // loop_header_branch
    %12 = sbr.rel (%p10) target = $region8
  $region5: #{adapter_forward.15} parent=0 // loop_body
    %s14 = ssub.s32 %s9, 1
    %s15 = ssub.s32 %s9, 2
    %s22 = sadd.s32 1, %s17
    %p23 = scmp.ge.s32.totalorder %s22, 1
    %s24 = scalar_select %p23, 0, %s22
    %s25 = sadd.s32 1, %s16
    %s26 = scalar_select %p23, %s25, %s16
    %p27 = scmp.ge.s32.totalorder %s26, 2
    %s28 = scalar_select %p27, 0, %s26
    %s29 = ssub.s32 %s16, %s28
    %p30 = scmp.eq.s32.totalorder %s29, 0
    %s32 = sadd.s32 %s31, 1
    %s33 = scalar_select %p30, %s31, %s32
    %p36 = pneg %p30
    %p37 = scmp.eq.s32.totalorder %s9, 1
    %p38 = por %p36, %p37
    %p39 = scmp.ne.s32.totalorder %s31, %s34
    %p40 = scmp.eq.s32.totalorder %s9, 0
    %p41 = por %p39, %p40
    %p42 = scmp.ne.s32.totalorder %s31, %s34
    %p43 = scmp.eq.s32.totalorder %s14, 1
    %p44 = por %p42, %p43
    %p45 = scmp.ne.s32.totalorder %s34, %s35
    %p46 = scmp.eq.s32.totalorder %s14, 0
    %p47 = por %p45, %p46
    %p48 = scmp.ne.s32.totalorder %s34, %s35
    %p49 = scmp.eq.s32.totalorder %s15, 1
    %p50 = por %p48, %p49
    %p52 = scmp.ne.s32.totalorder %s35, %s51
    %p53 = scmp.eq.s32.totalorder %s15, 0
    %p54 = por %p52, %p53
    %s56 = sadd.s32 %s55, 1
    %p59 = scmp.eq.s32.totalorder %s9, 1
    %p60 = scmp.ne.s32.totalorder %s55, %s57
    %p61 = scmp.eq.s32.totalorder %s9, 0
    %p62 = por %p60, %p61
    %p63 = scmp.ne.s32.totalorder %s55, %s57
    %p64 = scmp.eq.s32.totalorder %s14, 1
    %p65 = por %p63, %p64
    %p66 = scmp.ne.s32.totalorder %s57, %s58
    %p67 = scmp.eq.s32.totalorder %s14, 0
    %p68 = por %p66, %p67
    %p69 = scmp.ne.s32.totalorder %s57, %s58
    %p70 = scmp.eq.s32.totalorder %s15, 1
    %p71 = por %p69, %p70
    %p73 = scmp.ne.s32.totalorder %s58, %s72
    %p74 = scmp.eq.s32.totalorder %s15, 0
    %p75 = por %p73, %p74
    %s77 = sadd.s32 %s76, 1
    %p80 = scmp.eq.s32.totalorder %s9, 1
    %p81 = scmp.ne.s32.totalorder %s76, %s78
    %p82 = scmp.eq.s32.totalorder %s9, 0
    %p83 = por %p81, %p82
    %p84 = scmp.ne.s32.totalorder %s76, %s78
    %p85 = scmp.eq.s32.totalorder %s14, 1
    %p86 = por %p84, %p85
    %p87 = scmp.ne.s32.totalorder %s78, %s79
    %p88 = scmp.eq.s32.totalorder %s14, 0
    %p89 = por %p87, %p88
    %p90 = scmp.ne.s32.totalorder %s78, %s79
    %p91 = scmp.eq.s32.totalorder %s15, 1
    %p92 = por %p90, %p91
    %p94 = scmp.ne.s32.totalorder %s79, %s93
    %p95 = scmp.eq.s32.totalorder %s15, 0
    %p96 = por %p94, %p95
    %s97 = sadd.s32 %s16, %s17
    %s98 = sadd.s32 %s28, %s24
    %s99 = ssub.s32 %s97, %s98
    %p100 = scmp.eq.s32.totalorder %s99, 0
    %s102 = sadd.s32 %s101, 1
    %s103 = scalar_select %p100, %s101, %s102
    %p106 = pneg %p100
    %p107 = scmp.eq.s32.totalorder %s9, 1
    %p108 = por %p106, %p107
    %p109 = scmp.ne.s32.totalorder %s101, %s104
    %p110 = scmp.eq.s32.totalorder %s9, 0
    %p111 = por %p109, %p110
    %p112 = scmp.ne.s32.totalorder %s101, %s104
    %p113 = scmp.eq.s32.totalorder %s14, 1
    %p114 = por %p112, %p113
    %p115 = scmp.ne.s32.totalorder %s104, %s105
    %p116 = scmp.eq.s32.totalorder %s14, 0
    %p117 = por %p115, %p116
    %p118 = scmp.ne.s32.totalorder %s104, %s105
    %p119 = scmp.eq.s32.totalorder %s15, 1
    %p120 = por %p118, %p119
    %p122 = scmp.ne.s32.totalorder %s105, %s121
    %p123 = scmp.eq.s32.totalorder %s15, 0
    %p124 = por %p122, %p123
    %p125 = scmp.le.s32.totalorder 1, %s9
    %p126 = scmp.lt.s32.totalorder %s9, 3
    %p127 = pnand %p125, %p126
    %p128 = pneg %p127
    // Predicated region
    $region9: #{adapter_forward.15} parent=5 // pred_check
      _
    $region10: #{adapter_forward.15} parent=5 // pred_check_branch
      %130 = sbr.rel (%p127) target = $region12
    $region11: #{adapter_forward.15} parent=5 // pred_region
      %s131 = ssub.s32 %s9, 1
      // Predicated region
      $region13: #{adapter_forward.15} parent=11 // pred_check
        %p132 = pneg %p68
      $region14: #{adapter_forward.15} parent=11 // pred_check_branch
        %134 = sbr.rel (%p132) target = $region16
      $region15: #{adapter_forward.15} parent=11 // pred_region
        _
      $region16: #{adapter_forward.15} parent=11 // pred_fallthru
        _
      // Predicated region
      $region17: #{adapter_forward.15} parent=11 // pred_check
        %p135 = pneg %p89
      $region18: #{adapter_forward.15} parent=11 // pred_check_branch
        %137 = sbr.rel (%p135) target = $region20
      $region19: #{adapter_forward.15} parent=11 // pred_region
        _
      $region20: #{adapter_forward.15} parent=11 // pred_fallthru
        _
    $region12: #{adapter_forward.15} parent=5 // pred_fallthru
      _
    %p138 = scmp.lt.s32.totalorder %s9, 2
    // Predicated region
    $region21: #{adapter_forward.15} parent=5 // pred_check
      %p139 = pneg %p138
    $region22: #{adapter_forward.15} parent=5 // pred_check_branch
      %141 = sbr.rel (%p139) target = $region24
    $region23: #{adapter_forward.15} parent=5 // pred_region
      // Predicated region
      $region25: #{adapter_forward.15} parent=23 // pred_check
        %p142 = pneg %p41
      $region26: #{adapter_forward.15} parent=23 // pred_check_branch
        %144 = sbr.rel (%p142) target = $region28
      $region27: #{adapter_forward.15} parent=23 // pred_region
        %s145 = smul.u32 16, %s16
        %p146 = scmp.lt.s32.totalorder %s145, 31
        %s147 = scalar_select %p146, %s145, 31
        %s148 = smul.addr %s147, 8
        %s149 = scalar_lea.vmem %s0, %s148
        %s150 = smul.u32 16, %s16
      $region28: #{adapter_forward.15} parent=23 // pred_fallthru
        _
    $region24: #{adapter_forward.15} parent=5 // pred_fallthru
      _
    %p151 = scmp.le.s32.totalorder 1, %s9
    %p152 = scmp.lt.s32.totalorder %s9, 3
    %p153 = pnand %p151, %p152
    %p154 = pneg %p153
    // Predicated region
    $region29: #{adapter_forward.15} parent=5 // pred_check
      _
    $region30: #{adapter_forward.15} parent=5 // pred_check_branch
      %156 = sbr.rel (%p153) target = $region32
    $region31: #{adapter_forward.15} parent=5 // pred_region
      %s157 = ssub.s32 %s9, 1
      %s158 = smul.u32 16, %s18
      %p159 = scmp.lt.s32.totalorder %s158, 31
      %s160 = scalar_select %p159, %s158, 31
      %s161 = smul.addr %s160, 8
      %s162 = scalar_lea.vmem %s0, %s161
      %p163 = pneg %p47
      %p164 = pneg %p44
      %p165 = pneg %p68
      %p166 = pneg %p65
      %p167 = pneg %p89
      %p168 = pneg %p86
      %p169 = pneg %p117
      %p170 = pneg %p114
      %s171 = sadd.s32 %s18, %s19
      %s172 = smul.u32 3, %s171
      %p173 = scmp.lt.s32.totalorder %s172, 5
      %s174 = scalar_select %p173, %s172, 5
      %s175 = smul.addr %s174, 8
      %s176 = scalar_lea.vmem %s3, %s175
      %s177 = smul.u32 16, %s18
      %p178 = scmp.lt.s32.totalorder %s177, 31
      %s179 = scalar_select %p178, %s177, 31
      %s180 = smul.addr %s179, 8
      %s181 = scalar_lea.vmem %s0, %s180
      %s182 = smul.u32 16, %s18
      %s183 = sadd.s32 %s18, %s19
      %s184 = smul.u32 3, %s183
      %p185 = scmp.lt.s32.totalorder %s184, 5
      %s186 = scalar_select %p185, %s184, 5
      %s187 = smul.addr %s186, 8
      %s188 = scalar_lea.vmem %s3, %s187
      %s189 = sadd.s32 %s18, %s19
      %s190 = smul.u32 3, %s189
      %s192 = smul.u32 %s19, 24
      %s193 = scalar_lea.vmem %s181, %s192
      %v194 = vld [vmem:[%s193] sm:$0xff]
      %v195 = vld [vmem:[%s193 + $0x8] sm:$0xff]
      %v196 = vld [vmem:[%s193 + $0x10] sm:$0xff]
      %v197 = vpack.c.bf16 %v195, %v194
      %v198 = vpack.c.bf16 %v196, %v196
      %v199 = vld [vmem:[%s1] sm:$0xf]
      %s200 = sadd.s32 %s192, 32
      %s201 = scalar_lea.vmem %s181, %s200
      %v202 = vld [vmem:[%s201] sm:$0xff]
      %v203 = vld [vmem:[%s201 + $0x8] sm:$0xff]
      %v204 = vld [vmem:[%s201 + $0x10] sm:$0xff]
      %v205 = vpack.c.bf16 %v203, %v202
      %v206 = vpack.c.bf16 %v204, %v204
      %s207 = scalar_lea.vmem %s1, 4
      %v208 = vld [vmem:[%s207] sm:$0xf]
      %vm209 = vcmask 64512
      %v211 = vsel %vm209, %v205, 0
      %v214 = vsel %vm209, %v206, 0
      %vm216 = vcmask 1043456
      %v218 = vsel %vm216, %v208, 0
      %220 = vmatprep.subr.bf16.mxu0 0
      %221 = vmatpush1.bf16.msra.mxu0 %v218
      %222 = vmatprep.subr.bf16.mxu0 0
      %223 = vmatpush1.bf16.msra.mxu0 0
      %224 = vmatprep.subr.bf16.mxu0 0
      %225 = vmatpush1.bf16.msra.mxu0 0
      %226 = vmatprep.subr.bf16.mxu0 0
      %227 = vmatpush1.bf16.msra.mxu0 0
      %228 = vmatprep.subr.bf16.mxu0 0
      %229 = vmatpush1.bf16.msra.mxu0 0
      %230 = vmatprep.subr.bf16.mxu0 0
      %231 = vmatpush1.bf16.msra.mxu0 0
      %232 = vmatprep.subr.bf16.mxu0 0
      %233 = vmatpush1.bf16.msra.mxu0 0
      %234 = vmatprep.subr.bf16.mxu0 0
      %235 = vmatpush1.bf16.msra.mxu0 0
      %236 = vmatprep.subr.bf16.mxu0 0
      %237 = vmatpush1.bf16.msra.mxu0 0
      %238 = vmatprep.subr.bf16.mxu0 0
      %239 = vmatpush1.bf16.msra.mxu0 0
      %240 = vmatprep.subr.bf16.mxu0 0
      %241 = vmatpush1.bf16.msra.mxu0 0
      %242 = vmatprep.subr.bf16.mxu0 0
      %243 = vmatpush1.bf16.msra.mxu0 0
      %244 = vmatprep.subr.bf16.mxu0 0
      %245 = vmatpush1.bf16.msra.mxu0 0
      %246 = vmatprep.subr.bf16.mxu0 0
      %247 = vmatpush1.bf16.msra.mxu0 0
      %248 = vmatprep.subr.bf16.mxu0 0
      %249 = vmatpush1.bf16.msra.mxu0 0
      %250 = vmatprep.subr.bf16.mxu0 0
      %251 = vmatpush1.bf16.msra.mxu0 0
      %252 = vmatprep.mubr.bf16.mxu0 0
      %253 = vmatmul.mubr.bf16.gmra.mrb[0].mxu0 %v211
      %v254 = vpop.f32.mrb[0].mxu0
      %v255 = vadd.f32 0.0, %v254
      %v256 = vpop.f32.mrb[0].mxu0
      %v257 = vpop.f32.mrb[0].mxu0
      %v258 = vadd.f32 0.0, %v257
      %v259 = vpop.f32.mrb[0].mxu0
      %260 = vmatprep.mubr.bf16.mxu0 0
      %261 = vmatmul.mubr.bf16.gmra.mrb[0].mxu0 %v214
      %v262 = vpop.f32.mrb[0].mxu0
      %v263 = vadd.f32 0.0, %v262
      %v264 = vpop.f32.mrb[0].mxu0
      %v265 = vpop.f32.mrb[0].mxu0
      %v266 = vpop.f32.mrb[0].mxu0
      %267 = vdwg.mxu0
      %v269 = vsel %vm209, %v197, 0
      %v272 = vsel %vm209, %v198, 0
      %v275 = vsel %vm216, %v199, 0
      %277 = vmatprep.subr.bf16.mxu0 0
      %278 = vmatpush1.bf16.msra.mxu0 %v275
      %279 = vmatprep.subr.bf16.mxu0 0
      %280 = vmatpush1.bf16.msra.mxu0 0
      %281 = vmatprep.subr.bf16.mxu0 0
      %282 = vmatpush1.bf16.msra.mxu0 0
      %283 = vmatprep.subr.bf16.mxu0 0
      %284 = vmatpush1.bf16.msra.mxu0 0
      %285 = vmatprep.subr.bf16.mxu0 0
      %286 = vmatpush1.bf16.msra.mxu0 0
      %287 = vmatprep.subr.bf16.mxu0 0
      %288 = vmatpush1.bf16.msra.mxu0 0
      %289 = vmatprep.subr.bf16.mxu0 0
      %290 = vmatpush1.bf16.msra.mxu0 0
      %291 = vmatprep.subr.bf16.mxu0 0
      %292 = vmatpush1.bf16.msra.mxu0 0
      %293 = vmatprep.subr.bf16.mxu0 0
      %294 = vmatpush1.bf16.msra.mxu0 0
      %295 = vmatprep.subr.bf16.mxu0 0
      %296 = vmatpush1.bf16.msra.mxu0 0
      %297 = vmatprep.subr.bf16.mxu0 0
      %298 = vmatpush1.bf16.msra.mxu0 0
      %299 = vmatprep.subr.bf16.mxu0 0
      %300 = vmatpush1.bf16.msra.mxu0 0
      %301 = vmatprep.subr.bf16.mxu0 0
      %302 = vmatpush1.bf16.msra.mxu0 0
      %303 = vmatprep.subr.bf16.mxu0 0
      %304 = vmatpush1.bf16.msra.mxu0 0
      %305 = vmatprep.subr.bf16.mxu0 0
      %306 = vmatpush1.bf16.msra.mxu0 0
      %307 = vmatprep.subr.bf16.mxu0 0
      %308 = vmatpush1.bf16.msra.mxu0 0
      %309 = vmatprep.mubr.bf16.mxu0 0
      %310 = vmatmul.mubr.bf16.gmra.mrb[0].mxu0 %v269
      %v311 = vpop.f32.mrb[0].mxu0
      %v312 = vadd.f32 %v255, %v311
      %v313 = vpop.f32.mrb[0].mxu0
      %v314 = vpop.f32.mrb[0].mxu0
      %v315 = vadd.f32 %v258, %v314
      %v316 = vpop.f32.mrb[0].mxu0
      %317 = vmatprep.mubr.bf16.mxu0 0
      %318 = vmatmul.mubr.bf16.gmra.mrb[0].mxu0 %v272
      %v319 = vpop.f32.mrb[0].mxu0
      %v320 = vadd.f32 %v263, %v319
      %v321 = vpop.f32.mrb[0].mxu0
      %v322 = vpop.f32.mrb[0].mxu0
      %v323 = vpop.f32.mrb[0].mxu0
      %324 = vdwg.mxu0
      %s325 = sadd.s32 %s192, 1
      %s326 = scalar_lea.vmem %s181, %s325
      %v327 = vld [vmem:[%s326] sm:$0xff]
      %v328 = vld [vmem:[%s326 + $0x8] sm:$0xff]
      %v329 = vld [vmem:[%s326 + $0x10] sm:$0xff]
      %v330 = vpack.c.bf16 %v328, %v327
      %v331 = vpack.c.bf16 %v329, %v329
      %s332 = scalar_lea.vmem %s1, 8
      %v333 = vld [vmem:[%s332] sm:$0xf]
      %v335 = vsel %vm209, %v330, 0
      %v338 = vsel %vm209, %v331, 0
      %v341 = vsel %vm216, %v333, 0
      %343 = vmatprep.subr.bf16.mxu0 0
      %344 = vmatpush1.bf16.msra.mxu0 %v341
      %345 = vmatprep.subr.bf16.mxu0 0
      %346 = vmatpush1.bf16.msra.mxu0 0
      %347 = vmatprep.subr.bf16.mxu0 0
      %348 = vmatpush1.bf16.msra.mxu0 0
      %349 = vmatprep.subr.bf16.mxu0 0
      %350 = vmatpush1.bf16.msra.mxu0 0
      %351 = vmatprep.subr.bf16.mxu0 0
      %352 = vmatpush1.bf16.msra.mxu0 0
      %353 = vmatprep.subr.bf16.mxu0 0
      %354 = vmatpush1.bf16.msra.mxu0 0
      %355 = vmatprep.subr.bf16.mxu0 0
      %356 = vmatpush1.bf16.msra.mxu0 0
      %357 = vmatprep.subr.bf16.mxu0 0
      %358 = vmatpush1.bf16.msra.mxu0 0
      %359 = vmatprep.subr.bf16.mxu0 0
      %360 = vmatpush1.bf16.msra.mxu0 0
      %361 = vmatprep.subr.bf16.mxu0 0
      %362 = vmatpush1.bf16.msra.mxu0 0
      %363 = vmatprep.subr.bf16.mxu0 0
      %364 = vmatpush1.bf16.msra.mxu0 0
      %365 = vmatprep.subr.bf16.mxu0 0
      %366 = vmatpush1.bf16.msra.mxu0 0
      %367 = vmatprep.subr.bf16.mxu0 0
      %368 = vmatpush1.bf16.msra.mxu0 0
      %369 = vmatprep.subr.bf16.mxu0 0
      %370 = vmatpush1.bf16.msra.mxu0 0
      %371 = vmatprep.subr.bf16.mxu0 0
      %372 = vmatpush1.bf16.msra.mxu0 0
      %373 = vmatprep.subr.bf16.mxu0 0
      %374 = vmatpush1.bf16.msra.mxu0 0
      %375 = vmatprep.mubr.bf16.mxu0 0
      %376 = vmatmul.mubr.bf16.gmra.mrb[0].mxu0 %v335
      %v377 = vpop.f32.mrb[0].mxu0
      %v378 = vadd.f32 0.0, %v377
      %v379 = vpop.f32.mrb[0].mxu0
      %v380 = vpop.f32.mrb[0].mxu0
      %v381 = vadd.f32 0.0, %v380
      %v382 = vpop.f32.mrb[0].mxu0
      %383 = vmatprep.mubr.bf16.mxu0 0
      %384 = vmatmul.mubr.bf16.gmra.mrb[0].mxu0 %v338
      %v385 = vpop.f32.mrb[0].mxu0
      %v386 = vadd.f32 0.0, %v385
      %v387 = vpop.f32.mrb[0].mxu0
      %v388 = vpop.f32.mrb[0].mxu0
      %v389 = vpop.f32.mrb[0].mxu0
      %390 = vdwg.mxu0
      %v391 = vadd.f32 %v312, %v378
      %v392 = vadd.f32 %v315, %v381
      %v393 = vadd.f32 %v320, %v386
      %s394 = sadd.s32 %s192, 64
      %s395 = scalar_lea.vmem %s181, %s394
      %v396 = vld [vmem:[%s395] sm:$0xff]
      %v397 = vld [vmem:[%s395 + $0x8] sm:$0xff]
      %v398 = vld [vmem:[%s395 + $0x10] sm:$0xff]
      %v399 = vpack.c.bf16 %v397, %v396
      %v400 = vpack.c.bf16 %v398, %v398
      %s401 = scalar_lea.vmem %s1, 12
      %v402 = vld [vmem:[%s401] sm:$0xf]
      %v404 = vsel %vm209, %v399, 0
      %v407 = vsel %vm209, %v400, 0
      %v410 = vsel %vm216, %v402, 0
      %412 = vmatprep.subr.bf16.mxu0 0
      %413 = vmatpush1.bf16.msra.mxu0 %v410
      %414 = vmatprep.subr.bf16.mxu0 0
      %415 = vmatpush1.bf16.msra.mxu0 0
      %416 = vmatprep.subr.bf16.mxu0 0
      %417 = vmatpush1.bf16.msra.mxu0 0
      %418 = vmatprep.subr.bf16.mxu0 0
      %419 = vmatpush1.bf16.msra.mxu0 0
      %420 = vmatprep.subr.bf16.mxu0 0
      %421 = vmatpush1.bf16.msra.mxu0 0
      %422 = vmatprep.subr.bf16.mxu0 0
      %423 = vmatpush1.bf16.msra.mxu0 0
      %424 = vmatprep.subr.bf16.mxu0 0
      %425 = vmatpush1.bf16.msra.mxu0 0
      %426 = vmatprep.subr.bf16.mxu0 0
      %427 = vmatpush1.bf16.msra.mxu0 0
      %428 = vmatprep.subr.bf16.mxu0 0
      %429 = vmatpush1.bf16.msra.mxu0 0
      %430 = vmatprep.subr.bf16.mxu0 0
      %431 = vmatpush1.bf16.msra.mxu0 0
      %432 = vmatprep.subr.bf16.mxu0 0
      %433 = vmatpush1.bf16.msra.mxu0 0
      %434 = vmatprep.subr.bf16.mxu0 0
      %435 = vmatpush1.bf16.msra.mxu0 0
      %436 = vmatprep.subr.bf16.mxu0 0
      %437 = vmatpush1.bf16.msra.mxu0 0
      %438 = vmatprep.subr.bf16.mxu0 0
      %439 = vmatpush1.bf16.msra.mxu0 0
      %440 = vmatprep.subr.bf16.mxu0 0
      %441 = vmatpush1.bf16.msra.mxu0 0
      %442 = vmatprep.subr.bf16.mxu0 0
      %443 = vmatpush1.bf16.msra.mxu0 0
      %444 = vmatprep.mubr.bf16.mxu0 0
      %445 = vmatmul.mubr.bf16.gmra.mrb[0].mxu0 %v404
      %v446 = vpop.f32.mrb[0].mxu0
      %v447 = vadd.f32 0.0, %v446
      %v448 = vpop.f32.mrb[0].mxu0
      %v449 = vpop.f32.mrb[0].mxu0
      %v450 = vadd.f32 0.0, %v449
      %v451 = vpop.f32.mrb[0].mxu0
      %452 = vmatprep.mubr.bf16.mxu0 0
      %453 = vmatmul.mubr.bf16.gmra.mrb[0].mxu0 %v407
      %v454 = vpop.f32.mrb[0].mxu0
      %v455 = vadd.f32 0.0, %v454
      %v456 = vpop.f32.mrb[0].mxu0
      %v457 = vpop.f32.mrb[0].mxu0
      %v458 = vpop.f32.mrb[0].mxu0
      %459 = vdwg.mxu0
      %v460 = vadd.f32 %v391, %v447
      %v461 = vadd.f32 %v392, %v450
      %v462 = vadd.f32 %v393, %v455
      %s463 = sadd.s32 %s192, 96
      %s464 = scalar_lea.vmem %s181, %s463
      %v465 = vld [vmem:[%s464] sm:$0xff]
      %v466 = vld [vmem:[%s464 + $0x8] sm:$0xff]
      %v467 = vld [vmem:[%s464 + $0x10] sm:$0xff]
      %v468 = vpack.c.bf16 %v466, %v465
      %v469 = vpack.c.bf16 %v467, %v467
      %s470 = scalar_lea.vmem %s1, 16
      %v471 = vld [vmem:[%s470] sm:$0xf]
      %v473 = vsel %vm209, %v468, 0
      %v476 = vsel %vm209, %v469, 0
      %v479 = vsel %vm216, %v471, 0
      %481 = vmatprep.subr.bf16.mxu0 0
      %482 = vmatpush1.bf16.msra.mxu0 %v479
      %483 = vmatprep.subr.bf16.mxu0 0
      %484 = vmatpush1.bf16.msra.mxu0 0
      %485 = vmatprep.subr.bf16.mxu0 0
      %486 = vmatpush1.bf16.msra.mxu0 0
      %487 = vmatprep.subr.bf16.mxu0 0
      %488 = vmatpush1.bf16.msra.mxu0 0
      %489 = vmatprep.subr.bf16.mxu0 0
      %490 = vmatpush1.bf16.msra.mxu0 0
      %491 = vmatprep.subr.bf16.mxu0 0
      %492 = vmatpush1.bf16.msra.mxu0 0
      %493 = vmatprep.subr.bf16.mxu0 0
      %494 = vmatpush1.bf16.msra.mxu0 0
      %495 = vmatprep.subr.bf16.mxu0 0
      %496 = vmatpush1.bf16.msra.mxu0 0
      %497 = vmatprep.subr.bf16.mxu0 0
      %498 = vmatpush1.bf16.msra.mxu0 0
      %499 = vmatprep.subr.bf16.mxu0 0
      %500 = vmatpush1.bf16.msra.mxu0 0
      %501 = vmatprep.subr.bf16.mxu0 0
      %502 = vmatpush1.bf16.msra.mxu0 0
      %503 = vmatprep.subr.bf16.mxu0 0
      %504 = vmatpush1.bf16.msra.mxu0 0
      %505 = vmatprep.subr.bf16.mxu0 0
      %506 = vmatpush1.bf16.msra.mxu0 0
      %507 = vmatprep.subr.bf16.mxu0 0
      %508 = vmatpush1.bf16.msra.mxu0 0
      %509 = vmatprep.subr.bf16.mxu0 0
      %510 = vmatpush1.bf16.msra.mxu0 0
      %511 = vmatprep.subr.bf16.mxu0 0
      %512 = vmatpush1.bf16.msra.mxu0 0
      %513 = vmatprep.mubr.bf16.mxu0 0
      %514 = vmatmul.mubr.bf16.gmra.mrb[0].mxu0 %v473
      %v515 = vpop.f32.mrb[0].mxu0
      %v516 = vadd.f32 0.0, %v515
      %v517 = vpop.f32.mrb[0].mxu0
      %v518 = vpop.f32.mrb[0].mxu0
      %v519 = vadd.f32 0.0, %v518
      %v520 = vpop.f32.mrb[0].mxu0
      %521 = vmatprep.mubr.bf16.mxu0 0
      %522 = vmatmul.mubr.bf16.gmra.mrb[0].mxu0 %v476
      %v523 = vpop.f32.mrb[0].mxu0
      %v524 = vadd.f32 0.0, %v523
      %v525 = vpop.f32.mrb[0].mxu0
      %v526 = vpop.f32.mrb[0].mxu0
      %v527 = vpop.f32.mrb[0].mxu0
      %528 = vdwg.mxu0
      %v529 = vadd.f32 %v460, %v516
      %v530 = vadd.f32 %v461, %v519
      %v531 = vadd.f32 %v462, %v524
      %s532 = sadd.s32 %s192, 65
      %s533 = scalar_lea.vmem %s181, %s532
      %v534 = vld [vmem:[%s533] sm:$0xff]
      %v535 = vld [vmem:[%s533 + $0x8] sm:$0xff]
      %v536 = vld [vmem:[%s533 + $0x10] sm:$0xff]
      %v537 = vpack.c.bf16 %v535, %v534
      %v538 = vpack.c.bf16 %v536, %v536
      %s539 = scalar_lea.vmem %s1, 20
      %v540 = vld [vmem:[%s539] sm:$0xf]
      %v542 = vsel %vm209, %v537, 0
      %v545 = vsel %vm209, %v538, 0
      %v548 = vsel %vm216, %v540, 0
      %550 = vmatprep.subr.bf16.mxu0 0
      %551 = vmatpush1.bf16.msra.mxu0 %v548
      %552 = vmatprep.subr.bf16.mxu0 0
      %553 = vmatpush1.bf16.msra.mxu0 0
      %554 = vmatprep.subr.bf16.mxu0 0
      %555 = vmatpush1.bf16.msra.mxu0 0
      %556 = vmatprep.subr.bf16.mxu0 0
      %557 = vmatpush1.bf16.msra.mxu0 0
      %558 = vmatprep.subr.bf16.mxu0 0
      %559 = vmatpush1.bf16.msra.mxu0 0
      %560 = vmatprep.subr.bf16.mxu0 0
      %561 = vmatpush1.bf16.msra.mxu0 0
      %562 = vmatprep.subr.bf16.mxu0 0
      %563 = vmatpush1.bf16.msra.mxu0 0
      %564 = vmatprep.subr.bf16.mxu0 0
      %565 = vmatpush1.bf16.msra.mxu0 0
      %566 = vmatprep.subr.bf16.mxu0 0
      %567 = vmatpush1.bf16.msra.mxu0 0
      %568 = vmatprep.subr.bf16.mxu0 0
      %569 = vmatpush1.bf16.msra.mxu0 0
      %570 = vmatprep.subr.bf16.mxu0 0
      %571 = vmatpush1.bf16.msra.mxu0 0
      %572 = vmatprep.subr.bf16.mxu0 0
      %573 = vmatpush1.bf16.msra.mxu0 0
      %574 = vmatprep.subr.bf16.mxu0 0
      %575 = vmatpush1.bf16.msra.mxu0 0
      %576 = vmatprep.subr.bf16.mxu0 0
      %577 = vmatpush1.bf16.msra.mxu0 0
      %578 = vmatprep.subr.bf16.mxu0 0
      %579 = vmatpush1.bf16.msra.mxu0 0
      %580 = vmatprep.subr.bf16.mxu0 0
      %581 = vmatpush1.bf16.msra.mxu0 0
      %582 = vmatprep.mubr.bf16.mxu0 0
      %583 = vmatmul.mubr.bf16.gmra.mrb[0].mxu0 %v542
      %v584 = vpop.f32.mrb[0].mxu0
      %v585 = vadd.f32 0.0, %v584
      %v586 = vpop.f32.mrb[0].mxu0
      %v587 = vpop.f32.mrb[0].mxu0
      %v588 = vadd.f32 0.0, %v587
      %v589 = vpop.f32.mrb[0].mxu0
      %590 = vmatprep.mubr.bf16.mxu0 0
      %591 = vmatmul.mubr.bf16.gmra.mrb[0].mxu0 %v545
      %v592 = vpop.f32.mrb[0].mxu0
      %v593 = vadd.f32 0.0, %v592
      %v594 = vpop.f32.mrb[0].mxu0
      %v595 = vpop.f32.mrb[0].mxu0
      %v596 = vpop.f32.mrb[0].mxu0
      %597 = vdwg.mxu0
      %v598 = vadd.f32 %v529, %v585
      %v599 = vadd.f32 %v530, %v588
      %v600 = vadd.f32 %v531, %v593
      %s601 = sadd.s32 %s192, 5
      %s602 = scalar_lea.vmem %s181, %s601
      %v603 = vld [vmem:[%s602] sm:$0xff]
      %v604 = vld [vmem:[%s602 + $0x8] sm:$0xff]
      %v605 = vld [vmem:[%s602 + $0x10] sm:$0xff]
      %v606 = vpack.c.bf16 %v604, %v603
      %v607 = vpack.c.bf16 %v605, %v605
      %s608 = scalar_lea.vmem %s1, 24
      %v609 = vld [vmem:[%s608] sm:$0xf]
      %v611 = vsel %vm209, %v606, 0
      %v614 = vsel %vm209, %v607, 0
      %v617 = vsel %vm216, %v609, 0
      %619 = vmatprep.subr.bf16.mxu0 0
      %620 = vmatpush1.bf16.msra.mxu0 %v617
      %621 = vmatprep.subr.bf16.mxu0 0
      %622 = vmatpush1.bf16.msra.mxu0 0
      %623 = vmatprep.subr.bf16.mxu0 0
      %624 = vmatpush1.bf16.msra.mxu0 0
      %625 = vmatprep.subr.bf16.mxu0 0
      %626 = vmatpush1.bf16.msra.mxu0 0
      %627 = vmatprep.subr.bf16.mxu0 0
      %628 = vmatpush1.bf16.msra.mxu0 0
      %629 = vmatprep.subr.bf16.mxu0 0
      %630 = vmatpush1.bf16.msra.mxu0 0
      %631 = vmatprep.subr.bf16.mxu0 0
      %632 = vmatpush1.bf16.msra.mxu0 0
      %633 = vmatprep.subr.bf16.mxu0 0
      %634 = vmatpush1.bf16.msra.mxu0 0
      %635 = vmatprep.subr.bf16.mxu0 0
      %636 = vmatpush1.bf16.msra.mxu0 0
      %637 = vmatprep.subr.bf16.mxu0 0
      %638 = vmatpush1.bf16.msra.mxu0 0
      %639 = vmatprep.subr.bf16.mxu0 0
      %640 = vmatpush1.bf16.msra.mxu0 0
      %641 = vmatprep.subr.bf16.mxu0 0
      %642 = vmatpush1.bf16.msra.mxu0 0
      %643 = vmatprep.subr.bf16.mxu0 0
      %644 = vmatpush1.bf16.msra.mxu0 0
      %645 = vmatprep.subr.bf16.mxu0 0
      %646 = vmatpush1.bf16.msra.mxu0 0
      %647 = vmatprep.subr.bf16.mxu0 0
      %648 = vmatpush1.bf16.msra.mxu0 0
      %649 = vmatprep.subr.bf16.mxu0 0
      %650 = vmatpush1.bf16.msra.mxu0 0
      %651 = vmatprep.mubr.bf16.mxu0 0
      %652 = vmatmul.mubr.bf16.gmra.mrb[0].mxu0 %v611
      %v653 = vpop.f32.mrb[0].mxu0
      %v654 = vadd.f32 0.0, %v653
      %v655 = vpop.f32.mrb[0].mxu0
      %v656 = vpop.f32.mrb[0].mxu0
      %v657 = vadd.f32 0.0, %v656
      %v658 = vpop.f32.mrb[0].mxu0
      %659 = vmatprep.mubr.bf16.mxu0 0
      %660 = vmatmul.mubr.bf16.gmra.mrb[0].mxu0 %v614
      %v661 = vpop.f32.mrb[0].mxu0
      %v662 = vadd.f32 0.0, %v661
      %v663 = vpop.f32.mrb[0].mxu0
      %v664 = vpop.f32.mrb[0].mxu0
      %v665 = vpop.f32.mrb[0].mxu0
      %666 = vdwg.mxu0
      %v667 = vadd.f32 %v598, %v654
      %v668 = vadd.f32 %v599, %v657
      %v669 = vadd.f32 %v600, %v662
      %s670 = sadd.s32 %s192, 37
      %s671 = scalar_lea.vmem %s181, %s670
      %v672 = vld [vmem:[%s671] sm:$0xff]
      %v673 = vld [vmem:[%s671 + $0x8] sm:$0xff]
      %v674 = vld [vmem:[%s671 + $0x10] sm:$0xff]
      %v675 = vpack.c.bf16 %v673, %v672
      %v676 = vpack.c.bf16 %v674, %v674
      %s677 = scalar_lea.vmem %s1, 28
      %v678 = vld [vmem:[%s677] sm:$0xf]
      %v680 = vsel %vm209, %v675, 0
      %v683 = vsel %vm209, %v676, 0
      %v686 = vsel %vm216, %v678, 0
      %688 = vmatprep.subr.bf16.mxu0 0
      %689 = vmatpush1.bf16.msra.mxu0 %v686
      %690 = vmatprep.subr.bf16.mxu0 0
      %691 = vmatpush1.bf16.msra.mxu0 0
      %692 = vmatprep.subr.bf16.mxu0 0
      %693 = vmatpush1.bf16.msra.mxu0 0
      %694 = vmatprep.subr.bf16.mxu0 0
      %695 = vmatpush1.bf16.msra.mxu0 0
      %696 = vmatprep.subr.bf16.mxu0 0
      %697 = vmatpush1.bf16.msra.mxu0 0
      %698 = vmatprep.subr.bf16.mxu0 0
      %699 = vmatpush1.bf16.msra.mxu0 0
      %700 = vmatprep.subr.bf16.mxu0 0
      %701 = vmatpush1.bf16.msra.mxu0 0
      %702 = vmatprep.subr.bf16.mxu0 0
      %703 = vmatpush1.bf16.msra.mxu0 0
      %704 = vmatprep.subr.bf16.mxu0 0
      %705 = vmatpush1.bf16.msra.mxu0 0
      %706 = vmatprep.subr.bf16.mxu0 0
      %707 = vmatpush1.bf16.msra.mxu0 0
      %708 = vmatprep.subr.bf16.mxu0 0
      %709 = vmatpush1.bf16.msra.mxu0 0
      %710 = vmatprep.subr.bf16.mxu0 0
      %711 = vmatpush1.bf16.msra.mxu0 0
      %712 = vmatprep.subr.bf16.mxu0 0
      %713 = vmatpush1.bf16.msra.mxu0 0
      %714 = vmatprep.subr.bf16.mxu0 0
      %715 = vmatpush1.bf16.msra.mxu0 0
      %716 = vmatprep.subr.bf16.mxu0 0
      %717 = vmatpush1.bf16.msra.mxu0 0
      %718 = vmatprep.subr.bf16.mxu0 0
      %719 = vmatpush1.bf16.msra.mxu0 0
      %720 = vmatprep.mubr.bf16.mxu0 0
      %721 = vmatmul.mubr.bf16.gmra.mrb[0].mxu0 %v680
      %v722 = vpop.f32.mrb[0].mxu0
      %v723 = vadd.f32 0.0, %v722
      %v724 = vpop.f32.mrb[0].mxu0
      %v725 = vpop.f32.mrb[0].mxu0
      %v726 = vadd.f32 0.0, %v725
      %v727 = vpop.f32.mrb[0].mxu0
      %728 = vmatprep.mubr.bf16.mxu0 0
      %729 = vmatmul.mubr.bf16.gmra.mrb[0].mxu0 %v683
      %v730 = vpop.f32.mrb[0].mxu0
      %v731 = vadd.f32 0.0, %v730
      %v732 = vpop.f32.mrb[0].mxu0
      %v733 = vpop.f32.mrb[0].mxu0
      %v734 = vpop.f32.mrb[0].mxu0
      %735 = vdwg.mxu0
      %v736 = vadd.f32 %v667, %v723
      %v737 = vadd.f32 %v668, %v726
      %v738 = vadd.f32 %v669, %v731
      %s739 = sadd.s32 %s192, 6
      %s740 = scalar_lea.vmem %s181, %s739
      %v741 = vld [vmem:[%s740] sm:$0xff]
      %v742 = vld [vmem:[%s740 + $0x8] sm:$0xff]
      %v743 = vld [vmem:[%s740 + $0x10] sm:$0xff]
      %v744 = vpack.c.bf16 %v742, %v741
      %v745 = vpack.c.bf16 %v743, %v743
      %s746 = scalar_lea.vmem %s1, 32
      %v747 = vld [vmem:[%s746] sm:$0xf]
      %v749 = vsel %vm209, %v744, 0
      %v752 = vsel %vm209, %v745, 0
      %v755 = vsel %vm216, %v747, 0
      %757 = vmatprep.subr.bf16.mxu0 0
      %758 = vmatpush1.bf16.msra.mxu0 %v755
      %759 = vmatprep.subr.bf16.mxu0 0
      %760 = vmatpush1.bf16.msra.mxu0 0
      %761 = vmatprep.subr.bf16.mxu0 0
      %762 = vmatpush1.bf16.msra.mxu0 0
      %763 = vmatprep.subr.bf16.mxu0 0
      %764 = vmatpush1.bf16.msra.mxu0 0
      %765 = vmatprep.subr.bf16.mxu0 0
      %766 = vmatpush1.bf16.msra.mxu0 0
      %767 = vmatprep.subr.bf16.mxu0 0
      %768 = vmatpush1.bf16.msra.mxu0 0
      %769 = vmatprep.subr.bf16.mxu0 0
      %770 = vmatpush1.bf16.msra.mxu0 0
      %771 = vmatprep.subr.bf16.mxu0 0
      %772 = vmatpush1.bf16.msra.mxu0 0
      %773 = vmatprep.subr.bf16.mxu0 0
      %774 = vmatpush1.bf16.msra.mxu0 0
      %775 = vmatprep.subr.bf16.mxu0 0
      %776 = vmatpush1.bf16.msra.mxu0 0
      %777 = vmatprep.subr.bf16.mxu0 0
      %778 = vmatpush1.bf16.msra.mxu0 0
      %779 = vmatprep.subr.bf16.mxu0 0
      %780 = vmatpush1.bf16.msra.mxu0 0
      %781 = vmatprep.subr.bf16.mxu0 0
      %782 = vmatpush1.bf16.msra.mxu0 0
      %783 = vmatprep.subr.bf16.mxu0 0
      %784 = vmatpush1.bf16.msra.mxu0 0
      %785 = vmatprep.subr.bf16.mxu0 0
      %786 = vmatpush1.bf16.msra.mxu0 0
      %787 = vmatprep.subr.bf16.mxu0 0
      %788 = vmatpush1.bf16.msra.mxu0 0
      %789 = vmatprep.mubr.bf16.mxu0 0
      %790 = vmatmul.mubr.bf16.gmra.mrb[0].mxu0 %v749
      %v791 = vpop.f32.mrb[0].mxu0
      %v792 = vadd.f32 0.0, %v791
      %v793 = vpop.f32.mrb[0].mxu0
      %v794 = vpop.f32.mrb[0].mxu0
      %v795 = vadd.f32 0.0, %v794
      %v796 = vpop.f32.mrb[0].mxu0
      %797 = vmatprep.mubr.bf16.mxu0 0
      %798 = vmatmul.mubr.bf16.gmra.mrb[0].mxu0 %v752
      %v799 = vpop.f32.mrb[0].mxu0
      %v800 = vadd.f32 0.0, %v799
      %v801 = vpop.f32.mrb[0].mxu0
      %v802 = vpop.f32.mrb[0].mxu0
      %v803 = vpop.f32.mrb[0].mxu0
      %804 = vdwg.mxu0
      %v805 = vadd.f32 %v736, %v792
      %v806 = vadd.f32 %v737, %v795
      %v807 = vadd.f32 %v738, %v800
      %v808 = vld [vmem:[%s2] sm:$0x1]
      %v810 = vlaneseq
      %v811 = vshrl.u32 %v810, 7
      %v812 = vsub.s32 0, %v811
      %v813 = vrot.slane %v808, %v812
      %v815 = vadd.f32 %v805, %v813
      %v816 = vadd.f32 %v806, %v813
      %v817 = vadd.f32 %v807, %v813
      %818 = vst [vmem:[%s188] sm:$0xff] %v815
      %819 = vst [vmem:[%s188 + $0x8] sm:$0xff] %v816
      %820 = vst [vmem:[%s188 + $0x10] sm:$0xff] %v817
      %s821 = sadd.s32 %s18, %s19
      %s822 = smul.u32 3, %s821
      %p823 = scmp.lt.s32.totalorder %s822, 5
      %s824 = scalar_select %p823, %s822, 5
      %s825 = smul.addr %s824, 8
      %s826 = scalar_lea.vmem %s3, %s825
      // Predicated region
      $region33: #{adapter_forward.15} parent=31 // pred_check
        %p827 = pneg %p114
      $region34: #{adapter_forward.15} parent=31 // pred_check_branch
        %829 = sbr.rel (%p827) target = $region36
      $region35: #{adapter_forward.15} parent=31 // pred_region
        %s830 = sadd.s32 %s18, %s19
        %s831 = smul.u32 3, %s830
      $region36: #{adapter_forward.15} parent=31 // pred_fallthru
        _
    $region32: #{adapter_forward.15} parent=5 // pred_fallthru
      _
    %p832 = scmp.le.s32.totalorder 2, %s9
    // Predicated region
    $region37: #{adapter_forward.15} parent=5 // pred_check
      %p833 = pneg %p832
    $region38: #{adapter_forward.15} parent=5 // pred_check_branch
      %835 = sbr.rel (%p833) target = $region40
    $region39: #{adapter_forward.15} parent=5 // pred_region
      %s836 = ssub.s32 %s9, 2
      // Predicated region
      $region41: #{adapter_forward.15} parent=39 // pred_check
        %p837 = pneg %p120
      $region42: #{adapter_forward.15} parent=39 // pred_check_branch
        %839 = sbr.rel (%p837) target = $region44
      $region43: #{adapter_forward.15} parent=39 // pred_region
        %s840 = sadd.s32 %s20, %s21
        %s841 = smul.u32 3, %s840
        %p842 = scmp.lt.s32.totalorder %s841, 5
        %s843 = scalar_select %p842, %s841, 5
        %s844 = smul.addr %s843, 8
        %s845 = scalar_lea.vmem %s3, %s844
      $region44: #{adapter_forward.15} parent=39 // pred_fallthru
        _
    $region40: #{adapter_forward.15} parent=5 // pred_fallthru
      _
  $region6: #{adapter_forward.15} parent=0 // loop_footer
    %s13 = sadd.s32 1, %s9
  $region7: #{adapter_forward.15} parent=0 // loop_footer_branch
    %8 = sbr.rel target = $region3
  $region8: #{adapter_forward.15} parent=0 // loop_exit
    _

// kernel: adapter_forward.16
$region0: #{adapter_forward.16}
  #allocation0 [shape = 'u32[]', space=smem, size = 0x4, offset = 0x4, fixed_abs, tag = 'smem constant byte address 0x4 - core index']
  #allocation1 [shape = 'u32[144,128]{1,0:T(1,128)}', space=vmem, size = 0x12000, scoped, tag = 'internal scratch']
  %s0 = inlined_call_operand.vmem [shape: f32[80,8], index: 0, kind: input, shape index: {}]
  %s1 = inlined_call_operand.vmem [shape: bf16[9,8,128], index: 1, kind: input, shape index: {}]
  %s2 = inlined_call_operand.vmem [shape: f32[1,128], index: 2, kind: input, shape index: {}]
  %s3 = inlined_call_operand.vmem [shape: f32[48,128], index: 3, kind: output, shape index: {}]
  %s4 = sld [smem:[#allocation0]]
  $region45: #{adapter_forward.16} parent=0
    _
  %s6 = ssub.s32 1, %s4
  %s7 = scalar_select 0, %s6, %s4
  loop: start=0, step=1, limit=4
  $region2: #{adapter_forward.16} parent=0 // loop_pre_header
    _
  $region3: #{adapter_forward.16} parent=0 // loop_header
    %s9 = sphi 0, %s13
    %p10 = scmp.ge.s32.totalorder %s9, 4
    %s16 = sphi 0, %s28
    %s17 = sphi 0, %s24
    %s18 = sphi 0, %s16
    %s19 = sphi 0, %s17
    %s20 = sphi 0, %s18
    %s21 = sphi 0, %s19
    %s31 = sphi 0, %s33
    %s34 = sphi 0, %s31
    %s35 = sphi 0, %s34
    %s51 = sphi 0, %s35
    %s55 = sphi 0, %s55
    %s57 = sphi 0, %s55
    %s58 = sphi 0, %s57
    %s72 = sphi 0, %s58
    %s76 = sphi 0, %s76
    %s78 = sphi 0, %s76
    %s79 = sphi 0, %s78
    %s93 = sphi 0, %s79
    %s101 = sphi 0, %s103
    %s104 = sphi 0, %s101
    %s105 = sphi 0, %s104
    %s121 = sphi 0, %s105
  $region4: #{adapter_forward.16} parent=0 // loop_header_branch
    %12 = sbr.rel (%p10) target = $region8
  $region5: #{adapter_forward.16} parent=0 // loop_body
    %s14 = ssub.s32 %s9, 1
    %s15 = ssub.s32 %s9, 2
    %s22 = sadd.s32 1, %s17
    %p23 = scmp.ge.s32.totalorder %s22, 1
    %s24 = scalar_select %p23, 0, %s22
    %s25 = sadd.s32 1, %s16
    %s26 = scalar_select %p23, %s25, %s16
    %p27 = scmp.ge.s32.totalorder %s26, 2
    %s28 = scalar_select %p27, 0, %s26
    %s29 = ssub.s32 %s16, %s28
    %p30 = scmp.eq.s32.totalorder %s29, 0
    %s32 = sadd.s32 %s31, 1
    %s33 = scalar_select %p30, %s31, %s32
    %p36 = pneg %p30
    %p37 = scmp.eq.s32.totalorder %s9, 1
    %p38 = por %p36, %p37
    %p39 = scmp.ne.s32.totalorder %s31, %s34
    %p40 = scmp.eq.s32.totalorder %s9, 0
    %p41 = por %p39, %p40
    %p42 = scmp.ne.s32.totalorder %s31, %s34
    %p43 = scmp.eq.s32.totalorder %s14, 1
    %p44 = por %p42, %p43
    %p45 = scmp.ne.s32.totalorder %s34, %s35
    %p46 = scmp.eq.s32.totalorder %s14, 0
    %p47 = por %p45, %p46
    %p48 = scmp.ne.s32.totalorder %s34, %s35
    %p49 = scmp.eq.s32.totalorder %s15, 1
    %p50 = por %p48, %p49
    %p52 = scmp.ne.s32.totalorder %s35, %s51
    %p53 = scmp.eq.s32.totalorder %s15, 0
    %p54 = por %p52, %p53
    %s56 = sadd.s32 %s55, 1
    %p59 = scmp.eq.s32.totalorder %s9, 1
    %p60 = scmp.ne.s32.totalorder %s55, %s57
    %p61 = scmp.eq.s32.totalorder %s9, 0
    %p62 = por %p60, %p61
    %p63 = scmp.ne.s32.totalorder %s55, %s57
    %p64 = scmp.eq.s32.totalorder %s14, 1
    %p65 = por %p63, %p64
    %p66 = scmp.ne.s32.totalorder %s57, %s58
    %p67 = scmp.eq.s32.totalorder %s14, 0
    %p68 = por %p66, %p67
    %p69 = scmp.ne.s32.totalorder %s57, %s58
    %p70 = scmp.eq.s32.totalorder %s15, 1
    %p71 = por %p69, %p70
    %p73 = scmp.ne.s32.totalorder %s58, %s72
    %p74 = scmp.eq.s32.totalorder %s15, 0
    %p75 = por %p73, %p74
    %s77 = sadd.s32 %s76, 1
    %p80 = scmp.eq.s32.totalorder %s9, 1
    %p81 = scmp.ne.s32.totalorder %s76, %s78
    %p82 = scmp.eq.s32.totalorder %s9, 0
    %p83 = por %p81, %p82
    %p84 = scmp.ne.s32.totalorder %s76, %s78
    %p85 = scmp.eq.s32.totalorder %s14, 1
    %p86 = por %p84, %p85
    %p87 = scmp.ne.s32.totalorder %s78, %s79
    %p88 = scmp.eq.s32.totalorder %s14, 0
    %p89 = por %p87, %p88
    %p90 = scmp.ne.s32.totalorder %s78, %s79
    %p91 = scmp.eq.s32.totalorder %s15, 1
    %p92 = por %p90, %p91
    %p94 = scmp.ne.s32.totalorder %s79, %s93
    %p95 = scmp.eq.s32.totalorder %s15, 0
    %p96 = por %p94, %p95
    %s97 = sadd.s32 %s16, %s17
    %s98 = sadd.s32 %s28, %s24
    %s99 = ssub.s32 %s97, %s98
    %p100 = scmp.eq.s32.totalorder %s99, 0
    %s102 = sadd.s32 %s101, 1
    %s103 = scalar_select %p100, %s101, %s102
    %p106 = pneg %p100
    %p107 = scmp.eq.s32.totalorder %s9, 1
    %p108 = por %p106, %p107
    %p109 = scmp.ne.s32.totalorder %s101, %s104
    %p110 = scmp.eq.s32.totalorder %s9, 0
    %p111 = por %p109, %p110
    %p112 = scmp.ne.s32.totalorder %s101, %s104
    %p113 = scmp.eq.s32.totalorder %s14, 1
    %p114 = por %p112, %p113
    %p115 = scmp.ne.s32.totalorder %s104, %s105
    %p116 = scmp.eq.s32.totalorder %s14, 0
    %p117 = por %p115, %p116
    %p118 = scmp.ne.s32.totalorder %s104, %s105
    %p119 = scmp.eq.s32.totalorder %s15, 1
    %p120 = por %p118, %p119
    %p122 = scmp.ne.s32.totalorder %s105, %s121
    %p123 = scmp.eq.s32.totalorder %s15, 0
    %p124 = por %p122, %p123
    %p125 = scmp.le.s32.totalorder 1, %s9
    %p126 = scmp.lt.s32.totalorder %s9, 3
    %p127 = pnand %p125, %p126
    %p128 = pneg %p127
    // Predicated region
    $region9: #{adapter_forward.16} parent=5 // pred_check
      _
    $region10: #{adapter_forward.16} parent=5 // pred_check_branch
      %130 = sbr.rel (%p127) target = $region12
    $region11: #{adapter_forward.16} parent=5 // pred_region
      %s131 = ssub.s32 %s9, 1
      // Predicated region
      $region13: #{adapter_forward.16} parent=11 // pred_check
        %p132 = pneg %p68
      $region14: #{adapter_forward.16} parent=11 // pred_check_branch
        %134 = sbr.rel (%p132) target = $region16
      $region15: #{adapter_forward.16} parent=11 // pred_region
        _
      $region16: #{adapter_forward.16} parent=11 // pred_fallthru
        _
      // Predicated region
      $region17: #{adapter_forward.16} parent=11 // pred_check
        %p135 = pneg %p89
      $region18: #{adapter_forward.16} parent=11 // pred_check_branch
        %137 = sbr.rel (%p135) target = $region20
      $region19: #{adapter_forward.16} parent=11 // pred_region
        _
      $region20: #{adapter_forward.16} parent=11 // pred_fallthru
        _
    $region12: #{adapter_forward.16} parent=5 // pred_fallthru
      _
    %p138 = scmp.lt.s32.totalorder %s9, 2
    // Predicated region
    $region21: #{adapter_forward.16} parent=5 // pred_check
      %p139 = pneg %p138
    $region22: #{adapter_forward.16} parent=5 // pred_check_branch
      %141 = sbr.rel (%p139) target = $region24
    $region23: #{adapter_forward.16} parent=5 // pred_region
      // Predicated region
      $region25: #{adapter_forward.16} parent=23 // pred_check
        %p142 = pneg %p41
      $region26: #{adapter_forward.16} parent=23 // pred_check_branch
        %144 = sbr.rel (%p142) target = $region28
      $region27: #{adapter_forward.16} parent=23 // pred_region
        %s145 = smul.u32 5, %s16
        %p146 = scmp.lt.s32.totalorder %s145, 9
        %s147 = scalar_select %p146, %s145, 9
        %s148 = smul.addr %s147, 8
        %s149 = scalar_lea.vmem %s0, %s148
        %s150 = smul.u32 5, %s16
      $region28: #{adapter_forward.16} parent=23 // pred_fallthru
        _
    $region24: #{adapter_forward.16} parent=5 // pred_fallthru
      _
    %p151 = scmp.le.s32.totalorder 1, %s9
    %p152 = scmp.lt.s32.totalorder %s9, 3
    %p153 = pnand %p151, %p152
    %p154 = pneg %p153
    // Predicated region
    $region29: #{adapter_forward.16} parent=5 // pred_check
      _
    $region30: #{adapter_forward.16} parent=5 // pred_check_branch
      %156 = sbr.rel (%p153) target = $region32
    $region31: #{adapter_forward.16} parent=5 // pred_region
      %s157 = ssub.s32 %s9, 1
      %s158 = smul.u32 5, %s18
      %p159 = scmp.lt.s32.totalorder %s158, 9
      %s160 = scalar_select %p159, %s158, 9
      %s161 = smul.addr %s160, 8
      %s162 = scalar_lea.vmem %s0, %s161
      %p163 = pneg %p47
      %p164 = pneg %p44
      %p165 = pneg %p68
      %p166 = pneg %p65
      %p167 = pneg %p89
      %p168 = pneg %p86
      %p169 = pneg %p117
      %p170 = pneg %p114
      %s171 = sadd.s32 %s18, %s19
      %s172 = smul.u32 3, %s171
      %p173 = scmp.lt.s32.totalorder %s172, 5
      %s174 = scalar_select %p173, %s172, 5
      %s175 = smul.addr %s174, 8
      %s176 = scalar_lea.vmem %s3, %s175
      %s177 = smul.u32 5, %s18
      %p178 = scmp.lt.s32.totalorder %s177, 9
      %s179 = scalar_select %p178, %s177, 9
      %s180 = smul.addr %s179, 8
      %s181 = scalar_lea.vmem %s0, %s180
      %s182 = smul.u32 5, %s18
      %s183 = sadd.s32 %s18, %s19
      %s184 = smul.u32 3, %s183
      %p185 = scmp.lt.s32.totalorder %s184, 5
      %s186 = scalar_select %p185, %s184, 5
      %s187 = smul.addr %s186, 8
      %s188 = scalar_lea.vmem %s3, %s187
      %s189 = sadd.s32 %s18, %s19
      %s190 = smul.u32 3, %s189
      %s192 = smul.u32 %s19, 24
      %s193 = scalar_lea.vmem %s181, %s192
      %v194 = vld [vmem:[%s193] sm:$0xff]
      %v195 = vld [vmem:[%s193 + $0x8] sm:$0xff]
      %v196 = vld [vmem:[%s193 + $0x10] sm:$0xff]
      %v197 = vpack.c.bf16 %v195, %v194
      %v198 = vpack.c.bf16 %v196, %v196
      %v199 = vld [vmem:[%s1] sm:$0xf]
      %s200 = sadd.s32 %s192, 1
      %s201 = scalar_lea.vmem %s181, %s200
      %v202 = vld [vmem:[%s201] sm:$0xff]
      %v203 = vld [vmem:[%s201 + $0x8] sm:$0xff]
      %v204 = vld [vmem:[%s201 + $0x10] sm:$0xff]
      %v205 = vpack.c.bf16 %v203, %v202
      %v206 = vpack.c.bf16 %v204, %v204
      %s207 = scalar_lea.vmem %s1, 4
      %v208 = vld [vmem:[%s207] sm:$0xf]
      %vm209 = vcmask 64512
      %v211 = vsel %vm209, %v205, 0
      %v214 = vsel %vm209, %v206, 0
      %vm216 = vcmask 1043456
      %v218 = vsel %vm216, %v208, 0
      %220 = vmatprep.subr.bf16.mxu0 0
      %221 = vmatpush1.bf16.msra.mxu0 %v218
      %222 = vmatprep.subr.bf16.mxu0 0
      %223 = vmatpush1.bf16.msra.mxu0 0
      %224 = vmatprep.subr.bf16.mxu0 0
      %225 = vmatpush1.bf16.msra.mxu0 0
      %226 = vmatprep.subr.bf16.mxu0 0
      %227 = vmatpush1.bf16.msra.mxu0 0
      %228 = vmatprep.subr.bf16.mxu0 0
      %229 = vmatpush1.bf16.msra.mxu0 0
      %230 = vmatprep.subr.bf16.mxu0 0
      %231 = vmatpush1.bf16.msra.mxu0 0
      %232 = vmatprep.subr.bf16.mxu0 0
      %233 = vmatpush1.bf16.msra.mxu0 0
      %234 = vmatprep.subr.bf16.mxu0 0
      %235 = vmatpush1.bf16.msra.mxu0 0
      %236 = vmatprep.subr.bf16.mxu0 0
      %237 = vmatpush1.bf16.msra.mxu0 0
      %238 = vmatprep.subr.bf16.mxu0 0
      %239 = vmatpush1.bf16.msra.mxu0 0
      %240 = vmatprep.subr.bf16.mxu0 0
      %241 = vmatpush1.bf16.msra.mxu0 0
      %242 = vmatprep.subr.bf16.mxu0 0
      %243 = vmatpush1.bf16.msra.mxu0 0
      %244 = vmatprep.subr.bf16.mxu0 0
      %245 = vmatpush1.bf16.msra.mxu0 0
      %246 = vmatprep.subr.bf16.mxu0 0
      %247 = vmatpush1.bf16.msra.mxu0 0
      %248 = vmatprep.subr.bf16.mxu0 0
      %249 = vmatpush1.bf16.msra.mxu0 0
      %250 = vmatprep.subr.bf16.mxu0 0
      %251 = vmatpush1.bf16.msra.mxu0 0
      %252 = vmatprep.mubr.bf16.mxu0 0
      %253 = vmatmul.mubr.bf16.gmra.mrb[0].mxu0 %v211
      %v254 = vpop.f32.mrb[0].mxu0
      %v255 = vadd.f32 0.0, %v254
      %v256 = vpop.f32.mrb[0].mxu0
      %v257 = vpop.f32.mrb[0].mxu0
      %v258 = vadd.f32 0.0, %v257
      %v259 = vpop.f32.mrb[0].mxu0
      %260 = vmatprep.mubr.bf16.mxu0 0
      %261 = vmatmul.mubr.bf16.gmra.mrb[0].mxu0 %v214
      %v262 = vpop.f32.mrb[0].mxu0
      %v263 = vadd.f32 0.0, %v262
      %v264 = vpop.f32.mrb[0].mxu0
      %v265 = vpop.f32.mrb[0].mxu0
      %v266 = vpop.f32.mrb[0].mxu0
      %267 = vdwg.mxu0
      %v269 = vsel %vm209, %v197, 0
      %v272 = vsel %vm209, %v198, 0
      %v275 = vsel %vm216, %v199, 0
      %277 = vmatprep.subr.bf16.mxu0 0
      %278 = vmatpush1.bf16.msra.mxu0 %v275
      %279 = vmatprep.subr.bf16.mxu0 0
      %280 = vmatpush1.bf16.msra.mxu0 0
      %281 = vmatprep.subr.bf16.mxu0 0
      %282 = vmatpush1.bf16.msra.mxu0 0
      %283 = vmatprep.subr.bf16.mxu0 0
      %284 = vmatpush1.bf16.msra.mxu0 0
      %285 = vmatprep.subr.bf16.mxu0 0
      %286 = vmatpush1.bf16.msra.mxu0 0
      %287 = vmatprep.subr.bf16.mxu0 0
      %288 = vmatpush1.bf16.msra.mxu0 0
      %289 = vmatprep.subr.bf16.mxu0 0
      %290 = vmatpush1.bf16.msra.mxu0 0
      %291 = vmatprep.subr.bf16.mxu0 0
      %292 = vmatpush1.bf16.msra.mxu0 0
      %293 = vmatprep.subr.bf16.mxu0 0
      %294 = vmatpush1.bf16.msra.mxu0 0
      %295 = vmatprep.subr.bf16.mxu0 0
      %296 = vmatpush1.bf16.msra.mxu0 0
      %297 = vmatprep.subr.bf16.mxu0 0
      %298 = vmatpush1.bf16.msra.mxu0 0
      %299 = vmatprep.subr.bf16.mxu0 0
      %300 = vmatpush1.bf16.msra.mxu0 0
      %301 = vmatprep.subr.bf16.mxu0 0
      %302 = vmatpush1.bf16.msra.mxu0 0
      %303 = vmatprep.subr.bf16.mxu0 0
      %304 = vmatpush1.bf16.msra.mxu0 0
      %305 = vmatprep.subr.bf16.mxu0 0
      %306 = vmatpush1.bf16.msra.mxu0 0
      %307 = vmatprep.subr.bf16.mxu0 0
      %308 = vmatpush1.bf16.msra.mxu0 0
      %309 = vmatprep.mubr.bf16.mxu0 0
      %310 = vmatmul.mubr.bf16.gmra.mrb[0].mxu0 %v269
      %v311 = vpop.f32.mrb[0].mxu0
      %v312 = vadd.f32 %v255, %v311
      %v313 = vpop.f32.mrb[0].mxu0
      %v314 = vpop.f32.mrb[0].mxu0
      %v315 = vadd.f32 %v258, %v314
      %v316 = vpop.f32.mrb[0].mxu0
      %317 = vmatprep.mubr.bf16.mxu0 0
      %318 = vmatmul.mubr.bf16.gmra.mrb[0].mxu0 %v272
      %v319 = vpop.f32.mrb[0].mxu0
      %v320 = vadd.f32 %v263, %v319
      %v321 = vpop.f32.mrb[0].mxu0
      %v322 = vpop.f32.mrb[0].mxu0
      %v323 = vpop.f32.mrb[0].mxu0
      %324 = vdwg.mxu0
      %s325 = sadd.s32 %s192, 2
      %s326 = scalar_lea.vmem %s181, %s325
      %v327 = vld [vmem:[%s326] sm:$0xff]
      %v328 = vld [vmem:[%s326 + $0x8] sm:$0xff]
      %v329 = vld [vmem:[%s326 + $0x10] sm:$0xff]
      %v330 = vpack.c.bf16 %v328, %v327
      %v331 = vpack.c.bf16 %v329, %v329
      %s332 = scalar_lea.vmem %s1, 8
      %v333 = vld [vmem:[%s332] sm:$0xf]
      %v335 = vsel %vm209, %v330, 0
      %v338 = vsel %vm209, %v331, 0
      %v341 = vsel %vm216, %v333, 0
      %343 = vmatprep.subr.bf16.mxu0 0
      %344 = vmatpush1.bf16.msra.mxu0 %v341
      %345 = vmatprep.subr.bf16.mxu0 0
      %346 = vmatpush1.bf16.msra.mxu0 0
      %347 = vmatprep.subr.bf16.mxu0 0
      %348 = vmatpush1.bf16.msra.mxu0 0
      %349 = vmatprep.subr.bf16.mxu0 0
      %350 = vmatpush1.bf16.msra.mxu0 0
      %351 = vmatprep.subr.bf16.mxu0 0
      %352 = vmatpush1.bf16.msra.mxu0 0
      %353 = vmatprep.subr.bf16.mxu0 0
      %354 = vmatpush1.bf16.msra.mxu0 0
      %355 = vmatprep.subr.bf16.mxu0 0
      %356 = vmatpush1.bf16.msra.mxu0 0
      %357 = vmatprep.subr.bf16.mxu0 0
      %358 = vmatpush1.bf16.msra.mxu0 0
      %359 = vmatprep.subr.bf16.mxu0 0
      %360 = vmatpush1.bf16.msra.mxu0 0
      %361 = vmatprep.subr.bf16.mxu0 0
      %362 = vmatpush1.bf16.msra.mxu0 0
      %363 = vmatprep.subr.bf16.mxu0 0
      %364 = vmatpush1.bf16.msra.mxu0 0
      %365 = vmatprep.subr.bf16.mxu0 0
      %366 = vmatpush1.bf16.msra.mxu0 0
      %367 = vmatprep.subr.bf16.mxu0 0
      %368 = vmatpush1.bf16.msra.mxu0 0
      %369 = vmatprep.subr.bf16.mxu0 0
      %370 = vmatpush1.bf16.msra.mxu0 0
      %371 = vmatprep.subr.bf16.mxu0 0
      %372 = vmatpush1.bf16.msra.mxu0 0
      %373 = vmatprep.subr.bf16.mxu0 0
      %374 = vmatpush1.bf16.msra.mxu0 0
      %375 = vmatprep.mubr.bf16.mxu0 0
      %376 = vmatmul.mubr.bf16.gmra.mrb[0].mxu0 %v335
      %v377 = vpop.f32.mrb[0].mxu0
      %v378 = vadd.f32 0.0, %v377
      %v379 = vpop.f32.mrb[0].mxu0
      %v380 = vpop.f32.mrb[0].mxu0
      %v381 = vadd.f32 0.0, %v380
      %v382 = vpop.f32.mrb[0].mxu0
      %383 = vmatprep.mubr.bf16.mxu0 0
      %384 = vmatmul.mubr.bf16.gmra.mrb[0].mxu0 %v338
      %v385 = vpop.f32.mrb[0].mxu0
      %v386 = vadd.f32 0.0, %v385
      %v387 = vpop.f32.mrb[0].mxu0
      %v388 = vpop.f32.mrb[0].mxu0
      %v389 = vpop.f32.mrb[0].mxu0
      %390 = vdwg.mxu0
      %v391 = vadd.f32 %v312, %v378
      %v392 = vadd.f32 %v315, %v381
      %v393 = vadd.f32 %v320, %v386
      %s394 = sadd.s32 %s192, 6
      %s395 = scalar_lea.vmem %s181, %s394
      %v396 = vld [vmem:[%s395] sm:$0xff]
      %v397 = vld [vmem:[%s395 + $0x8] sm:$0xff]
      %v398 = vld [vmem:[%s395 + $0x10] sm:$0xff]
      %v399 = vpack.c.bf16 %v397, %v396
      %v400 = vpack.c.bf16 %v398, %v398
      %s401 = scalar_lea.vmem %s1, 12
      %v402 = vld [vmem:[%s401] sm:$0xf]
      %v404 = vsel %vm209, %v399, 0
      %v407 = vsel %vm209, %v400, 0
      %v410 = vsel %vm216, %v402, 0
      %412 = vmatprep.subr.bf16.mxu0 0
      %413 = vmatpush1.bf16.msra.mxu0 %v410
      %414 = vmatprep.subr.bf16.mxu0 0
      %415 = vmatpush1.bf16.msra.mxu0 0
      %416 = vmatprep.subr.bf16.mxu0 0
      %417 = vmatpush1.bf16.msra.mxu0 0
      %418 = vmatprep.subr.bf16.mxu0 0
      %419 = vmatpush1.bf16.msra.mxu0 0
      %420 = vmatprep.subr.bf16.mxu0 0
      %421 = vmatpush1.bf16.msra.mxu0 0
      %422 = vmatprep.subr.bf16.mxu0 0
      %423 = vmatpush1.bf16.msra.mxu0 0
      %424 = vmatprep.subr.bf16.mxu0 0
      %425 = vmatpush1.bf16.msra.mxu0 0
      %426 = vmatprep.subr.bf16.mxu0 0
      %427 = vmatpush1.bf16.msra.mxu0 0
      %428 = vmatprep.subr.bf16.mxu0 0
      %429 = vmatpush1.bf16.msra.mxu0 0
      %430 = vmatprep.subr.bf16.mxu0 0
      %431 = vmatpush1.bf16.msra.mxu0 0
      %432 = vmatprep.subr.bf16.mxu0 0
      %433 = vmatpush1.bf16.msra.mxu0 0
      %434 = vmatprep.subr.bf16.mxu0 0
      %435 = vmatpush1.bf16.msra.mxu0 0
      %436 = vmatprep.subr.bf16.mxu0 0
      %437 = vmatpush1.bf16.msra.mxu0 0
      %438 = vmatprep.subr.bf16.mxu0 0
      %439 = vmatpush1.bf16.msra.mxu0 0
      %440 = vmatprep.subr.bf16.mxu0 0
      %441 = vmatpush1.bf16.msra.mxu0 0
      %442 = vmatprep.subr.bf16.mxu0 0
      %443 = vmatpush1.bf16.msra.mxu0 0
      %444 = vmatprep.mubr.bf16.mxu0 0
      %445 = vmatmul.mubr.bf16.gmra.mrb[0].mxu0 %v404
      %v446 = vpop.f32.mrb[0].mxu0
      %v447 = vadd.f32 0.0, %v446
      %v448 = vpop.f32.mrb[0].mxu0
      %v449 = vpop.f32.mrb[0].mxu0
      %v450 = vadd.f32 0.0, %v449
      %v451 = vpop.f32.mrb[0].mxu0
      %452 = vmatprep.mubr.bf16.mxu0 0
      %453 = vmatmul.mubr.bf16.gmra.mrb[0].mxu0 %v407
      %v454 = vpop.f32.mrb[0].mxu0
      %v455 = vadd.f32 0.0, %v454
      %v456 = vpop.f32.mrb[0].mxu0
      %v457 = vpop.f32.mrb[0].mxu0
      %v458 = vpop.f32.mrb[0].mxu0
      %459 = vdwg.mxu0
      %v460 = vadd.f32 %v391, %v447
      %v461 = vadd.f32 %v392, %v450
      %v462 = vadd.f32 %v393, %v455
      %s463 = sadd.s32 %s192, 7
      %s464 = scalar_lea.vmem %s181, %s463
      %v465 = vld [vmem:[%s464] sm:$0xff]
      %v466 = vld [vmem:[%s464 + $0x8] sm:$0xff]
      %v467 = vld [vmem:[%s464 + $0x10] sm:$0xff]
      %v468 = vpack.c.bf16 %v466, %v465
      %v469 = vpack.c.bf16 %v467, %v467
      %s470 = scalar_lea.vmem %s1, 16
      %v471 = vld [vmem:[%s470] sm:$0xf]
      %v473 = vsel %vm209, %v468, 0
      %v476 = vsel %vm209, %v469, 0
      %v479 = vsel %vm216, %v471, 0
      %481 = vmatprep.subr.bf16.mxu0 0
      %482 = vmatpush1.bf16.msra.mxu0 %v479
      %483 = vmatprep.subr.bf16.mxu0 0
      %484 = vmatpush1.bf16.msra.mxu0 0
      %485 = vmatprep.subr.bf16.mxu0 0
      %486 = vmatpush1.bf16.msra.mxu0 0
      %487 = vmatprep.subr.bf16.mxu0 0
      %488 = vmatpush1.bf16.msra.mxu0 0
      %489 = vmatprep.subr.bf16.mxu0 0
      %490 = vmatpush1.bf16.msra.mxu0 0
      %491 = vmatprep.subr.bf16.mxu0 0
      %492 = vmatpush1.bf16.msra.mxu0 0
      %493 = vmatprep.subr.bf16.mxu0 0
      %494 = vmatpush1.bf16.msra.mxu0 0
      %495 = vmatprep.subr.bf16.mxu0 0
      %496 = vmatpush1.bf16.msra.mxu0 0
      %497 = vmatprep.subr.bf16.mxu0 0
      %498 = vmatpush1.bf16.msra.mxu0 0
      %499 = vmatprep.subr.bf16.mxu0 0
      %500 = vmatpush1.bf16.msra.mxu0 0
      %501 = vmatprep.subr.bf16.mxu0 0
      %502 = vmatpush1.bf16.msra.mxu0 0
      %503 = vmatprep.subr.bf16.mxu0 0
      %504 = vmatpush1.bf16.msra.mxu0 0
      %505 = vmatprep.subr.bf16.mxu0 0
      %506 = vmatpush1.bf16.msra.mxu0 0
      %507 = vmatprep.subr.bf16.mxu0 0
      %508 = vmatpush1.bf16.msra.mxu0 0
      %509 = vmatprep.subr.bf16.mxu0 0
      %510 = vmatpush1.bf16.msra.mxu0 0
      %511 = vmatprep.subr.bf16.mxu0 0
      %512 = vmatpush1.bf16.msra.mxu0 0
      %513 = vmatprep.mubr.bf16.mxu0 0
      %514 = vmatmul.mubr.bf16.gmra.mrb[0].mxu0 %v473
      %v515 = vpop.f32.mrb[0].mxu0
      %v516 = vadd.f32 0.0, %v515
      %v517 = vpop.f32.mrb[0].mxu0
      %v518 = vpop.f32.mrb[0].mxu0
      %v519 = vadd.f32 0.0, %v518
      %v520 = vpop.f32.mrb[0].mxu0
      %521 = vmatprep.mubr.bf16.mxu0 0
      %522 = vmatmul.mubr.bf16.gmra.mrb[0].mxu0 %v476
      %v523 = vpop.f32.mrb[0].mxu0
      %v524 = vadd.f32 0.0, %v523
      %v525 = vpop.f32.mrb[0].mxu0
      %v526 = vpop.f32.mrb[0].mxu0
      %v527 = vpop.f32.mrb[0].mxu0
      %528 = vdwg.mxu0
      %v529 = vadd.f32 %v460, %v516
      %v530 = vadd.f32 %v461, %v519
      %v531 = vadd.f32 %v462, %v524
      %s532 = sadd.s32 %s192, 8
      %s533 = scalar_lea.vmem %s181, %s532
      %v534 = vld [vmem:[%s533] sm:$0xff]
      %v535 = vld [vmem:[%s533 + $0x8] sm:$0xff]
      %v536 = vld [vmem:[%s533 + $0x10] sm:$0xff]
      %v537 = vpack.c.bf16 %v535, %v534
      %v538 = vpack.c.bf16 %v536, %v536
      %s539 = scalar_lea.vmem %s1, 20
      %v540 = vld [vmem:[%s539] sm:$0xf]
      %v542 = vsel %vm209, %v537, 0
      %v545 = vsel %vm209, %v538, 0
      %v548 = vsel %vm216, %v540, 0
      %550 = vmatprep.subr.bf16.mxu0 0
      %551 = vmatpush1.bf16.msra.mxu0 %v548
      %552 = vmatprep.subr.bf16.mxu0 0
      %553 = vmatpush1.bf16.msra.mxu0 0
      %554 = vmatprep.subr.bf16.mxu0 0
      %555 = vmatpush1.bf16.msra.mxu0 0
      %556 = vmatprep.subr.bf16.mxu0 0
      %557 = vmatpush1.bf16.msra.mxu0 0
      %558 = vmatprep.subr.bf16.mxu0 0
      %559 = vmatpush1.bf16.msra.mxu0 0
      %560 = vmatprep.subr.bf16.mxu0 0
      %561 = vmatpush1.bf16.msra.mxu0 0
      %562 = vmatprep.subr.bf16.mxu0 0
      %563 = vmatpush1.bf16.msra.mxu0 0
      %564 = vmatprep.subr.bf16.mxu0 0
      %565 = vmatpush1.bf16.msra.mxu0 0
      %566 = vmatprep.subr.bf16.mxu0 0
      %567 = vmatpush1.bf16.msra.mxu0 0
      %568 = vmatprep.subr.bf16.mxu0 0
      %569 = vmatpush1.bf16.msra.mxu0 0
      %570 = vmatprep.subr.bf16.mxu0 0
      %571 = vmatpush1.bf16.msra.mxu0 0
      %572 = vmatprep.subr.bf16.mxu0 0
      %573 = vmatpush1.bf16.msra.mxu0 0
      %574 = vmatprep.subr.bf16.mxu0 0
      %575 = vmatpush1.bf16.msra.mxu0 0
      %576 = vmatprep.subr.bf16.mxu0 0
      %577 = vmatpush1.bf16.msra.mxu0 0
      %578 = vmatprep.subr.bf16.mxu0 0
      %579 = vmatpush1.bf16.msra.mxu0 0
      %580 = vmatprep.subr.bf16.mxu0 0
      %581 = vmatpush1.bf16.msra.mxu0 0
      %582 = vmatprep.mubr.bf16.mxu0 0
      %583 = vmatmul.mubr.bf16.gmra.mrb[0].mxu0 %v542
      %v584 = vpop.f32.mrb[0].mxu0
      %v585 = vadd.f32 0.0, %v584
      %v586 = vpop.f32.mrb[0].mxu0
      %v587 = vpop.f32.mrb[0].mxu0
      %v588 = vadd.f32 0.0, %v587
      %v589 = vpop.f32.mrb[0].mxu0
      %590 = vmatprep.mubr.bf16.mxu0 0
      %591 = vmatmul.mubr.bf16.gmra.mrb[0].mxu0 %v545
      %v592 = vpop.f32.mrb[0].mxu0
      %v593 = vadd.f32 0.0, %v592
      %v594 = vpop.f32.mrb[0].mxu0
      %v595 = vpop.f32.mrb[0].mxu0
      %v596 = vpop.f32.mrb[0].mxu0
      %597 = vdwg.mxu0
      %v598 = vadd.f32 %v529, %v585
      %v599 = vadd.f32 %v530, %v588
      %v600 = vadd.f32 %v531, %v593
      %s601 = sadd.s32 %s192, 12
      %s602 = scalar_lea.vmem %s181, %s601
      %v603 = vld [vmem:[%s602] sm:$0xff]
      %v604 = vld [vmem:[%s602 + $0x8] sm:$0xff]
      %v605 = vld [vmem:[%s602 + $0x10] sm:$0xff]
      %v606 = vpack.c.bf16 %v604, %v603
      %v607 = vpack.c.bf16 %v605, %v605
      %s608 = scalar_lea.vmem %s1, 24
      %v609 = vld [vmem:[%s608] sm:$0xf]
      %v611 = vsel %vm209, %v606, 0
      %v614 = vsel %vm209, %v607, 0
      %v617 = vsel %vm216, %v609, 0
      %619 = vmatprep.subr.bf16.mxu0 0
      %620 = vmatpush1.bf16.msra.mxu0 %v617
      %621 = vmatprep.subr.bf16.mxu0 0
      %622 = vmatpush1.bf16.msra.mxu0 0
      %623 = vmatprep.subr.bf16.mxu0 0
      %624 = vmatpush1.bf16.msra.mxu0 0
      %625 = vmatprep.subr.bf16.mxu0 0
      %626 = vmatpush1.bf16.msra.mxu0 0
      %627 = vmatprep.subr.bf16.mxu0 0
      %628 = vmatpush1.bf16.msra.mxu0 0
      %629 = vmatprep.subr.bf16.mxu0 0
      %630 = vmatpush1.bf16.msra.mxu0 0
      %631 = vmatprep.subr.bf16.mxu0 0
      %632 = vmatpush1.bf16.msra.mxu0 0
      %633 = vmatprep.subr.bf16.mxu0 0
      %634 = vmatpush1.bf16.msra.mxu0 0
      %635 = vmatprep.subr.bf16.mxu0 0
      %636 = vmatpush1.bf16.msra.mxu0 0
      %637 = vmatprep.subr.bf16.mxu0 0
      %638 = vmatpush1.bf16.msra.mxu0 0
      %639 = vmatprep.subr.bf16.mxu0 0
      %640 = vmatpush1.bf16.msra.mxu0 0
      %641 = vmatprep.subr.bf16.mxu0 0
      %642 = vmatpush1.bf16.msra.mxu0 0
      %643 = vmatprep.subr.bf16.mxu0 0
      %644 = vmatpush1.bf16.msra.mxu0 0
      %645 = vmatprep.subr.bf16.mxu0 0
      %646 = vmatpush1.bf16.msra.mxu0 0
      %647 = vmatprep.subr.bf16.mxu0 0
      %648 = vmatpush1.bf16.msra.mxu0 0
      %649 = vmatprep.subr.bf16.mxu0 0
      %650 = vmatpush1.bf16.msra.mxu0 0
      %651 = vmatprep.mubr.bf16.mxu0 0
      %652 = vmatmul.mubr.bf16.gmra.mrb[0].mxu0 %v611
      %v653 = vpop.f32.mrb[0].mxu0
      %v654 = vadd.f32 0.0, %v653
      %v655 = vpop.f32.mrb[0].mxu0
      %v656 = vpop.f32.mrb[0].mxu0
      %v657 = vadd.f32 0.0, %v656
      %v658 = vpop.f32.mrb[0].mxu0
      %659 = vmatprep.mubr.bf16.mxu0 0
      %660 = vmatmul.mubr.bf16.gmra.mrb[0].mxu0 %v614
      %v661 = vpop.f32.mrb[0].mxu0
      %v662 = vadd.f32 0.0, %v661
      %v663 = vpop.f32.mrb[0].mxu0
      %v664 = vpop.f32.mrb[0].mxu0
      %v665 = vpop.f32.mrb[0].mxu0
      %666 = vdwg.mxu0
      %v667 = vadd.f32 %v598, %v654
      %v668 = vadd.f32 %v599, %v657
      %v669 = vadd.f32 %v600, %v662
      %s670 = sadd.s32 %s192, 13
      %s671 = scalar_lea.vmem %s181, %s670
      %v672 = vld [vmem:[%s671] sm:$0xff]
      %v673 = vld [vmem:[%s671 + $0x8] sm:$0xff]
      %v674 = vld [vmem:[%s671 + $0x10] sm:$0xff]
      %v675 = vpack.c.bf16 %v673, %v672
      %v676 = vpack.c.bf16 %v674, %v674
      %s677 = scalar_lea.vmem %s1, 28
      %v678 = vld [vmem:[%s677] sm:$0xf]
      %v680 = vsel %vm209, %v675, 0
      %v683 = vsel %vm209, %v676, 0
      %v686 = vsel %vm216, %v678, 0
      %688 = vmatprep.subr.bf16.mxu0 0
      %689 = vmatpush1.bf16.msra.mxu0 %v686
      %690 = vmatprep.subr.bf16.mxu0 0
      %691 = vmatpush1.bf16.msra.mxu0 0
      %692 = vmatprep.subr.bf16.mxu0 0
      %693 = vmatpush1.bf16.msra.mxu0 0
      %694 = vmatprep.subr.bf16.mxu0 0
      %695 = vmatpush1.bf16.msra.mxu0 0
      %696 = vmatprep.subr.bf16.mxu0 0
      %697 = vmatpush1.bf16.msra.mxu0 0
      %698 = vmatprep.subr.bf16.mxu0 0
      %699 = vmatpush1.bf16.msra.mxu0 0
      %700 = vmatprep.subr.bf16.mxu0 0
      %701 = vmatpush1.bf16.msra.mxu0 0
      %702 = vmatprep.subr.bf16.mxu0 0
      %703 = vmatpush1.bf16.msra.mxu0 0
      %704 = vmatprep.subr.bf16.mxu0 0
      %705 = vmatpush1.bf16.msra.mxu0 0
      %706 = vmatprep.subr.bf16.mxu0 0
      %707 = vmatpush1.bf16.msra.mxu0 0
      %708 = vmatprep.subr.bf16.mxu0 0
      %709 = vmatpush1.bf16.msra.mxu0 0
      %710 = vmatprep.subr.bf16.mxu0 0
      %711 = vmatpush1.bf16.msra.mxu0 0
      %712 = vmatprep.subr.bf16.mxu0 0
      %713 = vmatpush1.bf16.msra.mxu0 0
      %714 = vmatprep.subr.bf16.mxu0 0
      %715 = vmatpush1.bf16.msra.mxu0 0
      %716 = vmatprep.subr.bf16.mxu0 0
      %717 = vmatpush1.bf16.msra.mxu0 0
      %718 = vmatprep.subr.bf16.mxu0 0
      %719 = vmatpush1.bf16.msra.mxu0 0
      %720 = vmatprep.mubr.bf16.mxu0 0
      %721 = vmatmul.mubr.bf16.gmra.mrb[0].mxu0 %v680
      %v722 = vpop.f32.mrb[0].mxu0
      %v723 = vadd.f32 0.0, %v722
      %v724 = vpop.f32.mrb[0].mxu0
      %v725 = vpop.f32.mrb[0].mxu0
      %v726 = vadd.f32 0.0, %v725
      %v727 = vpop.f32.mrb[0].mxu0
      %728 = vmatprep.mubr.bf16.mxu0 0
      %729 = vmatmul.mubr.bf16.gmra.mrb[0].mxu0 %v683
      %v730 = vpop.f32.mrb[0].mxu0
      %v731 = vadd.f32 0.0, %v730
      %v732 = vpop.f32.mrb[0].mxu0
      %v733 = vpop.f32.mrb[0].mxu0
      %v734 = vpop.f32.mrb[0].mxu0
      %735 = vdwg.mxu0
      %v736 = vadd.f32 %v667, %v723
      %v737 = vadd.f32 %v668, %v726
      %v738 = vadd.f32 %v669, %v731
      %s739 = sadd.s32 %s192, 14
      %s740 = scalar_lea.vmem %s181, %s739
      %v741 = vld [vmem:[%s740] sm:$0xff]
      %v742 = vld [vmem:[%s740 + $0x8] sm:$0xff]
      %v743 = vld [vmem:[%s740 + $0x10] sm:$0xff]
      %v744 = vpack.c.bf16 %v742, %v741
      %v745 = vpack.c.bf16 %v743, %v743
      %s746 = scalar_lea.vmem %s1, 32
      %v747 = vld [vmem:[%s746] sm:$0xf]
      %v749 = vsel %vm209, %v744, 0
      %v752 = vsel %vm209, %v745, 0
      %v755 = vsel %vm216, %v747, 0
      %757 = vmatprep.subr.bf16.mxu0 0
      %758 = vmatpush1.bf16.msra.mxu0 %v755
      %759 = vmatprep.subr.bf16.mxu0 0
      %760 = vmatpush1.bf16.msra.mxu0 0
      %761 = vmatprep.subr.bf16.mxu0 0
      %762 = vmatpush1.bf16.msra.mxu0 0
      %763 = vmatprep.subr.bf16.mxu0 0
      %764 = vmatpush1.bf16.msra.mxu0 0
      %765 = vmatprep.subr.bf16.mxu0 0
      %766 = vmatpush1.bf16.msra.mxu0 0
      %767 = vmatprep.subr.bf16.mxu0 0
      %768 = vmatpush1.bf16.msra.mxu0 0
      %769 = vmatprep.subr.bf16.mxu0 0
      %770 = vmatpush1.bf16.msra.mxu0 0
      %771 = vmatprep.subr.bf16.mxu0 0
      %772 = vmatpush1.bf16.msra.mxu0 0
      %773 = vmatprep.subr.bf16.mxu0 0
      %774 = vmatpush1.bf16.msra.mxu0 0
      %775 = vmatprep.subr.bf16.mxu0 0
      %776 = vmatpush1.bf16.msra.mxu0 0
      %777 = vmatprep.subr.bf16.mxu0 0
      %778 = vmatpush1.bf16.msra.mxu0 0
      %779 = vmatprep.subr.bf16.mxu0 0
      %780 = vmatpush1.bf16.msra.mxu0 0
      %781 = vmatprep.subr.bf16.mxu0 0
      %782 = vmatpush1.bf16.msra.mxu0 0
      %783 = vmatprep.subr.bf16.mxu0 0
      %784 = vmatpush1.bf16.msra.mxu0 0
      %785 = vmatprep.subr.bf16.mxu0 0
      %786 = vmatpush1.bf16.msra.mxu0 0
      %787 = vmatprep.subr.bf16.mxu0 0
      %788 = vmatpush1.bf16.msra.mxu0 0
      %789 = vmatprep.mubr.bf16.mxu0 0
      %790 = vmatmul.mubr.bf16.gmra.mrb[0].mxu0 %v749
      %v791 = vpop.f32.mrb[0].mxu0
      %v792 = vadd.f32 0.0, %v791
      %v793 = vpop.f32.mrb[0].mxu0
      %v794 = vpop.f32.mrb[0].mxu0
      %v795 = vadd.f32 0.0, %v794
      %v796 = vpop.f32.mrb[0].mxu0
      %797 = vmatprep.mubr.bf16.mxu0 0
      %798 = vmatmul.mubr.bf16.gmra.mrb[0].mxu0 %v752
      %v799 = vpop.f32.mrb[0].mxu0
      %v800 = vadd.f32 0.0, %v799
      %v801 = vpop.f32.mrb[0].mxu0
      %v802 = vpop.f32.mrb[0].mxu0
      %v803 = vpop.f32.mrb[0].mxu0
      %804 = vdwg.mxu0
      %v805 = vadd.f32 %v736, %v792
      %v806 = vadd.f32 %v737, %v795
      %v807 = vadd.f32 %v738, %v800
      %v808 = vld [vmem:[%s2] sm:$0x1]
      %v810 = vlaneseq
      %v811 = vshrl.u32 %v810, 7
      %v812 = vsub.s32 0, %v811
      %v813 = vrot.slane %v808, %v812
      %v815 = vadd.f32 %v805, %v813
      %v816 = vadd.f32 %v806, %v813
      %v817 = vadd.f32 %v807, %v813
      %818 = vst [vmem:[%s188] sm:$0xff] %v815
      %819 = vst [vmem:[%s188 + $0x8] sm:$0xff] %v816
      %820 = vst [vmem:[%s188 + $0x10] sm:$0xff] %v817
      %s821 = sadd.s32 %s18, %s19
      %s822 = smul.u32 3, %s821
      %p823 = scmp.lt.s32.totalorder %s822, 5
      %s824 = scalar_select %p823, %s822, 5
      %s825 = smul.addr %s824, 8
      %s826 = scalar_lea.vmem %s3, %s825
      // Predicated region
      $region33: #{adapter_forward.16} parent=31 // pred_check
        %p827 = pneg %p114
      $region34: #{adapter_forward.16} parent=31 // pred_check_branch
        %829 = sbr.rel (%p827) target = $region36
      $region35: #{adapter_forward.16} parent=31 // pred_region
        %s830 = sadd.s32 %s18, %s19
        %s831 = smul.u32 3, %s830
      $region36: #{adapter_forward.16} parent=31 // pred_fallthru
        _
    $region32: #{adapter_forward.16} parent=5 // pred_fallthru
      _
    %p832 = scmp.le.s32.totalorder 2, %s9
    // Predicated region
    $region37: #{adapter_forward.16} parent=5 // pred_check
      %p833 = pneg %p832
    $region38: #{adapter_forward.16} parent=5 // pred_check_branch
      %835 = sbr.rel (%p833) target = $region40
    $region39: #{adapter_forward.16} parent=5 // pred_region
      %s836 = ssub.s32 %s9, 2
      // Predicated region
      $region41: #{adapter_forward.16} parent=39 // pred_check
        %p837 = pneg %p120
      $region42: #{adapter_forward.16} parent=39 // pred_check_branch
        %839 = sbr.rel (%p837) target = $region44
      $region43: #{adapter_forward.16} parent=39 // pred_region
        %s840 = sadd.s32 %s20, %s21
        %s841 = smul.u32 3, %s840
        %p842 = scmp.lt.s32.totalorder %s841, 5
        %s843 = scalar_select %p842, %s841, 5
        %s844 = smul.addr %s843, 8
        %s845 = scalar_lea.vmem %s3, %s844
      $region44: #{adapter_forward.16} parent=39 // pred_fallthru
        _
    $region40: #{adapter_forward.16} parent=5 // pred_fallthru
      _
  $region6: #{adapter_forward.16} parent=0 // loop_footer
    %s13 = sadd.s32 1, %s9
  $region7: #{adapter_forward.16} parent=0 // loop_footer_branch
    %8 = sbr.rel target = $region3
  $region8: #{adapter_forward.16} parent=0 // loop_exit
    _

// kernel: adapter_forward.19
$region0: #{adapter_forward.19}
  #allocation0 [shape = 'u32[]', space=smem, size = 0x4, offset = 0x4, fixed_abs, tag = 'smem constant byte address 0x4 - core index']
  #allocation1 [shape = 'u32[144,128]{1,0:T(1,128)}', space=vmem, size = 0x12000, scoped, tag = 'internal scratch']
  %s0 = inlined_call_operand.vmem [shape: f32[80,8], index: 0, kind: input, shape index: {}]
  %s1 = inlined_call_operand.vmem [shape: bf16[9,8,128], index: 1, kind: input, shape index: {}]
  %s2 = inlined_call_operand.vmem [shape: f32[1,128], index: 2, kind: input, shape index: {}]
  %s3 = inlined_call_operand.vmem [shape: f32[48,128], index: 3, kind: input, shape index: {}, may-alias: {3,4}]
  %s4 = inlined_call_operand.vmem [shape: f32[48,128], index: 4, kind: output, shape index: {}, may-alias: {3,4}]
  %s5 = sld [smem:[#allocation0]]
  $region49: #{adapter_forward.19} parent=0
    _
  %s7 = ssub.s32 1, %s5
  %s8 = scalar_select 0, %s7, %s5
  loop: start=0, step=1, limit=4
  $region2: #{adapter_forward.19} parent=0 // loop_pre_header
    _
  $region3: #{adapter_forward.19} parent=0 // loop_header
    %s10 = sphi 0, %s14
    %p11 = scmp.ge.s32.totalorder %s10, 4
    %s17 = sphi 0, %s29
    %s18 = sphi 0, %s25
    %s19 = sphi 0, %s17
    %s20 = sphi 0, %s18
    %s21 = sphi 0, %s19
    %s22 = sphi 0, %s20
    %s32 = sphi 0, %s34
    %s35 = sphi 0, %s32
    %s36 = sphi 0, %s35
    %s52 = sphi 0, %s36
    %s56 = sphi 0, %s56
    %s58 = sphi 0, %s56
    %s59 = sphi 0, %s58
    %s73 = sphi 0, %s59
    %s77 = sphi 0, %s77
    %s79 = sphi 0, %s77
    %s80 = sphi 0, %s79
    %s94 = sphi 0, %s80
    %s102 = sphi 0, %s104
    %s105 = sphi 0, %s102
    %s106 = sphi 0, %s105
    %s122 = sphi 0, %s106
    %s130 = sphi 0, %s132
    %s133 = sphi 0, %s130
    %s134 = sphi 0, %s133
    %s150 = sphi 0, %s134
  $region4: #{adapter_forward.19} parent=0 // loop_header_branch
    %13 = sbr.rel (%p11) target = $region8
  $region5: #{adapter_forward.19} parent=0 // loop_body
    %s15 = ssub.s32 %s10, 1
    %s16 = ssub.s32 %s10, 2
    %s23 = sadd.s32 1, %s18
    %p24 = scmp.ge.s32.totalorder %s23, 1
    %s25 = scalar_select %p24, 0, %s23
    %s26 = sadd.s32 1, %s17
    %s27 = scalar_select %p24, %s26, %s17
    %p28 = scmp.ge.s32.totalorder %s27, 2
    %s29 = scalar_select %p28, 0, %s27
    %s30 = ssub.s32 %s17, %s29
    %p31 = scmp.eq.s32.totalorder %s30, 0
    %s33 = sadd.s32 %s32, 1
    %s34 = scalar_select %p31, %s32, %s33
    %p37 = pneg %p31
    %p38 = scmp.eq.s32.totalorder %s10, 1
    %p39 = por %p37, %p38
    %p40 = scmp.ne.s32.totalorder %s32, %s35
    %p41 = scmp.eq.s32.totalorder %s10, 0
    %p42 = por %p40, %p41
    %p43 = scmp.ne.s32.totalorder %s32, %s35
    %p44 = scmp.eq.s32.totalorder %s15, 1
    %p45 = por %p43, %p44
    %p46 = scmp.ne.s32.totalorder %s35, %s36
    %p47 = scmp.eq.s32.totalorder %s15, 0
    %p48 = por %p46, %p47
    %p49 = scmp.ne.s32.totalorder %s35, %s36
    %p50 = scmp.eq.s32.totalorder %s16, 1
    %p51 = por %p49, %p50
    %p53 = scmp.ne.s32.totalorder %s36, %s52
    %p54 = scmp.eq.s32.totalorder %s16, 0
    %p55 = por %p53, %p54
    %s57 = sadd.s32 %s56, 1
    %p60 = scmp.eq.s32.totalorder %s10, 1
    %p61 = scmp.ne.s32.totalorder %s56, %s58
    %p62 = scmp.eq.s32.totalorder %s10, 0
    %p63 = por %p61, %p62
    %p64 = scmp.ne.s32.totalorder %s56, %s58
    %p65 = scmp.eq.s32.totalorder %s15, 1
    %p66 = por %p64, %p65
    %p67 = scmp.ne.s32.totalorder %s58, %s59
    %p68 = scmp.eq.s32.totalorder %s15, 0
    %p69 = por %p67, %p68
    %p70 = scmp.ne.s32.totalorder %s58, %s59
    %p71 = scmp.eq.s32.totalorder %s16, 1
    %p72 = por %p70, %p71
    %p74 = scmp.ne.s32.totalorder %s59, %s73
    %p75 = scmp.eq.s32.totalorder %s16, 0
    %p76 = por %p74, %p75
    %s78 = sadd.s32 %s77, 1
    %p81 = scmp.eq.s32.totalorder %s10, 1
    %p82 = scmp.ne.s32.totalorder %s77, %s79
    %p83 = scmp.eq.s32.totalorder %s10, 0
    %p84 = por %p82, %p83
    %p85 = scmp.ne.s32.totalorder %s77, %s79
    %p86 = scmp.eq.s32.totalorder %s15, 1
    %p87 = por %p85, %p86
    %p88 = scmp.ne.s32.totalorder %s79, %s80
    %p89 = scmp.eq.s32.totalorder %s15, 0
    %p90 = por %p88, %p89
    %p91 = scmp.ne.s32.totalorder %s79, %s80
    %p92 = scmp.eq.s32.totalorder %s16, 1
    %p93 = por %p91, %p92
    %p95 = scmp.ne.s32.totalorder %s80, %s94
    %p96 = scmp.eq.s32.totalorder %s16, 0
    %p97 = por %p95, %p96
    %s98 = sadd.s32 %s17, %s18
    %s99 = sadd.s32 %s29, %s25
    %s100 = ssub.s32 %s98, %s99
    %p101 = scmp.eq.s32.totalorder %s100, 0
    %s103 = sadd.s32 %s102, 1
    %s104 = scalar_select %p101, %s102, %s103
    %p107 = pneg %p101
    %p108 = scmp.eq.s32.totalorder %s10, 1
    %p109 = por %p107, %p108
    %p110 = scmp.ne.s32.totalorder %s102, %s105
    %p111 = scmp.eq.s32.totalorder %s10, 0
    %p112 = por %p110, %p111
    %p113 = scmp.ne.s32.totalorder %s102, %s105
    %p114 = scmp.eq.s32.totalorder %s15, 1
    %p115 = por %p113, %p114
    %p116 = scmp.ne.s32.totalorder %s105, %s106
    %p117 = scmp.eq.s32.totalorder %s15, 0
    %p118 = por %p116, %p117
    %p119 = scmp.ne.s32.totalorder %s105, %s106
    %p120 = scmp.eq.s32.totalorder %s16, 1
    %p121 = por %p119, %p120
    %p123 = scmp.ne.s32.totalorder %s106, %s122
    %p124 = scmp.eq.s32.totalorder %s16, 0
    %p125 = por %p123, %p124
    %s126 = sadd.s32 %s17, %s18
    %s127 = sadd.s32 %s29, %s25
    %s128 = ssub.s32 %s126, %s127
    %p129 = scmp.eq.s32.totalorder %s128, 0
    %s131 = sadd.s32 %s130, 1
    %s132 = scalar_select %p129, %s130, %s131
    %p135 = pneg %p129
    %p136 = scmp.eq.s32.totalorder %s10, 1
    %p137 = por %p135, %p136
    %p138 = scmp.ne.s32.totalorder %s130, %s133
    %p139 = scmp.eq.s32.totalorder %s10, 0
    %p140 = por %p138, %p139
    %p141 = scmp.ne.s32.totalorder %s130, %s133
    %p142 = scmp.eq.s32.totalorder %s15, 1
    %p143 = por %p141, %p142
    %p144 = scmp.ne.s32.totalorder %s133, %s134
    %p145 = scmp.eq.s32.totalorder %s15, 0
    %p146 = por %p144, %p145
    %p147 = scmp.ne.s32.totalorder %s133, %s134
    %p148 = scmp.eq.s32.totalorder %s16, 1
    %p149 = por %p147, %p148
    %p151 = scmp.ne.s32.totalorder %s134, %s150
    %p152 = scmp.eq.s32.totalorder %s16, 0
    %p153 = por %p151, %p152
    %p154 = scmp.le.s32.totalorder 1, %s10
    %p155 = scmp.lt.s32.totalorder %s10, 3
    %p156 = pnand %p154, %p155
    %p157 = pneg %p156
    // Predicated region
    $region9: #{adapter_forward.19} parent=5 // pred_check
      _
    $region10: #{adapter_forward.19} parent=5 // pred_check_branch
      %159 = sbr.rel (%p156) target = $region12
    $region11: #{adapter_forward.19} parent=5 // pred_region
      %s160 = ssub.s32 %s10, 1
      // Predicated region
      $region13: #{adapter_forward.19} parent=11 // pred_check
        %p161 = pneg %p69
      $region14: #{adapter_forward.19} parent=11 // pred_check_branch
        %163 = sbr.rel (%p161) target = $region16
      $region15: #{adapter_forward.19} parent=11 // pred_region
        _
      $region16: #{adapter_forward.19} parent=11 // pred_fallthru
        _
      // Predicated region
      $region17: #{adapter_forward.19} parent=11 // pred_check
        %p164 = pneg %p90
      $region18: #{adapter_forward.19} parent=11 // pred_check_branch
        %166 = sbr.rel (%p164) target = $region20
      $region19: #{adapter_forward.19} parent=11 // pred_region
        _
      $region20: #{adapter_forward.19} parent=11 // pred_fallthru
        _
    $region12: #{adapter_forward.19} parent=5 // pred_fallthru
      _
    %p167 = scmp.lt.s32.totalorder %s10, 2
    // Predicated region
    $region21: #{adapter_forward.19} parent=5 // pred_check
      %p168 = pneg %p167
    $region22: #{adapter_forward.19} parent=5 // pred_check_branch
      %170 = sbr.rel (%p168) target = $region24
    $region23: #{adapter_forward.19} parent=5 // pred_region
      // Predicated region
      $region25: #{adapter_forward.19} parent=23 // pred_check
        %p171 = pneg %p42
      $region26: #{adapter_forward.19} parent=23 // pred_check_branch
        %173 = sbr.rel (%p171) target = $region28
      $region27: #{adapter_forward.19} parent=23 // pred_region
        %s174 = smul.u32 5, %s17
        %p175 = scmp.lt.s32.totalorder %s174, 9
        %s176 = scalar_select %p175, %s174, 9
        %s177 = smul.addr %s176, 8
        %s178 = scalar_lea.vmem %s0, %s177
        %s179 = smul.u32 5, %s17
      $region28: #{adapter_forward.19} parent=23 // pred_fallthru
        _
      // Predicated region
      $region29: #{adapter_forward.19} parent=23 // pred_check
        %p180 = pneg %p112
      $region30: #{adapter_forward.19} parent=23 // pred_check_branch
        %182 = sbr.rel (%p180) target = $region32
      $region31: #{adapter_forward.19} parent=23 // pred_region
        %s183 = sadd.s32 %s17, %s18
        %s184 = smul.u32 3, %s183
        %p185 = scmp.lt.s32.totalorder %s184, 5
        %s186 = scalar_select %p185, %s184, 5
        %s187 = smul.addr %s186, 8
        %s188 = scalar_lea.vmem %s3, %s187
        %s189 = sadd.s32 %s17, %s18
        %s190 = smul.u32 3, %s189
      $region32: #{adapter_forward.19} parent=23 // pred_fallthru
        _
    $region24: #{adapter_forward.19} parent=5 // pred_fallthru
      _
    %p191 = scmp.le.s32.totalorder 1, %s10
    %p192 = scmp.lt.s32.totalorder %s10, 3
    %p193 = pnand %p191, %p192
    %p194 = pneg %p193
    // Predicated region
    $region33: #{adapter_forward.19} parent=5 // pred_check
      _
    $region34: #{adapter_forward.19} parent=5 // pred_check_branch
      %196 = sbr.rel (%p193) target = $region36
    $region35: #{adapter_forward.19} parent=5 // pred_region
      %s197 = ssub.s32 %s10, 1
      %s198 = smul.u32 5, %s19
      %p199 = scmp.lt.s32.totalorder %s198, 9
      %s200 = scalar_select %p199, %s198, 9
      %s201 = smul.addr %s200, 8
      %s202 = scalar_lea.vmem %s0, %s201
      %p203 = pneg %p48
      %p204 = pneg %p45
      %p205 = pneg %p69
      %p206 = pneg %p66
      %p207 = pneg %p90
      %p208 = pneg %p87
      %s209 = sadd.s32 %s19, %s20
      %s210 = smul.u32 3, %s209
      %p211 = scmp.lt.s32.totalorder %s210, 5
      %s212 = scalar_select %p211, %s210, 5
      %s213 = smul.addr %s212, 8
      %s214 = scalar_lea.vmem %s3, %s213
      %p215 = pneg %p118
      %p216 = pneg %p115
      %p217 = pneg %p146
      %p218 = pneg %p143
      %s219 = sadd.s32 %s19, %s20
      %s220 = smul.u32 3, %s219
      %p221 = scmp.lt.s32.totalorder %s220, 5
      %s222 = scalar_select %p221, %s220, 5
      %s223 = smul.addr %s222, 8
      %s224 = scalar_lea.vmem %s4, %s223
      %s225 = smul.u32 5, %s19
      %p226 = scmp.lt.s32.totalorder %s225, 9
      %s227 = scalar_select %p226, %s225, 9
      %s228 = smul.addr %s227, 8
      %s229 = scalar_lea.vmem %s0, %s228
      %s230 = smul.u32 5, %s19
      %s231 = sadd.s32 %s19, %s20
      %s232 = smul.u32 3, %s231
      %p233 = scmp.lt.s32.totalorder %s232, 5
      %s234 = scalar_select %p233, %s232, 5
      %s235 = smul.addr %s234, 8
      %s236 = scalar_lea.vmem %s3, %s235
      %s237 = sadd.s32 %s19, %s20
      %s238 = smul.u32 3, %s237
      %s239 = sadd.s32 %s19, %s20
      %s240 = smul.u32 3, %s239
      %p241 = scmp.lt.s32.totalorder %s240, 5
      %s242 = scalar_select %p241, %s240, 5
      %s243 = smul.addr %s242, 8
      %s244 = scalar_lea.vmem %s4, %s243
      %s245 = sadd.s32 %s19, %s20
      %s246 = smul.u32 3, %s245
      %s248 = smul.u32 %s20, 24
      %s249 = scalar_lea.vmem %s229, %s248
      %v250 = vld [vmem:[%s249] sm:$0xff]
      %v251 = vld [vmem:[%s249 + $0x8] sm:$0xff]
      %v252 = vld [vmem:[%s249 + $0x10] sm:$0xff]
      %v253 = vpack.c.bf16 %v251, %v250
      %v254 = vpack.c.bf16 %v252, %v252
      %v255 = vld [vmem:[%s1] sm:$0xf]
      %s256 = sadd.s32 %s248, 1
      %s257 = scalar_lea.vmem %s229, %s256
      %v258 = vld [vmem:[%s257] sm:$0xff]
      %v259 = vld [vmem:[%s257 + $0x8] sm:$0xff]
      %v260 = vld [vmem:[%s257 + $0x10] sm:$0xff]
      %v261 = vpack.c.bf16 %v259, %v258
      %v262 = vpack.c.bf16 %v260, %v260
      %s263 = scalar_lea.vmem %s1, 4
      %v264 = vld [vmem:[%s263] sm:$0xf]
      %vm265 = vcmask 64512
      %v267 = vsel %vm265, %v261, 0
      %v270 = vsel %vm265, %v262, 0
      %vm272 = vcmask 1043456
      %v274 = vsel %vm272, %v264, 0
      %276 = vmatprep.subr.bf16.mxu0 0
      %277 = vmatpush1.bf16.msra.mxu0 %v274
      %278 = vmatprep.subr.bf16.mxu0 0
      %279 = vmatpush1.bf16.msra.mxu0 0
      %280 = vmatprep.subr.bf16.mxu0 0
      %281 = vmatpush1.bf16.msra.mxu0 0
      %282 = vmatprep.subr.bf16.mxu0 0
      %283 = vmatpush1.bf16.msra.mxu0 0
      %284 = vmatprep.subr.bf16.mxu0 0
      %285 = vmatpush1.bf16.msra.mxu0 0
      %286 = vmatprep.subr.bf16.mxu0 0
      %287 = vmatpush1.bf16.msra.mxu0 0
      %288 = vmatprep.subr.bf16.mxu0 0
      %289 = vmatpush1.bf16.msra.mxu0 0
      %290 = vmatprep.subr.bf16.mxu0 0
      %291 = vmatpush1.bf16.msra.mxu0 0
      %292 = vmatprep.subr.bf16.mxu0 0
      %293 = vmatpush1.bf16.msra.mxu0 0
      %294 = vmatprep.subr.bf16.mxu0 0
      %295 = vmatpush1.bf16.msra.mxu0 0
      %296 = vmatprep.subr.bf16.mxu0 0
      %297 = vmatpush1.bf16.msra.mxu0 0
      %298 = vmatprep.subr.bf16.mxu0 0
      %299 = vmatpush1.bf16.msra.mxu0 0
      %300 = vmatprep.subr.bf16.mxu0 0
      %301 = vmatpush1.bf16.msra.mxu0 0
      %302 = vmatprep.subr.bf16.mxu0 0
      %303 = vmatpush1.bf16.msra.mxu0 0
      %304 = vmatprep.subr.bf16.mxu0 0
      %305 = vmatpush1.bf16.msra.mxu0 0
      %306 = vmatprep.subr.bf16.mxu0 0
      %307 = vmatpush1.bf16.msra.mxu0 0
      %308 = vmatprep.mubr.bf16.mxu0 0
      %309 = vmatmul.mubr.bf16.gmra.mrb[0].mxu0 %v267
      %v310 = vpop.f32.mrb[0].mxu0
      %v311 = vadd.f32 0.0, %v310
      %v312 = vpop.f32.mrb[0].mxu0
      %v313 = vpop.f32.mrb[0].mxu0
      %v314 = vadd.f32 0.0, %v313
      %v315 = vpop.f32.mrb[0].mxu0
      %316 = vmatprep.mubr.bf16.mxu0 0
      %317 = vmatmul.mubr.bf16.gmra.mrb[0].mxu0 %v270
      %v318 = vpop.f32.mrb[0].mxu0
      %v319 = vadd.f32 0.0, %v318
      %v320 = vpop.f32.mrb[0].mxu0
      %v321 = vpop.f32.mrb[0].mxu0
      %v322 = vpop.f32.mrb[0].mxu0
      %323 = vdwg.mxu0
      %v325 = vsel %vm265, %v253, 0
      %v328 = vsel %vm265, %v254, 0
      %v331 = vsel %vm272, %v255, 0
      %333 = vmatprep.subr.bf16.mxu0 0
      %334 = vmatpush1.bf16.msra.mxu0 %v331
      %335 = vmatprep.subr.bf16.mxu0 0
      %336 = vmatpush1.bf16.msra.mxu0 0
      %337 = vmatprep.subr.bf16.mxu0 0
      %338 = vmatpush1.bf16.msra.mxu0 0
      %339 = vmatprep.subr.bf16.mxu0 0
      %340 = vmatpush1.bf16.msra.mxu0 0
      %341 = vmatprep.subr.bf16.mxu0 0
      %342 = vmatpush1.bf16.msra.mxu0 0
      %343 = vmatprep.subr.bf16.mxu0 0
      %344 = vmatpush1.bf16.msra.mxu0 0
      %345 = vmatprep.subr.bf16.mxu0 0
      %346 = vmatpush1.bf16.msra.mxu0 0
      %347 = vmatprep.subr.bf16.mxu0 0
      %348 = vmatpush1.bf16.msra.mxu0 0
      %349 = vmatprep.subr.bf16.mxu0 0
      %350 = vmatpush1.bf16.msra.mxu0 0
      %351 = vmatprep.subr.bf16.mxu0 0
      %352 = vmatpush1.bf16.msra.mxu0 0
      %353 = vmatprep.subr.bf16.mxu0 0
      %354 = vmatpush1.bf16.msra.mxu0 0
      %355 = vmatprep.subr.bf16.mxu0 0
      %356 = vmatpush1.bf16.msra.mxu0 0
      %357 = vmatprep.subr.bf16.mxu0 0
      %358 = vmatpush1.bf16.msra.mxu0 0
      %359 = vmatprep.subr.bf16.mxu0 0
      %360 = vmatpush1.bf16.msra.mxu0 0
      %361 = vmatprep.subr.bf16.mxu0 0
      %362 = vmatpush1.bf16.msra.mxu0 0
      %363 = vmatprep.subr.bf16.mxu0 0
      %364 = vmatpush1.bf16.msra.mxu0 0
      %365 = vmatprep.mubr.bf16.mxu0 0
      %366 = vmatmul.mubr.bf16.gmra.mrb[0].mxu0 %v325
      %v367 = vpop.f32.mrb[0].mxu0
      %v368 = vadd.f32 %v311, %v367
      %v369 = vpop.f32.mrb[0].mxu0
      %v370 = vpop.f32.mrb[0].mxu0
      %v371 = vadd.f32 %v314, %v370
      %v372 = vpop.f32.mrb[0].mxu0
      %373 = vmatprep.mubr.bf16.mxu0 0
      %374 = vmatmul.mubr.bf16.gmra.mrb[0].mxu0 %v328
      %v375 = vpop.f32.mrb[0].mxu0
      %v376 = vadd.f32 %v319, %v375
      %v377 = vpop.f32.mrb[0].mxu0
      %v378 = vpop.f32.mrb[0].mxu0
      %v379 = vpop.f32.mrb[0].mxu0
      %380 = vdwg.mxu0
      %s381 = sadd.s32 %s248, 2
      %s382 = scalar_lea.vmem %s229, %s381
      %v383 = vld [vmem:[%s382] sm:$0xff]
      %v384 = vld [vmem:[%s382 + $0x8] sm:$0xff]
      %v385 = vld [vmem:[%s382 + $0x10] sm:$0xff]
      %v386 = vpack.c.bf16 %v384, %v383
      %v387 = vpack.c.bf16 %v385, %v385
      %s388 = scalar_lea.vmem %s1, 8
      %v389 = vld [vmem:[%s388] sm:$0xf]
      %v391 = vsel %vm265, %v386, 0
      %v394 = vsel %vm265, %v387, 0
      %v397 = vsel %vm272, %v389, 0
      %399 = vmatprep.subr.bf16.mxu0 0
      %400 = vmatpush1.bf16.msra.mxu0 %v397
      %401 = vmatprep.subr.bf16.mxu0 0
      %402 = vmatpush1.bf16.msra.mxu0 0
      %403 = vmatprep.subr.bf16.mxu0 0
      %404 = vmatpush1.bf16.msra.mxu0 0
      %405 = vmatprep.subr.bf16.mxu0 0
      %406 = vmatpush1.bf16.msra.mxu0 0
      %407 = vmatprep.subr.bf16.mxu0 0
      %408 = vmatpush1.bf16.msra.mxu0 0
      %409 = vmatprep.subr.bf16.mxu0 0
      %410 = vmatpush1.bf16.msra.mxu0 0
      %411 = vmatprep.subr.bf16.mxu0 0
      %412 = vmatpush1.bf16.msra.mxu0 0
      %413 = vmatprep.subr.bf16.mxu0 0
      %414 = vmatpush1.bf16.msra.mxu0 0
      %415 = vmatprep.subr.bf16.mxu0 0
      %416 = vmatpush1.bf16.msra.mxu0 0
      %417 = vmatprep.subr.bf16.mxu0 0
      %418 = vmatpush1.bf16.msra.mxu0 0
      %419 = vmatprep.subr.bf16.mxu0 0
      %420 = vmatpush1.bf16.msra.mxu0 0
      %421 = vmatprep.subr.bf16.mxu0 0
      %422 = vmatpush1.bf16.msra.mxu0 0
      %423 = vmatprep.subr.bf16.mxu0 0
      %424 = vmatpush1.bf16.msra.mxu0 0
      %425 = vmatprep.subr.bf16.mxu0 0
      %426 = vmatpush1.bf16.msra.mxu0 0
      %427 = vmatprep.subr.bf16.mxu0 0
      %428 = vmatpush1.bf16.msra.mxu0 0
      %429 = vmatprep.subr.bf16.mxu0 0
      %430 = vmatpush1.bf16.msra.mxu0 0
      %431 = vmatprep.mubr.bf16.mxu0 0
      %432 = vmatmul.mubr.bf16.gmra.mrb[0].mxu0 %v391
      %v433 = vpop.f32.mrb[0].mxu0
      %v434 = vadd.f32 0.0, %v433
      %v435 = vpop.f32.mrb[0].mxu0
      %v436 = vpop.f32.mrb[0].mxu0
      %v437 = vadd.f32 0.0, %v436
      %v438 = vpop.f32.mrb[0].mxu0
      %439 = vmatprep.mubr.bf16.mxu0 0
      %440 = vmatmul.mubr.bf16.gmra.mrb[0].mxu0 %v394
      %v441 = vpop.f32.mrb[0].mxu0
      %v442 = vadd.f32 0.0, %v441
      %v443 = vpop.f32.mrb[0].mxu0
      %v444 = vpop.f32.mrb[0].mxu0
      %v445 = vpop.f32.mrb[0].mxu0
      %446 = vdwg.mxu0
      %v447 = vadd.f32 %v368, %v434
      %v448 = vadd.f32 %v371, %v437
      %v449 = vadd.f32 %v376, %v442
      %s450 = sadd.s32 %s248, 6
      %s451 = scalar_lea.vmem %s229, %s450
      %v452 = vld [vmem:[%s451] sm:$0xff]
      %v453 = vld [vmem:[%s451 + $0x8] sm:$0xff]
      %v454 = vld [vmem:[%s451 + $0x10] sm:$0xff]
      %v455 = vpack.c.bf16 %v453, %v452
      %v456 = vpack.c.bf16 %v454, %v454
      %s457 = scalar_lea.vmem %s1, 12
      %v458 = vld [vmem:[%s457] sm:$0xf]
      %v460 = vsel %vm265, %v455, 0
      %v463 = vsel %vm265, %v456, 0
      %v466 = vsel %vm272, %v458, 0
      %468 = vmatprep.subr.bf16.mxu0 0
      %469 = vmatpush1.bf16.msra.mxu0 %v466
      %470 = vmatprep.subr.bf16.mxu0 0
      %471 = vmatpush1.bf16.msra.mxu0 0
      %472 = vmatprep.subr.bf16.mxu0 0
      %473 = vmatpush1.bf16.msra.mxu0 0
      %474 = vmatprep.subr.bf16.mxu0 0
      %475 = vmatpush1.bf16.msra.mxu0 0
      %476 = vmatprep.subr.bf16.mxu0 0
      %477 = vmatpush1.bf16.msra.mxu0 0
      %478 = vmatprep.subr.bf16.mxu0 0
      %479 = vmatpush1.bf16.msra.mxu0 0
      %480 = vmatprep.subr.bf16.mxu0 0
      %481 = vmatpush1.bf16.msra.mxu0 0
      %482 = vmatprep.subr.bf16.mxu0 0
      %483 = vmatpush1.bf16.msra.mxu0 0
      %484 = vmatprep.subr.bf16.mxu0 0
      %485 = vmatpush1.bf16.msra.mxu0 0
      %486 = vmatprep.subr.bf16.mxu0 0
      %487 = vmatpush1.bf16.msra.mxu0 0
      %488 = vmatprep.subr.bf16.mxu0 0
      %489 = vmatpush1.bf16.msra.mxu0 0
      %490 = vmatprep.subr.bf16.mxu0 0
      %491 = vmatpush1.bf16.msra.mxu0 0
      %492 = vmatprep.subr.bf16.mxu0 0
      %493 = vmatpush1.bf16.msra.mxu0 0
      %494 = vmatprep.subr.bf16.mxu0 0
      %495 = vmatpush1.bf16.msra.mxu0 0
      %496 = vmatprep.subr.bf16.mxu0 0
      %497 = vmatpush1.bf16.msra.mxu0 0
      %498 = vmatprep.subr.bf16.mxu0 0
      %499 = vmatpush1.bf16.msra.mxu0 0
      %500 = vmatprep.mubr.bf16.mxu0 0
      %501 = vmatmul.mubr.bf16.gmra.mrb[0].mxu0 %v460
      %v502 = vpop.f32.mrb[0].mxu0
      %v503 = vadd.f32 0.0, %v502
      %v504 = vpop.f32.mrb[0].mxu0
      %v505 = vpop.f32.mrb[0].mxu0
      %v506 = vadd.f32 0.0, %v505
      %v507 = vpop.f32.mrb[0].mxu0
      %508 = vmatprep.mubr.bf16.mxu0 0
      %509 = vmatmul.mubr.bf16.gmra.mrb[0].mxu0 %v463
      %v510 = vpop.f32.mrb[0].mxu0
      %v511 = vadd.f32 0.0, %v510
      %v512 = vpop.f32.mrb[0].mxu0
      %v513 = vpop.f32.mrb[0].mxu0
      %v514 = vpop.f32.mrb[0].mxu0
      %515 = vdwg.mxu0
      %v516 = vadd.f32 %v447, %v503
      %v517 = vadd.f32 %v448, %v506
      %v518 = vadd.f32 %v449, %v511
      %s519 = sadd.s32 %s248, 7
      %s520 = scalar_lea.vmem %s229, %s519
      %v521 = vld [vmem:[%s520] sm:$0xff]
      %v522 = vld [vmem:[%s520 + $0x8] sm:$0xff]
      %v523 = vld [vmem:[%s520 + $0x10] sm:$0xff]
      %v524 = vpack.c.bf16 %v522, %v521
      %v525 = vpack.c.bf16 %v523, %v523
      %s526 = scalar_lea.vmem %s1, 16
      %v527 = vld [vmem:[%s526] sm:$0xf]
      %v529 = vsel %vm265, %v524, 0
      %v532 = vsel %vm265, %v525, 0
      %v535 = vsel %vm272, %v527, 0
      %537 = vmatprep.subr.bf16.mxu0 0
      %538 = vmatpush1.bf16.msra.mxu0 %v535
      %539 = vmatprep.subr.bf16.mxu0 0
      %540 = vmatpush1.bf16.msra.mxu0 0
      %541 = vmatprep.subr.bf16.mxu0 0
      %542 = vmatpush1.bf16.msra.mxu0 0
      %543 = vmatprep.subr.bf16.mxu0 0
      %544 = vmatpush1.bf16.msra.mxu0 0
      %545 = vmatprep.subr.bf16.mxu0 0
      %546 = vmatpush1.bf16.msra.mxu0 0
      %547 = vmatprep.subr.bf16.mxu0 0
      %548 = vmatpush1.bf16.msra.mxu0 0
      %549 = vmatprep.subr.bf16.mxu0 0
      %550 = vmatpush1.bf16.msra.mxu0 0
      %551 = vmatprep.subr.bf16.mxu0 0
      %552 = vmatpush1.bf16.msra.mxu0 0
      %553 = vmatprep.subr.bf16.mxu0 0
      %554 = vmatpush1.bf16.msra.mxu0 0
      %555 = vmatprep.subr.bf16.mxu0 0
      %556 = vmatpush1.bf16.msra.mxu0 0
      %557 = vmatprep.subr.bf16.mxu0 0
      %558 = vmatpush1.bf16.msra.mxu0 0
      %559 = vmatprep.subr.bf16.mxu0 0
      %560 = vmatpush1.bf16.msra.mxu0 0
      %561 = vmatprep.subr.bf16.mxu0 0
      %562 = vmatpush1.bf16.msra.mxu0 0
      %563 = vmatprep.subr.bf16.mxu0 0
      %564 = vmatpush1.bf16.msra.mxu0 0
      %565 = vmatprep.subr.bf16.mxu0 0
      %566 = vmatpush1.bf16.msra.mxu0 0
      %567 = vmatprep.subr.bf16.mxu0 0
      %568 = vmatpush1.bf16.msra.mxu0 0
      %569 = vmatprep.mubr.bf16.mxu0 0
      %570 = vmatmul.mubr.bf16.gmra.mrb[0].mxu0 %v529
      %v571 = vpop.f32.mrb[0].mxu0
      %v572 = vadd.f32 0.0, %v571
      %v573 = vpop.f32.mrb[0].mxu0
      %v574 = vpop.f32.mrb[0].mxu0
      %v575 = vadd.f32 0.0, %v574
      %v576 = vpop.f32.mrb[0].mxu0
      %577 = vmatprep.mubr.bf16.mxu0 0
      %578 = vmatmul.mubr.bf16.gmra.mrb[0].mxu0 %v532
      %v579 = vpop.f32.mrb[0].mxu0
      %v580 = vadd.f32 0.0, %v579
      %v581 = vpop.f32.mrb[0].mxu0
      %v582 = vpop.f32.mrb[0].mxu0
      %v583 = vpop.f32.mrb[0].mxu0
      %584 = vdwg.mxu0
      %v585 = vadd.f32 %v516, %v572
      %v586 = vadd.f32 %v517, %v575
      %v587 = vadd.f32 %v518, %v580
      %s588 = sadd.s32 %s248, 8
      %s589 = scalar_lea.vmem %s229, %s588
      %v590 = vld [vmem:[%s589] sm:$0xff]
      %v591 = vld [vmem:[%s589 + $0x8] sm:$0xff]
      %v592 = vld [vmem:[%s589 + $0x10] sm:$0xff]
      %v593 = vpack.c.bf16 %v591, %v590
      %v594 = vpack.c.bf16 %v592, %v592
      %s595 = scalar_lea.vmem %s1, 20
      %v596 = vld [vmem:[%s595] sm:$0xf]
      %v598 = vsel %vm265, %v593, 0
      %v601 = vsel %vm265, %v594, 0
      %v604 = vsel %vm272, %v596, 0
      %606 = vmatprep.subr.bf16.mxu0 0
      %607 = vmatpush1.bf16.msra.mxu0 %v604
      %608 = vmatprep.subr.bf16.mxu0 0
      %609 = vmatpush1.bf16.msra.mxu0 0
      %610 = vmatprep.subr.bf16.mxu0 0
      %611 = vmatpush1.bf16.msra.mxu0 0
      %612 = vmatprep.subr.bf16.mxu0 0
      %613 = vmatpush1.bf16.msra.mxu0 0
      %614 = vmatprep.subr.bf16.mxu0 0
      %615 = vmatpush1.bf16.msra.mxu0 0
      %616 = vmatprep.subr.bf16.mxu0 0
      %617 = vmatpush1.bf16.msra.mxu0 0
      %618 = vmatprep.subr.bf16.mxu0 0
      %619 = vmatpush1.bf16.msra.mxu0 0
      %620 = vmatprep.subr.bf16.mxu0 0
      %621 = vmatpush1.bf16.msra.mxu0 0
      %622 = vmatprep.subr.bf16.mxu0 0
      %623 = vmatpush1.bf16.msra.mxu0 0
      %624 = vmatprep.subr.bf16.mxu0 0
      %625 = vmatpush1.bf16.msra.mxu0 0
      %626 = vmatprep.subr.bf16.mxu0 0
      %627 = vmatpush1.bf16.msra.mxu0 0
      %628 = vmatprep.subr.bf16.mxu0 0
      %629 = vmatpush1.bf16.msra.mxu0 0
      %630 = vmatprep.subr.bf16.mxu0 0
      %631 = vmatpush1.bf16.msra.mxu0 0
      %632 = vmatprep.subr.bf16.mxu0 0
      %633 = vmatpush1.bf16.msra.mxu0 0
      %634 = vmatprep.subr.bf16.mxu0 0
      %635 = vmatpush1.bf16.msra.mxu0 0
      %636 = vmatprep.subr.bf16.mxu0 0
      %637 = vmatpush1.bf16.msra.mxu0 0
      %638 = vmatprep.mubr.bf16.mxu0 0
      %639 = vmatmul.mubr.bf16.gmra.mrb[0].mxu0 %v598
      %v640 = vpop.f32.mrb[0].mxu0
      %v641 = vadd.f32 0.0, %v640
      %v642 = vpop.f32.mrb[0].mxu0
      %v643 = vpop.f32.mrb[0].mxu0
      %v644 = vadd.f32 0.0, %v643
      %v645 = vpop.f32.mrb[0].mxu0
      %646 = vmatprep.mubr.bf16.mxu0 0
      %647 = vmatmul.mubr.bf16.gmra.mrb[0].mxu0 %v601
      %v648 = vpop.f32.mrb[0].mxu0
      %v649 = vadd.f32 0.0, %v648
      %v650 = vpop.f32.mrb[0].mxu0
      %v651 = vpop.f32.mrb[0].mxu0
      %v652 = vpop.f32.mrb[0].mxu0
      %653 = vdwg.mxu0
      %v654 = vadd.f32 %v585, %v641
      %v655 = vadd.f32 %v586, %v644
      %v656 = vadd.f32 %v587, %v649
      %s657 = sadd.s32 %s248, 12
      %s658 = scalar_lea.vmem %s229, %s657
      %v659 = vld [vmem:[%s658] sm:$0xff]
      %v660 = vld [vmem:[%s658 + $0x8] sm:$0xff]
      %v661 = vld [vmem:[%s658 + $0x10] sm:$0xff]
      %v662 = vpack.c.bf16 %v660, %v659
      %v663 = vpack.c.bf16 %v661, %v661
      %s664 = scalar_lea.vmem %s1, 24
      %v665 = vld [vmem:[%s664] sm:$0xf]
      %v667 = vsel %vm265, %v662, 0
      %v670 = vsel %vm265, %v663, 0
      %v673 = vsel %vm272, %v665, 0
      %675 = vmatprep.subr.bf16.mxu0 0
      %676 = vmatpush1.bf16.msra.mxu0 %v673
      %677 = vmatprep.subr.bf16.mxu0 0
      %678 = vmatpush1.bf16.msra.mxu0 0
      %679 = vmatprep.subr.bf16.mxu0 0
      %680 = vmatpush1.bf16.msra.mxu0 0
      %681 = vmatprep.subr.bf16.mxu0 0
      %682 = vmatpush1.bf16.msra.mxu0 0
      %683 = vmatprep.subr.bf16.mxu0 0
      %684 = vmatpush1.bf16.msra.mxu0 0
      %685 = vmatprep.subr.bf16.mxu0 0
      %686 = vmatpush1.bf16.msra.mxu0 0
      %687 = vmatprep.subr.bf16.mxu0 0
      %688 = vmatpush1.bf16.msra.mxu0 0
      %689 = vmatprep.subr.bf16.mxu0 0
      %690 = vmatpush1.bf16.msra.mxu0 0
      %691 = vmatprep.subr.bf16.mxu0 0
      %692 = vmatpush1.bf16.msra.mxu0 0
      %693 = vmatprep.subr.bf16.mxu0 0
      %694 = vmatpush1.bf16.msra.mxu0 0
      %695 = vmatprep.subr.bf16.mxu0 0
      %696 = vmatpush1.bf16.msra.mxu0 0
      %697 = vmatprep.subr.bf16.mxu0 0
      %698 = vmatpush1.bf16.msra.mxu0 0
      %699 = vmatprep.subr.bf16.mxu0 0
      %700 = vmatpush1.bf16.msra.mxu0 0
      %701 = vmatprep.subr.bf16.mxu0 0
      %702 = vmatpush1.bf16.msra.mxu0 0
      %703 = vmatprep.subr.bf16.mxu0 0
      %704 = vmatpush1.bf16.msra.mxu0 0
      %705 = vmatprep.subr.bf16.mxu0 0
      %706 = vmatpush1.bf16.msra.mxu0 0
      %707 = vmatprep.mubr.bf16.mxu0 0
      %708 = vmatmul.mubr.bf16.gmra.mrb[0].mxu0 %v667
      %v709 = vpop.f32.mrb[0].mxu0
      %v710 = vadd.f32 0.0, %v709
      %v711 = vpop.f32.mrb[0].mxu0
      %v712 = vpop.f32.mrb[0].mxu0
      %v713 = vadd.f32 0.0, %v712
      %v714 = vpop.f32.mrb[0].mxu0
      %715 = vmatprep.mubr.bf16.mxu0 0
      %716 = vmatmul.mubr.bf16.gmra.mrb[0].mxu0 %v670
      %v717 = vpop.f32.mrb[0].mxu0
      %v718 = vadd.f32 0.0, %v717
      %v719 = vpop.f32.mrb[0].mxu0
      %v720 = vpop.f32.mrb[0].mxu0
      %v721 = vpop.f32.mrb[0].mxu0
      %722 = vdwg.mxu0
      %v723 = vadd.f32 %v654, %v710
      %v724 = vadd.f32 %v655, %v713
      %v725 = vadd.f32 %v656, %v718
      %s726 = sadd.s32 %s248, 13
      %s727 = scalar_lea.vmem %s229, %s726
      %v728 = vld [vmem:[%s727] sm:$0xff]
      %v729 = vld [vmem:[%s727 + $0x8] sm:$0xff]
      %v730 = vld [vmem:[%s727 + $0x10] sm:$0xff]
      %v731 = vpack.c.bf16 %v729, %v728
      %v732 = vpack.c.bf16 %v730, %v730
      %s733 = scalar_lea.vmem %s1, 28
      %v734 = vld [vmem:[%s733] sm:$0xf]
      %v736 = vsel %vm265, %v731, 0
      %v739 = vsel %vm265, %v732, 0
      %v742 = vsel %vm272, %v734, 0
      %744 = vmatprep.subr.bf16.mxu0 0
      %745 = vmatpush1.bf16.msra.mxu0 %v742
      %746 = vmatprep.subr.bf16.mxu0 0
      %747 = vmatpush1.bf16.msra.mxu0 0
      %748 = vmatprep.subr.bf16.mxu0 0
      %749 = vmatpush1.bf16.msra.mxu0 0
      %750 = vmatprep.subr.bf16.mxu0 0
      %751 = vmatpush1.bf16.msra.mxu0 0
      %752 = vmatprep.subr.bf16.mxu0 0
      %753 = vmatpush1.bf16.msra.mxu0 0
      %754 = vmatprep.subr.bf16.mxu0 0
      %755 = vmatpush1.bf16.msra.mxu0 0
      %756 = vmatprep.subr.bf16.mxu0 0
      %757 = vmatpush1.bf16.msra.mxu0 0
      %758 = vmatprep.subr.bf16.mxu0 0
      %759 = vmatpush1.bf16.msra.mxu0 0
      %760 = vmatprep.subr.bf16.mxu0 0
      %761 = vmatpush1.bf16.msra.mxu0 0
      %762 = vmatprep.subr.bf16.mxu0 0
      %763 = vmatpush1.bf16.msra.mxu0 0
      %764 = vmatprep.subr.bf16.mxu0 0
      %765 = vmatpush1.bf16.msra.mxu0 0
      %766 = vmatprep.subr.bf16.mxu0 0
      %767 = vmatpush1.bf16.msra.mxu0 0
      %768 = vmatprep.subr.bf16.mxu0 0
      %769 = vmatpush1.bf16.msra.mxu0 0
      %770 = vmatprep.subr.bf16.mxu0 0
      %771 = vmatpush1.bf16.msra.mxu0 0
      %772 = vmatprep.subr.bf16.mxu0 0
      %773 = vmatpush1.bf16.msra.mxu0 0
      %774 = vmatprep.subr.bf16.mxu0 0
      %775 = vmatpush1.bf16.msra.mxu0 0
      %776 = vmatprep.mubr.bf16.mxu0 0
      %777 = vmatmul.mubr.bf16.gmra.mrb[0].mxu0 %v736
      %v778 = vpop.f32.mrb[0].mxu0
      %v779 = vadd.f32 0.0, %v778
      %v780 = vpop.f32.mrb[0].mxu0
      %v781 = vpop.f32.mrb[0].mxu0
      %v782 = vadd.f32 0.0, %v781
      %v783 = vpop.f32.mrb[0].mxu0
      %784 = vmatprep.mubr.bf16.mxu0 0
      %785 = vmatmul.mubr.bf16.gmra.mrb[0].mxu0 %v739
      %v786 = vpop.f32.mrb[0].mxu0
      %v787 = vadd.f32 0.0, %v786
      %v788 = vpop.f32.mrb[0].mxu0
      %v789 = vpop.f32.mrb[0].mxu0
      %v790 = vpop.f32.mrb[0].mxu0
      %791 = vdwg.mxu0
      %v792 = vadd.f32 %v723, %v779
      %v793 = vadd.f32 %v724, %v782
      %v794 = vadd.f32 %v725, %v787
      %s795 = sadd.s32 %s248, 14
      %s796 = scalar_lea.vmem %s229, %s795
      %v797 = vld [vmem:[%s796] sm:$0xff]
      %v798 = vld [vmem:[%s796 + $0x8] sm:$0xff]
      %v799 = vld [vmem:[%s796 + $0x10] sm:$0xff]
      %v800 = vpack.c.bf16 %v798, %v797
      %v801 = vpack.c.bf16 %v799, %v799
      %s802 = scalar_lea.vmem %s1, 32
      %v803 = vld [vmem:[%s802] sm:$0xf]
      %v805 = vsel %vm265, %v800, 0
      %v808 = vsel %vm265, %v801, 0
      %v811 = vsel %vm272, %v803, 0
      %813 = vmatprep.subr.bf16.mxu0 0
      %814 = vmatpush1.bf16.msra.mxu0 %v811
      %815 = vmatprep.subr.bf16.mxu0 0
      %816 = vmatpush1.bf16.msra.mxu0 0
      %817 = vmatprep.subr.bf16.mxu0 0
      %818 = vmatpush1.bf16.msra.mxu0 0
      %819 = vmatprep.subr.bf16.mxu0 0
      %820 = vmatpush1.bf16.msra.mxu0 0
      %821 = vmatprep.subr.bf16.mxu0 0
      %822 = vmatpush1.bf16.msra.mxu0 0
      %823 = vmatprep.subr.bf16.mxu0 0
      %824 = vmatpush1.bf16.msra.mxu0 0
      %825 = vmatprep.subr.bf16.mxu0 0
      %826 = vmatpush1.bf16.msra.mxu0 0
      %827 = vmatprep.subr.bf16.mxu0 0
      %828 = vmatpush1.bf16.msra.mxu0 0
      %829 = vmatprep.subr.bf16.mxu0 0
      %830 = vmatpush1.bf16.msra.mxu0 0
      %831 = vmatprep.subr.bf16.mxu0 0
      %832 = vmatpush1.bf16.msra.mxu0 0
      %833 = vmatprep.subr.bf16.mxu0 0
      %834 = vmatpush1.bf16.msra.mxu0 0
      %835 = vmatprep.subr.bf16.mxu0 0
      %836 = vmatpush1.bf16.msra.mxu0 0
      %837 = vmatprep.subr.bf16.mxu0 0
      %838 = vmatpush1.bf16.msra.mxu0 0
      %839 = vmatprep.subr.bf16.mxu0 0
      %840 = vmatpush1.bf16.msra.mxu0 0
      %841 = vmatprep.subr.bf16.mxu0 0
      %842 = vmatpush1.bf16.msra.mxu0 0
      %843 = vmatprep.subr.bf16.mxu0 0
      %844 = vmatpush1.bf16.msra.mxu0 0
      %845 = vmatprep.mubr.bf16.mxu0 0
      %846 = vmatmul.mubr.bf16.gmra.mrb[0].mxu0 %v805
      %v847 = vpop.f32.mrb[0].mxu0
      %v848 = vadd.f32 0.0, %v847
      %v849 = vpop.f32.mrb[0].mxu0
      %v850 = vpop.f32.mrb[0].mxu0
      %v851 = vadd.f32 0.0, %v850
      %v852 = vpop.f32.mrb[0].mxu0
      %853 = vmatprep.mubr.bf16.mxu0 0
      %854 = vmatmul.mubr.bf16.gmra.mrb[0].mxu0 %v808
      %v855 = vpop.f32.mrb[0].mxu0
      %v856 = vadd.f32 0.0, %v855
      %v857 = vpop.f32.mrb[0].mxu0
      %v858 = vpop.f32.mrb[0].mxu0
      %v859 = vpop.f32.mrb[0].mxu0
      %860 = vdwg.mxu0
      %v861 = vadd.f32 %v792, %v848
      %v862 = vadd.f32 %v793, %v851
      %v863 = vadd.f32 %v794, %v856
      %v864 = vld [vmem:[%s2] sm:$0x1]
      %v866 = vlaneseq
      %v867 = vshrl.u32 %v866, 7
      %v868 = vsub.s32 0, %v867
      %v869 = vrot.slane %v864, %v868
      %v871 = vadd.f32 %v861, %v869
      %v872 = vadd.f32 %v862, %v869
      %v873 = vadd.f32 %v863, %v869
      %v874 = vld [vmem:[%s236] sm:$0xff]
      %v875 = vld [vmem:[%s236 + $0x8] sm:$0xff]
      %v876 = vld [vmem:[%s236 + $0x10] sm:$0xff]
      %v877 = vadd.f32 %v871, %v874
      %v878 = vadd.f32 %v872, %v875
      %v879 = vadd.f32 %v873, %v876
      %880 = vst [vmem:[%s244] sm:$0xff] %v877
      %881 = vst [vmem:[%s244 + $0x8] sm:$0xff] %v878
      %882 = vst [vmem:[%s244 + $0x10] sm:$0xff] %v879
      %s883 = sadd.s32 %s19, %s20
      %s884 = smul.u32 3, %s883
      %p885 = scmp.lt.s32.totalorder %s884, 5
      %s886 = scalar_select %p885, %s884, 5
      %s887 = smul.addr %s886, 8
      %s888 = scalar_lea.vmem %s4, %s887
      // Predicated region
      $region37: #{adapter_forward.19} parent=35 // pred_check
        %p889 = pneg %p143
      $region38: #{adapter_forward.19} parent=35 // pred_check_branch
        %891 = sbr.rel (%p889) target = $region40
      $region39: #{adapter_forward.19} parent=35 // pred_region
        %s892 = sadd.s32 %s19, %s20
        %s893 = smul.u32 3, %s892
      $region40: #{adapter_forward.19} parent=35 // pred_fallthru
        _
    $region36: #{adapter_forward.19} parent=5 // pred_fallthru
      _
    %p894 = scmp.le.s32.totalorder 2, %s10
    // Predicated region
    $region41: #{adapter_forward.19} parent=5 // pred_check
      %p895 = pneg %p894
    $region42: #{adapter_forward.19} parent=5 // pred_check_branch
      %897 = sbr.rel (%p895) target = $region44
    $region43: #{adapter_forward.19} parent=5 // pred_region
      %s898 = ssub.s32 %s10, 2
      // Predicated region
      $region45: #{adapter_forward.19} parent=43 // pred_check
        %p899 = pneg %p149
      $region46: #{adapter_forward.19} parent=43 // pred_check_branch
        %901 = sbr.rel (%p899) target = $region48
      $region47: #{adapter_forward.19} parent=43 // pred_region
        %s902 = sadd.s32 %s21, %s22
        %s903 = smul.u32 3, %s902
        %p904 = scmp.lt.s32.totalorder %s903, 5
        %s905 = scalar_select %p904, %s903, 5
        %s906 = smul.addr %s905, 8
        %s907 = scalar_lea.vmem %s4, %s906
      $region48: #{adapter_forward.19} parent=43 // pred_fallthru
        _
    $region44: #{adapter_forward.19} parent=5 // pred_fallthru
      _
  $region6: #{adapter_forward.19} parent=0 // loop_footer
    %s14 = sadd.s32 1, %s10
  $region7: #{adapter_forward.19} parent=0 // loop_footer_branch
    %9 = sbr.rel target = $region3
  $region8: #{adapter_forward.19} parent=0 // loop_exit
    _

// kernel: adapter_forward.17
$region0: #{adapter_forward.17}
  #allocation0 [shape = 'u32[]', space=smem, size = 0x4, offset = 0x4, fixed_abs, tag = 'smem constant byte address 0x4 - core index']
  #allocation1 [shape = 'u32[144,128]{1,0:T(1,128)}', space=vmem, size = 0x12000, scoped, tag = 'internal scratch']
  %s0 = inlined_call_operand.vmem [shape: f32[80,8], index: 0, kind: input, shape index: {}]
  %s1 = inlined_call_operand.vmem [shape: bf16[9,8,128], index: 1, kind: input, shape index: {}]
  %s2 = inlined_call_operand.vmem [shape: f32[1,128], index: 2, kind: input, shape index: {}]
  %s3 = inlined_call_operand.vmem [shape: f32[48,128], index: 3, kind: output, shape index: {}]
  %s4 = sld [smem:[#allocation0]]
  $region45: #{adapter_forward.17} parent=0
    _
  %s6 = ssub.s32 1, %s4
  %s7 = scalar_select 0, %s6, %s4
  loop: start=0, step=1, limit=4
  $region2: #{adapter_forward.17} parent=0 // loop_pre_header
    _
  $region3: #{adapter_forward.17} parent=0 // loop_header
    %s9 = sphi 0, %s13
    %p10 = scmp.ge.s32.totalorder %s9, 4
    %s16 = sphi 0, %s28
    %s17 = sphi 0, %s24
    %s18 = sphi 0, %s16
    %s19 = sphi 0, %s17
    %s20 = sphi 0, %s18
    %s21 = sphi 0, %s19
    %s31 = sphi 0, %s33
    %s34 = sphi 0, %s31
    %s35 = sphi 0, %s34
    %s51 = sphi 0, %s35
    %s55 = sphi 0, %s55
    %s57 = sphi 0, %s55
    %s58 = sphi 0, %s57
    %s72 = sphi 0, %s58
    %s76 = sphi 0, %s76
    %s78 = sphi 0, %s76
    %s79 = sphi 0, %s78
    %s93 = sphi 0, %s79
    %s101 = sphi 0, %s103
    %s104 = sphi 0, %s101
    %s105 = sphi 0, %s104
    %s121 = sphi 0, %s105
  $region4: #{adapter_forward.17} parent=0 // loop_header_branch
    %12 = sbr.rel (%p10) target = $region8
  $region5: #{adapter_forward.17} parent=0 // loop_body
    %s14 = ssub.s32 %s9, 1
    %s15 = ssub.s32 %s9, 2
    %s22 = sadd.s32 1, %s17
    %p23 = scmp.ge.s32.totalorder %s22, 1
    %s24 = scalar_select %p23, 0, %s22
    %s25 = sadd.s32 1, %s16
    %s26 = scalar_select %p23, %s25, %s16
    %p27 = scmp.ge.s32.totalorder %s26, 2
    %s28 = scalar_select %p27, 0, %s26
    %s29 = ssub.s32 %s16, %s28
    %p30 = scmp.eq.s32.totalorder %s29, 0
    %s32 = sadd.s32 %s31, 1
    %s33 = scalar_select %p30, %s31, %s32
    %p36 = pneg %p30
    %p37 = scmp.eq.s32.totalorder %s9, 1
    %p38 = por %p36, %p37
    %p39 = scmp.ne.s32.totalorder %s31, %s34
    %p40 = scmp.eq.s32.totalorder %s9, 0
    %p41 = por %p39, %p40
    %p42 = scmp.ne.s32.totalorder %s31, %s34
    %p43 = scmp.eq.s32.totalorder %s14, 1
    %p44 = por %p42, %p43
    %p45 = scmp.ne.s32.totalorder %s34, %s35
    %p46 = scmp.eq.s32.totalorder %s14, 0
    %p47 = por %p45, %p46
    %p48 = scmp.ne.s32.totalorder %s34, %s35
    %p49 = scmp.eq.s32.totalorder %s15, 1
    %p50 = por %p48, %p49
    %p52 = scmp.ne.s32.totalorder %s35, %s51
    %p53 = scmp.eq.s32.totalorder %s15, 0
    %p54 = por %p52, %p53
    %s56 = sadd.s32 %s55, 1
    %p59 = scmp.eq.s32.totalorder %s9, 1
    %p60 = scmp.ne.s32.totalorder %s55, %s57
    %p61 = scmp.eq.s32.totalorder %s9, 0
    %p62 = por %p60, %p61
    %p63 = scmp.ne.s32.totalorder %s55, %s57
    %p64 = scmp.eq.s32.totalorder %s14, 1
    %p65 = por %p63, %p64
    %p66 = scmp.ne.s32.totalorder %s57, %s58
    %p67 = scmp.eq.s32.totalorder %s14, 0
    %p68 = por %p66, %p67
    %p69 = scmp.ne.s32.totalorder %s57, %s58
    %p70 = scmp.eq.s32.totalorder %s15, 1
    %p71 = por %p69, %p70
    %p73 = scmp.ne.s32.totalorder %s58, %s72
    %p74 = scmp.eq.s32.totalorder %s15, 0
    %p75 = por %p73, %p74
    %s77 = sadd.s32 %s76, 1
    %p80 = scmp.eq.s32.totalorder %s9, 1
    %p81 = scmp.ne.s32.totalorder %s76, %s78
    %p82 = scmp.eq.s32.totalorder %s9, 0
    %p83 = por %p81, %p82
    %p84 = scmp.ne.s32.totalorder %s76, %s78
    %p85 = scmp.eq.s32.totalorder %s14, 1
    %p86 = por %p84, %p85
    %p87 = scmp.ne.s32.totalorder %s78, %s79
    %p88 = scmp.eq.s32.totalorder %s14, 0
    %p89 = por %p87, %p88
    %p90 = scmp.ne.s32.totalorder %s78, %s79
    %p91 = scmp.eq.s32.totalorder %s15, 1
    %p92 = por %p90, %p91
    %p94 = scmp.ne.s32.totalorder %s79, %s93
    %p95 = scmp.eq.s32.totalorder %s15, 0
    %p96 = por %p94, %p95
    %s97 = sadd.s32 %s16, %s17
    %s98 = sadd.s32 %s28, %s24
    %s99 = ssub.s32 %s97, %s98
    %p100 = scmp.eq.s32.totalorder %s99, 0
    %s102 = sadd.s32 %s101, 1
    %s103 = scalar_select %p100, %s101, %s102
    %p106 = pneg %p100
    %p107 = scmp.eq.s32.totalorder %s9, 1
    %p108 = por %p106, %p107
    %p109 = scmp.ne.s32.totalorder %s101, %s104
    %p110 = scmp.eq.s32.totalorder %s9, 0
    %p111 = por %p109, %p110
    %p112 = scmp.ne.s32.totalorder %s101, %s104
    %p113 = scmp.eq.s32.totalorder %s14, 1
    %p114 = por %p112, %p113
    %p115 = scmp.ne.s32.totalorder %s104, %s105
    %p116 = scmp.eq.s32.totalorder %s14, 0
    %p117 = por %p115, %p116
    %p118 = scmp.ne.s32.totalorder %s104, %s105
    %p119 = scmp.eq.s32.totalorder %s15, 1
    %p120 = por %p118, %p119
    %p122 = scmp.ne.s32.totalorder %s105, %s121
    %p123 = scmp.eq.s32.totalorder %s15, 0
    %p124 = por %p122, %p123
    %p125 = scmp.le.s32.totalorder 1, %s9
    %p126 = scmp.lt.s32.totalorder %s9, 3
    %p127 = pnand %p125, %p126
    %p128 = pneg %p127
    // Predicated region
    $region9: #{adapter_forward.17} parent=5 // pred_check
      _
    $region10: #{adapter_forward.17} parent=5 // pred_check_branch
      %130 = sbr.rel (%p127) target = $region12
    $region11: #{adapter_forward.17} parent=5 // pred_region
      %s131 = ssub.s32 %s9, 1
      // Predicated region
      $region13: #{adapter_forward.17} parent=11 // pred_check
        %p132 = pneg %p68
      $region14: #{adapter_forward.17} parent=11 // pred_check_branch
        %134 = sbr.rel (%p132) target = $region16
      $region15: #{adapter_forward.17} parent=11 // pred_region
        _
      $region16: #{adapter_forward.17} parent=11 // pred_fallthru
        _
      // Predicated region
      $region17: #{adapter_forward.17} parent=11 // pred_check
        %p135 = pneg %p89
      $region18: #{adapter_forward.17} parent=11 // pred_check_branch
        %137 = sbr.rel (%p135) target = $region20
      $region19: #{adapter_forward.17} parent=11 // pred_region
        _
      $region20: #{adapter_forward.17} parent=11 // pred_fallthru
        _
    $region12: #{adapter_forward.17} parent=5 // pred_fallthru
      _
    %p138 = scmp.lt.s32.totalorder %s9, 2
    // Predicated region
    $region21: #{adapter_forward.17} parent=5 // pred_check
      %p139 = pneg %p138
    $region22: #{adapter_forward.17} parent=5 // pred_check_branch
      %141 = sbr.rel (%p139) target = $region24
    $region23: #{adapter_forward.17} parent=5 // pred_region
      // Predicated region
      $region25: #{adapter_forward.17} parent=23 // pred_check
        %p142 = pneg %p41
      $region26: #{adapter_forward.17} parent=23 // pred_check_branch
        %144 = sbr.rel (%p142) target = $region28
      $region27: #{adapter_forward.17} parent=23 // pred_region
        %s145 = smul.u32 5, %s16
        %p146 = scmp.lt.s32.totalorder %s145, 9
        %s147 = scalar_select %p146, %s145, 9
        %s148 = smul.addr %s147, 8
        %s149 = scalar_lea.vmem %s0, %s148
        %s150 = smul.u32 5, %s16
      $region28: #{adapter_forward.17} parent=23 // pred_fallthru
        _
    $region24: #{adapter_forward.17} parent=5 // pred_fallthru
      _
    %p151 = scmp.le.s32.totalorder 1, %s9
    %p152 = scmp.lt.s32.totalorder %s9, 3
    %p153 = pnand %p151, %p152
    %p154 = pneg %p153
    // Predicated region
    $region29: #{adapter_forward.17} parent=5 // pred_check
      _
    $region30: #{adapter_forward.17} parent=5 // pred_check_branch
      %156 = sbr.rel (%p153) target = $region32
    $region31: #{adapter_forward.17} parent=5 // pred_region
      %s157 = ssub.s32 %s9, 1
      %s158 = smul.u32 5, %s18
      %p159 = scmp.lt.s32.totalorder %s158, 9
      %s160 = scalar_select %p159, %s158, 9
      %s161 = smul.addr %s160, 8
      %s162 = scalar_lea.vmem %s0, %s161
      %p163 = pneg %p47
      %p164 = pneg %p44
      %p165 = pneg %p68
      %p166 = pneg %p65
      %p167 = pneg %p89
      %p168 = pneg %p86
      %p169 = pneg %p117
      %p170 = pneg %p114
      %s171 = sadd.s32 %s18, %s19
      %s172 = smul.u32 3, %s171
      %p173 = scmp.lt.s32.totalorder %s172, 5
      %s174 = scalar_select %p173, %s172, 5
      %s175 = smul.addr %s174, 8
      %s176 = scalar_lea.vmem %s3, %s175
      %s177 = smul.u32 5, %s18
      %p178 = scmp.lt.s32.totalorder %s177, 9
      %s179 = scalar_select %p178, %s177, 9
      %s180 = smul.addr %s179, 8
      %s181 = scalar_lea.vmem %s0, %s180
      %s182 = smul.u32 5, %s18
      %s183 = sadd.s32 %s18, %s19
      %s184 = smul.u32 3, %s183
      %p185 = scmp.lt.s32.totalorder %s184, 5
      %s186 = scalar_select %p185, %s184, 5
      %s187 = smul.addr %s186, 8
      %s188 = scalar_lea.vmem %s3, %s187
      %s189 = sadd.s32 %s18, %s19
      %s190 = smul.u32 3, %s189
      %s192 = smul.u32 %s19, 24
      %s193 = scalar_lea.vmem %s181, %s192
      %v194 = vld [vmem:[%s193] sm:$0xff]
      %v195 = vld [vmem:[%s193 + $0x8] sm:$0xff]
      %v196 = vld [vmem:[%s193 + $0x10] sm:$0xff]
      %v197 = vpack.c.bf16 %v195, %v194
      %v198 = vpack.c.bf16 %v196, %v196
      %v199 = vld [vmem:[%s1] sm:$0xf]
      %s200 = sadd.s32 %s192, 1
      %s201 = scalar_lea.vmem %s181, %s200
      %v202 = vld [vmem:[%s201] sm:$0xff]
      %v203 = vld [vmem:[%s201 + $0x8] sm:$0xff]
      %v204 = vld [vmem:[%s201 + $0x10] sm:$0xff]
      %v205 = vpack.c.bf16 %v203, %v202
      %v206 = vpack.c.bf16 %v204, %v204
      %s207 = scalar_lea.vmem %s1, 4
      %v208 = vld [vmem:[%s207] sm:$0xf]
      %vm209 = vcmask 64512
      %v211 = vsel %vm209, %v205, 0
      %v214 = vsel %vm209, %v206, 0
      %vm216 = vcmask 1043456
      %v218 = vsel %vm216, %v208, 0
      %220 = vmatprep.subr.bf16.mxu0 0
      %221 = vmatpush1.bf16.msra.mxu0 %v218
      %222 = vmatprep.subr.bf16.mxu0 0
      %223 = vmatpush1.bf16.msra.mxu0 0
      %224 = vmatprep.subr.bf16.mxu0 0
      %225 = vmatpush1.bf16.msra.mxu0 0
      %226 = vmatprep.subr.bf16.mxu0 0
      %227 = vmatpush1.bf16.msra.mxu0 0
      %228 = vmatprep.subr.bf16.mxu0 0
      %229 = vmatpush1.bf16.msra.mxu0 0
      %230 = vmatprep.subr.bf16.mxu0 0
      %231 = vmatpush1.bf16.msra.mxu0 0
      %232 = vmatprep.subr.bf16.mxu0 0
      %233 = vmatpush1.bf16.msra.mxu0 0
      %234 = vmatprep.subr.bf16.mxu0 0
      %235 = vmatpush1.bf16.msra.mxu0 0
      %236 = vmatprep.subr.bf16.mxu0 0
      %237 = vmatpush1.bf16.msra.mxu0 0
      %238 = vmatprep.subr.bf16.mxu0 0
      %239 = vmatpush1.bf16.msra.mxu0 0
      %240 = vmatprep.subr.bf16.mxu0 0
      %241 = vmatpush1.bf16.msra.mxu0 0
      %242 = vmatprep.subr.bf16.mxu0 0
      %243 = vmatpush1.bf16.msra.mxu0 0
      %244 = vmatprep.subr.bf16.mxu0 0
      %245 = vmatpush1.bf16.msra.mxu0 0
      %246 = vmatprep.subr.bf16.mxu0 0
      %247 = vmatpush1.bf16.msra.mxu0 0
      %248 = vmatprep.subr.bf16.mxu0 0
      %249 = vmatpush1.bf16.msra.mxu0 0
      %250 = vmatprep.subr.bf16.mxu0 0
      %251 = vmatpush1.bf16.msra.mxu0 0
      %252 = vmatprep.mubr.bf16.mxu0 0
      %253 = vmatmul.mubr.bf16.gmra.mrb[0].mxu0 %v211
      %v254 = vpop.f32.mrb[0].mxu0
      %v255 = vadd.f32 0.0, %v254
      %v256 = vpop.f32.mrb[0].mxu0
      %v257 = vpop.f32.mrb[0].mxu0
      %v258 = vadd.f32 0.0, %v257
      %v259 = vpop.f32.mrb[0].mxu0
      %260 = vmatprep.mubr.bf16.mxu0 0
      %261 = vmatmul.mubr.bf16.gmra.mrb[0].mxu0 %v214
      %v262 = vpop.f32.mrb[0].mxu0
      %v263 = vadd.f32 0.0, %v262
      %v264 = vpop.f32.mrb[0].mxu0
      %v265 = vpop.f32.mrb[0].mxu0
      %v266 = vpop.f32.mrb[0].mxu0
      %267 = vdwg.mxu0
      %v269 = vsel %vm209, %v197, 0
      %v272 = vsel %vm209, %v198, 0
      %v275 = vsel %vm216, %v199, 0
      %277 = vmatprep.subr.bf16.mxu0 0
      %278 = vmatpush1.bf16.msra.mxu0 %v275
      %279 = vmatprep.subr.bf16.mxu0 0
      %280 = vmatpush1.bf16.msra.mxu0 0
      %281 = vmatprep.subr.bf16.mxu0 0
      %282 = vmatpush1.bf16.msra.mxu0 0
      %283 = vmatprep.subr.bf16.mxu0 0
      %284 = vmatpush1.bf16.msra.mxu0 0
      %285 = vmatprep.subr.bf16.mxu0 0
      %286 = vmatpush1.bf16.msra.mxu0 0
      %287 = vmatprep.subr.bf16.mxu0 0
      %288 = vmatpush1.bf16.msra.mxu0 0
      %289 = vmatprep.subr.bf16.mxu0 0
      %290 = vmatpush1.bf16.msra.mxu0 0
      %291 = vmatprep.subr.bf16.mxu0 0
      %292 = vmatpush1.bf16.msra.mxu0 0
      %293 = vmatprep.subr.bf16.mxu0 0
      %294 = vmatpush1.bf16.msra.mxu0 0
      %295 = vmatprep.subr.bf16.mxu0 0
      %296 = vmatpush1.bf16.msra.mxu0 0
      %297 = vmatprep.subr.bf16.mxu0 0
      %298 = vmatpush1.bf16.msra.mxu0 0
      %299 = vmatprep.subr.bf16.mxu0 0
      %300 = vmatpush1.bf16.msra.mxu0 0
      %301 = vmatprep.subr.bf16.mxu0 0
      %302 = vmatpush1.bf16.msra.mxu0 0
      %303 = vmatprep.subr.bf16.mxu0 0
      %304 = vmatpush1.bf16.msra.mxu0 0
      %305 = vmatprep.subr.bf16.mxu0 0
      %306 = vmatpush1.bf16.msra.mxu0 0
      %307 = vmatprep.subr.bf16.mxu0 0
      %308 = vmatpush1.bf16.msra.mxu0 0
      %309 = vmatprep.mubr.bf16.mxu0 0
      %310 = vmatmul.mubr.bf16.gmra.mrb[0].mxu0 %v269
      %v311 = vpop.f32.mrb[0].mxu0
      %v312 = vadd.f32 %v255, %v311
      %v313 = vpop.f32.mrb[0].mxu0
      %v314 = vpop.f32.mrb[0].mxu0
      %v315 = vadd.f32 %v258, %v314
      %v316 = vpop.f32.mrb[0].mxu0
      %317 = vmatprep.mubr.bf16.mxu0 0
      %318 = vmatmul.mubr.bf16.gmra.mrb[0].mxu0 %v272
      %v319 = vpop.f32.mrb[0].mxu0
      %v320 = vadd.f32 %v263, %v319
      %v321 = vpop.f32.mrb[0].mxu0
      %v322 = vpop.f32.mrb[0].mxu0
      %v323 = vpop.f32.mrb[0].mxu0
      %324 = vdwg.mxu0
      %s325 = sadd.s32 %s192, 2
      %s326 = scalar_lea.vmem %s181, %s325
      %v327 = vld [vmem:[%s326] sm:$0xff]
      %v328 = vld [vmem:[%s326 + $0x8] sm:$0xff]
      %v329 = vld [vmem:[%s326 + $0x10] sm:$0xff]
      %v330 = vpack.c.bf16 %v328, %v327
      %v331 = vpack.c.bf16 %v329, %v329
      %s332 = scalar_lea.vmem %s1, 8
      %v333 = vld [vmem:[%s332] sm:$0xf]
      %v335 = vsel %vm209, %v330, 0
      %v338 = vsel %vm209, %v331, 0
      %v341 = vsel %vm216, %v333, 0
      %343 = vmatprep.subr.bf16.mxu0 0
      %344 = vmatpush1.bf16.msra.mxu0 %v341
      %345 = vmatprep.subr.bf16.mxu0 0
      %346 = vmatpush1.bf16.msra.mxu0 0
      %347 = vmatprep.subr.bf16.mxu0 0
      %348 = vmatpush1.bf16.msra.mxu0 0
      %349 = vmatprep.subr.bf16.mxu0 0
      %350 = vmatpush1.bf16.msra.mxu0 0
      %351 = vmatprep.subr.bf16.mxu0 0
      %352 = vmatpush1.bf16.msra.mxu0 0
      %353 = vmatprep.subr.bf16.mxu0 0
      %354 = vmatpush1.bf16.msra.mxu0 0
      %355 = vmatprep.subr.bf16.mxu0 0
      %356 = vmatpush1.bf16.msra.mxu0 0
      %357 = vmatprep.subr.bf16.mxu0 0
      %358 = vmatpush1.bf16.msra.mxu0 0
      %359 = vmatprep.subr.bf16.mxu0 0
      %360 = vmatpush1.bf16.msra.mxu0 0
      %361 = vmatprep.subr.bf16.mxu0 0
      %362 = vmatpush1.bf16.msra.mxu0 0
      %363 = vmatprep.subr.bf16.mxu0 0
      %364 = vmatpush1.bf16.msra.mxu0 0
      %365 = vmatprep.subr.bf16.mxu0 0
      %366 = vmatpush1.bf16.msra.mxu0 0
      %367 = vmatprep.subr.bf16.mxu0 0
      %368 = vmatpush1.bf16.msra.mxu0 0
      %369 = vmatprep.subr.bf16.mxu0 0
      %370 = vmatpush1.bf16.msra.mxu0 0
      %371 = vmatprep.subr.bf16.mxu0 0
      %372 = vmatpush1.bf16.msra.mxu0 0
      %373 = vmatprep.subr.bf16.mxu0 0
      %374 = vmatpush1.bf16.msra.mxu0 0
      %375 = vmatprep.mubr.bf16.mxu0 0
      %376 = vmatmul.mubr.bf16.gmra.mrb[0].mxu0 %v335
      %v377 = vpop.f32.mrb[0].mxu0
      %v378 = vadd.f32 0.0, %v377
      %v379 = vpop.f32.mrb[0].mxu0
      %v380 = vpop.f32.mrb[0].mxu0
      %v381 = vadd.f32 0.0, %v380
      %v382 = vpop.f32.mrb[0].mxu0
      %383 = vmatprep.mubr.bf16.mxu0 0
      %384 = vmatmul.mubr.bf16.gmra.mrb[0].mxu0 %v338
      %v385 = vpop.f32.mrb[0].mxu0
      %v386 = vadd.f32 0.0, %v385
      %v387 = vpop.f32.mrb[0].mxu0
      %v388 = vpop.f32.mrb[0].mxu0
      %v389 = vpop.f32.mrb[0].mxu0
      %390 = vdwg.mxu0
      %v391 = vadd.f32 %v312, %v378
      %v392 = vadd.f32 %v315, %v381
      %v393 = vadd.f32 %v320, %v386
      %s394 = sadd.s32 %s192, 6
      %s395 = scalar_lea.vmem %s181, %s394
      %v396 = vld [vmem:[%s395] sm:$0xff]
      %v397 = vld [vmem:[%s395 + $0x8] sm:$0xff]
      %v398 = vld [vmem:[%s395 + $0x10] sm:$0xff]
      %v399 = vpack.c.bf16 %v397, %v396
      %v400 = vpack.c.bf16 %v398, %v398
      %s401 = scalar_lea.vmem %s1, 12
      %v402 = vld [vmem:[%s401] sm:$0xf]
      %v404 = vsel %vm209, %v399, 0
      %v407 = vsel %vm209, %v400, 0
      %v410 = vsel %vm216, %v402, 0
      %412 = vmatprep.subr.bf16.mxu0 0
      %413 = vmatpush1.bf16.msra.mxu0 %v410
      %414 = vmatprep.subr.bf16.mxu0 0
      %415 = vmatpush1.bf16.msra.mxu0 0
      %416 = vmatprep.subr.bf16.mxu0 0
      %417 = vmatpush1.bf16.msra.mxu0 0
      %418 = vmatprep.subr.bf16.mxu0 0
      %419 = vmatpush1.bf16.msra.mxu0 0
      %420 = vmatprep.subr.bf16.mxu0 0
      %421 = vmatpush1.bf16.msra.mxu0 0
      %422 = vmatprep.subr.bf16.mxu0 0
      %423 = vmatpush1.bf16.msra.mxu0 0
      %424 = vmatprep.subr.bf16.mxu0 0
      %425 = vmatpush1.bf16.msra.mxu0 0
      %426 = vmatprep.subr.bf16.mxu0 0
      %427 = vmatpush1.bf16.msra.mxu0 0
      %428 = vmatprep.subr.bf16.mxu0 0
      %429 = vmatpush1.bf16.msra.mxu0 0
      %430 = vmatprep.subr.bf16.mxu0 0
      %431 = vmatpush1.bf16.msra.mxu0 0
      %432 = vmatprep.subr.bf16.mxu0 0
      %433 = vmatpush1.bf16.msra.mxu0 0
      %434 = vmatprep.subr.bf16.mxu0 0
      %435 = vmatpush1.bf16.msra.mxu0 0
      %436 = vmatprep.subr.bf16.mxu0 0
      %437 = vmatpush1.bf16.msra.mxu0 0
      %438 = vmatprep.subr.bf16.mxu0 0
      %439 = vmatpush1.bf16.msra.mxu0 0
      %440 = vmatprep.subr.bf16.mxu0 0
      %441 = vmatpush1.bf16.msra.mxu0 0
      %442 = vmatprep.subr.bf16.mxu0 0
      %443 = vmatpush1.bf16.msra.mxu0 0
      %444 = vmatprep.mubr.bf16.mxu0 0
      %445 = vmatmul.mubr.bf16.gmra.mrb[0].mxu0 %v404
      %v446 = vpop.f32.mrb[0].mxu0
      %v447 = vadd.f32 0.0, %v446
      %v448 = vpop.f32.mrb[0].mxu0
      %v449 = vpop.f32.mrb[0].mxu0
      %v450 = vadd.f32 0.0, %v449
      %v451 = vpop.f32.mrb[0].mxu0
      %452 = vmatprep.mubr.bf16.mxu0 0
      %453 = vmatmul.mubr.bf16.gmra.mrb[0].mxu0 %v407
      %v454 = vpop.f32.mrb[0].mxu0
      %v455 = vadd.f32 0.0, %v454
      %v456 = vpop.f32.mrb[0].mxu0
      %v457 = vpop.f32.mrb[0].mxu0
      %v458 = vpop.f32.mrb[0].mxu0
      %459 = vdwg.mxu0
      %v460 = vadd.f32 %v391, %v447
      %v461 = vadd.f32 %v392, %v450
      %v462 = vadd.f32 %v393, %v455
      %s463 = sadd.s32 %s192, 7
      %s464 = scalar_lea.vmem %s181, %s463
      %v465 = vld [vmem:[%s464] sm:$0xff]
      %v466 = vld [vmem:[%s464 + $0x8] sm:$0xff]
      %v467 = vld [vmem:[%s464 + $0x10] sm:$0xff]
      %v468 = vpack.c.bf16 %v466, %v465
      %v469 = vpack.c.bf16 %v467, %v467
      %s470 = scalar_lea.vmem %s1, 16
      %v471 = vld [vmem:[%s470] sm:$0xf]
      %v473 = vsel %vm209, %v468, 0
      %v476 = vsel %vm209, %v469, 0
      %v479 = vsel %vm216, %v471, 0
      %481 = vmatprep.subr.bf16.mxu0 0
      %482 = vmatpush1.bf16.msra.mxu0 %v479
      %483 = vmatprep.subr.bf16.mxu0 0
      %484 = vmatpush1.bf16.msra.mxu0 0
      %485 = vmatprep.subr.bf16.mxu0 0
      %486 = vmatpush1.bf16.msra.mxu0 0
      %487 = vmatprep.subr.bf16.mxu0 0
      %488 = vmatpush1.bf16.msra.mxu0 0
      %489 = vmatprep.subr.bf16.mxu0 0
      %490 = vmatpush1.bf16.msra.mxu0 0
      %491 = vmatprep.subr.bf16.mxu0 0
      %492 = vmatpush1.bf16.msra.mxu0 0
      %493 = vmatprep.subr.bf16.mxu0 0
      %494 = vmatpush1.bf16.msra.mxu0 0
      %495 = vmatprep.subr.bf16.mxu0 0
      %496 = vmatpush1.bf16.msra.mxu0 0
      %497 = vmatprep.subr.bf16.mxu0 0
      %498 = vmatpush1.bf16.msra.mxu0 0
      %499 = vmatprep.subr.bf16.mxu0 0
      %500 = vmatpush1.bf16.msra.mxu0 0
      %501 = vmatprep.subr.bf16.mxu0 0
      %502 = vmatpush1.bf16.msra.mxu0 0
      %503 = vmatprep.subr.bf16.mxu0 0
      %504 = vmatpush1.bf16.msra.mxu0 0
      %505 = vmatprep.subr.bf16.mxu0 0
      %506 = vmatpush1.bf16.msra.mxu0 0
      %507 = vmatprep.subr.bf16.mxu0 0
      %508 = vmatpush1.bf16.msra.mxu0 0
      %509 = vmatprep.subr.bf16.mxu0 0
      %510 = vmatpush1.bf16.msra.mxu0 0
      %511 = vmatprep.subr.bf16.mxu0 0
      %512 = vmatpush1.bf16.msra.mxu0 0
      %513 = vmatprep.mubr.bf16.mxu0 0
      %514 = vmatmul.mubr.bf16.gmra.mrb[0].mxu0 %v473
      %v515 = vpop.f32.mrb[0].mxu0
      %v516 = vadd.f32 0.0, %v515
      %v517 = vpop.f32.mrb[0].mxu0
      %v518 = vpop.f32.mrb[0].mxu0
      %v519 = vadd.f32 0.0, %v518
      %v520 = vpop.f32.mrb[0].mxu0
      %521 = vmatprep.mubr.bf16.mxu0 0
      %522 = vmatmul.mubr.bf16.gmra.mrb[0].mxu0 %v476
      %v523 = vpop.f32.mrb[0].mxu0
      %v524 = vadd.f32 0.0, %v523
      %v525 = vpop.f32.mrb[0].mxu0
      %v526 = vpop.f32.mrb[0].mxu0
      %v527 = vpop.f32.mrb[0].mxu0
      %528 = vdwg.mxu0
      %v529 = vadd.f32 %v460, %v516
      %v530 = vadd.f32 %v461, %v519
      %v531 = vadd.f32 %v462, %v524
      %s532 = sadd.s32 %s192, 8
      %s533 = scalar_lea.vmem %s181, %s532
      %v534 = vld [vmem:[%s533] sm:$0xff]
      %v535 = vld [vmem:[%s533 + $0x8] sm:$0xff]
      %v536 = vld [vmem:[%s533 + $0x10] sm:$0xff]
      %v537 = vpack.c.bf16 %v535, %v534
      %v538 = vpack.c.bf16 %v536, %v536
      %s539 = scalar_lea.vmem %s1, 20
      %v540 = vld [vmem:[%s539] sm:$0xf]
      %v542 = vsel %vm209, %v537, 0
      %v545 = vsel %vm209, %v538, 0
      %v548 = vsel %vm216, %v540, 0
      %550 = vmatprep.subr.bf16.mxu0 0
      %551 = vmatpush1.bf16.msra.mxu0 %v548
      %552 = vmatprep.subr.bf16.mxu0 0
      %553 = vmatpush1.bf16.msra.mxu0 0
      %554 = vmatprep.subr.bf16.mxu0 0
      %555 = vmatpush1.bf16.msra.mxu0 0
      %556 = vmatprep.subr.bf16.mxu0 0
      %557 = vmatpush1.bf16.msra.mxu0 0
      %558 = vmatprep.subr.bf16.mxu0 0
      %559 = vmatpush1.bf16.msra.mxu0 0
      %560 = vmatprep.subr.bf16.mxu0 0
      %561 = vmatpush1.bf16.msra.mxu0 0
      %562 = vmatprep.subr.bf16.mxu0 0
      %563 = vmatpush1.bf16.msra.mxu0 0
      %564 = vmatprep.subr.bf16.mxu0 0
      %565 = vmatpush1.bf16.msra.mxu0 0
      %566 = vmatprep.subr.bf16.mxu0 0
      %567 = vmatpush1.bf16.msra.mxu0 0
      %568 = vmatprep.subr.bf16.mxu0 0
      %569 = vmatpush1.bf16.msra.mxu0 0
      %570 = vmatprep.subr.bf16.mxu0 0
      %571 = vmatpush1.bf16.msra.mxu0 0
      %572 = vmatprep.subr.bf16.mxu0 0
      %573 = vmatpush1.bf16.msra.mxu0 0
      %574 = vmatprep.subr.bf16.mxu0 0
      %575 = vmatpush1.bf16.msra.mxu0 0
      %576 = vmatprep.subr.bf16.mxu0 0
      %577 = vmatpush1.bf16.msra.mxu0 0
      %578 = vmatprep.subr.bf16.mxu0 0
      %579 = vmatpush1.bf16.msra.mxu0 0
      %580 = vmatprep.subr.bf16.mxu0 0
      %581 = vmatpush1.bf16.msra.mxu0 0
      %582 = vmatprep.mubr.bf16.mxu0 0
      %583 = vmatmul.mubr.bf16.gmra.mrb[0].mxu0 %v542
      %v584 = vpop.f32.mrb[0].mxu0
      %v585 = vadd.f32 0.0, %v584
      %v586 = vpop.f32.mrb[0].mxu0
      %v587 = vpop.f32.mrb[0].mxu0
      %v588 = vadd.f32 0.0, %v587
      %v589 = vpop.f32.mrb[0].mxu0
      %590 = vmatprep.mubr.bf16.mxu0 0
      %591 = vmatmul.mubr.bf16.gmra.mrb[0].mxu0 %v545
      %v592 = vpop.f32.mrb[0].mxu0
      %v593 = vadd.f32 0.0, %v592
      %v594 = vpop.f32.mrb[0].mxu0
      %v595 = vpop.f32.mrb[0].mxu0
      %v596 = vpop.f32.mrb[0].mxu0
      %597 = vdwg.mxu0
      %v598 = vadd.f32 %v529, %v585
      %v599 = vadd.f32 %v530, %v588
      %v600 = vadd.f32 %v531, %v593
      %s601 = sadd.s32 %s192, 12
      %s602 = scalar_lea.vmem %s181, %s601
      %v603 = vld [vmem:[%s602] sm:$0xff]
      %v604 = vld [vmem:[%s602 + $0x8] sm:$0xff]
      %v605 = vld [vmem:[%s602 + $0x10] sm:$0xff]
      %v606 = vpack.c.bf16 %v604, %v603
      %v607 = vpack.c.bf16 %v605, %v605
      %s608 = scalar_lea.vmem %s1, 24
      %v609 = vld [vmem:[%s608] sm:$0xf]
      %v611 = vsel %vm209, %v606, 0
      %v614 = vsel %vm209, %v607, 0
      %v617 = vsel %vm216, %v609, 0
      %619 = vmatprep.subr.bf16.mxu0 0
      %620 = vmatpush1.bf16.msra.mxu0 %v617
      %621 = vmatprep.subr.bf16.mxu0 0
      %622 = vmatpush1.bf16.msra.mxu0 0
      %623 = vmatprep.subr.bf16.mxu0 0
      %624 = vmatpush1.bf16.msra.mxu0 0
      %625 = vmatprep.subr.bf16.mxu0 0
      %626 = vmatpush1.bf16.msra.mxu0 0
      %627 = vmatprep.subr.bf16.mxu0 0
      %628 = vmatpush1.bf16.msra.mxu0 0
      %629 = vmatprep.subr.bf16.mxu0 0
      %630 = vmatpush1.bf16.msra.mxu0 0
      %631 = vmatprep.subr.bf16.mxu0 0
      %632 = vmatpush1.bf16.msra.mxu0 0
      %633 = vmatprep.subr.bf16.mxu0 0
      %634 = vmatpush1.bf16.msra.mxu0 0
      %635 = vmatprep.subr.bf16.mxu0 0
      %636 = vmatpush1.bf16.msra.mxu0 0
      %637 = vmatprep.subr.bf16.mxu0 0
      %638 = vmatpush1.bf16.msra.mxu0 0
      %639 = vmatprep.subr.bf16.mxu0 0
      %640 = vmatpush1.bf16.msra.mxu0 0
      %641 = vmatprep.subr.bf16.mxu0 0
      %642 = vmatpush1.bf16.msra.mxu0 0
      %643 = vmatprep.subr.bf16.mxu0 0
      %644 = vmatpush1.bf16.msra.mxu0 0
      %645 = vmatprep.subr.bf16.mxu0 0
      %646 = vmatpush1.bf16.msra.mxu0 0
      %647 = vmatprep.subr.bf16.mxu0 0
      %648 = vmatpush1.bf16.msra.mxu0 0
      %649 = vmatprep.subr.bf16.mxu0 0
      %650 = vmatpush1.bf16.msra.mxu0 0
      %651 = vmatprep.mubr.bf16.mxu0 0
      %652 = vmatmul.mubr.bf16.gmra.mrb[0].mxu0 %v611
      %v653 = vpop.f32.mrb[0].mxu0
      %v654 = vadd.f32 0.0, %v653
      %v655 = vpop.f32.mrb[0].mxu0
      %v656 = vpop.f32.mrb[0].mxu0
      %v657 = vadd.f32 0.0, %v656
      %v658 = vpop.f32.mrb[0].mxu0
      %659 = vmatprep.mubr.bf16.mxu0 0
      %660 = vmatmul.mubr.bf16.gmra.mrb[0].mxu0 %v614
      %v661 = vpop.f32.mrb[0].mxu0
      %v662 = vadd.f32 0.0, %v661
      %v663 = vpop.f32.mrb[0].mxu0
      %v664 = vpop.f32.mrb[0].mxu0
      %v665 = vpop.f32.mrb[0].mxu0
      %666 = vdwg.mxu0
      %v667 = vadd.f32 %v598, %v654
      %v668 = vadd.f32 %v599, %v657
      %v669 = vadd.f32 %v600, %v662
      %s670 = sadd.s32 %s192, 13
      %s671 = scalar_lea.vmem %s181, %s670
      %v672 = vld [vmem:[%s671] sm:$0xff]
      %v673 = vld [vmem:[%s671 + $0x8] sm:$0xff]
      %v674 = vld [vmem:[%s671 + $0x10] sm:$0xff]
      %v675 = vpack.c.bf16 %v673, %v672
      %v676 = vpack.c.bf16 %v674, %v674
      %s677 = scalar_lea.vmem %s1, 28
      %v678 = vld [vmem:[%s677] sm:$0xf]
      %v680 = vsel %vm209, %v675, 0
      %v683 = vsel %vm209, %v676, 0
      %v686 = vsel %vm216, %v678, 0
      %688 = vmatprep.subr.bf16.mxu0 0
      %689 = vmatpush1.bf16.msra.mxu0 %v686
      %690 = vmatprep.subr.bf16.mxu0 0
      %691 = vmatpush1.bf16.msra.mxu0 0
      %692 = vmatprep.subr.bf16.mxu0 0
      %693 = vmatpush1.bf16.msra.mxu0 0
      %694 = vmatprep.subr.bf16.mxu0 0
      %695 = vmatpush1.bf16.msra.mxu0 0
      %696 = vmatprep.subr.bf16.mxu0 0
      %697 = vmatpush1.bf16.msra.mxu0 0
      %698 = vmatprep.subr.bf16.mxu0 0
      %699 = vmatpush1.bf16.msra.mxu0 0
      %700 = vmatprep.subr.bf16.mxu0 0
      %701 = vmatpush1.bf16.msra.mxu0 0
      %702 = vmatprep.subr.bf16.mxu0 0
      %703 = vmatpush1.bf16.msra.mxu0 0
      %704 = vmatprep.subr.bf16.mxu0 0
      %705 = vmatpush1.bf16.msra.mxu0 0
      %706 = vmatprep.subr.bf16.mxu0 0
      %707 = vmatpush1.bf16.msra.mxu0 0
      %708 = vmatprep.subr.bf16.mxu0 0
      %709 = vmatpush1.bf16.msra.mxu0 0
      %710 = vmatprep.subr.bf16.mxu0 0
      %711 = vmatpush1.bf16.msra.mxu0 0
      %712 = vmatprep.subr.bf16.mxu0 0
      %713 = vmatpush1.bf16.msra.mxu0 0
      %714 = vmatprep.subr.bf16.mxu0 0
      %715 = vmatpush1.bf16.msra.mxu0 0
      %716 = vmatprep.subr.bf16.mxu0 0
      %717 = vmatpush1.bf16.msra.mxu0 0
      %718 = vmatprep.subr.bf16.mxu0 0
      %719 = vmatpush1.bf16.msra.mxu0 0
      %720 = vmatprep.mubr.bf16.mxu0 0
      %721 = vmatmul.mubr.bf16.gmra.mrb[0].mxu0 %v680
      %v722 = vpop.f32.mrb[0].mxu0
      %v723 = vadd.f32 0.0, %v722
      %v724 = vpop.f32.mrb[0].mxu0
      %v725 = vpop.f32.mrb[0].mxu0
      %v726 = vadd.f32 0.0, %v725
      %v727 = vpop.f32.mrb[0].mxu0
      %728 = vmatprep.mubr.bf16.mxu0 0
      %729 = vmatmul.mubr.bf16.gmra.mrb[0].mxu0 %v683
      %v730 = vpop.f32.mrb[0].mxu0
      %v731 = vadd.f32 0.0, %v730
      %v732 = vpop.f32.mrb[0].mxu0
      %v733 = vpop.f32.mrb[0].mxu0
      %v734 = vpop.f32.mrb[0].mxu0
      %735 = vdwg.mxu0
      %v736 = vadd.f32 %v667, %v723
      %v737 = vadd.f32 %v668, %v726
      %v738 = vadd.f32 %v669, %v731
      %s739 = sadd.s32 %s192, 14
      %s740 = scalar_lea.vmem %s181, %s739
      %v741 = vld [vmem:[%s740] sm:$0xff]
      %v742 = vld [vmem:[%s740 + $0x8] sm:$0xff]
      %v743 = vld [vmem:[%s740 + $0x10] sm:$0xff]
      %v744 = vpack.c.bf16 %v742, %v741
      %v745 = vpack.c.bf16 %v743, %v743
      %s746 = scalar_lea.vmem %s1, 32
      %v747 = vld [vmem:[%s746] sm:$0xf]
      %v749 = vsel %vm209, %v744, 0
      %v752 = vsel %vm209, %v745, 0
      %v755 = vsel %vm216, %v747, 0
      %757 = vmatprep.subr.bf16.mxu0 0
      %758 = vmatpush1.bf16.msra.mxu0 %v755
      %759 = vmatprep.subr.bf16.mxu0 0
      %760 = vmatpush1.bf16.msra.mxu0 0
      %761 = vmatprep.subr.bf16.mxu0 0
      %762 = vmatpush1.bf16.msra.mxu0 0
      %763 = vmatprep.subr.bf16.mxu0 0
      %764 = vmatpush1.bf16.msra.mxu0 0
      %765 = vmatprep.subr.bf16.mxu0 0
      %766 = vmatpush1.bf16.msra.mxu0 0
      %767 = vmatprep.subr.bf16.mxu0 0
      %768 = vmatpush1.bf16.msra.mxu0 0
      %769 = vmatprep.subr.bf16.mxu0 0
      %770 = vmatpush1.bf16.msra.mxu0 0
      %771 = vmatprep.subr.bf16.mxu0 0
      %772 = vmatpush1.bf16.msra.mxu0 0
      %773 = vmatprep.subr.bf16.mxu0 0
      %774 = vmatpush1.bf16.msra.mxu0 0
      %775 = vmatprep.subr.bf16.mxu0 0
      %776 = vmatpush1.bf16.msra.mxu0 0
      %777 = vmatprep.subr.bf16.mxu0 0
      %778 = vmatpush1.bf16.msra.mxu0 0
      %779 = vmatprep.subr.bf16.mxu0 0
      %780 = vmatpush1.bf16.msra.mxu0 0
      %781 = vmatprep.subr.bf16.mxu0 0
      %782 = vmatpush1.bf16.msra.mxu0 0
      %783 = vmatprep.subr.bf16.mxu0 0
      %784 = vmatpush1.bf16.msra.mxu0 0
      %785 = vmatprep.subr.bf16.mxu0 0
      %786 = vmatpush1.bf16.msra.mxu0 0
      %787 = vmatprep.subr.bf16.mxu0 0
      %788 = vmatpush1.bf16.msra.mxu0 0
      %789 = vmatprep.mubr.bf16.mxu0 0
      %790 = vmatmul.mubr.bf16.gmra.mrb[0].mxu0 %v749
      %v791 = vpop.f32.mrb[0].mxu0
      %v792 = vadd.f32 0.0, %v791
      %v793 = vpop.f32.mrb[0].mxu0
      %v794 = vpop.f32.mrb[0].mxu0
      %v795 = vadd.f32 0.0, %v794
      %v796 = vpop.f32.mrb[0].mxu0
      %797 = vmatprep.mubr.bf16.mxu0 0
      %798 = vmatmul.mubr.bf16.gmra.mrb[0].mxu0 %v752
      %v799 = vpop.f32.mrb[0].mxu0
      %v800 = vadd.f32 0.0, %v799
      %v801 = vpop.f32.mrb[0].mxu0
      %v802 = vpop.f32.mrb[0].mxu0
      %v803 = vpop.f32.mrb[0].mxu0
      %804 = vdwg.mxu0
      %v805 = vadd.f32 %v736, %v792
      %v806 = vadd.f32 %v737, %v795
      %v807 = vadd.f32 %v738, %v800
      %v808 = vld [vmem:[%s2] sm:$0x1]
      %v810 = vlaneseq
      %v811 = vshrl.u32 %v810, 7
      %v812 = vsub.s32 0, %v811
      %v813 = vrot.slane %v808, %v812
      %v815 = vadd.f32 %v805, %v813
      %v816 = vadd.f32 %v806, %v813
      %v817 = vadd.f32 %v807, %v813
      %v818 = vmax.f32 %v815, 0.0
      %v819 = vmax.f32 %v816, 0.0
      %v820 = vmax.f32 %v817, 0.0
      %821 = vst [vmem:[%s188] sm:$0xff] %v818
      %822 = vst [vmem:[%s188 + $0x8] sm:$0xff] %v819
      %823 = vst [vmem:[%s188 + $0x10] sm:$0xff] %v820
      %s824 = sadd.s32 %s18, %s19
      %s825 = smul.u32 3, %s824
      %p826 = scmp.lt.s32.totalorder %s825, 5
      %s827 = scalar_select %p826, %s825, 5
      %s828 = smul.addr %s827, 8
      %s829 = scalar_lea.vmem %s3, %s828
      // Predicated region
      $region33: #{adapter_forward.17} parent=31 // pred_check
        %p830 = pneg %p114
      $region34: #{adapter_forward.17} parent=31 // pred_check_branch
        %832 = sbr.rel (%p830) target = $region36
      $region35: #{adapter_forward.17} parent=31 // pred_region
        %s833 = sadd.s32 %s18, %s19
        %s834 = smul.u32 3, %s833
      $region36: #{adapter_forward.17} parent=31 // pred_fallthru
        _
    $region32: #{adapter_forward.17} parent=5 // pred_fallthru
      _
    %p835 = scmp.le.s32.totalorder 2, %s9
    // Predicated region
    $region37: #{adapter_forward.17} parent=5 // pred_check
      %p836 = pneg %p835
    $region38: #{adapter_forward.17} parent=5 // pred_check_branch
      %838 = sbr.rel (%p836) target = $region40
    $region39: #{adapter_forward.17} parent=5 // pred_region
      %s839 = ssub.s32 %s9, 2
      // Predicated region
      $region41: #{adapter_forward.17} parent=39 // pred_check
        %p840 = pneg %p120
      $region42: #{adapter_forward.17} parent=39 // pred_check_branch
        %842 = sbr.rel (%p840) target = $region44
      $region43: #{adapter_forward.17} parent=39 // pred_region
        %s843 = sadd.s32 %s20, %s21
        %s844 = smul.u32 3, %s843
        %p845 = scmp.lt.s32.totalorder %s844, 5
        %s846 = scalar_select %p845, %s844, 5
        %s847 = smul.addr %s846, 8
        %s848 = scalar_lea.vmem %s3, %s847
      $region44: #{adapter_forward.17} parent=39 // pred_fallthru
        _
    $region40: #{adapter_forward.17} parent=5 // pred_fallthru
      _
  $region6: #{adapter_forward.17} parent=0 // loop_footer
    %s13 = sadd.s32 1, %s9
  $region7: #{adapter_forward.17} parent=0 // loop_footer_branch
    %8 = sbr.rel target = $region3
  $region8: #{adapter_forward.17} parent=0 // loop_exit
    _

</llo_original>
